<compile_context>
chip_gen: v7x
topology: tpu7x:2x2x1
jax: 0.10.0
libtpu: 0.0.40
codegen_flags: <defaults>
</compile_context>

<pallas_src>
import functools

import numpy as np
import jax
import jax.numpy as jnp
from jax.experimental import pallas as pl
from jax.experimental.pallas import tpu as pltpu


@functools.partial(jax.jit, static_argnames=("stride", "padding", "output_padding"))
def conv_transpose2d_pallas(x, weight, bias, *, stride=1, padding=0, output_padding=0):
    """ConvTranspose2d forward. x: (N,Cin,H,W), weight: (Cin,Cout,K,K), bias: (Cout,).
    Returns (N,Cout,Ho,Wo), matching PyTorch semantics (dilation=1, groups=1)."""
    N, Cin, H, W = x.shape
    Cin_w, Cout, K, K2 = weight.shape
    assert Cin == Cin_w and K == K2
    s, p, op = int(stride), int(padding), int(output_padding)
    assert s >= 1 and p >= 0
    assert 0 <= op < s, "output_padding must be smaller than stride"
    Ho = (H - 1) * s - 2 * p + K + op
    Wo = (W - 1) * s - 2 * p + K + op
    assert Ho > 0 and Wo > 0, "hyperparameters give an empty output"

    nH = -(-Ho // s)                 # rows per row-phase (rounded up)
    nW = -(-Wo // s)                 # cols per col-phase (rounded up)
    Ho_pad, Wo_pad = nH * s, nW * s

    # Output phase ph (o % s == ph) pulls input offset d via kernel tap k = ph+p-d*s.
    def _offsets():
        offs = set()
        for ph in range(s):
            for k in range(K):
                if (ph + p - k) % s == 0:
                    offs.add((ph + p - k) // s)
        return sorted(offs) or [0]

    Dh = _offsets()
    Dw = _offsets()
    nDh, nDw = len(Dh), len(Dw)
    T = Cin * nDh * nDw              # stacked tap count (union over all phases)
    R = s * s * Cout                 # phase-major output rows of the weight matrix

    halo_t = max(0, -min(Dh)); halo_b = max(0, max(Dh) + nH - H)
    halo_l = max(0, -min(Dw)); halo_r = max(0, max(Dw) + nW - W)
    Hc, Wc = H + halo_t + halo_b, W + halo_l + halo_r
    needs_pad = (halo_t + halo_b + halo_l + halo_r) > 0

    # Host-side pre-gathered phase weights (static in s, p, K):
    #   Wbig[(r*s+q)*Cout+co, (ci*nDh+a)*nDw+b] = weight[ci,co, r+p-Dh[a]*s, q+p-Dw[b]*s]
    # when those kernel taps exist for that phase, else 0.
    ci_i = np.zeros((R, T), np.int32); co_i = np.zeros((R, T), np.int32)
    kh_i = np.zeros((R, T), np.int32); kw_i = np.zeros((R, T), np.int32)
    ok = np.zeros((R, T), bool)
    for r in range(s):
        for q in range(s):
            for co in range(Cout):
                row = (r * s + q) * Cout + co
                for ci in range(Cin):
                    for a, dh in enumerate(Dh):
                        for b, dw in enumerate(Dw):
                            col = (ci * nDh + a) * nDw + b
                            kh = r + p - dh * s
                            kw = q + p - dw * s
                            ci_i[row, col] = ci
                            co_i[row, col] = co
                            kh_i[row, col] = min(max(kh, 0), K - 1)
                            kw_i[row, col] = min(max(kw, 0), K - 1)
                            ok[row, col] = (0 <= kh < K) and (0 <= kw < K)
    w32 = jnp.asarray(weight, jnp.float32)
    wbig = jnp.where(jnp.asarray(ok), w32[ci_i, co_i, kh_i, kw_i], 0.0)    # (R, T)
    bias2 = jnp.tile(jnp.asarray(bias, jnp.float32), s * s)[:, None]       # (R, 1)

    # 0/1 expansion matrices: phase-q compact columns -> interleaved output columns.
    E_np = np.zeros((s, nW, Wo_pad), np.float32)
    for q in range(s):
        for mw in range(nW):
            E_np[q, mw, mw * s + q] = 1.0
    E = jnp.asarray(E_np)

    out_dtype = x.dtype

    def kernel(w_ref, b_ref, e_ref, x_ref, o_ref, xbuf_ref, x2_ref):
        # ---- fused halo pad: no wrapper-side jnp.pad / extra HBM copy ----------
        if needs_pad:
            xbuf_ref[...] = jnp.zeros((Cin, Hc, Wc), jnp.float32)
        xbuf_ref[:, halo_t:halo_t + H, halo_l:halo_l + W] = x_ref[...].astype(jnp.float32)

        # ---- gather the union of tap windows ONCE (shared by all phases) ------
        for ci in range(Cin):
            for a, dh in enumerate(Dh):
                rblk = xbuf_ref[ci, dh + halo_t:dh + halo_t + nH, :]        # (nH, Wc)
                for b, dw in enumerate(Dw):
                    t = (ci * nDh + a) * nDw + b
                    x2_ref[:, t, :] = rblk[:, dw + halo_l:dw + halo_l + nW]  # (nH, nW)

        x2 = x2_ref[...]                                                    # (nH, T, nW)
        wb = jnp.broadcast_to(w_ref[...], (nH, R, T))                       # hoisted once
        # One batched MXU contraction for every phase / channel / tap.
        y = jnp.einsum("hrt,htw->hrw", wb, x2,
                       preferred_element_type=jnp.float32)                  # (nH, R, nW)
        y = y + b_ref[...]                                                  # bias once

        # ---- W-phase interleave (tiny 0/1 matmuls) + static full-width stores --
        if s > 1:
            e_b = [jnp.broadcast_to(e_ref[q], (nH, nW, Wo_pad)) for q in range(s)]
        row_slabs = []
        for r in range(s):
            acc = None
            for q in range(s):
                base = (r * s + q) * Cout
                slab = y[:, base:base + Cout, :]                            # (nH, Cout, nW)
                if s == 1:
                    contrib = slab
                else:
                    contrib = jnp.einsum("hcw,hwo->hco", slab, e_b[q],
                                         preferred_element_type=jnp.float32)
                acc = contrib if acc is None else acc + contrib
            row_slabs.append(acc)                                           # (nH, Cout, Wo_pad)
        full = row_slabs[0] if s == 1 else jnp.concatenate(row_slabs, axis=-1)
        # full: (nH, Cout, s*Wo_pad) — store channel-major so NCHW is a free reshape.
        for co in range(Cout):
            o_ref[co, :, :] = full[:, co, :].astype(o_ref.dtype)

    out4 = pl.pallas_call(
        kernel,
        out_shape=jax.ShapeDtypeStruct((N, Cout, nH, s * Wo_pad), out_dtype),
        grid_spec=pltpu.PrefetchScalarGridSpec(
            num_scalar_prefetch=0,
            grid=(N,),
            in_specs=[
                pl.BlockSpec((R, T), lambda n: (0, 0)),                     # phase weights
                pl.BlockSpec((R, 1), lambda n: (0, 0)),                     # phase bias
                pl.BlockSpec((s, nW, Wo_pad), lambda n: (0, 0, 0)),         # expansion mats
                pl.BlockSpec((None, Cin, H, W), lambda n: (n, 0, 0, 0)),    # compact input
            ],
            out_specs=pl.BlockSpec((None, Cout, nH, s * Wo_pad),
                                   lambda n: (n, 0, 0, 0)),
            scratch_shapes=[
                pltpu.VMEM((Cin, Hc, Wc), jnp.float32),                     # halo-padded x
                pltpu.VMEM((nH, T, nW), jnp.float32),                       # stacked taps
            ],
        ),
        compiler_params=pltpu.CompilerParams(
            dimension_semantics=("parallel",),
            vmem_limit_bytes=32 * 1024 * 1024,
        ),
    )(wbig, bias2, E, x)

    # Free (contiguous) reshapes to NCHW; crop is a no-op when Ho,Wo are multiples of s.
    out = out4.reshape(N, Cout, nH, s, Wo_pad).reshape(N, Cout, Ho_pad, Wo_pad)
    return out[:, :, :Ho, :Wo]


def _ref_conv_transpose2d(x, w, b, stride, padding, output_padding):
    """Naive scatter reference mirroring nn.ConvTranspose2d exactly (numpy)."""
    N, Cin, H, W = x.shape
    _, Cout, K, _ = w.shape
    Ho = (H - 1) * stride - 2 * padding + K + output_padding
    Wo = (W - 1) * stride - 2 * padding + K + output_padding
    out = np.zeros((N, Cout, Ho, Wo), np.float32)
    for n in range(N):
        for ih in range(H):
            for iw in range(W):
                for kh in range(K):
                    for kw in range(K):
                        oh = ih * stride - padding + kh
                        ow = iw * stride - padding + kw
                        if 0 <= oh < Ho and 0 <= ow < Wo:
                            out[n, :, oh, ow] += w[:, :, kh, kw].T @ x[n, :, ih, iw]
    return out + b.reshape(1, Cout, 1, 1)


if __name__ == "__main__":
    # ConvTransposeLayer(input_channels=4, output_channels=8, kernel_size=3,
    #                    stride=2, padding=1, output_padding=1, bias=True)
    N, Cin, Cout, H, W, K = 2, 4, 8, 16, 16, 3
    stride, padding, output_padding = 2, 1, 1

    key = jax.random.PRNGKey(0)
    kx, kwt, kb = jax.random.split(key, 3)
    x = jax.random.normal(kx, (N, Cin, H, W), jnp.float32)
    weight = jax.random.normal(kwt, (Cin, Cout, K, K), jnp.float32) * 0.1   # (Cin,Cout,K,K)
    bias = jax.random.normal(kb, (Cout,), jnp.float32) * 0.1

    out = conv_transpose2d_pallas(x, weight, bias, stride=stride, padding=padding,
                                  output_padding=output_padding)
    out = jax.block_until_ready(out)

    ref = _ref_conv_transpose2d(np.asarray(x), np.asarray(weight), np.asarray(bias),
                                stride, padding, output_padding)
    assert out.shape == ref.shape, (out.shape, ref.shape)
    np.testing.assert_allclose(np.asarray(out), ref, rtol=1e-4, atol=1e-4)
    print("KERNEL_OK")
</pallas_src>

<mosaic_0001>
module attributes {stable_mosaic.version = 11 : i64} {
  func.func @kernel(%arg0: i32, %arg1: memref<32x16xf32, #tpu.memory_space<vmem>>, %arg2: memref<32x1xf32, #tpu.memory_space<vmem>>, %arg3: memref<2x16x32xf32, #tpu.memory_space<vmem>>, %arg4: memref<1x4x16x16xf32, #tpu.memory_space<vmem>>, %arg5: memref<1x8x16x64xf32, #tpu.memory_space<vmem>>, %arg6: memref<4x17x17xf32, #tpu.memory_space<vmem>>, %arg7: memref<16x16x16xf32, #tpu.memory_space<vmem>>) attributes {dimension_semantics = [#tpu.dimension_semantics<parallel>], iteration_bounds = array<i64: 2>, scalar_prefetch = 0 : i64, scratch_operands = 2 : i64, tpu.core_type = #tpu.core_type<tc>, window_params = [{pipeline_mode = #tpu.pipeline_mode<synchronous>, transform_indices = @transform_0, window_bounds = array<i64: 32, 16>}, {pipeline_mode = #tpu.pipeline_mode<synchronous>, transform_indices = @transform_1, window_bounds = array<i64: 32, 1>}, {pipeline_mode = #tpu.pipeline_mode<synchronous>, transform_indices = @transform_2, window_bounds = array<i64: 2, 16, 32>}, {transform_indices = @transform_3, window_bounds = array<i64: 1, 4, 16, 16>}, {transform_indices = @transform_4, window_bounds = array<i64: 1, 8, 16, 64>}]} {
    %cst = arith.constant 0.000000e+00 : f32
    %0 = vector.broadcast %cst : f32 to vector<4x17x17xf32>
    %c0 = arith.constant 0 : index
    %c0_0 = arith.constant 0 : index
    %c0_1 = arith.constant 0 : index
    %1 = vector.load %arg6[%c0, %c0_0, %c0_1] : memref<4x17x17xf32, #tpu.memory_space<vmem>>, vector<4x17x17xf32>
    tpu.vector_store %arg6[%c0, %c0_0, %c0_1], %0 {strides = array<i32>} : memref<4x17x17xf32, #tpu.memory_space<vmem>>, vector<4x17x17xf32>,
    %c0_2 = arith.constant 0 : index
    %c0_3 = arith.constant 0 : index
    %c0_4 = arith.constant 0 : index
    %c0_5 = arith.constant 0 : index
    %2 = vector.load %arg4[%c0_2, %c0_3, %c0_4, %c0_5] : memref<1x4x16x16xf32, #tpu.memory_space<vmem>>, vector<1x4x16x16xf32>
    %3 = vector.shape_cast %2 : vector<1x4x16x16xf32> to vector<4x16x16xf32>
    %c0_6 = arith.constant 0 : index
    %c0_7 = arith.constant 0 : index
    %c0_8 = arith.constant 0 : index
    %4 = vector.load %arg6[%c0_6, %c0_7, %c0_8] : memref<4x17x17xf32, #tpu.memory_space<vmem>>, vector<4x16x16xf32>
    tpu.vector_store %arg6[%c0_6, %c0_7, %c0_8], %3 {strides = array<i32>} : memref<4x17x17xf32, #tpu.memory_space<vmem>>, vector<4x16x16xf32>,
    %c0_9 = arith.constant 0 : index
    %c0_10 = arith.constant 0 : index
    %c0_11 = arith.constant 0 : index
    %5 = vector.load %arg6[%c0_9, %c0_10, %c0_11] : memref<4x17x17xf32, #tpu.memory_space<vmem>>, vector<1x16x17xf32>
    %6 = vector.shape_cast %5 : vector<1x16x17xf32> to vector<16x17xf32>
    %7 = vector.extract_strided_slice %6 {offsets = [0, 0], sizes = [16, 16], strides = [1, 1]} : vector<16x17xf32> to vector<16x16xf32>
    %c0_12 = arith.constant 0 : index
    %c0_13 = arith.constant 0 : index
    %c0_14 = arith.constant 0 : index
    %8 = vector.load %arg7[%c0_12, %c0_13, %c0_14] : memref<16x16x16xf32, #tpu.memory_space<vmem>>, vector<16x1x16xf32>
    %9 = vector.shape_cast %8 : vector<16x1x16xf32> to vector<16x16xf32>
    %10 = vector.shape_cast %7 : vector<16x16xf32> to vector<16x1x16xf32>
    tpu.vector_store %arg7[%c0_12, %c0_13, %c0_14], %10 {strides = array<i32>} : memref<16x16x16xf32, #tpu.memory_space<vmem>>, vector<16x1x16xf32>,
    %11 = vector.extract_strided_slice %6 {offsets = [0, 1], sizes = [16, 16], strides = [1, 1]} : vector<16x17xf32> to vector<16x16xf32>
    %c0_15 = arith.constant 0 : index
    %c1 = arith.constant 1 : index
    %c0_16 = arith.constant 0 : index
    %12 = vector.load %arg7[%c0_15, %c1, %c0_16] : memref<16x16x16xf32, #tpu.memory_space<vmem>>, vector<16x1x16xf32>
    %13 = vector.shape_cast %12 : vector<16x1x16xf32> to vector<16x16xf32>
    %14 = vector.shape_cast %11 : vector<16x16xf32> to vector<16x1x16xf32>
    tpu.vector_store %arg7[%c0_15, %c1, %c0_16], %14 {strides = array<i32>} : memref<16x16x16xf32, #tpu.memory_space<vmem>>, vector<16x1x16xf32>,
    %c0_17 = arith.constant 0 : index
    %c1_18 = arith.constant 1 : index
    %c0_19 = arith.constant 0 : index
    %15 = vector.load %arg6[%c0_17, %c1_18, %c0_19] : memref<4x17x17xf32, #tpu.memory_space<vmem>>, vector<1x16x17xf32>
    %16 = vector.shape_cast %15 : vector<1x16x17xf32> to vector<16x17xf32>
    %17 = vector.extract_strided_slice %16 {offsets = [0, 0], sizes = [16, 16], strides = [1, 1]} : vector<16x17xf32> to vector<16x16xf32>
    %c0_20 = arith.constant 0 : index
    %c2 = arith.constant 2 : index
    %c0_21 = arith.constant 0 : index
    %18 = vector.load %arg7[%c0_20, %c2, %c0_21] : memref<16x16x16xf32, #tpu.memory_space<vmem>>, vector<16x1x16xf32>
    %19 = vector.shape_cast %18 : vector<16x1x16xf32> to vector<16x16xf32>
    %20 = vector.shape_cast %17 : vector<16x16xf32> to vector<16x1x16xf32>
    tpu.vector_store %arg7[%c0_20, %c2, %c0_21], %20 {strides = array<i32>} : memref<16x16x16xf32, #tpu.memory_space<vmem>>, vector<16x1x16xf32>,
    %21 = vector.extract_strided_slice %16 {offsets = [0, 1], sizes = [16, 16], strides = [1, 1]} : vector<16x17xf32> to vector<16x16xf32>
    %c0_22 = arith.constant 0 : index
    %c3 = arith.constant 3 : index
    %c0_23 = arith.constant 0 : index
    %22 = vector.load %arg7[%c0_22, %c3, %c0_23] : memref<16x16x16xf32, #tpu.memory_space<vmem>>, vector<16x1x16xf32>
    %23 = vector.shape_cast %22 : vector<16x1x16xf32> to vector<16x16xf32>
    %24 = vector.shape_cast %21 : vector<16x16xf32> to vector<16x1x16xf32>
    tpu.vector_store %arg7[%c0_22, %c3, %c0_23], %24 {strides = array<i32>} : memref<16x16x16xf32, #tpu.memory_space<vmem>>, vector<16x1x16xf32>,
    %c1_24 = arith.constant 1 : index
    %c0_25 = arith.constant 0 : index
    %c0_26 = arith.constant 0 : index
    %25 = vector.load %arg6[%c1_24, %c0_25, %c0_26] : memref<4x17x17xf32, #tpu.memory_space<vmem>>, vector<1x16x17xf32>
    %26 = vector.shape_cast %25 : vector<1x16x17xf32> to vector<16x17xf32>
    %27 = vector.extract_strided_slice %26 {offsets = [0, 0], sizes = [16, 16], strides = [1, 1]} : vector<16x17xf32> to vector<16x16xf32>
    %c0_27 = arith.constant 0 : index
    %c4 = arith.constant 4 : index
    %c0_28 = arith.constant 0 : index
    %28 = vector.load %arg7[%c0_27, %c4, %c0_28] : memref<16x16x16xf32, #tpu.memory_space<vmem>>, vector<16x1x16xf32>
    %29 = vector.shape_cast %28 : vector<16x1x16xf32> to vector<16x16xf32>
    %30 = vector.shape_cast %27 : vector<16x16xf32> to vector<16x1x16xf32>
    tpu.vector_store %arg7[%c0_27, %c4, %c0_28], %30 {strides = array<i32>} : memref<16x16x16xf32, #tpu.memory_space<vmem>>, vector<16x1x16xf32>,
    %31 = vector.extract_strided_slice %26 {offsets = [0, 1], sizes = [16, 16], strides = [1, 1]} : vector<16x17xf32> to vector<16x16xf32>
    %c0_29 = arith.constant 0 : index
    %c5 = arith.constant 5 : index
    %c0_30 = arith.constant 0 : index
    %32 = vector.load %arg7[%c0_29, %c5, %c0_30] : memref<16x16x16xf32, #tpu.memory_space<vmem>>, vector<16x1x16xf32>
    %33 = vector.shape_cast %32 : vector<16x1x16xf32> to vector<16x16xf32>
    %34 = vector.shape_cast %31 : vector<16x16xf32> to vector<16x1x16xf32>
    tpu.vector_store %arg7[%c0_29, %c5, %c0_30], %34 {strides = array<i32>} : memref<16x16x16xf32, #tpu.memory_space<vmem>>, vector<16x1x16xf32>,
    %c1_31 = arith.constant 1 : index
    %c1_32 = arith.constant 1 : index
    %c0_33 = arith.constant 0 : index
    %35 = vector.load %arg6[%c1_31, %c1_32, %c0_33] : memref<4x17x17xf32, #tpu.memory_space<vmem>>, vector<1x16x17xf32>
    %36 = vector.shape_cast %35 : vector<1x16x17xf32> to vector<16x17xf32>
    %37 = vector.extract_strided_slice %36 {offsets = [0, 0], sizes = [16, 16], strides = [1, 1]} : vector<16x17xf32> to vector<16x16xf32>
    %c0_34 = arith.constant 0 : index
    %c6 = arith.constant 6 : index
    %c0_35 = arith.constant 0 : index
    %38 = vector.load %arg7[%c0_34, %c6, %c0_35] : memref<16x16x16xf32, #tpu.memory_space<vmem>>, vector<16x1x16xf32>
    %39 = vector.shape_cast %38 : vector<16x1x16xf32> to vector<16x16xf32>
    %40 = vector.shape_cast %37 : vector<16x16xf32> to vector<16x1x16xf32>
    tpu.vector_store %arg7[%c0_34, %c6, %c0_35], %40 {strides = array<i32>} : memref<16x16x16xf32, #tpu.memory_space<vmem>>, vector<16x1x16xf32>,
    %41 = vector.extract_strided_slice %36 {offsets = [0, 1], sizes = [16, 16], strides = [1, 1]} : vector<16x17xf32> to vector<16x16xf32>
    %c0_36 = arith.constant 0 : index
    %c7 = arith.constant 7 : index
    %c0_37 = arith.constant 0 : index
    %42 = vector.load %arg7[%c0_36, %c7, %c0_37] : memref<16x16x16xf32, #tpu.memory_space<vmem>>, vector<16x1x16xf32>
    %43 = vector.shape_cast %42 : vector<16x1x16xf32> to vector<16x16xf32>
    %44 = vector.shape_cast %41 : vector<16x16xf32> to vector<16x1x16xf32>
    tpu.vector_store %arg7[%c0_36, %c7, %c0_37], %44 {strides = array<i32>} : memref<16x16x16xf32, #tpu.memory_space<vmem>>, vector<16x1x16xf32>,
    %c2_38 = arith.constant 2 : index
    %c0_39 = arith.constant 0 : index
    %c0_40 = arith.constant 0 : index
    %45 = vector.load %arg6[%c2_38, %c0_39, %c0_40] : memref<4x17x17xf32, #tpu.memory_space<vmem>>, vector<1x16x17xf32>
    %46 = vector.shape_cast %45 : vector<1x16x17xf32> to vector<16x17xf32>
    %47 = vector.extract_strided_slice %46 {offsets = [0, 0], sizes = [16, 16], strides = [1, 1]} : vector<16x17xf32> to vector<16x16xf32>
    %c0_41 = arith.constant 0 : index
    %c8 = arith.constant 8 : index
    %c0_42 = arith.constant 0 : index
    %48 = vector.load %arg7[%c0_41, %c8, %c0_42] : memref<16x16x16xf32, #tpu.memory_space<vmem>>, vector<16x1x16xf32>
    %49 = vector.shape_cast %48 : vector<16x1x16xf32> to vector<16x16xf32>
    %50 = vector.shape_cast %47 : vector<16x16xf32> to vector<16x1x16xf32>
    tpu.vector_store %arg7[%c0_41, %c8, %c0_42], %50 {strides = array<i32>} : memref<16x16x16xf32, #tpu.memory_space<vmem>>, vector<16x1x16xf32>,
    %51 = vector.extract_strided_slice %46 {offsets = [0, 1], sizes = [16, 16], strides = [1, 1]} : vector<16x17xf32> to vector<16x16xf32>
    %c0_43 = arith.constant 0 : index
    %c9 = arith.constant 9 : index
    %c0_44 = arith.constant 0 : index
    %52 = vector.load %arg7[%c0_43, %c9, %c0_44] : memref<16x16x16xf32, #tpu.memory_space<vmem>>, vector<16x1x16xf32>
    %53 = vector.shape_cast %52 : vector<16x1x16xf32> to vector<16x16xf32>
    %54 = vector.shape_cast %51 : vector<16x16xf32> to vector<16x1x16xf32>
    tpu.vector_store %arg7[%c0_43, %c9, %c0_44], %54 {strides = array<i32>} : memref<16x16x16xf32, #tpu.memory_space<vmem>>, vector<16x1x16xf32>,
    %c2_45 = arith.constant 2 : index
    %c1_46 = arith.constant 1 : index
    %c0_47 = arith.constant 0 : index
    %55 = vector.load %arg6[%c2_45, %c1_46, %c0_47] : memref<4x17x17xf32, #tpu.memory_space<vmem>>, vector<1x16x17xf32>
    %56 = vector.shape_cast %55 : vector<1x16x17xf32> to vector<16x17xf32>
    %57 = vector.extract_strided_slice %56 {offsets = [0, 0], sizes = [16, 16], strides = [1, 1]} : vector<16x17xf32> to vector<16x16xf32>
    %c0_48 = arith.constant 0 : index
    %c10 = arith.constant 10 : index
    %c0_49 = arith.constant 0 : index
    %58 = vector.load %arg7[%c0_48, %c10, %c0_49] : memref<16x16x16xf32, #tpu.memory_space<vmem>>, vector<16x1x16xf32>
    %59 = vector.shape_cast %58 : vector<16x1x16xf32> to vector<16x16xf32>
    %60 = vector.shape_cast %57 : vector<16x16xf32> to vector<16x1x16xf32>
    tpu.vector_store %arg7[%c0_48, %c10, %c0_49], %60 {strides = array<i32>} : memref<16x16x16xf32, #tpu.memory_space<vmem>>, vector<16x1x16xf32>,
    %61 = vector.extract_strided_slice %56 {offsets = [0, 1], sizes = [16, 16], strides = [1, 1]} : vector<16x17xf32> to vector<16x16xf32>
    %c0_50 = arith.constant 0 : index
    %c11 = arith.constant 11 : index
    %c0_51 = arith.constant 0 : index
    %62 = vector.load %arg7[%c0_50, %c11, %c0_51] : memref<16x16x16xf32, #tpu.memory_space<vmem>>, vector<16x1x16xf32>
    %63 = vector.shape_cast %62 : vector<16x1x16xf32> to vector<16x16xf32>
    %64 = vector.shape_cast %61 : vector<16x16xf32> to vector<16x1x16xf32>
    tpu.vector_store %arg7[%c0_50, %c11, %c0_51], %64 {strides = array<i32>} : memref<16x16x16xf32, #tpu.memory_space<vmem>>, vector<16x1x16xf32>,
    %c3_52 = arith.constant 3 : index
    %c0_53 = arith.constant 0 : index
    %c0_54 = arith.constant 0 : index
    %65 = vector.load %arg6[%c3_52, %c0_53, %c0_54] : memref<4x17x17xf32, #tpu.memory_space<vmem>>, vector<1x16x17xf32>
    %66 = vector.shape_cast %65 : vector<1x16x17xf32> to vector<16x17xf32>
    %67 = vector.extract_strided_slice %66 {offsets = [0, 0], sizes = [16, 16], strides = [1, 1]} : vector<16x17xf32> to vector<16x16xf32>
    %c0_55 = arith.constant 0 : index
    %c12 = arith.constant 12 : index
    %c0_56 = arith.constant 0 : index
    %68 = vector.load %arg7[%c0_55, %c12, %c0_56] : memref<16x16x16xf32, #tpu.memory_space<vmem>>, vector<16x1x16xf32>
    %69 = vector.shape_cast %68 : vector<16x1x16xf32> to vector<16x16xf32>
    %70 = vector.shape_cast %67 : vector<16x16xf32> to vector<16x1x16xf32>
    tpu.vector_store %arg7[%c0_55, %c12, %c0_56], %70 {strides = array<i32>} : memref<16x16x16xf32, #tpu.memory_space<vmem>>, vector<16x1x16xf32>,
    %71 = vector.extract_strided_slice %66 {offsets = [0, 1], sizes = [16, 16], strides = [1, 1]} : vector<16x17xf32> to vector<16x16xf32>
    %c0_57 = arith.constant 0 : index
    %c13 = arith.constant 13 : index
    %c0_58 = arith.constant 0 : index
    %72 = vector.load %arg7[%c0_57, %c13, %c0_58] : memref<16x16x16xf32, #tpu.memory_space<vmem>>, vector<16x1x16xf32>
    %73 = vector.shape_cast %72 : vector<16x1x16xf32> to vector<16x16xf32>
    %74 = vector.shape_cast %71 : vector<16x16xf32> to vector<16x1x16xf32>
    tpu.vector_store %arg7[%c0_57, %c13, %c0_58], %74 {strides = array<i32>} : memref<16x16x16xf32, #tpu.memory_space<vmem>>, vector<16x1x16xf32>,
    %c3_59 = arith.constant 3 : index
    %c1_60 = arith.constant 1 : index
    %c0_61 = arith.constant 0 : index
    %75 = vector.load %arg6[%c3_59, %c1_60, %c0_61] : memref<4x17x17xf32, #tpu.memory_space<vmem>>, vector<1x16x17xf32>
    %76 = vector.shape_cast %75 : vector<1x16x17xf32> to vector<16x17xf32>
    %77 = vector.extract_strided_slice %76 {offsets = [0, 0], sizes = [16, 16], strides = [1, 1]} : vector<16x17xf32> to vector<16x16xf32>
    %c0_62 = arith.constant 0 : index
    %c14 = arith.constant 14 : index
    %c0_63 = arith.constant 0 : index
    %78 = vector.load %arg7[%c0_62, %c14, %c0_63] : memref<16x16x16xf32, #tpu.memory_space<vmem>>, vector<16x1x16xf32>
    %79 = vector.shape_cast %78 : vector<16x1x16xf32> to vector<16x16xf32>
    %80 = vector.shape_cast %77 : vector<16x16xf32> to vector<16x1x16xf32>
    tpu.vector_store %arg7[%c0_62, %c14, %c0_63], %80 {strides = array<i32>} : memref<16x16x16xf32, #tpu.memory_space<vmem>>, vector<16x1x16xf32>,
    %81 = vector.extract_strided_slice %76 {offsets = [0, 1], sizes = [16, 16], strides = [1, 1]} : vector<16x17xf32> to vector<16x16xf32>
    %c0_64 = arith.constant 0 : index
    %c15 = arith.constant 15 : index
    %c0_65 = arith.constant 0 : index
    %82 = vector.load %arg7[%c0_64, %c15, %c0_65] : memref<16x16x16xf32, #tpu.memory_space<vmem>>, vector<16x1x16xf32>
    %83 = vector.shape_cast %82 : vector<16x1x16xf32> to vector<16x16xf32>
    %84 = vector.shape_cast %81 : vector<16x16xf32> to vector<16x1x16xf32>
    tpu.vector_store %arg7[%c0_64, %c15, %c0_65], %84 {strides = array<i32>} : memref<16x16x16xf32, #tpu.memory_space<vmem>>, vector<16x1x16xf32>,
    %c0_66 = arith.constant 0 : index
    %c0_67 = arith.constant 0 : index
    %c0_68 = arith.constant 0 : index
    %85 = vector.load %arg7[%c0_66, %c0_67, %c0_68] : memref<16x16x16xf32, #tpu.memory_space<vmem>>, vector<16x16x16xf32>
    %c0_69 = arith.constant 0 : index
    %c0_70 = arith.constant 0 : index
    %86 = vector.load %arg1[%c0_69, %c0_70] : memref<32x16xf32, #tpu.memory_space<vmem>>, vector<32x16xf32>
    %87 = vector.shape_cast %86 : vector<32x16xf32> to vector<1x32x16xf32>
    %88 = vector.broadcast %87 : vector<1x32x16xf32> to vector<16x32x16xf32>
    "tpu.trace_start"() <{level = 10 : i32, message = "hrt,htw->hrw"}> : () -> ()
    %cst_71 = arith.constant dense<0.000000e+00> : vector<16x32x16xf32>
    %89 = tpu.matmul %88, %85, %cst_71 {dimension_numbers = #tpu.dot_dimension_numbers<[2], [1], [1], [2], [0, 0, 0, 1, 1, 2], [0], [0]>} : vector<16x32x16xf32>, vector<16x16x16xf32>, vector<16x32x16xf32> -> vector<16x32x16xf32>
    "tpu.trace_stop"() : () -> ()
    %c0_72 = arith.constant 0 : index
    %c0_73 = arith.constant 0 : index
    %90 = vector.load %arg2[%c0_72, %c0_73] : memref<32x1xf32, #tpu.memory_space<vmem>>, vector<32x1xf32>
    %91 = vector.shape_cast %90 : vector<32x1xf32> to vector<1x32x1xf32>
    %92 = vector.broadcast %91 : vector<1x32x1xf32> to vector<16x32x16xf32>
    %93 = arith.addf %89, %92 : vector<16x32x16xf32>
    %c0_74 = arith.constant 0 : index
    %c0_75 = arith.constant 0 : index
    %c0_76 = arith.constant 0 : index
    %94 = vector.load %arg3[%c0_74, %c0_75, %c0_76] : memref<2x16x32xf32, #tpu.memory_space<vmem>>, vector<1x16x32xf32>
    %95 = vector.shape_cast %94 : vector<1x16x32xf32> to vector<16x32xf32>
    %96 = vector.shape_cast %95 : vector<16x32xf32> to vector<1x16x32xf32>
    %97 = vector.broadcast %96 : vector<1x16x32xf32> to vector<16x16x32xf32>
    %c1_77 = arith.constant 1 : index
    %c0_78 = arith.constant 0 : index
    %c0_79 = arith.constant 0 : index
    %98 = vector.load %arg3[%c1_77, %c0_78, %c0_79] : memref<2x16x32xf32, #tpu.memory_space<vmem>>, vector<1x16x32xf32>
    %99 = vector.shape_cast %98 : vector<1x16x32xf32> to vector<16x32xf32>
    %100 = vector.shape_cast %99 : vector<16x32xf32> to vector<1x16x32xf32>
    %101 = vector.broadcast %100 : vector<1x16x32xf32> to vector<16x16x32xf32>
    %102 = vector.extract_strided_slice %93 {offsets = [0, 0, 0], sizes = [16, 8, 16], strides = [1, 1, 1]} : vector<16x32x16xf32> to vector<16x8x16xf32>
    "tpu.trace_start"() <{level = 10 : i32, message = "hcw,hwo->hco"}> : () -> ()
    %cst_80 = arith.constant dense<0.000000e+00> : vector<16x8x32xf32>
    %103 = tpu.matmul %102, %97, %cst_80 {dimension_numbers = #tpu.dot_dimension_numbers<[2], [1], [1], [2], [0, 0, 0, 1, 1, 2], [0], [0]>} : vector<16x8x16xf32>, vector<16x16x32xf32>, vector<16x8x32xf32> -> vector<16x8x32xf32>
    "tpu.trace_stop"() : () -> ()
    %104 = vector.extract_strided_slice %93 {offsets = [0, 8, 0], sizes = [16, 8, 16], strides = [1, 1, 1]} : vector<16x32x16xf32> to vector<16x8x16xf32>
    "tpu.trace_start"() <{level = 10 : i32, message = "hcw,hwo->hco"}> : () -> ()
    %cst_81 = arith.constant dense<0.000000e+00> : vector<16x8x32xf32>
    %105 = tpu.matmul %104, %101, %cst_81 {dimension_numbers = #tpu.dot_dimension_numbers<[2], [1], [1], [2], [0, 0, 0, 1, 1, 2], [0], [0]>} : vector<16x8x16xf32>, vector<16x16x32xf32>, vector<16x8x32xf32> -> vector<16x8x32xf32>
    "tpu.trace_stop"() : () -> ()
    %106 = arith.addf %103, %105 : vector<16x8x32xf32>
    %107 = vector.extract_strided_slice %93 {offsets = [0, 16, 0], sizes = [16, 8, 16], strides = [1, 1, 1]} : vector<16x32x16xf32> to vector<16x8x16xf32>
    "tpu.trace_start"() <{level = 10 : i32, message = "hcw,hwo->hco"}> : () -> ()
    %cst_82 = arith.constant dense<0.000000e+00> : vector<16x8x32xf32>
    %108 = tpu.matmul %107, %97, %cst_82 {dimension_numbers = #tpu.dot_dimension_numbers<[2], [1], [1], [2], [0, 0, 0, 1, 1, 2], [0], [0]>} : vector<16x8x16xf32>, vector<16x16x32xf32>, vector<16x8x32xf32> -> vector<16x8x32xf32>
    "tpu.trace_stop"() : () -> ()
    %109 = vector.extract_strided_slice %93 {offsets = [0, 24, 0], sizes = [16, 8, 16], strides = [1, 1, 1]} : vector<16x32x16xf32> to vector<16x8x16xf32>
    "tpu.trace_start"() <{level = 10 : i32, message = "hcw,hwo->hco"}> : () -> ()
    %cst_83 = arith.constant dense<0.000000e+00> : vector<16x8x32xf32>
    %110 = tpu.matmul %109, %101, %cst_83 {dimension_numbers = #tpu.dot_dimension_numbers<[2], [1], [1], [2], [0, 0, 0, 1, 1, 2], [0], [0]>} : vector<16x8x16xf32>, vector<16x16x32xf32>, vector<16x8x32xf32> -> vector<16x8x32xf32>
    "tpu.trace_stop"() : () -> ()
    %111 = arith.addf %108, %110 : vector<16x8x32xf32>
    %112 = tpu.concatenate %106, %111 in 2 : vector<16x8x32xf32>, vector<16x8x32xf32> -> vector<16x8x64xf32>
    %113 = vector.extract_strided_slice %112 {offsets = [0, 0, 0], sizes = [16, 1, 64], strides = [1, 1, 1]} : vector<16x8x64xf32> to vector<16x1x64xf32>
    %114 = vector.shape_cast %113 : vector<16x1x64xf32> to vector<16x64xf32>
    %c0_84 = arith.constant 0 : index
    %c0_85 = arith.constant 0 : index
    %c0_86 = arith.constant 0 : index
    %c0_87 = arith.constant 0 : index
    %115 = vector.load %arg5[%c0_84, %c0_85, %c0_86, %c0_87] : memref<1x8x16x64xf32, #tpu.memory_space<vmem>>, vector<1x1x16x64xf32>
    %116 = vector.shape_cast %115 : vector<1x1x16x64xf32> to vector<16x64xf32>
    %117 = vector.shape_cast %114 : vector<16x64xf32> to vector<1x1x16x64xf32>
    tpu.vector_store %arg5[%c0_84, %c0_85, %c0_86, %c0_87], %117 {strides = array<i32>} : memref<1x8x16x64xf32, #tpu.memory_space<vmem>>, vector<1x1x16x64xf32>,
    %118 = vector.extract_strided_slice %112 {offsets = [0, 1, 0], sizes = [16, 1, 64], strides = [1, 1, 1]} : vector<16x8x64xf32> to vector<16x1x64xf32>
    %119 = vector.shape_cast %118 : vector<16x1x64xf32> to vector<16x64xf32>
    %c0_88 = arith.constant 0 : index
    %c1_89 = arith.constant 1 : index
    %c0_90 = arith.constant 0 : index
    %c0_91 = arith.constant 0 : index
    %120 = vector.load %arg5[%c0_88, %c1_89, %c0_90, %c0_91] : memref<1x8x16x64xf32, #tpu.memory_space<vmem>>, vector<1x1x16x64xf32>
    %121 = vector.shape_cast %120 : vector<1x1x16x64xf32> to vector<16x64xf32>
    %122 = vector.shape_cast %119 : vector<16x64xf32> to vector<1x1x16x64xf32>
    tpu.vector_store %arg5[%c0_88, %c1_89, %c0_90, %c0_91], %122 {strides = array<i32>} : memref<1x8x16x64xf32, #tpu.memory_space<vmem>>, vector<1x1x16x64xf32>,
    %123 = vector.extract_strided_slice %112 {offsets = [0, 2, 0], sizes = [16, 1, 64], strides = [1, 1, 1]} : vector<16x8x64xf32> to vector<16x1x64xf32>
    %124 = vector.shape_cast %123 : vector<16x1x64xf32> to vector<16x64xf32>
    %c0_92 = arith.constant 0 : index
    %c2_93 = arith.constant 2 : index
    %c0_94 = arith.constant 0 : index
    %c0_95 = arith.constant 0 : index
    %125 = vector.load %arg5[%c0_92, %c2_93, %c0_94, %c0_95] : memref<1x8x16x64xf32, #tpu.memory_space<vmem>>, vector<1x1x16x64xf32>
    %126 = vector.shape_cast %125 : vector<1x1x16x64xf32> to vector<16x64xf32>
    %127 = vector.shape_cast %124 : vector<16x64xf32> to vector<1x1x16x64xf32>
    tpu.vector_store %arg5[%c0_92, %c2_93, %c0_94, %c0_95], %127 {strides = array<i32>} : memref<1x8x16x64xf32, #tpu.memory_space<vmem>>, vector<1x1x16x64xf32>,
    %128 = vector.extract_strided_slice %112 {offsets = [0, 3, 0], sizes = [16, 1, 64], strides = [1, 1, 1]} : vector<16x8x64xf32> to vector<16x1x64xf32>
    %129 = vector.shape_cast %128 : vector<16x1x64xf32> to vector<16x64xf32>
    %c0_96 = arith.constant 0 : index
    %c3_97 = arith.constant 3 : index
    %c0_98 = arith.constant 0 : index
    %c0_99 = arith.constant 0 : index
    %130 = vector.load %arg5[%c0_96, %c3_97, %c0_98, %c0_99] : memref<1x8x16x64xf32, #tpu.memory_space<vmem>>, vector<1x1x16x64xf32>
    %131 = vector.shape_cast %130 : vector<1x1x16x64xf32> to vector<16x64xf32>
    %132 = vector.shape_cast %129 : vector<16x64xf32> to vector<1x1x16x64xf32>
    tpu.vector_store %arg5[%c0_96, %c3_97, %c0_98, %c0_99], %132 {strides = array<i32>} : memref<1x8x16x64xf32, #tpu.memory_space<vmem>>, vector<1x1x16x64xf32>,
    %133 = vector.extract_strided_slice %112 {offsets = [0, 4, 0], sizes = [16, 1, 64], strides = [1, 1, 1]} : vector<16x8x64xf32> to vector<16x1x64xf32>
    %134 = vector.shape_cast %133 : vector<16x1x64xf32> to vector<16x64xf32>
    %c0_100 = arith.constant 0 : index
    %c4_101 = arith.constant 4 : index
    %c0_102 = arith.constant 0 : index
    %c0_103 = arith.constant 0 : index
    %135 = vector.load %arg5[%c0_100, %c4_101, %c0_102, %c0_103] : memref<1x8x16x64xf32, #tpu.memory_space<vmem>>, vector<1x1x16x64xf32>
    %136 = vector.shape_cast %135 : vector<1x1x16x64xf32> to vector<16x64xf32>
    %137 = vector.shape_cast %134 : vector<16x64xf32> to vector<1x1x16x64xf32>
    tpu.vector_store %arg5[%c0_100, %c4_101, %c0_102, %c0_103], %137 {strides = array<i32>} : memref<1x8x16x64xf32, #tpu.memory_space<vmem>>, vector<1x1x16x64xf32>,
    %138 = vector.extract_strided_slice %112 {offsets = [0, 5, 0], sizes = [16, 1, 64], strides = [1, 1, 1]} : vector<16x8x64xf32> to vector<16x1x64xf32>
    %139 = vector.shape_cast %138 : vector<16x1x64xf32> to vector<16x64xf32>
    %c0_104 = arith.constant 0 : index
    %c5_105 = arith.constant 5 : index
    %c0_106 = arith.constant 0 : index
    %c0_107 = arith.constant 0 : index
    %140 = vector.load %arg5[%c0_104, %c5_105, %c0_106, %c0_107] : memref<1x8x16x64xf32, #tpu.memory_space<vmem>>, vector<1x1x16x64xf32>
    %141 = vector.shape_cast %140 : vector<1x1x16x64xf32> to vector<16x64xf32>
    %142 = vector.shape_cast %139 : vector<16x64xf32> to vector<1x1x16x64xf32>
    tpu.vector_store %arg5[%c0_104, %c5_105, %c0_106, %c0_107], %142 {strides = array<i32>} : memref<1x8x16x64xf32, #tpu.memory_space<vmem>>, vector<1x1x16x64xf32>,
    %143 = vector.extract_strided_slice %112 {offsets = [0, 6, 0], sizes = [16, 1, 64], strides = [1, 1, 1]} : vector<16x8x64xf32> to vector<16x1x64xf32>
    %144 = vector.shape_cast %143 : vector<16x1x64xf32> to vector<16x64xf32>
    %c0_108 = arith.constant 0 : index
    %c6_109 = arith.constant 6 : index
    %c0_110 = arith.constant 0 : index
    %c0_111 = arith.constant 0 : index
    %145 = vector.load %arg5[%c0_108, %c6_109, %c0_110, %c0_111] : memref<1x8x16x64xf32, #tpu.memory_space<vmem>>, vector<1x1x16x64xf32>
    %146 = vector.shape_cast %145 : vector<1x1x16x64xf32> to vector<16x64xf32>
    %147 = vector.shape_cast %144 : vector<16x64xf32> to vector<1x1x16x64xf32>
    tpu.vector_store %arg5[%c0_108, %c6_109, %c0_110, %c0_111], %147 {strides = array<i32>} : memref<1x8x16x64xf32, #tpu.memory_space<vmem>>, vector<1x1x16x64xf32>,
    %148 = vector.extract_strided_slice %112 {offsets = [0, 7, 0], sizes = [16, 1, 64], strides = [1, 1, 1]} : vector<16x8x64xf32> to vector<16x1x64xf32>
    %149 = vector.shape_cast %148 : vector<16x1x64xf32> to vector<16x64xf32>
    %c0_112 = arith.constant 0 : index
    %c7_113 = arith.constant 7 : index
    %c0_114 = arith.constant 0 : index
    %c0_115 = arith.constant 0 : index
    %150 = vector.load %arg5[%c0_112, %c7_113, %c0_114, %c0_115] : memref<1x8x16x64xf32, #tpu.memory_space<vmem>>, vector<1x1x16x64xf32>
    %151 = vector.shape_cast %150 : vector<1x1x16x64xf32> to vector<16x64xf32>
    %152 = vector.shape_cast %149 : vector<16x64xf32> to vector<1x1x16x64xf32>
    tpu.vector_store %arg5[%c0_112, %c7_113, %c0_114, %c0_115], %152 {strides = array<i32>} : memref<1x8x16x64xf32, #tpu.memory_space<vmem>>, vector<1x1x16x64xf32>,
    return
  }
  func.func @transform_0(%arg0: i32) -> (i32, i32) {
    %c0_i32 = arith.constant 0 : i32
    %c0_i32_0 = arith.constant 0 : i32
    %c0_i32_1 = arith.constant 0 : i32
    return %c0_i32, %c0_i32_0 : i32, i32
  }
  func.func @transform_1(%arg0: i32) -> (i32, i32) {
    %c0_i32 = arith.constant 0 : i32
    %c0_i32_0 = arith.constant 0 : i32
    %c0_i32_1 = arith.constant 0 : i32
    return %c0_i32, %c0_i32_0 : i32, i32
  }
  func.func @transform_2(%arg0: i32) -> (i32, i32, i32) {
    %c0_i32 = arith.constant 0 : i32
    %c0_i32_0 = arith.constant 0 : i32
    %c0_i32_1 = arith.constant 0 : i32
    %c0_i32_2 = arith.constant 0 : i32
    return %c0_i32, %c0_i32_0, %c0_i32_1 : i32, i32, i32
  }
  func.func @transform_3(%arg0: i32) -> (i32, i32, i32, i32) {
    %c0_i32 = arith.constant 0 : i32
    %c0_i32_0 = arith.constant 0 : i32
    %c0_i32_1 = arith.constant 0 : i32
    %c0_i32_2 = arith.constant 0 : i32
    return %arg0, %c0_i32, %c0_i32_0, %c0_i32_1 : i32, i32, i32, i32
  }
  func.func @transform_4(%arg0: i32) -> (i32, i32, i32, i32) {
    %c0_i32 = arith.constant 0 : i32
    %c0_i32_0 = arith.constant 0 : i32
    %c0_i32_1 = arith.constant 0 : i32
    %c0_i32_2 = arith.constant 0 : i32
    return %arg0, %c0_i32, %c0_i32_0, %c0_i32_1 : i32, i32, i32, i32
  }
}

</mosaic_0001>

<llo_original>
// kernel: tile.8
$region0: #{tile.8}
  #allocation0 [shape = 's32[1]{0}', space=sflag, size = 0x4, scoped, tag = 'scoped memory for tile.8']
  %s0 = inlined_call_operand.vmem [shape: f32[8], index: 0, kind: input, shape index: {}]
  %s1 = inlined_call_operand.vmem [shape: f32[4,8], index: 1, kind: output, shape index: {}]
  // Predicated region
  $region2: #{tile.8} parent=0 // pred_check
    _
  $region3: #{tile.8} parent=0 // pred_check_branch
    %3 = sbr.rel (0) target = $region5
  $region4: #{tile.8} parent=0 // pred_region
    _
  $region5: #{tile.8} parent=0 // pred_fallthru
    _
  %v4 = vld [vmem:[%s0] ss:$0 sm:$0xff]
  %5 = vst [vmem:[%s1] sm:$0xf] %v4

// kernel: tile.0
$region0: #{tile.0}
  %s0 = inlined_call_operand.vmem [shape: f32[4,8], index: 0, kind: input, shape index: {}]
  %s1 = inlined_call_operand.vmem [shape: f32[32,1], index: 1, kind: output, shape index: {}]
  $region1: #{tile.0} parent=0
    #allocation0 [shape = 'u8[4096]{0}', space=vmem, size = 0x1000, scoped, tag = 'scoped mem for input reshape']
    %s3 = sshllo.u32 0, 4
    %v4 = vld [vmem:[%s0] sm:%s3]
    %5 = vst [vmem:[#allocation0] sm:%s3] %v4
    %v6 = vld [vmem:[#allocation0] sm:$0xf]
    %vm7 = vcmask 7168
    %8 = vst.msk [vmem:[%s1] ss:$8 sm:$0xf] %vm7, %v6
    %v9 = vld [vmem:[#allocation0] sm:$0xf]
    %10 = vrot.lane.b32.xlu0 %v9, 127
    %v11 = vpop.permute.xlu0 %10
    %vm12 = vcmask 7168
    %s13 = scalar_lea.vmem %s1, 1
    %14 = vst.msk [vmem:[%s13] ss:$8 sm:$0xf] %vm12, %v11
    %v15 = vld [vmem:[#allocation0] sm:$0xf]
    %16 = vrot.lane.b32.xlu0 %v15, 126
    %v17 = vpop.permute.xlu0 %16
    %vm18 = vcmask 7168
    %s19 = scalar_lea.vmem %s1, 2
    %20 = vst.msk [vmem:[%s19] ss:$8 sm:$0xf] %vm18, %v17
    %v21 = vld [vmem:[#allocation0] sm:$0xf]
    %22 = vrot.lane.b32.xlu0 %v21, 125
    %v23 = vpop.permute.xlu0 %22
    %vm24 = vcmask 7168
    %s25 = scalar_lea.vmem %s1, 3
    %26 = vst.msk [vmem:[%s25] ss:$8 sm:$0xf] %vm24, %v23
    %v27 = vld [vmem:[#allocation0] sm:$0xf]
    %28 = vrot.lane.b32.xlu0 %v27, 124
    %v29 = vpop.permute.xlu0 %28
    %vm30 = vcmask 7168
    %s31 = scalar_lea.vmem %s1, 4
    %32 = vst.msk [vmem:[%s31] ss:$8 sm:$0xf] %vm30, %v29
    %v33 = vld [vmem:[#allocation0] sm:$0xf]
    %34 = vrot.lane.b32.xlu0 %v33, 123
    %v35 = vpop.permute.xlu0 %34
    %vm36 = vcmask 7168
    %s37 = scalar_lea.vmem %s1, 5
    %38 = vst.msk [vmem:[%s37] ss:$8 sm:$0xf] %vm36, %v35
    %v39 = vld [vmem:[#allocation0] sm:$0xf]
    %40 = vrot.lane.b32.xlu0 %v39, 122
    %v41 = vpop.permute.xlu0 %40
    %vm42 = vcmask 7168
    %s43 = scalar_lea.vmem %s1, 6
    %44 = vst.msk [vmem:[%s43] ss:$8 sm:$0xf] %vm42, %v41
    %v45 = vld [vmem:[#allocation0] sm:$0xf]
    %46 = vrot.lane.b32.xlu0 %v45, 121
    %v47 = vpop.permute.xlu0 %46
    %vm48 = vcmask 7168
    %s49 = scalar_lea.vmem %s1, 7
    %50 = vst.msk [vmem:[%s49] ss:$8 sm:$0xf] %vm48, %v47

// kernel: conv_transpose2d_pallas.1
$region0: #{conv_transpose2d_pallas.1}
  #allocation0 [shape = 'u32[]', space=smem, size = 0x4, offset = 0x4, fixed_abs, tag = 'smem constant byte address 0x4 - core index']
  #allocation1 [shape = 'u32[144,128]{1,0:T(1,128)}', space=vmem, size = 0x12000, scoped, tag = 'internal scratch']
  #allocation2 [shape = 'f32[4,17,17]{2,1,0:T(8,128)}', space=vmem, size = 0xc000, scoped, tag = 'scratch operand']
  #allocation3 [shape = 'f32[16,16,16]{2,1,0:T(8,128)}', space=vmem, size = 0x20000, scoped, tag = 'scratch operand']
  %s0 = inlined_call_operand.vmem [shape: f32[32,16], index: 0, kind: input, shape index: {}]
  %s1 = inlined_call_operand.vmem [shape: f32[32,1], index: 1, kind: input, shape index: {}]
  %s2 = inlined_call_operand.vmem [shape: f32[2,16,32], index: 2, kind: input, shape index: {}]
  %s3 = inlined_call_operand.vmem [shape: f32[2,4,16,16], index: 3, kind: input, shape index: {}]
  %s4 = inlined_call_operand.vmem [shape: f32[2,8,16,64], index: 4, kind: output, shape index: {}]
  %s5 = sld [smem:[#allocation0]]
  $region49: #{conv_transpose2d_pallas.1} parent=0
    _
  %s7 = ssub.s32 1, %s5
  %s8 = scalar_select 0, %s7, %s5
  loop: start=0, step=1, limit=4
  $region2: #{conv_transpose2d_pallas.1} parent=0 // loop_pre_header
    _
  $region3: #{conv_transpose2d_pallas.1} parent=0 // loop_header
    %s10 = sphi 0, %s14
    %p11 = scmp.ge.s32.totalorder %s10, 4
    %s18 = sphi 0, %s18
    %s20 = sphi 0, %s18
    %s21 = sphi 0, %s20
    %s35 = sphi 0, %s21
    %s39 = sphi 0, %s39
    %s41 = sphi 0, %s39
    %s42 = sphi 0, %s41
    %s56 = sphi 0, %s42
    %s60 = sphi 0, %s60
    %s62 = sphi 0, %s60
    %s63 = sphi 0, %s62
    %s77 = sphi 0, %s63
    %s83 = sphi 0, %s85
    %s86 = sphi 0, %s83
    %s87 = sphi 0, %s86
    %s103 = sphi 0, %s87
    %s109 = sphi 0, %s111
    %s112 = sphi 0, %s109
    %s113 = sphi 0, %s112
    %s129 = sphi 0, %s113
  $region4: #{conv_transpose2d_pallas.1} parent=0 // loop_header_branch
    %13 = sbr.rel (%p11) target = $region8
  $region5: #{conv_transpose2d_pallas.1} parent=0 // loop_body
    %s15 = ssub.s32 %s10, 1
    %s16 = ssub.s32 %s10, 2
    %s17 = sadd.s32 %s10, 1
    %s19 = sadd.s32 %s18, 1
    %p22 = scmp.eq.s32.totalorder %s10, 1
    %p23 = scmp.ne.s32.totalorder %s18, %s20
    %p24 = scmp.eq.s32.totalorder %s10, 0
    %p25 = por %p23, %p24
    %p26 = scmp.ne.s32.totalorder %s18, %s20
    %p27 = scmp.eq.s32.totalorder %s15, 1
    %p28 = por %p26, %p27
    %p29 = scmp.ne.s32.totalorder %s20, %s21
    %p30 = scmp.eq.s32.totalorder %s15, 0
    %p31 = por %p29, %p30
    %p32 = scmp.ne.s32.totalorder %s20, %s21
    %p33 = scmp.eq.s32.totalorder %s16, 1
    %p34 = por %p32, %p33
    %p36 = scmp.ne.s32.totalorder %s21, %s35
    %p37 = scmp.eq.s32.totalorder %s16, 0
    %p38 = por %p36, %p37
    %s40 = sadd.s32 %s39, 1
    %p43 = scmp.eq.s32.totalorder %s10, 1
    %p44 = scmp.ne.s32.totalorder %s39, %s41
    %p45 = scmp.eq.s32.totalorder %s10, 0
    %p46 = por %p44, %p45
    %p47 = scmp.ne.s32.totalorder %s39, %s41
    %p48 = scmp.eq.s32.totalorder %s15, 1
    %p49 = por %p47, %p48
    %p50 = scmp.ne.s32.totalorder %s41, %s42
    %p51 = scmp.eq.s32.totalorder %s15, 0
    %p52 = por %p50, %p51
    %p53 = scmp.ne.s32.totalorder %s41, %s42
    %p54 = scmp.eq.s32.totalorder %s16, 1
    %p55 = por %p53, %p54
    %p57 = scmp.ne.s32.totalorder %s42, %s56
    %p58 = scmp.eq.s32.totalorder %s16, 0
    %p59 = por %p57, %p58
    %s61 = sadd.s32 %s60, 1
    %p64 = scmp.eq.s32.totalorder %s10, 1
    %p65 = scmp.ne.s32.totalorder %s60, %s62
    %p66 = scmp.eq.s32.totalorder %s10, 0
    %p67 = por %p65, %p66
    %p68 = scmp.ne.s32.totalorder %s60, %s62
    %p69 = scmp.eq.s32.totalorder %s15, 1
    %p70 = por %p68, %p69
    %p71 = scmp.ne.s32.totalorder %s62, %s63
    %p72 = scmp.eq.s32.totalorder %s15, 0
    %p73 = por %p71, %p72
    %p74 = scmp.ne.s32.totalorder %s62, %s63
    %p75 = scmp.eq.s32.totalorder %s16, 1
    %p76 = por %p74, %p75
    %p78 = scmp.ne.s32.totalorder %s63, %s77
    %p79 = scmp.eq.s32.totalorder %s16, 0
    %p80 = por %p78, %p79
    %s81 = ssub.s32 %s10, %s17
    %p82 = scmp.eq.s32.totalorder %s81, 0
    %s84 = sadd.s32 %s83, 1
    %s85 = scalar_select %p82, %s83, %s84
    %p88 = pneg %p82
    %p89 = scmp.eq.s32.totalorder %s10, 1
    %p90 = por %p88, %p89
    %p91 = scmp.ne.s32.totalorder %s83, %s86
    %p92 = scmp.eq.s32.totalorder %s10, 0
    %p93 = por %p91, %p92
    %p94 = scmp.ne.s32.totalorder %s83, %s86
    %p95 = scmp.eq.s32.totalorder %s15, 1
    %p96 = por %p94, %p95
    %p97 = scmp.ne.s32.totalorder %s86, %s87
    %p98 = scmp.eq.s32.totalorder %s15, 0
    %p99 = por %p97, %p98
    %p100 = scmp.ne.s32.totalorder %s86, %s87
    %p101 = scmp.eq.s32.totalorder %s16, 1
    %p102 = por %p100, %p101
    %p104 = scmp.ne.s32.totalorder %s87, %s103
    %p105 = scmp.eq.s32.totalorder %s16, 0
    %p106 = por %p104, %p105
    %s107 = ssub.s32 %s10, %s17
    %p108 = scmp.eq.s32.totalorder %s107, 0
    %s110 = sadd.s32 %s109, 1
    %s111 = scalar_select %p108, %s109, %s110
    %p114 = pneg %p108
    %p115 = scmp.eq.s32.totalorder %s10, 1
    %p116 = por %p114, %p115
    %p117 = scmp.ne.s32.totalorder %s109, %s112
    %p118 = scmp.eq.s32.totalorder %s10, 0
    %p119 = por %p117, %p118
    %p120 = scmp.ne.s32.totalorder %s109, %s112
    %p121 = scmp.eq.s32.totalorder %s15, 1
    %p122 = por %p120, %p121
    %p123 = scmp.ne.s32.totalorder %s112, %s113
    %p124 = scmp.eq.s32.totalorder %s15, 0
    %p125 = por %p123, %p124
    %p126 = scmp.ne.s32.totalorder %s112, %s113
    %p127 = scmp.eq.s32.totalorder %s16, 1
    %p128 = por %p126, %p127
    %p130 = scmp.ne.s32.totalorder %s113, %s129
    %p131 = scmp.eq.s32.totalorder %s16, 0
    %p132 = por %p130, %p131
    %p133 = scmp.le.s32.totalorder 1, %s10
    %p134 = scmp.lt.s32.totalorder %s10, 3
    %p135 = pnand %p133, %p134
    %p136 = pneg %p135
    // Predicated region
    $region9: #{conv_transpose2d_pallas.1} parent=5 // pred_check
      _
    $region10: #{conv_transpose2d_pallas.1} parent=5 // pred_check_branch
      %138 = sbr.rel (%p135) target = $region12
    $region11: #{conv_transpose2d_pallas.1} parent=5 // pred_region
      %s139 = ssub.s32 %s10, 1
      // Predicated region
      $region13: #{conv_transpose2d_pallas.1} parent=11 // pred_check
        %p140 = pneg %p31
      $region14: #{conv_transpose2d_pallas.1} parent=11 // pred_check_branch
        %142 = sbr.rel (%p140) target = $region16
      $region15: #{conv_transpose2d_pallas.1} parent=11 // pred_region
        _
      $region16: #{conv_transpose2d_pallas.1} parent=11 // pred_fallthru
        _
      // Predicated region
      $region17: #{conv_transpose2d_pallas.1} parent=11 // pred_check
        %p143 = pneg %p52
      $region18: #{conv_transpose2d_pallas.1} parent=11 // pred_check_branch
        %145 = sbr.rel (%p143) target = $region20
      $region19: #{conv_transpose2d_pallas.1} parent=11 // pred_region
        _
      $region20: #{conv_transpose2d_pallas.1} parent=11 // pred_fallthru
        _
      // Predicated region
      $region21: #{conv_transpose2d_pallas.1} parent=11 // pred_check
        %p146 = pneg %p73
      $region22: #{conv_transpose2d_pallas.1} parent=11 // pred_check_branch
        %148 = sbr.rel (%p146) target = $region24
      $region23: #{conv_transpose2d_pallas.1} parent=11 // pred_region
        _
      $region24: #{conv_transpose2d_pallas.1} parent=11 // pred_fallthru
        _
    $region12: #{conv_transpose2d_pallas.1} parent=5 // pred_fallthru
      _
    %p149 = scmp.lt.s32.totalorder %s10, 2
    // Predicated region
    $region25: #{conv_transpose2d_pallas.1} parent=5 // pred_check
      %p150 = pneg %p149
    $region26: #{conv_transpose2d_pallas.1} parent=5 // pred_check_branch
      %152 = sbr.rel (%p150) target = $region28
    $region27: #{conv_transpose2d_pallas.1} parent=5 // pred_region
      // Predicated region
      $region29: #{conv_transpose2d_pallas.1} parent=27 // pred_check
        %p153 = pneg %p93
      $region30: #{conv_transpose2d_pallas.1} parent=27 // pred_check_branch
        %155 = sbr.rel (%p153) target = $region32
      $region31: #{conv_transpose2d_pallas.1} parent=27 // pred_region
        %p156 = scmp.lt.s32.totalorder %s10, 1
        %s157 = scalar_select %p156, %s10, 1
        %s158 = smul.addr %s157, 8
        %s159 = smul.addr %s158, 8
        %s160 = scalar_lea.vmem %s3, %s159
      $region32: #{conv_transpose2d_pallas.1} parent=27 // pred_fallthru
        _
    $region28: #{conv_transpose2d_pallas.1} parent=5 // pred_fallthru
      _
    %p161 = scmp.le.s32.totalorder 1, %s10
    %p162 = scmp.lt.s32.totalorder %s10, 3
    %p163 = pnand %p161, %p162
    %p164 = pneg %p163
    // Predicated region
    $region33: #{conv_transpose2d_pallas.1} parent=5 // pred_check
      _
    $region34: #{conv_transpose2d_pallas.1} parent=5 // pred_check_branch
      %166 = sbr.rel (%p163) target = $region36
    $region35: #{conv_transpose2d_pallas.1} parent=5 // pred_region
      %s167 = ssub.s32 %s10, 1
      %p168 = pneg %p31
      %p169 = pneg %p28
      %p170 = pneg %p52
      %p171 = pneg %p49
      %p172 = pneg %p73
      %p173 = pneg %p70
      %p174 = scmp.lt.s32.totalorder %s15, 1
      %s175 = scalar_select %p174, %s15, 1
      %s176 = smul.addr %s175, 8
      %s177 = smul.addr %s176, 8
      %s178 = scalar_lea.vmem %s3, %s177
      %p179 = pneg %p99
      %p180 = pneg %p96
      %p181 = pneg %p125
      %p182 = pneg %p122
      %p183 = scmp.lt.s32.totalorder %s15, 1
      %s184 = scalar_select %p183, %s15, 1
      %s185 = smul.addr %s184, 16
      %s186 = smul.addr %s185, 8
      %s187 = scalar_lea.vmem %s4, %s186
      %p188 = scmp.lt.s32.totalorder %s15, 1
      %s189 = scalar_select %p188, %s15, 1
      %s190 = smul.addr %s189, 8
      %s191 = smul.addr %s190, 8
      %s192 = scalar_lea.vmem %s3, %s191
      %p193 = scmp.lt.s32.totalorder %s15, 1
      %s194 = scalar_select %p193, %s15, 1
      %s195 = smul.addr %s194, 16
      %s196 = smul.addr %s195, 8
      %s197 = scalar_lea.vmem %s4, %s196
      %vm198 = vcmask 138240
      %199 = vst.msk [vmem:[#allocation2] sm:$0xff] %vm198, 0.0
      %200 = vst.msk [vmem:[#allocation2 + $0x8] sm:$0xff] %vm198, 0.0
      %vm201 = vcmask 131072
      %202 = vst.msk [vmem:[#allocation2 + $0x10] sm:$0x1] %vm201, 0.0
      %203 = vst.msk [vmem:[#allocation2 + $0x18] sm:$0xff] %vm198, 0.0
      %204 = vst.msk [vmem:[#allocation2 + $0x20] sm:$0xff] %vm198, 0.0
      %205 = vst.msk [vmem:[#allocation2 + $0x28] sm:$0x1] %vm201, 0.0
      %206 = vst.msk [vmem:[#allocation2 + $0x30] sm:$0xff] %vm198, 0.0
      %207 = vst.msk [vmem:[#allocation2 + $0x38] sm:$0xff] %vm198, 0.0
      %208 = vst.msk [vmem:[#allocation2 + $0x40] sm:$0x1] %vm201, 0.0
      %209 = vst.msk [vmem:[#allocation2 + $0x48] sm:$0xff] %vm198, 0.0
      %210 = vst.msk [vmem:[#allocation2 + $0x50] sm:$0xff] %vm198, 0.0
      %211 = vst.msk [vmem:[#allocation2 + $0x58] sm:$0x1] %vm201, 0.0
      %v212 = vld [vmem:[%s192] sm:$0xff]
      %v213 = vld [vmem:[%s192 + $0x8] sm:$0xff]
      %v214 = vld [vmem:[%s192 + $0x10] sm:$0xff]
      %v215 = vld [vmem:[%s192 + $0x18] sm:$0xff]
      %v216 = vld [vmem:[%s192 + $0x20] sm:$0xff]
      %v217 = vld [vmem:[%s192 + $0x28] sm:$0xff]
      %v218 = vld [vmem:[%s192 + $0x30] sm:$0xff]
      %v219 = vld [vmem:[%s192 + $0x38] sm:$0xff]
      %vm220 = vcmask 130048
      %221 = vst.msk [vmem:[#allocation2] sm:$0xff] %vm220, %v212
      %222 = vst.msk [vmem:[#allocation2 + $0x8] sm:$0xff] %vm220, %v213
      %223 = vst.msk [vmem:[#allocation2 + $0x18] sm:$0xff] %vm220, %v214
      %224 = vst.msk [vmem:[#allocation2 + $0x20] sm:$0xff] %vm220, %v215
      %225 = vst.msk [vmem:[#allocation2 + $0x30] sm:$0xff] %vm220, %v216
      %226 = vst.msk [vmem:[#allocation2 + $0x38] sm:$0xff] %vm220, %v217
      %227 = vst.msk [vmem:[#allocation2 + $0x48] sm:$0xff] %vm220, %v218
      %228 = vst.msk [vmem:[#allocation2 + $0x50] sm:$0xff] %vm220, %v219
      %v229 = vld [vmem:[#allocation2] sm:$0xff]
      %v230 = vld [vmem:[#allocation2 + $0x8] sm:$0xff]
      %v233 = vcombine.high %v229, %v229
      %v235 = vunpack.c.l.s4 1966171168
      %v236 = vunpack.c.0.s8 %v235
      %v237 = vlaneseq
      %v238 = vshrl.u32 %v237, 7
      %v239 = vsub.s32 %v236, %v238
      %v240 = vrot.slane %v229, %v239
      %v242 = vunpack.c.l.s4 1966171168
      %v243 = vunpack.c.0.s8 %v242
      %v244 = vlaneseq
      %v245 = vshrl.u32 %v244, 7
      %v246 = vsub.s32 %v243, %v245
      %v247 = vrot.slane %v233, %v246
      %v248 = vcombine.high %v240, %v240
      %v249 = vcombine.high %v247, %v247
      %v251 = vunpack.c.l.s4 1966171168
      %v252 = vunpack.c.0.s8 %v251
      %v253 = vlaneseq
      %v254 = vshrl.u32 %v253, 7
      %v255 = vsub.s32 %v252, %v254
      %v256 = vrot.slane %v240, %v255
      %v258 = vunpack.c.l.s4 1966171168
      %v259 = vunpack.c.0.s8 %v258
      %v260 = vlaneseq
      %v261 = vshrl.u32 %v260, 7
      %v262 = vsub.s32 %v259, %v261
      %v263 = vrot.slane %v247, %v262
      %v265 = vunpack.c.l.s4 1966171168
      %v266 = vunpack.c.0.s8 %v265
      %v267 = vlaneseq
      %v268 = vshrl.u32 %v267, 7
      %v269 = vsub.s32 %v266, %v268
      %v270 = vrot.slane %v248, %v269
      %v272 = vunpack.c.l.s4 1966171168
      %v273 = vunpack.c.0.s8 %v272
      %v274 = vlaneseq
      %v275 = vshrl.u32 %v274, 7
      %v276 = vsub.s32 %v273, %v275
      %v277 = vrot.slane %v249, %v276
      %v278 = vcombine.high %v256, %v256
      %v279 = vcombine.high %v263, %v263
      %v280 = vcombine.high %v270, %v270
      %v281 = vcombine.high %v277, %v277
      %v282 = vcombine.high %v230, %v230
      %v284 = vunpack.c.l.s4 1966171168
      %v285 = vunpack.c.0.s8 %v284
      %v286 = vlaneseq
      %v287 = vshrl.u32 %v286, 7
      %v288 = vsub.s32 %v285, %v287
      %v289 = vrot.slane %v230, %v288
      %v291 = vunpack.c.l.s4 1966171168
      %v292 = vunpack.c.0.s8 %v291
      %v293 = vlaneseq
      %v294 = vshrl.u32 %v293, 7
      %v295 = vsub.s32 %v292, %v294
      %v296 = vrot.slane %v282, %v295
      %v297 = vcombine.high %v289, %v289
      %v298 = vcombine.high %v296, %v296
      %v300 = vunpack.c.l.s4 1966171168
      %v301 = vunpack.c.0.s8 %v300
      %v302 = vlaneseq
      %v303 = vshrl.u32 %v302, 7
      %v304 = vsub.s32 %v301, %v303
      %v305 = vrot.slane %v289, %v304
      %v307 = vunpack.c.l.s4 1966171168
      %v308 = vunpack.c.0.s8 %v307
      %v309 = vlaneseq
      %v310 = vshrl.u32 %v309, 7
      %v311 = vsub.s32 %v308, %v310
      %v312 = vrot.slane %v296, %v311
      %v314 = vunpack.c.l.s4 1966171168
      %v315 = vunpack.c.0.s8 %v314
      %v316 = vlaneseq
      %v317 = vshrl.u32 %v316, 7
      %v318 = vsub.s32 %v315, %v317
      %v319 = vrot.slane %v297, %v318
      %v321 = vunpack.c.l.s4 1966171168
      %v322 = vunpack.c.0.s8 %v321
      %v323 = vlaneseq
      %v324 = vshrl.u32 %v323, 7
      %v325 = vsub.s32 %v322, %v324
      %v326 = vrot.slane %v298, %v325
      %v327 = vcombine.high %v305, %v305
      %v328 = vcombine.high %v312, %v312
      %v329 = vcombine.high %v319, %v319
      %v330 = vcombine.high %v326, %v326
      %vm347 = vcmask 122880
      %348 = vst.msk [vmem:[#allocation3] sm:$0x1] %vm347, %v256
      %349 = vst.msk [vmem:[#allocation3 + $0x10] sm:$0x1] %vm347, %v270
      %350 = vst.msk [vmem:[#allocation3 + $0x20] sm:$0x1] %vm347, %v278
      %351 = vst.msk [vmem:[#allocation3 + $0x30] sm:$0x1] %vm347, %v280
      %352 = vst.msk [vmem:[#allocation3 + $0x40] sm:$0x1] %vm347, %v263
      %353 = vst.msk [vmem:[#allocation3 + $0x50] sm:$0x1] %vm347, %v277
      %354 = vst.msk [vmem:[#allocation3 + $0x60] sm:$0x1] %vm347, %v279
      %355 = vst.msk [vmem:[#allocation3 + $0x70] sm:$0x1] %vm347, %v281
      %356 = vst.msk [vmem:[#allocation3 + $0x80] sm:$0x1] %vm347, %v305
      %357 = vst.msk [vmem:[#allocation3 + $0x90] sm:$0x1] %vm347, %v319
      %358 = vst.msk [vmem:[#allocation3 + $0xa0] sm:$0x1] %vm347, %v327
      %359 = vst.msk [vmem:[#allocation3 + $0xb0] sm:$0x1] %vm347, %v329
      %360 = vst.msk [vmem:[#allocation3 + $0xc0] sm:$0x1] %vm347, %v312
      %361 = vst.msk [vmem:[#allocation3 + $0xd0] sm:$0x1] %vm347, %v326
      %362 = vst.msk [vmem:[#allocation3 + $0xe0] sm:$0x1] %vm347, %v328
      %363 = vst.msk [vmem:[#allocation3 + $0xf0] sm:$0x1] %vm347, %v330
      %v364 = vlaneseq
      %v365 = vshrl.u32 %v364, 7
      %v366 = vsub.s32 0, %v365
      %v367 = vrot.slane %v256, %v366
      %v368 = vlaneseq
      %v369 = vshrl.u32 %v368, 7
      %v370 = vsub.s32 0, %v369
      %v371 = vrot.slane %v270, %v370
      %v372 = vlaneseq
      %v373 = vshrl.u32 %v372, 7
      %v374 = vsub.s32 0, %v373
      %v375 = vrot.slane %v278, %v374
      %v376 = vlaneseq
      %v377 = vshrl.u32 %v376, 7
      %v378 = vsub.s32 0, %v377
      %v379 = vrot.slane %v280, %v378
      %v380 = vlaneseq
      %v381 = vshrl.u32 %v380, 7
      %v382 = vsub.s32 0, %v381
      %v383 = vrot.slane %v263, %v382
      %v384 = vlaneseq
      %v385 = vshrl.u32 %v384, 7
      %v386 = vsub.s32 0, %v385
      %v387 = vrot.slane %v277, %v386
      %v388 = vlaneseq
      %v389 = vshrl.u32 %v388, 7
      %v390 = vsub.s32 0, %v389
      %v391 = vrot.slane %v279, %v390
      %v392 = vlaneseq
      %v393 = vshrl.u32 %v392, 7
      %v394 = vsub.s32 0, %v393
      %v395 = vrot.slane %v281, %v394
      %v396 = vlaneseq
      %v397 = vshrl.u32 %v396, 7
      %v398 = vsub.s32 0, %v397
      %v399 = vrot.slane %v305, %v398
      %v400 = vlaneseq
      %v401 = vshrl.u32 %v400, 7
      %v402 = vsub.s32 0, %v401
      %v403 = vrot.slane %v319, %v402
      %v404 = vlaneseq
      %v405 = vshrl.u32 %v404, 7
      %v406 = vsub.s32 0, %v405
      %v407 = vrot.slane %v327, %v406
      %v408 = vlaneseq
      %v409 = vshrl.u32 %v408, 7
      %v410 = vsub.s32 0, %v409
      %v411 = vrot.slane %v329, %v410
      %v412 = vlaneseq
      %v413 = vshrl.u32 %v412, 7
      %v414 = vsub.s32 0, %v413
      %v415 = vrot.slane %v312, %v414
      %v416 = vlaneseq
      %v417 = vshrl.u32 %v416, 7
      %v418 = vsub.s32 0, %v417
      %v419 = vrot.slane %v326, %v418
      %v420 = vlaneseq
      %v421 = vshrl.u32 %v420, 7
      %v422 = vsub.s32 0, %v421
      %v423 = vrot.slane %v328, %v422
      %v424 = vlaneseq
      %v425 = vshrl.u32 %v424, 7
      %v426 = vsub.s32 0, %v425
      %v427 = vrot.slane %v330, %v426
      %428 = vrot.lane.b32.xlu0 %v367, 127
      %v429 = vpop.permute.xlu0 %428
      %430 = vrot.lane.b32.xlu0 %v371, 127
      %v431 = vpop.permute.xlu0 %430
      %432 = vrot.lane.b32.xlu0 %v375, 127
      %v433 = vpop.permute.xlu0 %432
      %434 = vrot.lane.b32.xlu0 %v379, 127
      %v435 = vpop.permute.xlu0 %434
      %436 = vrot.lane.b32.xlu0 %v383, 127
      %v437 = vpop.permute.xlu0 %436
      %438 = vrot.lane.b32.xlu0 %v387, 127
      %v439 = vpop.permute.xlu0 %438
      %440 = vrot.lane.b32.xlu0 %v391, 127
      %v441 = vpop.permute.xlu0 %440
      %442 = vrot.lane.b32.xlu0 %v395, 127
      %v443 = vpop.permute.xlu0 %442
      %444 = vrot.lane.b32.xlu0 %v399, 127
      %v445 = vpop.permute.xlu0 %444
      %446 = vrot.lane.b32.xlu0 %v403, 127
      %v447 = vpop.permute.xlu0 %446
      %448 = vrot.lane.b32.xlu0 %v407, 127
      %v449 = vpop.permute.xlu0 %448
      %450 = vrot.lane.b32.xlu0 %v411, 127
      %v451 = vpop.permute.xlu0 %450
      %452 = vrot.lane.b32.xlu0 %v415, 127
      %v453 = vpop.permute.xlu0 %452
      %454 = vrot.lane.b32.xlu0 %v419, 127
      %v455 = vpop.permute.xlu0 %454
      %456 = vrot.lane.b32.xlu0 %v423, 127
      %v457 = vpop.permute.xlu0 %456
      %458 = vrot.lane.b32.xlu0 %v427, 127
      %v459 = vpop.permute.xlu0 %458
      %476 = vst.msk [vmem:[#allocation3 + $0x1] sm:$0x1] %vm347, %v429
      %477 = vst.msk [vmem:[#allocation3 + $0x11] sm:$0x1] %vm347, %v431
      %478 = vst.msk [vmem:[#allocation3 + $0x21] sm:$0x1] %vm347, %v433
      %479 = vst.msk [vmem:[#allocation3 + $0x31] sm:$0x1] %vm347, %v435
      %480 = vst.msk [vmem:[#allocation3 + $0x41] sm:$0x1] %vm347, %v437
      %481 = vst.msk [vmem:[#allocation3 + $0x51] sm:$0x1] %vm347, %v439
      %482 = vst.msk [vmem:[#allocation3 + $0x61] sm:$0x1] %vm347, %v441
      %483 = vst.msk [vmem:[#allocation3 + $0x71] sm:$0x1] %vm347, %v443
      %484 = vst.msk [vmem:[#allocation3 + $0x81] sm:$0x1] %vm347, %v445
      %485 = vst.msk [vmem:[#allocation3 + $0x91] sm:$0x1] %vm347, %v447
      %486 = vst.msk [vmem:[#allocation3 + $0xa1] sm:$0x1] %vm347, %v449
      %487 = vst.msk [vmem:[#allocation3 + $0xb1] sm:$0x1] %vm347, %v451
      %488 = vst.msk [vmem:[#allocation3 + $0xc1] sm:$0x1] %vm347, %v453
      %489 = vst.msk [vmem:[#allocation3 + $0xd1] sm:$0x1] %vm347, %v455
      %490 = vst.msk [vmem:[#allocation3 + $0xe1] sm:$0x1] %vm347, %v457
      %491 = vst.msk [vmem:[#allocation3 + $0xf1] sm:$0x1] %vm347, %v459
      %v492 = vld [vmem:[#allocation2 + $0x1] sm:$0xff]
      %v493 = vld [vmem:[#allocation2 + $0x9] sm:$0xff]
      %v496 = vcombine.high %v492, %v492
      %v498 = vunpack.c.l.s4 1966171168
      %v499 = vunpack.c.0.s8 %v498
      %v500 = vlaneseq
      %v501 = vshrl.u32 %v500, 7
      %v502 = vsub.s32 %v499, %v501
      %v503 = vrot.slane %v492, %v502
      %v505 = vunpack.c.l.s4 1966171168
      %v506 = vunpack.c.0.s8 %v505
      %v507 = vlaneseq
      %v508 = vshrl.u32 %v507, 7
      %v509 = vsub.s32 %v506, %v508
      %v510 = vrot.slane %v496, %v509
      %v511 = vcombine.high %v503, %v503
      %v512 = vcombine.high %v510, %v510
      %v514 = vunpack.c.l.s4 1966171168
      %v515 = vunpack.c.0.s8 %v514
      %v516 = vlaneseq
      %v517 = vshrl.u32 %v516, 7
      %v518 = vsub.s32 %v515, %v517
      %v519 = vrot.slane %v503, %v518
      %v521 = vunpack.c.l.s4 1966171168
      %v522 = vunpack.c.0.s8 %v521
      %v523 = vlaneseq
      %v524 = vshrl.u32 %v523, 7
      %v525 = vsub.s32 %v522, %v524
      %v526 = vrot.slane %v510, %v525
      %v528 = vunpack.c.l.s4 1966171168
      %v529 = vunpack.c.0.s8 %v528
      %v530 = vlaneseq
      %v531 = vshrl.u32 %v530, 7
      %v532 = vsub.s32 %v529, %v531
      %v533 = vrot.slane %v511, %v532
      %v535 = vunpack.c.l.s4 1966171168
      %v536 = vunpack.c.0.s8 %v535
      %v537 = vlaneseq
      %v538 = vshrl.u32 %v537, 7
      %v539 = vsub.s32 %v536, %v538
      %v540 = vrot.slane %v512, %v539
      %v541 = vcombine.high %v519, %v519
      %v542 = vcombine.high %v526, %v526
      %v543 = vcombine.high %v533, %v533
      %v544 = vcombine.high %v540, %v540
      %v545 = vcombine.high %v493, %v493
      %v547 = vunpack.c.l.s4 1966171168
      %v548 = vunpack.c.0.s8 %v547
      %v549 = vlaneseq
      %v550 = vshrl.u32 %v549, 7
      %v551 = vsub.s32 %v548, %v550
      %v552 = vrot.slane %v493, %v551
      %v554 = vunpack.c.l.s4 1966171168
      %v555 = vunpack.c.0.s8 %v554
      %v556 = vlaneseq
      %v557 = vshrl.u32 %v556, 7
      %v558 = vsub.s32 %v555, %v557
      %v559 = vrot.slane %v545, %v558
      %v560 = vcombine.high %v552, %v552
      %v561 = vcombine.high %v559, %v559
      %v563 = vunpack.c.l.s4 1966171168
      %v564 = vunpack.c.0.s8 %v563
      %v565 = vlaneseq
      %v566 = vshrl.u32 %v565, 7
      %v567 = vsub.s32 %v564, %v566
      %v568 = vrot.slane %v552, %v567
      %v570 = vunpack.c.l.s4 1966171168
      %v571 = vunpack.c.0.s8 %v570
      %v572 = vlaneseq
      %v573 = vshrl.u32 %v572, 7
      %v574 = vsub.s32 %v571, %v573
      %v575 = vrot.slane %v559, %v574
      %v577 = vunpack.c.l.s4 1966171168
      %v578 = vunpack.c.0.s8 %v577
      %v579 = vlaneseq
      %v580 = vshrl.u32 %v579, 7
      %v581 = vsub.s32 %v578, %v580
      %v582 = vrot.slane %v560, %v581
      %v584 = vunpack.c.l.s4 1966171168
      %v585 = vunpack.c.0.s8 %v584
      %v586 = vlaneseq
      %v587 = vshrl.u32 %v586, 7
      %v588 = vsub.s32 %v585, %v587
      %v589 = vrot.slane %v561, %v588
      %v590 = vcombine.high %v568, %v568
      %v591 = vcombine.high %v575, %v575
      %v592 = vcombine.high %v582, %v582
      %v593 = vcombine.high %v589, %v589
      %610 = vst.msk [vmem:[#allocation3 + $0x2] sm:$0x1] %vm347, %v519
      %611 = vst.msk [vmem:[#allocation3 + $0x12] sm:$0x1] %vm347, %v533
      %612 = vst.msk [vmem:[#allocation3 + $0x22] sm:$0x1] %vm347, %v541
      %613 = vst.msk [vmem:[#allocation3 + $0x32] sm:$0x1] %vm347, %v543
      %614 = vst.msk [vmem:[#allocation3 + $0x42] sm:$0x1] %vm347, %v526
      %615 = vst.msk [vmem:[#allocation3 + $0x52] sm:$0x1] %vm347, %v540
      %616 = vst.msk [vmem:[#allocation3 + $0x62] sm:$0x1] %vm347, %v542
      %617 = vst.msk [vmem:[#allocation3 + $0x72] sm:$0x1] %vm347, %v544
      %618 = vst.msk [vmem:[#allocation3 + $0x82] sm:$0x1] %vm347, %v568
      %619 = vst.msk [vmem:[#allocation3 + $0x92] sm:$0x1] %vm347, %v582
      %620 = vst.msk [vmem:[#allocation3 + $0xa2] sm:$0x1] %vm347, %v590
      %621 = vst.msk [vmem:[#allocation3 + $0xb2] sm:$0x1] %vm347, %v592
      %622 = vst.msk [vmem:[#allocation3 + $0xc2] sm:$0x1] %vm347, %v575
      %623 = vst.msk [vmem:[#allocation3 + $0xd2] sm:$0x1] %vm347, %v589
      %624 = vst.msk [vmem:[#allocation3 + $0xe2] sm:$0x1] %vm347, %v591
      %625 = vst.msk [vmem:[#allocation3 + $0xf2] sm:$0x1] %vm347, %v593
      %v626 = vlaneseq
      %v627 = vshrl.u32 %v626, 7
      %v628 = vsub.s32 0, %v627
      %v629 = vrot.slane %v519, %v628
      %v630 = vlaneseq
      %v631 = vshrl.u32 %v630, 7
      %v632 = vsub.s32 0, %v631
      %v633 = vrot.slane %v533, %v632
      %v634 = vlaneseq
      %v635 = vshrl.u32 %v634, 7
      %v636 = vsub.s32 0, %v635
      %v637 = vrot.slane %v541, %v636
      %v638 = vlaneseq
      %v639 = vshrl.u32 %v638, 7
      %v640 = vsub.s32 0, %v639
      %v641 = vrot.slane %v543, %v640
      %v642 = vlaneseq
      %v643 = vshrl.u32 %v642, 7
      %v644 = vsub.s32 0, %v643
      %v645 = vrot.slane %v526, %v644
      %v646 = vlaneseq
      %v647 = vshrl.u32 %v646, 7
      %v648 = vsub.s32 0, %v647
      %v649 = vrot.slane %v540, %v648
      %v650 = vlaneseq
      %v651 = vshrl.u32 %v650, 7
      %v652 = vsub.s32 0, %v651
      %v653 = vrot.slane %v542, %v652
      %v654 = vlaneseq
      %v655 = vshrl.u32 %v654, 7
      %v656 = vsub.s32 0, %v655
      %v657 = vrot.slane %v544, %v656
      %v658 = vlaneseq
      %v659 = vshrl.u32 %v658, 7
      %v660 = vsub.s32 0, %v659
      %v661 = vrot.slane %v568, %v660
      %v662 = vlaneseq
      %v663 = vshrl.u32 %v662, 7
      %v664 = vsub.s32 0, %v663
      %v665 = vrot.slane %v582, %v664
      %v666 = vlaneseq
      %v667 = vshrl.u32 %v666, 7
      %v668 = vsub.s32 0, %v667
      %v669 = vrot.slane %v590, %v668
      %v670 = vlaneseq
      %v671 = vshrl.u32 %v670, 7
      %v672 = vsub.s32 0, %v671
      %v673 = vrot.slane %v592, %v672
      %v674 = vlaneseq
      %v675 = vshrl.u32 %v674, 7
      %v676 = vsub.s32 0, %v675
      %v677 = vrot.slane %v575, %v676
      %v678 = vlaneseq
      %v679 = vshrl.u32 %v678, 7
      %v680 = vsub.s32 0, %v679
      %v681 = vrot.slane %v589, %v680
      %v682 = vlaneseq
      %v683 = vshrl.u32 %v682, 7
      %v684 = vsub.s32 0, %v683
      %v685 = vrot.slane %v591, %v684
      %v686 = vlaneseq
      %v687 = vshrl.u32 %v686, 7
      %v688 = vsub.s32 0, %v687
      %v689 = vrot.slane %v593, %v688
      %690 = vrot.lane.b32.xlu0 %v629, 127
      %v691 = vpop.permute.xlu0 %690
      %692 = vrot.lane.b32.xlu0 %v633, 127
      %v693 = vpop.permute.xlu0 %692
      %694 = vrot.lane.b32.xlu0 %v637, 127
      %v695 = vpop.permute.xlu0 %694
      %696 = vrot.lane.b32.xlu0 %v641, 127
      %v697 = vpop.permute.xlu0 %696
      %698 = vrot.lane.b32.xlu0 %v645, 127
      %v699 = vpop.permute.xlu0 %698
      %700 = vrot.lane.b32.xlu0 %v649, 127
      %v701 = vpop.permute.xlu0 %700
      %702 = vrot.lane.b32.xlu0 %v653, 127
      %v703 = vpop.permute.xlu0 %702
      %704 = vrot.lane.b32.xlu0 %v657, 127
      %v705 = vpop.permute.xlu0 %704
      %706 = vrot.lane.b32.xlu0 %v661, 127
      %v707 = vpop.permute.xlu0 %706
      %708 = vrot.lane.b32.xlu0 %v665, 127
      %v709 = vpop.permute.xlu0 %708
      %710 = vrot.lane.b32.xlu0 %v669, 127
      %v711 = vpop.permute.xlu0 %710
      %712 = vrot.lane.b32.xlu0 %v673, 127
      %v713 = vpop.permute.xlu0 %712
      %714 = vrot.lane.b32.xlu0 %v677, 127
      %v715 = vpop.permute.xlu0 %714
      %716 = vrot.lane.b32.xlu0 %v681, 127
      %v717 = vpop.permute.xlu0 %716
      %718 = vrot.lane.b32.xlu0 %v685, 127
      %v719 = vpop.permute.xlu0 %718
      %720 = vrot.lane.b32.xlu0 %v689, 127
      %v721 = vpop.permute.xlu0 %720
      %738 = vst.msk [vmem:[#allocation3 + $0x3] sm:$0x1] %vm347, %v691
      %739 = vst.msk [vmem:[#allocation3 + $0x13] sm:$0x1] %vm347, %v693
      %740 = vst.msk [vmem:[#allocation3 + $0x23] sm:$0x1] %vm347, %v695
      %741 = vst.msk [vmem:[#allocation3 + $0x33] sm:$0x1] %vm347, %v697
      %742 = vst.msk [vmem:[#allocation3 + $0x43] sm:$0x1] %vm347, %v699
      %743 = vst.msk [vmem:[#allocation3 + $0x53] sm:$0x1] %vm347, %v701
      %744 = vst.msk [vmem:[#allocation3 + $0x63] sm:$0x1] %vm347, %v703
      %745 = vst.msk [vmem:[#allocation3 + $0x73] sm:$0x1] %vm347, %v705
      %746 = vst.msk [vmem:[#allocation3 + $0x83] sm:$0x1] %vm347, %v707
      %747 = vst.msk [vmem:[#allocation3 + $0x93] sm:$0x1] %vm347, %v709
      %748 = vst.msk [vmem:[#allocation3 + $0xa3] sm:$0x1] %vm347, %v711
      %749 = vst.msk [vmem:[#allocation3 + $0xb3] sm:$0x1] %vm347, %v713
      %750 = vst.msk [vmem:[#allocation3 + $0xc3] sm:$0x1] %vm347, %v715
      %751 = vst.msk [vmem:[#allocation3 + $0xd3] sm:$0x1] %vm347, %v717
      %752 = vst.msk [vmem:[#allocation3 + $0xe3] sm:$0x1] %vm347, %v719
      %753 = vst.msk [vmem:[#allocation3 + $0xf3] sm:$0x1] %vm347, %v721
      %s754 = scalar_lea.vmem [#allocation2], 24
      %v755 = vld [vmem:[%s754] sm:$0xff]
      %v756 = vld [vmem:[%s754 + $0x8] sm:$0xff]
      %v759 = vcombine.high %v755, %v755
      %v761 = vunpack.c.l.s4 1966171168
      %v762 = vunpack.c.0.s8 %v761
      %v763 = vlaneseq
      %v764 = vshrl.u32 %v763, 7
      %v765 = vsub.s32 %v762, %v764
      %v766 = vrot.slane %v755, %v765
      %v768 = vunpack.c.l.s4 1966171168
      %v769 = vunpack.c.0.s8 %v768
      %v770 = vlaneseq
      %v771 = vshrl.u32 %v770, 7
      %v772 = vsub.s32 %v769, %v771
      %v773 = vrot.slane %v759, %v772
      %v774 = vcombine.high %v766, %v766
      %v775 = vcombine.high %v773, %v773
      %v777 = vunpack.c.l.s4 1966171168
      %v778 = vunpack.c.0.s8 %v777
      %v779 = vlaneseq
      %v780 = vshrl.u32 %v779, 7
      %v781 = vsub.s32 %v778, %v780
      %v782 = vrot.slane %v766, %v781
      %v784 = vunpack.c.l.s4 1966171168
      %v785 = vunpack.c.0.s8 %v784
      %v786 = vlaneseq
      %v787 = vshrl.u32 %v786, 7
      %v788 = vsub.s32 %v785, %v787
      %v789 = vrot.slane %v773, %v788
      %v791 = vunpack.c.l.s4 1966171168
      %v792 = vunpack.c.0.s8 %v791
      %v793 = vlaneseq
      %v794 = vshrl.u32 %v793, 7
      %v795 = vsub.s32 %v792, %v794
      %v796 = vrot.slane %v774, %v795
      %v798 = vunpack.c.l.s4 1966171168
      %v799 = vunpack.c.0.s8 %v798
      %v800 = vlaneseq
      %v801 = vshrl.u32 %v800, 7
      %v802 = vsub.s32 %v799, %v801
      %v803 = vrot.slane %v775, %v802
      %v804 = vcombine.high %v782, %v782
      %v805 = vcombine.high %v789, %v789
      %v806 = vcombine.high %v796, %v796
      %v807 = vcombine.high %v803, %v803
      %v808 = vcombine.high %v756, %v756
      %v810 = vunpack.c.l.s4 1966171168
      %v811 = vunpack.c.0.s8 %v810
      %v812 = vlaneseq
      %v813 = vshrl.u32 %v812, 7
      %v814 = vsub.s32 %v811, %v813
      %v815 = vrot.slane %v756, %v814
      %v817 = vunpack.c.l.s4 1966171168
      %v818 = vunpack.c.0.s8 %v817
      %v819 = vlaneseq
      %v820 = vshrl.u32 %v819, 7
      %v821 = vsub.s32 %v818, %v820
      %v822 = vrot.slane %v808, %v821
      %v823 = vcombine.high %v815, %v815
      %v824 = vcombine.high %v822, %v822
      %v826 = vunpack.c.l.s4 1966171168
      %v827 = vunpack.c.0.s8 %v826
      %v828 = vlaneseq
      %v829 = vshrl.u32 %v828, 7
      %v830 = vsub.s32 %v827, %v829
      %v831 = vrot.slane %v815, %v830
      %v833 = vunpack.c.l.s4 1966171168
      %v834 = vunpack.c.0.s8 %v833
      %v835 = vlaneseq
      %v836 = vshrl.u32 %v835, 7
      %v837 = vsub.s32 %v834, %v836
      %v838 = vrot.slane %v822, %v837
      %v840 = vunpack.c.l.s4 1966171168
      %v841 = vunpack.c.0.s8 %v840
      %v842 = vlaneseq
      %v843 = vshrl.u32 %v842, 7
      %v844 = vsub.s32 %v841, %v843
      %v845 = vrot.slane %v823, %v844
      %v847 = vunpack.c.l.s4 1966171168
      %v848 = vunpack.c.0.s8 %v847
      %v849 = vlaneseq
      %v850 = vshrl.u32 %v849, 7
      %v851 = vsub.s32 %v848, %v850
      %v852 = vrot.slane %v824, %v851
      %v853 = vcombine.high %v831, %v831
      %v854 = vcombine.high %v838, %v838
      %v855 = vcombine.high %v845, %v845
      %v856 = vcombine.high %v852, %v852
      %873 = vst.msk [vmem:[#allocation3 + $0x4] sm:$0x1] %vm347, %v782
      %874 = vst.msk [vmem:[#allocation3 + $0x14] sm:$0x1] %vm347, %v796
      %875 = vst.msk [vmem:[#allocation3 + $0x24] sm:$0x1] %vm347, %v804
      %876 = vst.msk [vmem:[#allocation3 + $0x34] sm:$0x1] %vm347, %v806
      %877 = vst.msk [vmem:[#allocation3 + $0x44] sm:$0x1] %vm347, %v789
      %878 = vst.msk [vmem:[#allocation3 + $0x54] sm:$0x1] %vm347, %v803
      %879 = vst.msk [vmem:[#allocation3 + $0x64] sm:$0x1] %vm347, %v805
      %880 = vst.msk [vmem:[#allocation3 + $0x74] sm:$0x1] %vm347, %v807
      %881 = vst.msk [vmem:[#allocation3 + $0x84] sm:$0x1] %vm347, %v831
      %882 = vst.msk [vmem:[#allocation3 + $0x94] sm:$0x1] %vm347, %v845
      %883 = vst.msk [vmem:[#allocation3 + $0xa4] sm:$0x1] %vm347, %v853
      %884 = vst.msk [vmem:[#allocation3 + $0xb4] sm:$0x1] %vm347, %v855
      %885 = vst.msk [vmem:[#allocation3 + $0xc4] sm:$0x1] %vm347, %v838
      %886 = vst.msk [vmem:[#allocation3 + $0xd4] sm:$0x1] %vm347, %v852
      %887 = vst.msk [vmem:[#allocation3 + $0xe4] sm:$0x1] %vm347, %v854
      %888 = vst.msk [vmem:[#allocation3 + $0xf4] sm:$0x1] %vm347, %v856
      %v889 = vlaneseq
      %v890 = vshrl.u32 %v889, 7
      %v891 = vsub.s32 0, %v890
      %v892 = vrot.slane %v782, %v891
      %v893 = vlaneseq
      %v894 = vshrl.u32 %v893, 7
      %v895 = vsub.s32 0, %v894
      %v896 = vrot.slane %v796, %v895
      %v897 = vlaneseq
      %v898 = vshrl.u32 %v897, 7
      %v899 = vsub.s32 0, %v898
      %v900 = vrot.slane %v804, %v899
      %v901 = vlaneseq
      %v902 = vshrl.u32 %v901, 7
      %v903 = vsub.s32 0, %v902
      %v904 = vrot.slane %v806, %v903
      %v905 = vlaneseq
      %v906 = vshrl.u32 %v905, 7
      %v907 = vsub.s32 0, %v906
      %v908 = vrot.slane %v789, %v907
      %v909 = vlaneseq
      %v910 = vshrl.u32 %v909, 7
      %v911 = vsub.s32 0, %v910
      %v912 = vrot.slane %v803, %v911
      %v913 = vlaneseq
      %v914 = vshrl.u32 %v913, 7
      %v915 = vsub.s32 0, %v914
      %v916 = vrot.slane %v805, %v915
      %v917 = vlaneseq
      %v918 = vshrl.u32 %v917, 7
      %v919 = vsub.s32 0, %v918
      %v920 = vrot.slane %v807, %v919
      %v921 = vlaneseq
      %v922 = vshrl.u32 %v921, 7
      %v923 = vsub.s32 0, %v922
      %v924 = vrot.slane %v831, %v923
      %v925 = vlaneseq
      %v926 = vshrl.u32 %v925, 7
      %v927 = vsub.s32 0, %v926
      %v928 = vrot.slane %v845, %v927
      %v929 = vlaneseq
      %v930 = vshrl.u32 %v929, 7
      %v931 = vsub.s32 0, %v930
      %v932 = vrot.slane %v853, %v931
      %v933 = vlaneseq
      %v934 = vshrl.u32 %v933, 7
      %v935 = vsub.s32 0, %v934
      %v936 = vrot.slane %v855, %v935
      %v937 = vlaneseq
      %v938 = vshrl.u32 %v937, 7
      %v939 = vsub.s32 0, %v938
      %v940 = vrot.slane %v838, %v939
      %v941 = vlaneseq
      %v942 = vshrl.u32 %v941, 7
      %v943 = vsub.s32 0, %v942
      %v944 = vrot.slane %v852, %v943
      %v945 = vlaneseq
      %v946 = vshrl.u32 %v945, 7
      %v947 = vsub.s32 0, %v946
      %v948 = vrot.slane %v854, %v947
      %v949 = vlaneseq
      %v950 = vshrl.u32 %v949, 7
      %v951 = vsub.s32 0, %v950
      %v952 = vrot.slane %v856, %v951
      %953 = vrot.lane.b32.xlu0 %v892, 127
      %v954 = vpop.permute.xlu0 %953
      %955 = vrot.lane.b32.xlu0 %v896, 127
      %v956 = vpop.permute.xlu0 %955
      %957 = vrot.lane.b32.xlu0 %v900, 127
      %v958 = vpop.permute.xlu0 %957
      %959 = vrot.lane.b32.xlu0 %v904, 127
      %v960 = vpop.permute.xlu0 %959
      %961 = vrot.lane.b32.xlu0 %v908, 127
      %v962 = vpop.permute.xlu0 %961
      %963 = vrot.lane.b32.xlu0 %v912, 127
      %v964 = vpop.permute.xlu0 %963
      %965 = vrot.lane.b32.xlu0 %v916, 127
      %v966 = vpop.permute.xlu0 %965
      %967 = vrot.lane.b32.xlu0 %v920, 127
      %v968 = vpop.permute.xlu0 %967
      %969 = vrot.lane.b32.xlu0 %v924, 127
      %v970 = vpop.permute.xlu0 %969
      %971 = vrot.lane.b32.xlu0 %v928, 127
      %v972 = vpop.permute.xlu0 %971
      %973 = vrot.lane.b32.xlu0 %v932, 127
      %v974 = vpop.permute.xlu0 %973
      %975 = vrot.lane.b32.xlu0 %v936, 127
      %v976 = vpop.permute.xlu0 %975
      %977 = vrot.lane.b32.xlu0 %v940, 127
      %v978 = vpop.permute.xlu0 %977
      %979 = vrot.lane.b32.xlu0 %v944, 127
      %v980 = vpop.permute.xlu0 %979
      %981 = vrot.lane.b32.xlu0 %v948, 127
      %v982 = vpop.permute.xlu0 %981
      %983 = vrot.lane.b32.xlu0 %v952, 127
      %v984 = vpop.permute.xlu0 %983
      %1001 = vst.msk [vmem:[#allocation3 + $0x5] sm:$0x1] %vm347, %v954
      %1002 = vst.msk [vmem:[#allocation3 + $0x15] sm:$0x1] %vm347, %v956
      %1003 = vst.msk [vmem:[#allocation3 + $0x25] sm:$0x1] %vm347, %v958
      %1004 = vst.msk [vmem:[#allocation3 + $0x35] sm:$0x1] %vm347, %v960
      %1005 = vst.msk [vmem:[#allocation3 + $0x45] sm:$0x1] %vm347, %v962
      %1006 = vst.msk [vmem:[#allocation3 + $0x55] sm:$0x1] %vm347, %v964
      %1007 = vst.msk [vmem:[#allocation3 + $0x65] sm:$0x1] %vm347, %v966
      %1008 = vst.msk [vmem:[#allocation3 + $0x75] sm:$0x1] %vm347, %v968
      %1009 = vst.msk [vmem:[#allocation3 + $0x85] sm:$0x1] %vm347, %v970
      %1010 = vst.msk [vmem:[#allocation3 + $0x95] sm:$0x1] %vm347, %v972
      %1011 = vst.msk [vmem:[#allocation3 + $0xa5] sm:$0x1] %vm347, %v974
      %1012 = vst.msk [vmem:[#allocation3 + $0xb5] sm:$0x1] %vm347, %v976
      %1013 = vst.msk [vmem:[#allocation3 + $0xc5] sm:$0x1] %vm347, %v978
      %1014 = vst.msk [vmem:[#allocation3 + $0xd5] sm:$0x1] %vm347, %v980
      %1015 = vst.msk [vmem:[#allocation3 + $0xe5] sm:$0x1] %vm347, %v982
      %1016 = vst.msk [vmem:[#allocation3 + $0xf5] sm:$0x1] %vm347, %v984
      %v1017 = vld [vmem:[%s754 + $0x1] sm:$0xff]
      %v1018 = vld [vmem:[%s754 + $0x9] sm:$0xff]
      %v1021 = vcombine.high %v1017, %v1017
      %v1023 = vunpack.c.l.s4 1966171168
      %v1024 = vunpack.c.0.s8 %v1023
      %v1025 = vlaneseq
      %v1026 = vshrl.u32 %v1025, 7
      %v1027 = vsub.s32 %v1024, %v1026
      %v1028 = vrot.slane %v1017, %v1027
      %v1030 = vunpack.c.l.s4 1966171168
      %v1031 = vunpack.c.0.s8 %v1030
      %v1032 = vlaneseq
      %v1033 = vshrl.u32 %v1032, 7
      %v1034 = vsub.s32 %v1031, %v1033
      %v1035 = vrot.slane %v1021, %v1034
      %v1036 = vcombine.high %v1028, %v1028
      %v1037 = vcombine.high %v1035, %v1035
      %v1039 = vunpack.c.l.s4 1966171168
      %v1040 = vunpack.c.0.s8 %v1039
      %v1041 = vlaneseq
      %v1042 = vshrl.u32 %v1041, 7
      %v1043 = vsub.s32 %v1040, %v1042
      %v1044 = vrot.slane %v1028, %v1043
      %v1046 = vunpack.c.l.s4 1966171168
      %v1047 = vunpack.c.0.s8 %v1046
      %v1048 = vlaneseq
      %v1049 = vshrl.u32 %v1048, 7
      %v1050 = vsub.s32 %v1047, %v1049
      %v1051 = vrot.slane %v1035, %v1050
      %v1053 = vunpack.c.l.s4 1966171168
      %v1054 = vunpack.c.0.s8 %v1053
      %v1055 = vlaneseq
      %v1056 = vshrl.u32 %v1055, 7
      %v1057 = vsub.s32 %v1054, %v1056
      %v1058 = vrot.slane %v1036, %v1057
      %v1060 = vunpack.c.l.s4 1966171168
      %v1061 = vunpack.c.0.s8 %v1060
      %v1062 = vlaneseq
      %v1063 = vshrl.u32 %v1062, 7
      %v1064 = vsub.s32 %v1061, %v1063
      %v1065 = vrot.slane %v1037, %v1064
      %v1066 = vcombine.high %v1044, %v1044
      %v1067 = vcombine.high %v1051, %v1051
      %v1068 = vcombine.high %v1058, %v1058
      %v1069 = vcombine.high %v1065, %v1065
      %v1070 = vcombine.high %v1018, %v1018
      %v1072 = vunpack.c.l.s4 1966171168
      %v1073 = vunpack.c.0.s8 %v1072
      %v1074 = vlaneseq
      %v1075 = vshrl.u32 %v1074, 7
      %v1076 = vsub.s32 %v1073, %v1075
      %v1077 = vrot.slane %v1018, %v1076
      %v1079 = vunpack.c.l.s4 1966171168
      %v1080 = vunpack.c.0.s8 %v1079
      %v1081 = vlaneseq
      %v1082 = vshrl.u32 %v1081, 7
      %v1083 = vsub.s32 %v1080, %v1082
      %v1084 = vrot.slane %v1070, %v1083
      %v1085 = vcombine.high %v1077, %v1077
      %v1086 = vcombine.high %v1084, %v1084
      %v1088 = vunpack.c.l.s4 1966171168
      %v1089 = vunpack.c.0.s8 %v1088
      %v1090 = vlaneseq
      %v1091 = vshrl.u32 %v1090, 7
      %v1092 = vsub.s32 %v1089, %v1091
      %v1093 = vrot.slane %v1077, %v1092
      %v1095 = vunpack.c.l.s4 1966171168
      %v1096 = vunpack.c.0.s8 %v1095
      %v1097 = vlaneseq
      %v1098 = vshrl.u32 %v1097, 7
      %v1099 = vsub.s32 %v1096, %v1098
      %v1100 = vrot.slane %v1084, %v1099
      %v1102 = vunpack.c.l.s4 1966171168
      %v1103 = vunpack.c.0.s8 %v1102
      %v1104 = vlaneseq
      %v1105 = vshrl.u32 %v1104, 7
      %v1106 = vsub.s32 %v1103, %v1105
      %v1107 = vrot.slane %v1085, %v1106
      %v1109 = vunpack.c.l.s4 1966171168
      %v1110 = vunpack.c.0.s8 %v1109
      %v1111 = vlaneseq
      %v1112 = vshrl.u32 %v1111, 7
      %v1113 = vsub.s32 %v1110, %v1112
      %v1114 = vrot.slane %v1086, %v1113
      %v1115 = vcombine.high %v1093, %v1093
      %v1116 = vcombine.high %v1100, %v1100
      %v1117 = vcombine.high %v1107, %v1107
      %v1118 = vcombine.high %v1114, %v1114
      %1135 = vst.msk [vmem:[#allocation3 + $0x6] sm:$0x1] %vm347, %v1044
      %1136 = vst.msk [vmem:[#allocation3 + $0x16] sm:$0x1] %vm347, %v1058
      %1137 = vst.msk [vmem:[#allocation3 + $0x26] sm:$0x1] %vm347, %v1066
      %1138 = vst.msk [vmem:[#allocation3 + $0x36] sm:$0x1] %vm347, %v1068
      %1139 = vst.msk [vmem:[#allocation3 + $0x46] sm:$0x1] %vm347, %v1051
      %1140 = vst.msk [vmem:[#allocation3 + $0x56] sm:$0x1] %vm347, %v1065
      %1141 = vst.msk [vmem:[#allocation3 + $0x66] sm:$0x1] %vm347, %v1067
      %1142 = vst.msk [vmem:[#allocation3 + $0x76] sm:$0x1] %vm347, %v1069
      %1143 = vst.msk [vmem:[#allocation3 + $0x86] sm:$0x1] %vm347, %v1093
      %1144 = vst.msk [vmem:[#allocation3 + $0x96] sm:$0x1] %vm347, %v1107
      %1145 = vst.msk [vmem:[#allocation3 + $0xa6] sm:$0x1] %vm347, %v1115
      %1146 = vst.msk [vmem:[#allocation3 + $0xb6] sm:$0x1] %vm347, %v1117
      %1147 = vst.msk [vmem:[#allocation3 + $0xc6] sm:$0x1] %vm347, %v1100
      %1148 = vst.msk [vmem:[#allocation3 + $0xd6] sm:$0x1] %vm347, %v1114
      %1149 = vst.msk [vmem:[#allocation3 + $0xe6] sm:$0x1] %vm347, %v1116
      %1150 = vst.msk [vmem:[#allocation3 + $0xf6] sm:$0x1] %vm347, %v1118
      %v1151 = vlaneseq
      %v1152 = vshrl.u32 %v1151, 7
      %v1153 = vsub.s32 0, %v1152
      %v1154 = vrot.slane %v1044, %v1153
      %v1155 = vlaneseq
      %v1156 = vshrl.u32 %v1155, 7
      %v1157 = vsub.s32 0, %v1156
      %v1158 = vrot.slane %v1058, %v1157
      %v1159 = vlaneseq
      %v1160 = vshrl.u32 %v1159, 7
      %v1161 = vsub.s32 0, %v1160
      %v1162 = vrot.slane %v1066, %v1161
      %v1163 = vlaneseq
      %v1164 = vshrl.u32 %v1163, 7
      %v1165 = vsub.s32 0, %v1164
      %v1166 = vrot.slane %v1068, %v1165
      %v1167 = vlaneseq
      %v1168 = vshrl.u32 %v1167, 7
      %v1169 = vsub.s32 0, %v1168
      %v1170 = vrot.slane %v1051, %v1169
      %v1171 = vlaneseq
      %v1172 = vshrl.u32 %v1171, 7
      %v1173 = vsub.s32 0, %v1172
      %v1174 = vrot.slane %v1065, %v1173
      %v1175 = vlaneseq
      %v1176 = vshrl.u32 %v1175, 7
      %v1177 = vsub.s32 0, %v1176
      %v1178 = vrot.slane %v1067, %v1177
      %v1179 = vlaneseq
      %v1180 = vshrl.u32 %v1179, 7
      %v1181 = vsub.s32 0, %v1180
      %v1182 = vrot.slane %v1069, %v1181
      %v1183 = vlaneseq
      %v1184 = vshrl.u32 %v1183, 7
      %v1185 = vsub.s32 0, %v1184
      %v1186 = vrot.slane %v1093, %v1185
      %v1187 = vlaneseq
      %v1188 = vshrl.u32 %v1187, 7
      %v1189 = vsub.s32 0, %v1188
      %v1190 = vrot.slane %v1107, %v1189
      %v1191 = vlaneseq
      %v1192 = vshrl.u32 %v1191, 7
      %v1193 = vsub.s32 0, %v1192
      %v1194 = vrot.slane %v1115, %v1193
      %v1195 = vlaneseq
      %v1196 = vshrl.u32 %v1195, 7
      %v1197 = vsub.s32 0, %v1196
      %v1198 = vrot.slane %v1117, %v1197
      %v1199 = vlaneseq
      %v1200 = vshrl.u32 %v1199, 7
      %v1201 = vsub.s32 0, %v1200
      %v1202 = vrot.slane %v1100, %v1201
      %v1203 = vlaneseq
      %v1204 = vshrl.u32 %v1203, 7
      %v1205 = vsub.s32 0, %v1204
      %v1206 = vrot.slane %v1114, %v1205
      %v1207 = vlaneseq
      %v1208 = vshrl.u32 %v1207, 7
      %v1209 = vsub.s32 0, %v1208
      %v1210 = vrot.slane %v1116, %v1209
      %v1211 = vlaneseq
      %v1212 = vshrl.u32 %v1211, 7
      %v1213 = vsub.s32 0, %v1212
      %v1214 = vrot.slane %v1118, %v1213
      %1215 = vrot.lane.b32.xlu0 %v1154, 127
      %v1216 = vpop.permute.xlu0 %1215
      %1217 = vrot.lane.b32.xlu0 %v1158, 127
      %v1218 = vpop.permute.xlu0 %1217
      %1219 = vrot.lane.b32.xlu0 %v1162, 127
      %v1220 = vpop.permute.xlu0 %1219
      %1221 = vrot.lane.b32.xlu0 %v1166, 127
      %v1222 = vpop.permute.xlu0 %1221
      %1223 = vrot.lane.b32.xlu0 %v1170, 127
      %v1224 = vpop.permute.xlu0 %1223
      %1225 = vrot.lane.b32.xlu0 %v1174, 127
      %v1226 = vpop.permute.xlu0 %1225
      %1227 = vrot.lane.b32.xlu0 %v1178, 127
      %v1228 = vpop.permute.xlu0 %1227
      %1229 = vrot.lane.b32.xlu0 %v1182, 127
      %v1230 = vpop.permute.xlu0 %1229
      %1231 = vrot.lane.b32.xlu0 %v1186, 127
      %v1232 = vpop.permute.xlu0 %1231
      %1233 = vrot.lane.b32.xlu0 %v1190, 127
      %v1234 = vpop.permute.xlu0 %1233
      %1235 = vrot.lane.b32.xlu0 %v1194, 127
      %v1236 = vpop.permute.xlu0 %1235
      %1237 = vrot.lane.b32.xlu0 %v1198, 127
      %v1238 = vpop.permute.xlu0 %1237
      %1239 = vrot.lane.b32.xlu0 %v1202, 127
      %v1240 = vpop.permute.xlu0 %1239
      %1241 = vrot.lane.b32.xlu0 %v1206, 127
      %v1242 = vpop.permute.xlu0 %1241
      %1243 = vrot.lane.b32.xlu0 %v1210, 127
      %v1244 = vpop.permute.xlu0 %1243
      %1245 = vrot.lane.b32.xlu0 %v1214, 127
      %v1246 = vpop.permute.xlu0 %1245
      %1263 = vst.msk [vmem:[#allocation3 + $0x7] sm:$0x1] %vm347, %v1216
      %1264 = vst.msk [vmem:[#allocation3 + $0x17] sm:$0x1] %vm347, %v1218
      %1265 = vst.msk [vmem:[#allocation3 + $0x27] sm:$0x1] %vm347, %v1220
      %1266 = vst.msk [vmem:[#allocation3 + $0x37] sm:$0x1] %vm347, %v1222
      %1267 = vst.msk [vmem:[#allocation3 + $0x47] sm:$0x1] %vm347, %v1224
      %1268 = vst.msk [vmem:[#allocation3 + $0x57] sm:$0x1] %vm347, %v1226
      %1269 = vst.msk [vmem:[#allocation3 + $0x67] sm:$0x1] %vm347, %v1228
      %1270 = vst.msk [vmem:[#allocation3 + $0x77] sm:$0x1] %vm347, %v1230
      %1271 = vst.msk [vmem:[#allocation3 + $0x87] sm:$0x1] %vm347, %v1232
      %1272 = vst.msk [vmem:[#allocation3 + $0x97] sm:$0x1] %vm347, %v1234
      %1273 = vst.msk [vmem:[#allocation3 + $0xa7] sm:$0x1] %vm347, %v1236
      %1274 = vst.msk [vmem:[#allocation3 + $0xb7] sm:$0x1] %vm347, %v1238
      %1275 = vst.msk [vmem:[#allocation3 + $0xc7] sm:$0x1] %vm347, %v1240
      %1276 = vst.msk [vmem:[#allocation3 + $0xd7] sm:$0x1] %vm347, %v1242
      %1277 = vst.msk [vmem:[#allocation3 + $0xe7] sm:$0x1] %vm347, %v1244
      %1278 = vst.msk [vmem:[#allocation3 + $0xf7] sm:$0x1] %vm347, %v1246
      %s1279 = scalar_lea.vmem [#allocation2], 48
      %v1280 = vld [vmem:[%s1279] sm:$0xff]
      %v1281 = vld [vmem:[%s1279 + $0x8] sm:$0xff]
      %v1284 = vcombine.high %v1280, %v1280
      %v1286 = vunpack.c.l.s4 1966171168
      %v1287 = vunpack.c.0.s8 %v1286
      %v1288 = vlaneseq
      %v1289 = vshrl.u32 %v1288, 7
      %v1290 = vsub.s32 %v1287, %v1289
      %v1291 = vrot.slane %v1280, %v1290
      %v1293 = vunpack.c.l.s4 1966171168
      %v1294 = vunpack.c.0.s8 %v1293
      %v1295 = vlaneseq
      %v1296 = vshrl.u32 %v1295, 7
      %v1297 = vsub.s32 %v1294, %v1296
      %v1298 = vrot.slane %v1284, %v1297
      %v1299 = vcombine.high %v1291, %v1291
      %v1300 = vcombine.high %v1298, %v1298
      %v1302 = vunpack.c.l.s4 1966171168
      %v1303 = vunpack.c.0.s8 %v1302
      %v1304 = vlaneseq
      %v1305 = vshrl.u32 %v1304, 7
      %v1306 = vsub.s32 %v1303, %v1305
      %v1307 = vrot.slane %v1291, %v1306
      %v1309 = vunpack.c.l.s4 1966171168
      %v1310 = vunpack.c.0.s8 %v1309
      %v1311 = vlaneseq
      %v1312 = vshrl.u32 %v1311, 7
      %v1313 = vsub.s32 %v1310, %v1312
      %v1314 = vrot.slane %v1298, %v1313
      %v1316 = vunpack.c.l.s4 1966171168
      %v1317 = vunpack.c.0.s8 %v1316
      %v1318 = vlaneseq
      %v1319 = vshrl.u32 %v1318, 7
      %v1320 = vsub.s32 %v1317, %v1319
      %v1321 = vrot.slane %v1299, %v1320
      %v1323 = vunpack.c.l.s4 1966171168
      %v1324 = vunpack.c.0.s8 %v1323
      %v1325 = vlaneseq
      %v1326 = vshrl.u32 %v1325, 7
      %v1327 = vsub.s32 %v1324, %v1326
      %v1328 = vrot.slane %v1300, %v1327
      %v1329 = vcombine.high %v1307, %v1307
      %v1330 = vcombine.high %v1314, %v1314
      %v1331 = vcombine.high %v1321, %v1321
      %v1332 = vcombine.high %v1328, %v1328
      %v1333 = vcombine.high %v1281, %v1281
      %v1335 = vunpack.c.l.s4 1966171168
      %v1336 = vunpack.c.0.s8 %v1335
      %v1337 = vlaneseq
      %v1338 = vshrl.u32 %v1337, 7
      %v1339 = vsub.s32 %v1336, %v1338
      %v1340 = vrot.slane %v1281, %v1339
      %v1342 = vunpack.c.l.s4 1966171168
      %v1343 = vunpack.c.0.s8 %v1342
      %v1344 = vlaneseq
      %v1345 = vshrl.u32 %v1344, 7
      %v1346 = vsub.s32 %v1343, %v1345
      %v1347 = vrot.slane %v1333, %v1346
      %v1348 = vcombine.high %v1340, %v1340
      %v1349 = vcombine.high %v1347, %v1347
      %v1351 = vunpack.c.l.s4 1966171168
      %v1352 = vunpack.c.0.s8 %v1351
      %v1353 = vlaneseq
      %v1354 = vshrl.u32 %v1353, 7
      %v1355 = vsub.s32 %v1352, %v1354
      %v1356 = vrot.slane %v1340, %v1355
      %v1358 = vunpack.c.l.s4 1966171168
      %v1359 = vunpack.c.0.s8 %v1358
      %v1360 = vlaneseq
      %v1361 = vshrl.u32 %v1360, 7
      %v1362 = vsub.s32 %v1359, %v1361
      %v1363 = vrot.slane %v1347, %v1362
      %v1365 = vunpack.c.l.s4 1966171168
      %v1366 = vunpack.c.0.s8 %v1365
      %v1367 = vlaneseq
      %v1368 = vshrl.u32 %v1367, 7
      %v1369 = vsub.s32 %v1366, %v1368
      %v1370 = vrot.slane %v1348, %v1369
      %v1372 = vunpack.c.l.s4 1966171168
      %v1373 = vunpack.c.0.s8 %v1372
      %v1374 = vlaneseq
      %v1375 = vshrl.u32 %v1374, 7
      %v1376 = vsub.s32 %v1373, %v1375
      %v1377 = vrot.slane %v1349, %v1376
      %v1378 = vcombine.high %v1356, %v1356
      %v1379 = vcombine.high %v1363, %v1363
      %v1380 = vcombine.high %v1370, %v1370
      %v1381 = vcombine.high %v1377, %v1377
      %1398 = vst.msk [vmem:[#allocation3 + $0x8] sm:$0x1] %vm347, %v1307
      %1399 = vst.msk [vmem:[#allocation3 + $0x18] sm:$0x1] %vm347, %v1321
      %1400 = vst.msk [vmem:[#allocation3 + $0x28] sm:$0x1] %vm347, %v1329
      %1401 = vst.msk [vmem:[#allocation3 + $0x38] sm:$0x1] %vm347, %v1331
      %1402 = vst.msk [vmem:[#allocation3 + $0x48] sm:$0x1] %vm347, %v1314
      %1403 = vst.msk [vmem:[#allocation3 + $0x58] sm:$0x1] %vm347, %v1328
      %1404 = vst.msk [vmem:[#allocation3 + $0x68] sm:$0x1] %vm347, %v1330
      %1405 = vst.msk [vmem:[#allocation3 + $0x78] sm:$0x1] %vm347, %v1332
      %1406 = vst.msk [vmem:[#allocation3 + $0x88] sm:$0x1] %vm347, %v1356
      %1407 = vst.msk [vmem:[#allocation3 + $0x98] sm:$0x1] %vm347, %v1370
      %1408 = vst.msk [vmem:[#allocation3 + $0xa8] sm:$0x1] %vm347, %v1378
      %1409 = vst.msk [vmem:[#allocation3 + $0xb8] sm:$0x1] %vm347, %v1380
      %1410 = vst.msk [vmem:[#allocation3 + $0xc8] sm:$0x1] %vm347, %v1363
      %1411 = vst.msk [vmem:[#allocation3 + $0xd8] sm:$0x1] %vm347, %v1377
      %1412 = vst.msk [vmem:[#allocation3 + $0xe8] sm:$0x1] %vm347, %v1379
      %1413 = vst.msk [vmem:[#allocation3 + $0xf8] sm:$0x1] %vm347, %v1381
      %v1414 = vlaneseq
      %v1415 = vshrl.u32 %v1414, 7
      %v1416 = vsub.s32 0, %v1415
      %v1417 = vrot.slane %v1307, %v1416
      %v1418 = vlaneseq
      %v1419 = vshrl.u32 %v1418, 7
      %v1420 = vsub.s32 0, %v1419
      %v1421 = vrot.slane %v1321, %v1420
      %v1422 = vlaneseq
      %v1423 = vshrl.u32 %v1422, 7
      %v1424 = vsub.s32 0, %v1423
      %v1425 = vrot.slane %v1329, %v1424
      %v1426 = vlaneseq
      %v1427 = vshrl.u32 %v1426, 7
      %v1428 = vsub.s32 0, %v1427
      %v1429 = vrot.slane %v1331, %v1428
      %v1430 = vlaneseq
      %v1431 = vshrl.u32 %v1430, 7
      %v1432 = vsub.s32 0, %v1431
      %v1433 = vrot.slane %v1314, %v1432
      %v1434 = vlaneseq
      %v1435 = vshrl.u32 %v1434, 7
      %v1436 = vsub.s32 0, %v1435
      %v1437 = vrot.slane %v1328, %v1436
      %v1438 = vlaneseq
      %v1439 = vshrl.u32 %v1438, 7
      %v1440 = vsub.s32 0, %v1439
      %v1441 = vrot.slane %v1330, %v1440
      %v1442 = vlaneseq
      %v1443 = vshrl.u32 %v1442, 7
      %v1444 = vsub.s32 0, %v1443
      %v1445 = vrot.slane %v1332, %v1444
      %v1446 = vlaneseq
      %v1447 = vshrl.u32 %v1446, 7
      %v1448 = vsub.s32 0, %v1447
      %v1449 = vrot.slane %v1356, %v1448
      %v1450 = vlaneseq
      %v1451 = vshrl.u32 %v1450, 7
      %v1452 = vsub.s32 0, %v1451
      %v1453 = vrot.slane %v1370, %v1452
      %v1454 = vlaneseq
      %v1455 = vshrl.u32 %v1454, 7
      %v1456 = vsub.s32 0, %v1455
      %v1457 = vrot.slane %v1378, %v1456
      %v1458 = vlaneseq
      %v1459 = vshrl.u32 %v1458, 7
      %v1460 = vsub.s32 0, %v1459
      %v1461 = vrot.slane %v1380, %v1460
      %v1462 = vlaneseq
      %v1463 = vshrl.u32 %v1462, 7
      %v1464 = vsub.s32 0, %v1463
      %v1465 = vrot.slane %v1363, %v1464
      %v1466 = vlaneseq
      %v1467 = vshrl.u32 %v1466, 7
      %v1468 = vsub.s32 0, %v1467
      %v1469 = vrot.slane %v1377, %v1468
      %v1470 = vlaneseq
      %v1471 = vshrl.u32 %v1470, 7
      %v1472 = vsub.s32 0, %v1471
      %v1473 = vrot.slane %v1379, %v1472
      %v1474 = vlaneseq
      %v1475 = vshrl.u32 %v1474, 7
      %v1476 = vsub.s32 0, %v1475
      %v1477 = vrot.slane %v1381, %v1476
      %1478 = vrot.lane.b32.xlu0 %v1417, 127
      %v1479 = vpop.permute.xlu0 %1478
      %1480 = vrot.lane.b32.xlu0 %v1421, 127
      %v1481 = vpop.permute.xlu0 %1480
      %1482 = vrot.lane.b32.xlu0 %v1425, 127
      %v1483 = vpop.permute.xlu0 %1482
      %1484 = vrot.lane.b32.xlu0 %v1429, 127
      %v1485 = vpop.permute.xlu0 %1484
      %1486 = vrot.lane.b32.xlu0 %v1433, 127
      %v1487 = vpop.permute.xlu0 %1486
      %1488 = vrot.lane.b32.xlu0 %v1437, 127
      %v1489 = vpop.permute.xlu0 %1488
      %1490 = vrot.lane.b32.xlu0 %v1441, 127
      %v1491 = vpop.permute.xlu0 %1490
      %1492 = vrot.lane.b32.xlu0 %v1445, 127
      %v1493 = vpop.permute.xlu0 %1492
      %1494 = vrot.lane.b32.xlu0 %v1449, 127
      %v1495 = vpop.permute.xlu0 %1494
      %1496 = vrot.lane.b32.xlu0 %v1453, 127
      %v1497 = vpop.permute.xlu0 %1496
      %1498 = vrot.lane.b32.xlu0 %v1457, 127
      %v1499 = vpop.permute.xlu0 %1498
      %1500 = vrot.lane.b32.xlu0 %v1461, 127
      %v1501 = vpop.permute.xlu0 %1500
      %1502 = vrot.lane.b32.xlu0 %v1465, 127
      %v1503 = vpop.permute.xlu0 %1502
      %1504 = vrot.lane.b32.xlu0 %v1469, 127
      %v1505 = vpop.permute.xlu0 %1504
      %1506 = vrot.lane.b32.xlu0 %v1473, 127
      %v1507 = vpop.permute.xlu0 %1506
      %1508 = vrot.lane.b32.xlu0 %v1477, 127
      %v1509 = vpop.permute.xlu0 %1508
      %1526 = vst.msk [vmem:[#allocation3 + $0x9] sm:$0x1] %vm347, %v1479
      %1527 = vst.msk [vmem:[#allocation3 + $0x19] sm:$0x1] %vm347, %v1481
      %1528 = vst.msk [vmem:[#allocation3 + $0x29] sm:$0x1] %vm347, %v1483
      %1529 = vst.msk [vmem:[#allocation3 + $0x39] sm:$0x1] %vm347, %v1485
      %1530 = vst.msk [vmem:[#allocation3 + $0x49] sm:$0x1] %vm347, %v1487
      %1531 = vst.msk [vmem:[#allocation3 + $0x59] sm:$0x1] %vm347, %v1489
      %1532 = vst.msk [vmem:[#allocation3 + $0x69] sm:$0x1] %vm347, %v1491
      %1533 = vst.msk [vmem:[#allocation3 + $0x79] sm:$0x1] %vm347, %v1493
      %1534 = vst.msk [vmem:[#allocation3 + $0x89] sm:$0x1] %vm347, %v1495
      %1535 = vst.msk [vmem:[#allocation3 + $0x99] sm:$0x1] %vm347, %v1497
      %1536 = vst.msk [vmem:[#allocation3 + $0xa9] sm:$0x1] %vm347, %v1499
      %1537 = vst.msk [vmem:[#allocation3 + $0xb9] sm:$0x1] %vm347, %v1501
      %1538 = vst.msk [vmem:[#allocation3 + $0xc9] sm:$0x1] %vm347, %v1503
      %1539 = vst.msk [vmem:[#allocation3 + $0xd9] sm:$0x1] %vm347, %v1505
      %1540 = vst.msk [vmem:[#allocation3 + $0xe9] sm:$0x1] %vm347, %v1507
      %1541 = vst.msk [vmem:[#allocation3 + $0xf9] sm:$0x1] %vm347, %v1509
      %v1542 = vld [vmem:[%s1279 + $0x1] sm:$0xff]
      %v1543 = vld [vmem:[%s1279 + $0x9] sm:$0xff]
      %v1546 = vcombine.high %v1542, %v1542
      %v1548 = vunpack.c.l.s4 1966171168
      %v1549 = vunpack.c.0.s8 %v1548
      %v1550 = vlaneseq
      %v1551 = vshrl.u32 %v1550, 7
      %v1552 = vsub.s32 %v1549, %v1551
      %v1553 = vrot.slane %v1542, %v1552
      %v1555 = vunpack.c.l.s4 1966171168
      %v1556 = vunpack.c.0.s8 %v1555
      %v1557 = vlaneseq
      %v1558 = vshrl.u32 %v1557, 7
      %v1559 = vsub.s32 %v1556, %v1558
      %v1560 = vrot.slane %v1546, %v1559
      %v1561 = vcombine.high %v1553, %v1553
      %v1562 = vcombine.high %v1560, %v1560
      %v1564 = vunpack.c.l.s4 1966171168
      %v1565 = vunpack.c.0.s8 %v1564
      %v1566 = vlaneseq
      %v1567 = vshrl.u32 %v1566, 7
      %v1568 = vsub.s32 %v1565, %v1567
      %v1569 = vrot.slane %v1553, %v1568
      %v1571 = vunpack.c.l.s4 1966171168
      %v1572 = vunpack.c.0.s8 %v1571
      %v1573 = vlaneseq
      %v1574 = vshrl.u32 %v1573, 7
      %v1575 = vsub.s32 %v1572, %v1574
      %v1576 = vrot.slane %v1560, %v1575
      %v1578 = vunpack.c.l.s4 1966171168
      %v1579 = vunpack.c.0.s8 %v1578
      %v1580 = vlaneseq
      %v1581 = vshrl.u32 %v1580, 7
      %v1582 = vsub.s32 %v1579, %v1581
      %v1583 = vrot.slane %v1561, %v1582
      %v1585 = vunpack.c.l.s4 1966171168
      %v1586 = vunpack.c.0.s8 %v1585
      %v1587 = vlaneseq
      %v1588 = vshrl.u32 %v1587, 7
      %v1589 = vsub.s32 %v1586, %v1588
      %v1590 = vrot.slane %v1562, %v1589
      %v1591 = vcombine.high %v1569, %v1569
      %v1592 = vcombine.high %v1576, %v1576
      %v1593 = vcombine.high %v1583, %v1583
      %v1594 = vcombine.high %v1590, %v1590
      %v1595 = vcombine.high %v1543, %v1543
      %v1597 = vunpack.c.l.s4 1966171168
      %v1598 = vunpack.c.0.s8 %v1597
      %v1599 = vlaneseq
      %v1600 = vshrl.u32 %v1599, 7
      %v1601 = vsub.s32 %v1598, %v1600
      %v1602 = vrot.slane %v1543, %v1601
      %v1604 = vunpack.c.l.s4 1966171168
      %v1605 = vunpack.c.0.s8 %v1604
      %v1606 = vlaneseq
      %v1607 = vshrl.u32 %v1606, 7
      %v1608 = vsub.s32 %v1605, %v1607
      %v1609 = vrot.slane %v1595, %v1608
      %v1610 = vcombine.high %v1602, %v1602
      %v1611 = vcombine.high %v1609, %v1609
      %v1613 = vunpack.c.l.s4 1966171168
      %v1614 = vunpack.c.0.s8 %v1613
      %v1615 = vlaneseq
      %v1616 = vshrl.u32 %v1615, 7
      %v1617 = vsub.s32 %v1614, %v1616
      %v1618 = vrot.slane %v1602, %v1617
      %v1620 = vunpack.c.l.s4 1966171168
      %v1621 = vunpack.c.0.s8 %v1620
      %v1622 = vlaneseq
      %v1623 = vshrl.u32 %v1622, 7
      %v1624 = vsub.s32 %v1621, %v1623
      %v1625 = vrot.slane %v1609, %v1624
      %v1627 = vunpack.c.l.s4 1966171168
      %v1628 = vunpack.c.0.s8 %v1627
      %v1629 = vlaneseq
      %v1630 = vshrl.u32 %v1629, 7
      %v1631 = vsub.s32 %v1628, %v1630
      %v1632 = vrot.slane %v1610, %v1631
      %v1634 = vunpack.c.l.s4 1966171168
      %v1635 = vunpack.c.0.s8 %v1634
      %v1636 = vlaneseq
      %v1637 = vshrl.u32 %v1636, 7
      %v1638 = vsub.s32 %v1635, %v1637
      %v1639 = vrot.slane %v1611, %v1638
      %v1640 = vcombine.high %v1618, %v1618
      %v1641 = vcombine.high %v1625, %v1625
      %v1642 = vcombine.high %v1632, %v1632
      %v1643 = vcombine.high %v1639, %v1639
      %1660 = vst.msk [vmem:[#allocation3 + $0xa] sm:$0x1] %vm347, %v1569
      %1661 = vst.msk [vmem:[#allocation3 + $0x1a] sm:$0x1] %vm347, %v1583
      %1662 = vst.msk [vmem:[#allocation3 + $0x2a] sm:$0x1] %vm347, %v1591
      %1663 = vst.msk [vmem:[#allocation3 + $0x3a] sm:$0x1] %vm347, %v1593
      %1664 = vst.msk [vmem:[#allocation3 + $0x4a] sm:$0x1] %vm347, %v1576
      %1665 = vst.msk [vmem:[#allocation3 + $0x5a] sm:$0x1] %vm347, %v1590
      %1666 = vst.msk [vmem:[#allocation3 + $0x6a] sm:$0x1] %vm347, %v1592
      %1667 = vst.msk [vmem:[#allocation3 + $0x7a] sm:$0x1] %vm347, %v1594
      %1668 = vst.msk [vmem:[#allocation3 + $0x8a] sm:$0x1] %vm347, %v1618
      %1669 = vst.msk [vmem:[#allocation3 + $0x9a] sm:$0x1] %vm347, %v1632
      %1670 = vst.msk [vmem:[#allocation3 + $0xaa] sm:$0x1] %vm347, %v1640
      %1671 = vst.msk [vmem:[#allocation3 + $0xba] sm:$0x1] %vm347, %v1642
      %1672 = vst.msk [vmem:[#allocation3 + $0xca] sm:$0x1] %vm347, %v1625
      %1673 = vst.msk [vmem:[#allocation3 + $0xda] sm:$0x1] %vm347, %v1639
      %1674 = vst.msk [vmem:[#allocation3 + $0xea] sm:$0x1] %vm347, %v1641
      %1675 = vst.msk [vmem:[#allocation3 + $0xfa] sm:$0x1] %vm347, %v1643
      %v1676 = vlaneseq
      %v1677 = vshrl.u32 %v1676, 7
      %v1678 = vsub.s32 0, %v1677
      %v1679 = vrot.slane %v1569, %v1678
      %v1680 = vlaneseq
      %v1681 = vshrl.u32 %v1680, 7
      %v1682 = vsub.s32 0, %v1681
      %v1683 = vrot.slane %v1583, %v1682
      %v1684 = vlaneseq
      %v1685 = vshrl.u32 %v1684, 7
      %v1686 = vsub.s32 0, %v1685
      %v1687 = vrot.slane %v1591, %v1686
      %v1688 = vlaneseq
      %v1689 = vshrl.u32 %v1688, 7
      %v1690 = vsub.s32 0, %v1689
      %v1691 = vrot.slane %v1593, %v1690
      %v1692 = vlaneseq
      %v1693 = vshrl.u32 %v1692, 7
      %v1694 = vsub.s32 0, %v1693
      %v1695 = vrot.slane %v1576, %v1694
      %v1696 = vlaneseq
      %v1697 = vshrl.u32 %v1696, 7
      %v1698 = vsub.s32 0, %v1697
      %v1699 = vrot.slane %v1590, %v1698
      %v1700 = vlaneseq
      %v1701 = vshrl.u32 %v1700, 7
      %v1702 = vsub.s32 0, %v1701
      %v1703 = vrot.slane %v1592, %v1702
      %v1704 = vlaneseq
      %v1705 = vshrl.u32 %v1704, 7
      %v1706 = vsub.s32 0, %v1705
      %v1707 = vrot.slane %v1594, %v1706
      %v1708 = vlaneseq
      %v1709 = vshrl.u32 %v1708, 7
      %v1710 = vsub.s32 0, %v1709
      %v1711 = vrot.slane %v1618, %v1710
      %v1712 = vlaneseq
      %v1713 = vshrl.u32 %v1712, 7
      %v1714 = vsub.s32 0, %v1713
      %v1715 = vrot.slane %v1632, %v1714
      %v1716 = vlaneseq
      %v1717 = vshrl.u32 %v1716, 7
      %v1718 = vsub.s32 0, %v1717
      %v1719 = vrot.slane %v1640, %v1718
      %v1720 = vlaneseq
      %v1721 = vshrl.u32 %v1720, 7
      %v1722 = vsub.s32 0, %v1721
      %v1723 = vrot.slane %v1642, %v1722
      %v1724 = vlaneseq
      %v1725 = vshrl.u32 %v1724, 7
      %v1726 = vsub.s32 0, %v1725
      %v1727 = vrot.slane %v1625, %v1726
      %v1728 = vlaneseq
      %v1729 = vshrl.u32 %v1728, 7
      %v1730 = vsub.s32 0, %v1729
      %v1731 = vrot.slane %v1639, %v1730
      %v1732 = vlaneseq
      %v1733 = vshrl.u32 %v1732, 7
      %v1734 = vsub.s32 0, %v1733
      %v1735 = vrot.slane %v1641, %v1734
      %v1736 = vlaneseq
      %v1737 = vshrl.u32 %v1736, 7
      %v1738 = vsub.s32 0, %v1737
      %v1739 = vrot.slane %v1643, %v1738
      %1740 = vrot.lane.b32.xlu0 %v1679, 127
      %v1741 = vpop.permute.xlu0 %1740
      %1742 = vrot.lane.b32.xlu0 %v1683, 127
      %v1743 = vpop.permute.xlu0 %1742
      %1744 = vrot.lane.b32.xlu0 %v1687, 127
      %v1745 = vpop.permute.xlu0 %1744
      %1746 = vrot.lane.b32.xlu0 %v1691, 127
      %v1747 = vpop.permute.xlu0 %1746
      %1748 = vrot.lane.b32.xlu0 %v1695, 127
      %v1749 = vpop.permute.xlu0 %1748
      %1750 = vrot.lane.b32.xlu0 %v1699, 127
      %v1751 = vpop.permute.xlu0 %1750
      %1752 = vrot.lane.b32.xlu0 %v1703, 127
      %v1753 = vpop.permute.xlu0 %1752
      %1754 = vrot.lane.b32.xlu0 %v1707, 127
      %v1755 = vpop.permute.xlu0 %1754
      %1756 = vrot.lane.b32.xlu0 %v1711, 127
      %v1757 = vpop.permute.xlu0 %1756
      %1758 = vrot.lane.b32.xlu0 %v1715, 127
      %v1759 = vpop.permute.xlu0 %1758
      %1760 = vrot.lane.b32.xlu0 %v1719, 127
      %v1761 = vpop.permute.xlu0 %1760
      %1762 = vrot.lane.b32.xlu0 %v1723, 127
      %v1763 = vpop.permute.xlu0 %1762
      %1764 = vrot.lane.b32.xlu0 %v1727, 127
      %v1765 = vpop.permute.xlu0 %1764
      %1766 = vrot.lane.b32.xlu0 %v1731, 127
      %v1767 = vpop.permute.xlu0 %1766
      %1768 = vrot.lane.b32.xlu0 %v1735, 127
      %v1769 = vpop.permute.xlu0 %1768
      %1770 = vrot.lane.b32.xlu0 %v1739, 127
      %v1771 = vpop.permute.xlu0 %1770
      %1788 = vst.msk [vmem:[#allocation3 + $0xb] sm:$0x1] %vm347, %v1741
      %1789 = vst.msk [vmem:[#allocation3 + $0x1b] sm:$0x1] %vm347, %v1743
      %1790 = vst.msk [vmem:[#allocation3 + $0x2b] sm:$0x1] %vm347, %v1745
      %1791 = vst.msk [vmem:[#allocation3 + $0x3b] sm:$0x1] %vm347, %v1747
      %1792 = vst.msk [vmem:[#allocation3 + $0x4b] sm:$0x1] %vm347, %v1749
      %1793 = vst.msk [vmem:[#allocation3 + $0x5b] sm:$0x1] %vm347, %v1751
      %1794 = vst.msk [vmem:[#allocation3 + $0x6b] sm:$0x1] %vm347, %v1753
      %1795 = vst.msk [vmem:[#allocation3 + $0x7b] sm:$0x1] %vm347, %v1755
      %1796 = vst.msk [vmem:[#allocation3 + $0x8b] sm:$0x1] %vm347, %v1757
      %1797 = vst.msk [vmem:[#allocation3 + $0x9b] sm:$0x1] %vm347, %v1759
      %1798 = vst.msk [vmem:[#allocation3 + $0xab] sm:$0x1] %vm347, %v1761
      %1799 = vst.msk [vmem:[#allocation3 + $0xbb] sm:$0x1] %vm347, %v1763
      %1800 = vst.msk [vmem:[#allocation3 + $0xcb] sm:$0x1] %vm347, %v1765
      %1801 = vst.msk [vmem:[#allocation3 + $0xdb] sm:$0x1] %vm347, %v1767
      %1802 = vst.msk [vmem:[#allocation3 + $0xeb] sm:$0x1] %vm347, %v1769
      %1803 = vst.msk [vmem:[#allocation3 + $0xfb] sm:$0x1] %vm347, %v1771
      %s1804 = scalar_lea.vmem [#allocation2], 72
      %v1805 = vld [vmem:[%s1804] sm:$0xff]
      %v1806 = vld [vmem:[%s1804 + $0x8] sm:$0xff]
      %v1809 = vcombine.high %v1805, %v1805
      %v1811 = vunpack.c.l.s4 1966171168
      %v1812 = vunpack.c.0.s8 %v1811
      %v1813 = vlaneseq
      %v1814 = vshrl.u32 %v1813, 7
      %v1815 = vsub.s32 %v1812, %v1814
      %v1816 = vrot.slane %v1805, %v1815
      %v1818 = vunpack.c.l.s4 1966171168
      %v1819 = vunpack.c.0.s8 %v1818
      %v1820 = vlaneseq
      %v1821 = vshrl.u32 %v1820, 7
      %v1822 = vsub.s32 %v1819, %v1821
      %v1823 = vrot.slane %v1809, %v1822
      %v1824 = vcombine.high %v1816, %v1816
      %v1825 = vcombine.high %v1823, %v1823
      %v1827 = vunpack.c.l.s4 1966171168
      %v1828 = vunpack.c.0.s8 %v1827
      %v1829 = vlaneseq
      %v1830 = vshrl.u32 %v1829, 7
      %v1831 = vsub.s32 %v1828, %v1830
      %v1832 = vrot.slane %v1816, %v1831
      %v1834 = vunpack.c.l.s4 1966171168
      %v1835 = vunpack.c.0.s8 %v1834
      %v1836 = vlaneseq
      %v1837 = vshrl.u32 %v1836, 7
      %v1838 = vsub.s32 %v1835, %v1837
      %v1839 = vrot.slane %v1823, %v1838
      %v1841 = vunpack.c.l.s4 1966171168
      %v1842 = vunpack.c.0.s8 %v1841
      %v1843 = vlaneseq
      %v1844 = vshrl.u32 %v1843, 7
      %v1845 = vsub.s32 %v1842, %v1844
      %v1846 = vrot.slane %v1824, %v1845
      %v1848 = vunpack.c.l.s4 1966171168
      %v1849 = vunpack.c.0.s8 %v1848
      %v1850 = vlaneseq
      %v1851 = vshrl.u32 %v1850, 7
      %v1852 = vsub.s32 %v1849, %v1851
      %v1853 = vrot.slane %v1825, %v1852
      %v1854 = vcombine.high %v1832, %v1832
      %v1855 = vcombine.high %v1839, %v1839
      %v1856 = vcombine.high %v1846, %v1846
      %v1857 = vcombine.high %v1853, %v1853
      %v1858 = vcombine.high %v1806, %v1806
      %v1860 = vunpack.c.l.s4 1966171168
      %v1861 = vunpack.c.0.s8 %v1860
      %v1862 = vlaneseq
      %v1863 = vshrl.u32 %v1862, 7
      %v1864 = vsub.s32 %v1861, %v1863
      %v1865 = vrot.slane %v1806, %v1864
      %v1867 = vunpack.c.l.s4 1966171168
      %v1868 = vunpack.c.0.s8 %v1867
      %v1869 = vlaneseq
      %v1870 = vshrl.u32 %v1869, 7
      %v1871 = vsub.s32 %v1868, %v1870
      %v1872 = vrot.slane %v1858, %v1871
      %v1873 = vcombine.high %v1865, %v1865
      %v1874 = vcombine.high %v1872, %v1872
      %v1876 = vunpack.c.l.s4 1966171168
      %v1877 = vunpack.c.0.s8 %v1876
      %v1878 = vlaneseq
      %v1879 = vshrl.u32 %v1878, 7
      %v1880 = vsub.s32 %v1877, %v1879
      %v1881 = vrot.slane %v1865, %v1880
      %v1883 = vunpack.c.l.s4 1966171168
      %v1884 = vunpack.c.0.s8 %v1883
      %v1885 = vlaneseq
      %v1886 = vshrl.u32 %v1885, 7
      %v1887 = vsub.s32 %v1884, %v1886
      %v1888 = vrot.slane %v1872, %v1887
      %v1890 = vunpack.c.l.s4 1966171168
      %v1891 = vunpack.c.0.s8 %v1890
      %v1892 = vlaneseq
      %v1893 = vshrl.u32 %v1892, 7
      %v1894 = vsub.s32 %v1891, %v1893
      %v1895 = vrot.slane %v1873, %v1894
      %v1897 = vunpack.c.l.s4 1966171168
      %v1898 = vunpack.c.0.s8 %v1897
      %v1899 = vlaneseq
      %v1900 = vshrl.u32 %v1899, 7
      %v1901 = vsub.s32 %v1898, %v1900
      %v1902 = vrot.slane %v1874, %v1901
      %v1903 = vcombine.high %v1881, %v1881
      %v1904 = vcombine.high %v1888, %v1888
      %v1905 = vcombine.high %v1895, %v1895
      %v1906 = vcombine.high %v1902, %v1902
      %1923 = vst.msk [vmem:[#allocation3 + $0xc] sm:$0x1] %vm347, %v1832
      %1924 = vst.msk [vmem:[#allocation3 + $0x1c] sm:$0x1] %vm347, %v1846
      %1925 = vst.msk [vmem:[#allocation3 + $0x2c] sm:$0x1] %vm347, %v1854
      %1926 = vst.msk [vmem:[#allocation3 + $0x3c] sm:$0x1] %vm347, %v1856
      %1927 = vst.msk [vmem:[#allocation3 + $0x4c] sm:$0x1] %vm347, %v1839
      %1928 = vst.msk [vmem:[#allocation3 + $0x5c] sm:$0x1] %vm347, %v1853
      %1929 = vst.msk [vmem:[#allocation3 + $0x6c] sm:$0x1] %vm347, %v1855
      %1930 = vst.msk [vmem:[#allocation3 + $0x7c] sm:$0x1] %vm347, %v1857
      %1931 = vst.msk [vmem:[#allocation3 + $0x8c] sm:$0x1] %vm347, %v1881
      %1932 = vst.msk [vmem:[#allocation3 + $0x9c] sm:$0x1] %vm347, %v1895
      %1933 = vst.msk [vmem:[#allocation3 + $0xac] sm:$0x1] %vm347, %v1903
      %1934 = vst.msk [vmem:[#allocation3 + $0xbc] sm:$0x1] %vm347, %v1905
      %1935 = vst.msk [vmem:[#allocation3 + $0xcc] sm:$0x1] %vm347, %v1888
      %1936 = vst.msk [vmem:[#allocation3 + $0xdc] sm:$0x1] %vm347, %v1902
      %1937 = vst.msk [vmem:[#allocation3 + $0xec] sm:$0x1] %vm347, %v1904
      %1938 = vst.msk [vmem:[#allocation3 + $0xfc] sm:$0x1] %vm347, %v1906
      %v1939 = vlaneseq
      %v1940 = vshrl.u32 %v1939, 7
      %v1941 = vsub.s32 0, %v1940
      %v1942 = vrot.slane %v1832, %v1941
      %v1943 = vlaneseq
      %v1944 = vshrl.u32 %v1943, 7
      %v1945 = vsub.s32 0, %v1944
      %v1946 = vrot.slane %v1846, %v1945
      %v1947 = vlaneseq
      %v1948 = vshrl.u32 %v1947, 7
      %v1949 = vsub.s32 0, %v1948
      %v1950 = vrot.slane %v1854, %v1949
      %v1951 = vlaneseq
      %v1952 = vshrl.u32 %v1951, 7
      %v1953 = vsub.s32 0, %v1952
      %v1954 = vrot.slane %v1856, %v1953
      %v1955 = vlaneseq
      %v1956 = vshrl.u32 %v1955, 7
      %v1957 = vsub.s32 0, %v1956
      %v1958 = vrot.slane %v1839, %v1957
      %v1959 = vlaneseq
      %v1960 = vshrl.u32 %v1959, 7
      %v1961 = vsub.s32 0, %v1960
      %v1962 = vrot.slane %v1853, %v1961
      %v1963 = vlaneseq
      %v1964 = vshrl.u32 %v1963, 7
      %v1965 = vsub.s32 0, %v1964
      %v1966 = vrot.slane %v1855, %v1965
      %v1967 = vlaneseq
      %v1968 = vshrl.u32 %v1967, 7
      %v1969 = vsub.s32 0, %v1968
      %v1970 = vrot.slane %v1857, %v1969
      %v1971 = vlaneseq
      %v1972 = vshrl.u32 %v1971, 7
      %v1973 = vsub.s32 0, %v1972
      %v1974 = vrot.slane %v1881, %v1973
      %v1975 = vlaneseq
      %v1976 = vshrl.u32 %v1975, 7
      %v1977 = vsub.s32 0, %v1976
      %v1978 = vrot.slane %v1895, %v1977
      %v1979 = vlaneseq
      %v1980 = vshrl.u32 %v1979, 7
      %v1981 = vsub.s32 0, %v1980
      %v1982 = vrot.slane %v1903, %v1981
      %v1983 = vlaneseq
      %v1984 = vshrl.u32 %v1983, 7
      %v1985 = vsub.s32 0, %v1984
      %v1986 = vrot.slane %v1905, %v1985
      %v1987 = vlaneseq
      %v1988 = vshrl.u32 %v1987, 7
      %v1989 = vsub.s32 0, %v1988
      %v1990 = vrot.slane %v1888, %v1989
      %v1991 = vlaneseq
      %v1992 = vshrl.u32 %v1991, 7
      %v1993 = vsub.s32 0, %v1992
      %v1994 = vrot.slane %v1902, %v1993
      %v1995 = vlaneseq
      %v1996 = vshrl.u32 %v1995, 7
      %v1997 = vsub.s32 0, %v1996
      %v1998 = vrot.slane %v1904, %v1997
      %v1999 = vlaneseq
      %v2000 = vshrl.u32 %v1999, 7
      %v2001 = vsub.s32 0, %v2000
      %v2002 = vrot.slane %v1906, %v2001
      %2003 = vrot.lane.b32.xlu0 %v1942, 127
      %v2004 = vpop.permute.xlu0 %2003
      %2005 = vrot.lane.b32.xlu0 %v1946, 127
      %v2006 = vpop.permute.xlu0 %2005
      %2007 = vrot.lane.b32.xlu0 %v1950, 127
      %v2008 = vpop.permute.xlu0 %2007
      %2009 = vrot.lane.b32.xlu0 %v1954, 127
      %v2010 = vpop.permute.xlu0 %2009
      %2011 = vrot.lane.b32.xlu0 %v1958, 127
      %v2012 = vpop.permute.xlu0 %2011
      %2013 = vrot.lane.b32.xlu0 %v1962, 127
      %v2014 = vpop.permute.xlu0 %2013
      %2015 = vrot.lane.b32.xlu0 %v1966, 127
      %v2016 = vpop.permute.xlu0 %2015
      %2017 = vrot.lane.b32.xlu0 %v1970, 127
      %v2018 = vpop.permute.xlu0 %2017
      %2019 = vrot.lane.b32.xlu0 %v1974, 127
      %v2020 = vpop.permute.xlu0 %2019
      %2021 = vrot.lane.b32.xlu0 %v1978, 127
      %v2022 = vpop.permute.xlu0 %2021
      %2023 = vrot.lane.b32.xlu0 %v1982, 127
      %v2024 = vpop.permute.xlu0 %2023
      %2025 = vrot.lane.b32.xlu0 %v1986, 127
      %v2026 = vpop.permute.xlu0 %2025
      %2027 = vrot.lane.b32.xlu0 %v1990, 127
      %v2028 = vpop.permute.xlu0 %2027
      %2029 = vrot.lane.b32.xlu0 %v1994, 127
      %v2030 = vpop.permute.xlu0 %2029
      %2031 = vrot.lane.b32.xlu0 %v1998, 127
      %v2032 = vpop.permute.xlu0 %2031
      %2033 = vrot.lane.b32.xlu0 %v2002, 127
      %v2034 = vpop.permute.xlu0 %2033
      %2051 = vst.msk [vmem:[#allocation3 + $0xd] sm:$0x1] %vm347, %v2004
      %2052 = vst.msk [vmem:[#allocation3 + $0x1d] sm:$0x1] %vm347, %v2006
      %2053 = vst.msk [vmem:[#allocation3 + $0x2d] sm:$0x1] %vm347, %v2008
      %2054 = vst.msk [vmem:[#allocation3 + $0x3d] sm:$0x1] %vm347, %v2010
      %2055 = vst.msk [vmem:[#allocation3 + $0x4d] sm:$0x1] %vm347, %v2012
      %2056 = vst.msk [vmem:[#allocation3 + $0x5d] sm:$0x1] %vm347, %v2014
      %2057 = vst.msk [vmem:[#allocation3 + $0x6d] sm:$0x1] %vm347, %v2016
      %2058 = vst.msk [vmem:[#allocation3 + $0x7d] sm:$0x1] %vm347, %v2018
      %2059 = vst.msk [vmem:[#allocation3 + $0x8d] sm:$0x1] %vm347, %v2020
      %2060 = vst.msk [vmem:[#allocation3 + $0x9d] sm:$0x1] %vm347, %v2022
      %2061 = vst.msk [vmem:[#allocation3 + $0xad] sm:$0x1] %vm347, %v2024
      %2062 = vst.msk [vmem:[#allocation3 + $0xbd] sm:$0x1] %vm347, %v2026
      %2063 = vst.msk [vmem:[#allocation3 + $0xcd] sm:$0x1] %vm347, %v2028
      %2064 = vst.msk [vmem:[#allocation3 + $0xdd] sm:$0x1] %vm347, %v2030
      %2065 = vst.msk [vmem:[#allocation3 + $0xed] sm:$0x1] %vm347, %v2032
      %2066 = vst.msk [vmem:[#allocation3 + $0xfd] sm:$0x1] %vm347, %v2034
      %v2067 = vld [vmem:[%s1804 + $0x1] sm:$0xff]
      %v2068 = vld [vmem:[%s1804 + $0x9] sm:$0xff]
      %v2071 = vcombine.high %v2067, %v2067
      %v2073 = vunpack.c.l.s4 1966171168
      %v2074 = vunpack.c.0.s8 %v2073
      %v2075 = vlaneseq
      %v2076 = vshrl.u32 %v2075, 7
      %v2077 = vsub.s32 %v2074, %v2076
      %v2078 = vrot.slane %v2067, %v2077
      %v2080 = vunpack.c.l.s4 1966171168
      %v2081 = vunpack.c.0.s8 %v2080
      %v2082 = vlaneseq
      %v2083 = vshrl.u32 %v2082, 7
      %v2084 = vsub.s32 %v2081, %v2083
      %v2085 = vrot.slane %v2071, %v2084
      %v2086 = vcombine.high %v2078, %v2078
      %v2087 = vcombine.high %v2085, %v2085
      %v2089 = vunpack.c.l.s4 1966171168
      %v2090 = vunpack.c.0.s8 %v2089
      %v2091 = vlaneseq
      %v2092 = vshrl.u32 %v2091, 7
      %v2093 = vsub.s32 %v2090, %v2092
      %v2094 = vrot.slane %v2078, %v2093
      %v2096 = vunpack.c.l.s4 1966171168
      %v2097 = vunpack.c.0.s8 %v2096
      %v2098 = vlaneseq
      %v2099 = vshrl.u32 %v2098, 7
      %v2100 = vsub.s32 %v2097, %v2099
      %v2101 = vrot.slane %v2085, %v2100
      %v2103 = vunpack.c.l.s4 1966171168
      %v2104 = vunpack.c.0.s8 %v2103
      %v2105 = vlaneseq
      %v2106 = vshrl.u32 %v2105, 7
      %v2107 = vsub.s32 %v2104, %v2106
      %v2108 = vrot.slane %v2086, %v2107
      %v2110 = vunpack.c.l.s4 1966171168
      %v2111 = vunpack.c.0.s8 %v2110
      %v2112 = vlaneseq
      %v2113 = vshrl.u32 %v2112, 7
      %v2114 = vsub.s32 %v2111, %v2113
      %v2115 = vrot.slane %v2087, %v2114
      %v2116 = vcombine.high %v2094, %v2094
      %v2117 = vcombine.high %v2101, %v2101
      %v2118 = vcombine.high %v2108, %v2108
      %v2119 = vcombine.high %v2115, %v2115
      %v2120 = vcombine.high %v2068, %v2068
      %v2122 = vunpack.c.l.s4 1966171168
      %v2123 = vunpack.c.0.s8 %v2122
      %v2124 = vlaneseq
      %v2125 = vshrl.u32 %v2124, 7
      %v2126 = vsub.s32 %v2123, %v2125
      %v2127 = vrot.slane %v2068, %v2126
      %v2129 = vunpack.c.l.s4 1966171168
      %v2130 = vunpack.c.0.s8 %v2129
      %v2131 = vlaneseq
      %v2132 = vshrl.u32 %v2131, 7
      %v2133 = vsub.s32 %v2130, %v2132
      %v2134 = vrot.slane %v2120, %v2133
      %v2135 = vcombine.high %v2127, %v2127
      %v2136 = vcombine.high %v2134, %v2134
      %v2138 = vunpack.c.l.s4 1966171168
      %v2139 = vunpack.c.0.s8 %v2138
      %v2140 = vlaneseq
      %v2141 = vshrl.u32 %v2140, 7
      %v2142 = vsub.s32 %v2139, %v2141
      %v2143 = vrot.slane %v2127, %v2142
      %v2145 = vunpack.c.l.s4 1966171168
      %v2146 = vunpack.c.0.s8 %v2145
      %v2147 = vlaneseq
      %v2148 = vshrl.u32 %v2147, 7
      %v2149 = vsub.s32 %v2146, %v2148
      %v2150 = vrot.slane %v2134, %v2149
      %v2152 = vunpack.c.l.s4 1966171168
      %v2153 = vunpack.c.0.s8 %v2152
      %v2154 = vlaneseq
      %v2155 = vshrl.u32 %v2154, 7
      %v2156 = vsub.s32 %v2153, %v2155
      %v2157 = vrot.slane %v2135, %v2156
      %v2159 = vunpack.c.l.s4 1966171168
      %v2160 = vunpack.c.0.s8 %v2159
      %v2161 = vlaneseq
      %v2162 = vshrl.u32 %v2161, 7
      %v2163 = vsub.s32 %v2160, %v2162
      %v2164 = vrot.slane %v2136, %v2163
      %v2165 = vcombine.high %v2143, %v2143
      %v2166 = vcombine.high %v2150, %v2150
      %v2167 = vcombine.high %v2157, %v2157
      %v2168 = vcombine.high %v2164, %v2164
      %2185 = vst.msk [vmem:[#allocation3 + $0xe] sm:$0x1] %vm347, %v2094
      %2186 = vst.msk [vmem:[#allocation3 + $0x1e] sm:$0x1] %vm347, %v2108
      %2187 = vst.msk [vmem:[#allocation3 + $0x2e] sm:$0x1] %vm347, %v2116
      %2188 = vst.msk [vmem:[#allocation3 + $0x3e] sm:$0x1] %vm347, %v2118
      %2189 = vst.msk [vmem:[#allocation3 + $0x4e] sm:$0x1] %vm347, %v2101
      %2190 = vst.msk [vmem:[#allocation3 + $0x5e] sm:$0x1] %vm347, %v2115
      %2191 = vst.msk [vmem:[#allocation3 + $0x6e] sm:$0x1] %vm347, %v2117
      %2192 = vst.msk [vmem:[#allocation3 + $0x7e] sm:$0x1] %vm347, %v2119
      %2193 = vst.msk [vmem:[#allocation3 + $0x8e] sm:$0x1] %vm347, %v2143
      %2194 = vst.msk [vmem:[#allocation3 + $0x9e] sm:$0x1] %vm347, %v2157
      %2195 = vst.msk [vmem:[#allocation3 + $0xae] sm:$0x1] %vm347, %v2165
      %2196 = vst.msk [vmem:[#allocation3 + $0xbe] sm:$0x1] %vm347, %v2167
      %2197 = vst.msk [vmem:[#allocation3 + $0xce] sm:$0x1] %vm347, %v2150
      %2198 = vst.msk [vmem:[#allocation3 + $0xde] sm:$0x1] %vm347, %v2164
      %2199 = vst.msk [vmem:[#allocation3 + $0xee] sm:$0x1] %vm347, %v2166
      %2200 = vst.msk [vmem:[#allocation3 + $0xfe] sm:$0x1] %vm347, %v2168
      %v2201 = vlaneseq
      %v2202 = vshrl.u32 %v2201, 7
      %v2203 = vsub.s32 0, %v2202
      %v2204 = vrot.slane %v2094, %v2203
      %v2205 = vlaneseq
      %v2206 = vshrl.u32 %v2205, 7
      %v2207 = vsub.s32 0, %v2206
      %v2208 = vrot.slane %v2108, %v2207
      %v2209 = vlaneseq
      %v2210 = vshrl.u32 %v2209, 7
      %v2211 = vsub.s32 0, %v2210
      %v2212 = vrot.slane %v2116, %v2211
      %v2213 = vlaneseq
      %v2214 = vshrl.u32 %v2213, 7
      %v2215 = vsub.s32 0, %v2214
      %v2216 = vrot.slane %v2118, %v2215
      %v2217 = vlaneseq
      %v2218 = vshrl.u32 %v2217, 7
      %v2219 = vsub.s32 0, %v2218
      %v2220 = vrot.slane %v2101, %v2219
      %v2221 = vlaneseq
      %v2222 = vshrl.u32 %v2221, 7
      %v2223 = vsub.s32 0, %v2222
      %v2224 = vrot.slane %v2115, %v2223
      %v2225 = vlaneseq
      %v2226 = vshrl.u32 %v2225, 7
      %v2227 = vsub.s32 0, %v2226
      %v2228 = vrot.slane %v2117, %v2227
      %v2229 = vlaneseq
      %v2230 = vshrl.u32 %v2229, 7
      %v2231 = vsub.s32 0, %v2230
      %v2232 = vrot.slane %v2119, %v2231
      %v2233 = vlaneseq
      %v2234 = vshrl.u32 %v2233, 7
      %v2235 = vsub.s32 0, %v2234
      %v2236 = vrot.slane %v2143, %v2235
      %v2237 = vlaneseq
      %v2238 = vshrl.u32 %v2237, 7
      %v2239 = vsub.s32 0, %v2238
      %v2240 = vrot.slane %v2157, %v2239
      %v2241 = vlaneseq
      %v2242 = vshrl.u32 %v2241, 7
      %v2243 = vsub.s32 0, %v2242
      %v2244 = vrot.slane %v2165, %v2243
      %v2245 = vlaneseq
      %v2246 = vshrl.u32 %v2245, 7
      %v2247 = vsub.s32 0, %v2246
      %v2248 = vrot.slane %v2167, %v2247
      %v2249 = vlaneseq
      %v2250 = vshrl.u32 %v2249, 7
      %v2251 = vsub.s32 0, %v2250
      %v2252 = vrot.slane %v2150, %v2251
      %v2253 = vlaneseq
      %v2254 = vshrl.u32 %v2253, 7
      %v2255 = vsub.s32 0, %v2254
      %v2256 = vrot.slane %v2164, %v2255
      %v2257 = vlaneseq
      %v2258 = vshrl.u32 %v2257, 7
      %v2259 = vsub.s32 0, %v2258
      %v2260 = vrot.slane %v2166, %v2259
      %v2261 = vlaneseq
      %v2262 = vshrl.u32 %v2261, 7
      %v2263 = vsub.s32 0, %v2262
      %v2264 = vrot.slane %v2168, %v2263
      %2265 = vrot.lane.b32.xlu0 %v2204, 127
      %v2266 = vpop.permute.xlu0 %2265
      %2267 = vrot.lane.b32.xlu0 %v2208, 127
      %v2268 = vpop.permute.xlu0 %2267
      %2269 = vrot.lane.b32.xlu0 %v2212, 127
      %v2270 = vpop.permute.xlu0 %2269
      %2271 = vrot.lane.b32.xlu0 %v2216, 127
      %v2272 = vpop.permute.xlu0 %2271
      %2273 = vrot.lane.b32.xlu0 %v2220, 127
      %v2274 = vpop.permute.xlu0 %2273
      %2275 = vrot.lane.b32.xlu0 %v2224, 127
      %v2276 = vpop.permute.xlu0 %2275
      %2277 = vrot.lane.b32.xlu0 %v2228, 127
      %v2278 = vpop.permute.xlu0 %2277
      %2279 = vrot.lane.b32.xlu0 %v2232, 127
      %v2280 = vpop.permute.xlu0 %2279
      %2281 = vrot.lane.b32.xlu0 %v2236, 127
      %v2282 = vpop.permute.xlu0 %2281
      %2283 = vrot.lane.b32.xlu0 %v2240, 127
      %v2284 = vpop.permute.xlu0 %2283
      %2285 = vrot.lane.b32.xlu0 %v2244, 127
      %v2286 = vpop.permute.xlu0 %2285
      %2287 = vrot.lane.b32.xlu0 %v2248, 127
      %v2288 = vpop.permute.xlu0 %2287
      %2289 = vrot.lane.b32.xlu0 %v2252, 127
      %v2290 = vpop.permute.xlu0 %2289
      %2291 = vrot.lane.b32.xlu0 %v2256, 127
      %v2292 = vpop.permute.xlu0 %2291
      %2293 = vrot.lane.b32.xlu0 %v2260, 127
      %v2294 = vpop.permute.xlu0 %2293
      %2295 = vrot.lane.b32.xlu0 %v2264, 127
      %v2296 = vpop.permute.xlu0 %2295
      %2313 = vst.msk [vmem:[#allocation3 + $0xf] sm:$0x1] %vm347, %v2266
      %2314 = vst.msk [vmem:[#allocation3 + $0x1f] sm:$0x1] %vm347, %v2268
      %2315 = vst.msk [vmem:[#allocation3 + $0x2f] sm:$0x1] %vm347, %v2270
      %2316 = vst.msk [vmem:[#allocation3 + $0x3f] sm:$0x1] %vm347, %v2272
      %2317 = vst.msk [vmem:[#allocation3 + $0x4f] sm:$0x1] %vm347, %v2274
      %2318 = vst.msk [vmem:[#allocation3 + $0x5f] sm:$0x1] %vm347, %v2276
      %2319 = vst.msk [vmem:[#allocation3 + $0x6f] sm:$0x1] %vm347, %v2278
      %2320 = vst.msk [vmem:[#allocation3 + $0x7f] sm:$0x1] %vm347, %v2280
      %2321 = vst.msk [vmem:[#allocation3 + $0x8f] sm:$0x1] %vm347, %v2282
      %2322 = vst.msk [vmem:[#allocation3 + $0x9f] sm:$0x1] %vm347, %v2284
      %2323 = vst.msk [vmem:[#allocation3 + $0xaf] sm:$0x1] %vm347, %v2286
      %2324 = vst.msk [vmem:[#allocation3 + $0xbf] sm:$0x1] %vm347, %v2288
      %2325 = vst.msk [vmem:[#allocation3 + $0xcf] sm:$0x1] %vm347, %v2290
      %2326 = vst.msk [vmem:[#allocation3 + $0xdf] sm:$0x1] %vm347, %v2292
      %2327 = vst.msk [vmem:[#allocation3 + $0xef] sm:$0x1] %vm347, %v2294
      %2328 = vst.msk [vmem:[#allocation3 + $0xff] sm:$0x1] %vm347, %v2296
      %v2329 = vld [vmem:[#allocation3] sm:$0xff]
      %v2330 = vld [vmem:[#allocation3 + $0x8] sm:$0xff]
      %v2331 = vld [vmem:[#allocation3 + $0x10] sm:$0xff]
      %v2332 = vld [vmem:[#allocation3 + $0x18] sm:$0xff]
      %v2333 = vld [vmem:[#allocation3 + $0x20] sm:$0xff]
      %v2334 = vld [vmem:[#allocation3 + $0x28] sm:$0xff]
      %v2335 = vld [vmem:[#allocation3 + $0x30] sm:$0xff]
      %v2336 = vld [vmem:[#allocation3 + $0x38] sm:$0xff]
      %v2337 = vld [vmem:[#allocation3 + $0x40] sm:$0xff]
      %v2338 = vld [vmem:[#allocation3 + $0x48] sm:$0xff]
      %v2339 = vld [vmem:[#allocation3 + $0x50] sm:$0xff]
      %v2340 = vld [vmem:[#allocation3 + $0x58] sm:$0xff]
      %v2341 = vld [vmem:[#allocation3 + $0x60] sm:$0xff]
      %v2342 = vld [vmem:[#allocation3 + $0x68] sm:$0xff]
      %v2343 = vld [vmem:[#allocation3 + $0x70] sm:$0xff]
      %v2344 = vld [vmem:[#allocation3 + $0x78] sm:$0xff]
      %v2345 = vld [vmem:[#allocation3 + $0x80] sm:$0xff]
      %v2346 = vld [vmem:[#allocation3 + $0x88] sm:$0xff]
      %v2347 = vld [vmem:[#allocation3 + $0x90] sm:$0xff]
      %v2348 = vld [vmem:[#allocation3 + $0x98] sm:$0xff]
      %v2349 = vld [vmem:[#allocation3 + $0xa0] sm:$0xff]
      %v2350 = vld [vmem:[#allocation3 + $0xa8] sm:$0xff]
      %v2351 = vld [vmem:[#allocation3 + $0xb0] sm:$0xff]
      %v2352 = vld [vmem:[#allocation3 + $0xb8] sm:$0xff]
      %v2353 = vld [vmem:[#allocation3 + $0xc0] sm:$0xff]
      %v2354 = vld [vmem:[#allocation3 + $0xc8] sm:$0xff]
      %v2355 = vld [vmem:[#allocation3 + $0xd0] sm:$0xff]
      %v2356 = vld [vmem:[#allocation3 + $0xd8] sm:$0xff]
      %v2357 = vld [vmem:[#allocation3 + $0xe0] sm:$0xff]
      %v2358 = vld [vmem:[#allocation3 + $0xe8] sm:$0xff]
      %v2359 = vld [vmem:[#allocation3 + $0xf0] sm:$0xff]
      %v2360 = vld [vmem:[#allocation3 + $0xf8] sm:$0xff]
      %v2361 = vld [vmem:[%s0] sm:$0xff]
      %v2362 = vld [vmem:[%s0 + $0x8] sm:$0xff]
      %v2363 = vld [vmem:[%s0 + $0x10] sm:$0xff]
      %v2364 = vld [vmem:[%s0 + $0x18] sm:$0xff]
      %v2365 = vld [vmem:[%s1] sm:$0xff]
      %v2366 = vld [vmem:[%s1 + $0x8] sm:$0xff]
      %v2367 = vld [vmem:[%s1 + $0x10] sm:$0xff]
      %v2368 = vld [vmem:[%s1 + $0x18] sm:$0xff]
      %2370 = vset.pattern.permute.xlu0 0
      %2371 = vperm.xlu0 %2370, %v2365
      %v2372 = vpop.permute.xlu0 %2371
      %2375 = vset.pattern.permute.xlu0 0
      %2376 = vperm.xlu0 %2375, %v2366
      %v2377 = vpop.permute.xlu0 %2376
      %2380 = vset.pattern.permute.xlu0 0
      %2381 = vperm.xlu0 %2380, %v2367
      %v2382 = vpop.permute.xlu0 %2381
      %2385 = vset.pattern.permute.xlu0 0
      %2386 = vperm.xlu0 %2385, %v2368
      %v2387 = vpop.permute.xlu0 %2386
      %v2390 = vsel %vm220, %v2361, 0
      %v2393 = vsel %vm220, %v2362, 0
      %v2396 = vsel %vm220, %v2363, 0
      %v2399 = vsel %vm220, %v2364, 0
      %2401 = vmatprep.subr.mxu0 0.0
      %2402 = vmatpush1.msra.mxu0 %v2329
      %2403 = vmatprep.subr.mxu0 0.0
      %2404 = vmatpush1.msra.mxu0 %v2330
      %2405 = vmatprep.subr.mxu0 0.0
      %2406 = vmatpush1.msra.mxu0 0.0
      %2407 = vmatprep.subr.mxu0 0.0
      %2408 = vmatpush1.msra.mxu0 0.0
      %2409 = vmatprep.subr.mxu0 0.0
      %2410 = vmatpush1.msra.mxu0 0.0
      %2411 = vmatprep.subr.mxu0 0.0
      %2412 = vmatpush1.msra.mxu0 0.0
      %2413 = vmatprep.subr.mxu0 0.0
      %2414 = vmatpush1.msra.mxu0 0.0
      %2415 = vmatprep.subr.mxu0 0.0
      %2416 = vmatpush1.msra.mxu0 0.0
      %2417 = vmatprep.subr.mxu0 0.0
      %2418 = vmatpush1.msra.mxu0 0.0
      %2419 = vmatprep.subr.mxu0 0.0
      %2420 = vmatpush1.msra.mxu0 0.0
      %2421 = vmatprep.subr.mxu0 0.0
      %2422 = vmatpush1.msra.mxu0 0.0
      %2423 = vmatprep.subr.mxu0 0.0
      %2424 = vmatpush1.msra.mxu0 0.0
      %2425 = vmatprep.subr.mxu0 0.0
      %2426 = vmatpush1.msra.mxu0 0.0
      %2427 = vmatprep.subr.mxu0 0.0
      %2428 = vmatpush1.msra.mxu0 0.0
      %2429 = vmatprep.subr.mxu0 0.0
      %2430 = vmatpush1.msra.mxu0 0.0
      %2431 = vmatprep.subr.mxu0 0.0
      %2432 = vmatpush1.msra.mxu0 0.0
      %2433 = vmatprep.subr.mxu0 0.0
      %2434 = vmatpush1.msra.mxu0 0.0
      %2435 = vmatprep.subr.mxu0 0.0
      %2436 = vmatpush1.msra.mxu0 0.0
      %2437 = vmatprep.subr.mxu0 0.0
      %2438 = vmatpush1.msra.mxu0 0.0
      %2439 = vmatprep.subr.mxu0 0.0
      %2440 = vmatpush1.msra.mxu0 0.0
      %2441 = vmatprep.subr.mxu0 0.0
      %2442 = vmatpush1.msra.mxu0 0.0
      %2443 = vmatprep.subr.mxu0 0.0
      %2444 = vmatpush1.msra.mxu0 0.0
      %2445 = vmatprep.subr.mxu0 0.0
      %2446 = vmatpush1.msra.mxu0 0.0
      %2447 = vmatprep.subr.mxu0 0.0
      %2448 = vmatpush1.msra.mxu0 0.0
      %2449 = vmatprep.subr.mxu0 0.0
      %2450 = vmatpush1.msra.mxu0 0.0
      %2451 = vmatprep.subr.mxu0 0.0
      %2452 = vmatpush1.msra.mxu0 0.0
      %2453 = vmatprep.subr.mxu0 0.0
      %2454 = vmatpush1.msra.mxu0 0.0
      %2455 = vmatprep.subr.mxu0 0.0
      %2456 = vmatpush1.msra.mxu0 0.0
      %2457 = vmatprep.subr.mxu0 0.0
      %2458 = vmatpush1.msra.mxu0 0.0
      %2459 = vmatprep.subr.mxu0 0.0
      %2460 = vmatpush1.msra.mxu0 0.0
      %2461 = vmatprep.subr.mxu0 0.0
      %2462 = vmatpush1.msra.mxu0 0.0
      %2463 = vmatprep.subr.mxu0 0.0
      %2464 = vmatpush1.msra.mxu0 0.0
      %2465 = vmatprep.mubr.f32.mxu0 0.0
      %2466 = vmatmul.mubr.f32.gmra.mrb[0].mxu0 %v2390
      %v2467 = vpop.f32.mrb[0].mxu0
      %v2468 = vadd.f32 %v2372, %v2467
      %v2469 = vpop.f32.mrb[0].mxu0
      %2470 = vmatprep.mubr.f32.mxu0 0.0
      %2471 = vmatmul.mubr.f32.gmra.mrb[0].mxu0 %v2393
      %v2472 = vpop.f32.mrb[0].mxu0
      %v2473 = vadd.f32 %v2377, %v2472
      %v2474 = vpop.f32.mrb[0].mxu0
      %2475 = vmatprep.mubr.f32.mxu0 0.0
      %2476 = vmatmul.mubr.f32.gmra.mrb[0].mxu0 %v2396
      %v2477 = vpop.f32.mrb[0].mxu0
      %v2478 = vadd.f32 %v2382, %v2477
      %v2479 = vpop.f32.mrb[0].mxu0
      %2480 = vmatprep.mubr.f32.mxu0 0.0
      %2481 = vmatmul.mubr.f32.gmra.mrb[0].mxu0 %v2399
      %v2482 = vpop.f32.mrb[0].mxu0
      %v2483 = vadd.f32 %v2387, %v2482
      %v2484 = vpop.f32.mrb[0].mxu0
      %2485 = vdwg.mxu0
      %2486 = vmatprep.subr.mxu0 0.0
      %2487 = vmatpush1.msra.mxu0 %v2331
      %2488 = vmatprep.subr.mxu0 0.0
      %2489 = vmatpush1.msra.mxu0 %v2332
      %2490 = vmatprep.subr.mxu0 0.0
      %2491 = vmatpush1.msra.mxu0 0.0
      %2492 = vmatprep.subr.mxu0 0.0
      %2493 = vmatpush1.msra.mxu0 0.0
      %2494 = vmatprep.subr.mxu0 0.0
      %2495 = vmatpush1.msra.mxu0 0.0
      %2496 = vmatprep.subr.mxu0 0.0
      %2497 = vmatpush1.msra.mxu0 0.0
      %2498 = vmatprep.subr.mxu0 0.0
      %2499 = vmatpush1.msra.mxu0 0.0
      %2500 = vmatprep.subr.mxu0 0.0
      %2501 = vmatpush1.msra.mxu0 0.0
      %2502 = vmatprep.subr.mxu0 0.0
      %2503 = vmatpush1.msra.mxu0 0.0
      %2504 = vmatprep.subr.mxu0 0.0
      %2505 = vmatpush1.msra.mxu0 0.0
      %2506 = vmatprep.subr.mxu0 0.0
      %2507 = vmatpush1.msra.mxu0 0.0
      %2508 = vmatprep.subr.mxu0 0.0
      %2509 = vmatpush1.msra.mxu0 0.0
      %2510 = vmatprep.subr.mxu0 0.0
      %2511 = vmatpush1.msra.mxu0 0.0
      %2512 = vmatprep.subr.mxu0 0.0
      %2513 = vmatpush1.msra.mxu0 0.0
      %2514 = vmatprep.subr.mxu0 0.0
      %2515 = vmatpush1.msra.mxu0 0.0
      %2516 = vmatprep.subr.mxu0 0.0
      %2517 = vmatpush1.msra.mxu0 0.0
      %2518 = vmatprep.subr.mxu0 0.0
      %2519 = vmatpush1.msra.mxu0 0.0
      %2520 = vmatprep.subr.mxu0 0.0
      %2521 = vmatpush1.msra.mxu0 0.0
      %2522 = vmatprep.subr.mxu0 0.0
      %2523 = vmatpush1.msra.mxu0 0.0
      %2524 = vmatprep.subr.mxu0 0.0
      %2525 = vmatpush1.msra.mxu0 0.0
      %2526 = vmatprep.subr.mxu0 0.0
      %2527 = vmatpush1.msra.mxu0 0.0
      %2528 = vmatprep.subr.mxu0 0.0
      %2529 = vmatpush1.msra.mxu0 0.0
      %2530 = vmatprep.subr.mxu0 0.0
      %2531 = vmatpush1.msra.mxu0 0.0
      %2532 = vmatprep.subr.mxu0 0.0
      %2533 = vmatpush1.msra.mxu0 0.0
      %2534 = vmatprep.subr.mxu0 0.0
      %2535 = vmatpush1.msra.mxu0 0.0
      %2536 = vmatprep.subr.mxu0 0.0
      %2537 = vmatpush1.msra.mxu0 0.0
      %2538 = vmatprep.subr.mxu0 0.0
      %2539 = vmatpush1.msra.mxu0 0.0
      %2540 = vmatprep.subr.mxu0 0.0
      %2541 = vmatpush1.msra.mxu0 0.0
      %2542 = vmatprep.subr.mxu0 0.0
      %2543 = vmatpush1.msra.mxu0 0.0
      %2544 = vmatprep.subr.mxu0 0.0
      %2545 = vmatpush1.msra.mxu0 0.0
      %2546 = vmatprep.subr.mxu0 0.0
      %2547 = vmatpush1.msra.mxu0 0.0
      %2548 = vmatprep.subr.mxu0 0.0
      %2549 = vmatpush1.msra.mxu0 0.0
      %2550 = vmatprep.mubr.f32.mxu0 0.0
      %2551 = vmatmul.mubr.f32.gmra.mrb[0].mxu0 %v2390
      %v2552 = vpop.f32.mrb[0].mxu0
      %v2553 = vadd.f32 %v2372, %v2552
      %v2554 = vpop.f32.mrb[0].mxu0
      %2555 = vmatprep.mubr.f32.mxu0 0.0
      %2556 = vmatmul.mubr.f32.gmra.mrb[0].mxu0 %v2393
      %v2557 = vpop.f32.mrb[0].mxu0
      %v2558 = vadd.f32 %v2377, %v2557
      %v2559 = vpop.f32.mrb[0].mxu0
      %2560 = vmatprep.mubr.f32.mxu0 0.0
      %2561 = vmatmul.mubr.f32.gmra.mrb[0].mxu0 %v2396
      %v2562 = vpop.f32.mrb[0].mxu0
      %v2563 = vadd.f32 %v2382, %v2562
      %v2564 = vpop.f32.mrb[0].mxu0
      %2565 = vmatprep.mubr.f32.mxu0 0.0
      %2566 = vmatmul.mubr.f32.gmra.mrb[0].mxu0 %v2399
      %v2567 = vpop.f32.mrb[0].mxu0
      %v2568 = vadd.f32 %v2387, %v2567
      %v2569 = vpop.f32.mrb[0].mxu0
      %2570 = vdwg.mxu0
      %2571 = vmatprep.subr.mxu0 0.0
      %2572 = vmatpush1.msra.mxu0 %v2333
      %2573 = vmatprep.subr.mxu0 0.0
      %2574 = vmatpush1.msra.mxu0 %v2334
      %2575 = vmatprep.subr.mxu0 0.0
      %2576 = vmatpush1.msra.mxu0 0.0
      %2577 = vmatprep.subr.mxu0 0.0
      %2578 = vmatpush1.msra.mxu0 0.0
      %2579 = vmatprep.subr.mxu0 0.0
      %2580 = vmatpush1.msra.mxu0 0.0
      %2581 = vmatprep.subr.mxu0 0.0
      %2582 = vmatpush1.msra.mxu0 0.0
      %2583 = vmatprep.subr.mxu0 0.0
      %2584 = vmatpush1.msra.mxu0 0.0
      %2585 = vmatprep.subr.mxu0 0.0
      %2586 = vmatpush1.msra.mxu0 0.0
      %2587 = vmatprep.subr.mxu0 0.0
      %2588 = vmatpush1.msra.mxu0 0.0
      %2589 = vmatprep.subr.mxu0 0.0
      %2590 = vmatpush1.msra.mxu0 0.0
      %2591 = vmatprep.subr.mxu0 0.0
      %2592 = vmatpush1.msra.mxu0 0.0
      %2593 = vmatprep.subr.mxu0 0.0
      %2594 = vmatpush1.msra.mxu0 0.0
      %2595 = vmatprep.subr.mxu0 0.0
      %2596 = vmatpush1.msra.mxu0 0.0
      %2597 = vmatprep.subr.mxu0 0.0
      %2598 = vmatpush1.msra.mxu0 0.0
      %2599 = vmatprep.subr.mxu0 0.0
      %2600 = vmatpush1.msra.mxu0 0.0
      %2601 = vmatprep.subr.mxu0 0.0
      %2602 = vmatpush1.msra.mxu0 0.0
      %2603 = vmatprep.subr.mxu0 0.0
      %2604 = vmatpush1.msra.mxu0 0.0
      %2605 = vmatprep.subr.mxu0 0.0
      %2606 = vmatpush1.msra.mxu0 0.0
      %2607 = vmatprep.subr.mxu0 0.0
      %2608 = vmatpush1.msra.mxu0 0.0
      %2609 = vmatprep.subr.mxu0 0.0
      %2610 = vmatpush1.msra.mxu0 0.0
      %2611 = vmatprep.subr.mxu0 0.0
      %2612 = vmatpush1.msra.mxu0 0.0
      %2613 = vmatprep.subr.mxu0 0.0
      %2614 = vmatpush1.msra.mxu0 0.0
      %2615 = vmatprep.subr.mxu0 0.0
      %2616 = vmatpush1.msra.mxu0 0.0
      %2617 = vmatprep.subr.mxu0 0.0
      %2618 = vmatpush1.msra.mxu0 0.0
      %2619 = vmatprep.subr.mxu0 0.0
      %2620 = vmatpush1.msra.mxu0 0.0
      %2621 = vmatprep.subr.mxu0 0.0
      %2622 = vmatpush1.msra.mxu0 0.0
      %2623 = vmatprep.subr.mxu0 0.0
      %2624 = vmatpush1.msra.mxu0 0.0
      %2625 = vmatprep.subr.mxu0 0.0
      %2626 = vmatpush1.msra.mxu0 0.0
      %2627 = vmatprep.subr.mxu0 0.0
      %2628 = vmatpush1.msra.mxu0 0.0
      %2629 = vmatprep.subr.mxu0 0.0
      %2630 = vmatpush1.msra.mxu0 0.0
      %2631 = vmatprep.subr.mxu0 0.0
      %2632 = vmatpush1.msra.mxu0 0.0
      %2633 = vmatprep.subr.mxu0 0.0
      %2634 = vmatpush1.msra.mxu0 0.0
      %2635 = vmatprep.mubr.f32.mxu0 0.0
      %2636 = vmatmul.mubr.f32.gmra.mrb[0].mxu0 %v2390
      %v2637 = vpop.f32.mrb[0].mxu0
      %v2638 = vadd.f32 %v2372, %v2637
      %v2639 = vpop.f32.mrb[0].mxu0
      %2640 = vmatprep.mubr.f32.mxu0 0.0
      %2641 = vmatmul.mubr.f32.gmra.mrb[0].mxu0 %v2393
      %v2642 = vpop.f32.mrb[0].mxu0
      %v2643 = vadd.f32 %v2377, %v2642
      %v2644 = vpop.f32.mrb[0].mxu0
      %2645 = vmatprep.mubr.f32.mxu0 0.0
      %2646 = vmatmul.mubr.f32.gmra.mrb[0].mxu0 %v2396
      %v2647 = vpop.f32.mrb[0].mxu0
      %v2648 = vadd.f32 %v2382, %v2647
      %v2649 = vpop.f32.mrb[0].mxu0
      %2650 = vmatprep.mubr.f32.mxu0 0.0
      %2651 = vmatmul.mubr.f32.gmra.mrb[0].mxu0 %v2399
      %v2652 = vpop.f32.mrb[0].mxu0
      %v2653 = vadd.f32 %v2387, %v2652
      %v2654 = vpop.f32.mrb[0].mxu0
      %2655 = vdwg.mxu0
      %2656 = vmatprep.subr.mxu0 0.0
      %2657 = vmatpush1.msra.mxu0 %v2335
      %2658 = vmatprep.subr.mxu0 0.0
      %2659 = vmatpush1.msra.mxu0 %v2336
      %2660 = vmatprep.subr.mxu0 0.0
      %2661 = vmatpush1.msra.mxu0 0.0
      %2662 = vmatprep.subr.mxu0 0.0
      %2663 = vmatpush1.msra.mxu0 0.0
      %2664 = vmatprep.subr.mxu0 0.0
      %2665 = vmatpush1.msra.mxu0 0.0
      %2666 = vmatprep.subr.mxu0 0.0
      %2667 = vmatpush1.msra.mxu0 0.0
      %2668 = vmatprep.subr.mxu0 0.0
      %2669 = vmatpush1.msra.mxu0 0.0
      %2670 = vmatprep.subr.mxu0 0.0
      %2671 = vmatpush1.msra.mxu0 0.0
      %2672 = vmatprep.subr.mxu0 0.0
      %2673 = vmatpush1.msra.mxu0 0.0
      %2674 = vmatprep.subr.mxu0 0.0
      %2675 = vmatpush1.msra.mxu0 0.0
      %2676 = vmatprep.subr.mxu0 0.0
      %2677 = vmatpush1.msra.mxu0 0.0
      %2678 = vmatprep.subr.mxu0 0.0
      %2679 = vmatpush1.msra.mxu0 0.0
      %2680 = vmatprep.subr.mxu0 0.0
      %2681 = vmatpush1.msra.mxu0 0.0
      %2682 = vmatprep.subr.mxu0 0.0
      %2683 = vmatpush1.msra.mxu0 0.0
      %2684 = vmatprep.subr.mxu0 0.0
      %2685 = vmatpush1.msra.mxu0 0.0
      %2686 = vmatprep.subr.mxu0 0.0
      %2687 = vmatpush1.msra.mxu0 0.0
      %2688 = vmatprep.subr.mxu0 0.0
      %2689 = vmatpush1.msra.mxu0 0.0
      %2690 = vmatprep.subr.mxu0 0.0
      %2691 = vmatpush1.msra.mxu0 0.0
      %2692 = vmatprep.subr.mxu0 0.0
      %2693 = vmatpush1.msra.mxu0 0.0
      %2694 = vmatprep.subr.mxu0 0.0
      %2695 = vmatpush1.msra.mxu0 0.0
      %2696 = vmatprep.subr.mxu0 0.0
      %2697 = vmatpush1.msra.mxu0 0.0
      %2698 = vmatprep.subr.mxu0 0.0
      %2699 = vmatpush1.msra.mxu0 0.0
      %2700 = vmatprep.subr.mxu0 0.0
      %2701 = vmatpush1.msra.mxu0 0.0
      %2702 = vmatprep.subr.mxu0 0.0
      %2703 = vmatpush1.msra.mxu0 0.0
      %2704 = vmatprep.subr.mxu0 0.0
      %2705 = vmatpush1.msra.mxu0 0.0
      %2706 = vmatprep.subr.mxu0 0.0
      %2707 = vmatpush1.msra.mxu0 0.0
      %2708 = vmatprep.subr.mxu0 0.0
      %2709 = vmatpush1.msra.mxu0 0.0
      %2710 = vmatprep.subr.mxu0 0.0
      %2711 = vmatpush1.msra.mxu0 0.0
      %2712 = vmatprep.subr.mxu0 0.0
      %2713 = vmatpush1.msra.mxu0 0.0
      %2714 = vmatprep.subr.mxu0 0.0
      %2715 = vmatpush1.msra.mxu0 0.0
      %2716 = vmatprep.subr.mxu0 0.0
      %2717 = vmatpush1.msra.mxu0 0.0
      %2718 = vmatprep.subr.mxu0 0.0
      %2719 = vmatpush1.msra.mxu0 0.0
      %2720 = vmatprep.mubr.f32.mxu0 0.0
      %2721 = vmatmul.mubr.f32.gmra.mrb[0].mxu0 %v2390
      %v2722 = vpop.f32.mrb[0].mxu0
      %v2723 = vadd.f32 %v2372, %v2722
      %v2724 = vpop.f32.mrb[0].mxu0
      %2725 = vmatprep.mubr.f32.mxu0 0.0
      %2726 = vmatmul.mubr.f32.gmra.mrb[0].mxu0 %v2393
      %v2727 = vpop.f32.mrb[0].mxu0
      %v2728 = vadd.f32 %v2377, %v2727
      %v2729 = vpop.f32.mrb[0].mxu0
      %2730 = vmatprep.mubr.f32.mxu0 0.0
      %2731 = vmatmul.mubr.f32.gmra.mrb[0].mxu0 %v2396
      %v2732 = vpop.f32.mrb[0].mxu0
      %v2733 = vadd.f32 %v2382, %v2732
      %v2734 = vpop.f32.mrb[0].mxu0
      %2735 = vmatprep.mubr.f32.mxu0 0.0
      %2736 = vmatmul.mubr.f32.gmra.mrb[0].mxu0 %v2399
      %v2737 = vpop.f32.mrb[0].mxu0
      %v2738 = vadd.f32 %v2387, %v2737
      %v2739 = vpop.f32.mrb[0].mxu0
      %2740 = vdwg.mxu0
      %2741 = vmatprep.subr.mxu0 0.0
      %2742 = vmatpush1.msra.mxu0 %v2337
      %2743 = vmatprep.subr.mxu0 0.0
      %2744 = vmatpush1.msra.mxu0 %v2338
      %2745 = vmatprep.subr.mxu0 0.0
      %2746 = vmatpush1.msra.mxu0 0.0
      %2747 = vmatprep.subr.mxu0 0.0
      %2748 = vmatpush1.msra.mxu0 0.0
      %2749 = vmatprep.subr.mxu0 0.0
      %2750 = vmatpush1.msra.mxu0 0.0
      %2751 = vmatprep.subr.mxu0 0.0
      %2752 = vmatpush1.msra.mxu0 0.0
      %2753 = vmatprep.subr.mxu0 0.0
      %2754 = vmatpush1.msra.mxu0 0.0
      %2755 = vmatprep.subr.mxu0 0.0
      %2756 = vmatpush1.msra.mxu0 0.0
      %2757 = vmatprep.subr.mxu0 0.0
      %2758 = vmatpush1.msra.mxu0 0.0
      %2759 = vmatprep.subr.mxu0 0.0
      %2760 = vmatpush1.msra.mxu0 0.0
      %2761 = vmatprep.subr.mxu0 0.0
      %2762 = vmatpush1.msra.mxu0 0.0
      %2763 = vmatprep.subr.mxu0 0.0
      %2764 = vmatpush1.msra.mxu0 0.0
      %2765 = vmatprep.subr.mxu0 0.0
      %2766 = vmatpush1.msra.mxu0 0.0
      %2767 = vmatprep.subr.mxu0 0.0
      %2768 = vmatpush1.msra.mxu0 0.0
      %2769 = vmatprep.subr.mxu0 0.0
      %2770 = vmatpush1.msra.mxu0 0.0
      %2771 = vmatprep.subr.mxu0 0.0
      %2772 = vmatpush1.msra.mxu0 0.0
      %2773 = vmatprep.subr.mxu0 0.0
      %2774 = vmatpush1.msra.mxu0 0.0
      %2775 = vmatprep.subr.mxu0 0.0
      %2776 = vmatpush1.msra.mxu0 0.0
      %2777 = vmatprep.subr.mxu0 0.0
      %2778 = vmatpush1.msra.mxu0 0.0
      %2779 = vmatprep.subr.mxu0 0.0
      %2780 = vmatpush1.msra.mxu0 0.0
      %2781 = vmatprep.subr.mxu0 0.0
      %2782 = vmatpush1.msra.mxu0 0.0
      %2783 = vmatprep.subr.mxu0 0.0
      %2784 = vmatpush1.msra.mxu0 0.0
      %2785 = vmatprep.subr.mxu0 0.0
      %2786 = vmatpush1.msra.mxu0 0.0
      %2787 = vmatprep.subr.mxu0 0.0
      %2788 = vmatpush1.msra.mxu0 0.0
      %2789 = vmatprep.subr.mxu0 0.0
      %2790 = vmatpush1.msra.mxu0 0.0
      %2791 = vmatprep.subr.mxu0 0.0
      %2792 = vmatpush1.msra.mxu0 0.0
      %2793 = vmatprep.subr.mxu0 0.0
      %2794 = vmatpush1.msra.mxu0 0.0
      %2795 = vmatprep.subr.mxu0 0.0
      %2796 = vmatpush1.msra.mxu0 0.0
      %2797 = vmatprep.subr.mxu0 0.0
      %2798 = vmatpush1.msra.mxu0 0.0
      %2799 = vmatprep.subr.mxu0 0.0
      %2800 = vmatpush1.msra.mxu0 0.0
      %2801 = vmatprep.subr.mxu0 0.0
      %2802 = vmatpush1.msra.mxu0 0.0
      %2803 = vmatprep.subr.mxu0 0.0
      %2804 = vmatpush1.msra.mxu0 0.0
      %2805 = vmatprep.mubr.f32.mxu0 0.0
      %2806 = vmatmul.mubr.f32.gmra.mrb[0].mxu0 %v2390
      %v2807 = vpop.f32.mrb[0].mxu0
      %v2808 = vadd.f32 %v2372, %v2807
      %v2809 = vpop.f32.mrb[0].mxu0
      %2810 = vmatprep.mubr.f32.mxu0 0.0
      %2811 = vmatmul.mubr.f32.gmra.mrb[0].mxu0 %v2393
      %v2812 = vpop.f32.mrb[0].mxu0
      %v2813 = vadd.f32 %v2377, %v2812
      %v2814 = vpop.f32.mrb[0].mxu0
      %2815 = vmatprep.mubr.f32.mxu0 0.0
      %2816 = vmatmul.mubr.f32.gmra.mrb[0].mxu0 %v2396
      %v2817 = vpop.f32.mrb[0].mxu0
      %v2818 = vadd.f32 %v2382, %v2817
      %v2819 = vpop.f32.mrb[0].mxu0
      %2820 = vmatprep.mubr.f32.mxu0 0.0
      %2821 = vmatmul.mubr.f32.gmra.mrb[0].mxu0 %v2399
      %v2822 = vpop.f32.mrb[0].mxu0
      %v2823 = vadd.f32 %v2387, %v2822
      %v2824 = vpop.f32.mrb[0].mxu0
      %2825 = vdwg.mxu0
      %2826 = vmatprep.subr.mxu0 0.0
      %2827 = vmatpush1.msra.mxu0 %v2339
      %2828 = vmatprep.subr.mxu0 0.0
      %2829 = vmatpush1.msra.mxu0 %v2340
      %2830 = vmatprep.subr.mxu0 0.0
      %2831 = vmatpush1.msra.mxu0 0.0
      %2832 = vmatprep.subr.mxu0 0.0
      %2833 = vmatpush1.msra.mxu0 0.0
      %2834 = vmatprep.subr.mxu0 0.0
      %2835 = vmatpush1.msra.mxu0 0.0
      %2836 = vmatprep.subr.mxu0 0.0
      %2837 = vmatpush1.msra.mxu0 0.0
      %2838 = vmatprep.subr.mxu0 0.0
      %2839 = vmatpush1.msra.mxu0 0.0
      %2840 = vmatprep.subr.mxu0 0.0
      %2841 = vmatpush1.msra.mxu0 0.0
      %2842 = vmatprep.subr.mxu0 0.0
      %2843 = vmatpush1.msra.mxu0 0.0
      %2844 = vmatprep.subr.mxu0 0.0
      %2845 = vmatpush1.msra.mxu0 0.0
      %2846 = vmatprep.subr.mxu0 0.0
      %2847 = vmatpush1.msra.mxu0 0.0
      %2848 = vmatprep.subr.mxu0 0.0
      %2849 = vmatpush1.msra.mxu0 0.0
      %2850 = vmatprep.subr.mxu0 0.0
      %2851 = vmatpush1.msra.mxu0 0.0
      %2852 = vmatprep.subr.mxu0 0.0
      %2853 = vmatpush1.msra.mxu0 0.0
      %2854 = vmatprep.subr.mxu0 0.0
      %2855 = vmatpush1.msra.mxu0 0.0
      %2856 = vmatprep.subr.mxu0 0.0
      %2857 = vmatpush1.msra.mxu0 0.0
      %2858 = vmatprep.subr.mxu0 0.0
      %2859 = vmatpush1.msra.mxu0 0.0
      %2860 = vmatprep.subr.mxu0 0.0
      %2861 = vmatpush1.msra.mxu0 0.0
      %2862 = vmatprep.subr.mxu0 0.0
      %2863 = vmatpush1.msra.mxu0 0.0
      %2864 = vmatprep.subr.mxu0 0.0
      %2865 = vmatpush1.msra.mxu0 0.0
      %2866 = vmatprep.subr.mxu0 0.0
      %2867 = vmatpush1.msra.mxu0 0.0
      %2868 = vmatprep.subr.mxu0 0.0
      %2869 = vmatpush1.msra.mxu0 0.0
      %2870 = vmatprep.subr.mxu0 0.0
      %2871 = vmatpush1.msra.mxu0 0.0
      %2872 = vmatprep.subr.mxu0 0.0
      %2873 = vmatpush1.msra.mxu0 0.0
      %2874 = vmatprep.subr.mxu0 0.0
      %2875 = vmatpush1.msra.mxu0 0.0
      %2876 = vmatprep.subr.mxu0 0.0
      %2877 = vmatpush1.msra.mxu0 0.0
      %2878 = vmatprep.subr.mxu0 0.0
      %2879 = vmatpush1.msra.mxu0 0.0
      %2880 = vmatprep.subr.mxu0 0.0
      %2881 = vmatpush1.msra.mxu0 0.0
      %2882 = vmatprep.subr.mxu0 0.0
      %2883 = vmatpush1.msra.mxu0 0.0
      %2884 = vmatprep.subr.mxu0 0.0
      %2885 = vmatpush1.msra.mxu0 0.0
      %2886 = vmatprep.subr.mxu0 0.0
      %2887 = vmatpush1.msra.mxu0 0.0
      %2888 = vmatprep.subr.mxu0 0.0
      %2889 = vmatpush1.msra.mxu0 0.0
      %2890 = vmatprep.mubr.f32.mxu0 0.0
      %2891 = vmatmul.mubr.f32.gmra.mrb[0].mxu0 %v2390
      %v2892 = vpop.f32.mrb[0].mxu0
      %v2893 = vadd.f32 %v2372, %v2892
      %v2894 = vpop.f32.mrb[0].mxu0
      %2895 = vmatprep.mubr.f32.mxu0 0.0
      %2896 = vmatmul.mubr.f32.gmra.mrb[0].mxu0 %v2393
      %v2897 = vpop.f32.mrb[0].mxu0
      %v2898 = vadd.f32 %v2377, %v2897
      %v2899 = vpop.f32.mrb[0].mxu0
      %2900 = vmatprep.mubr.f32.mxu0 0.0
      %2901 = vmatmul.mubr.f32.gmra.mrb[0].mxu0 %v2396
      %v2902 = vpop.f32.mrb[0].mxu0
      %v2903 = vadd.f32 %v2382, %v2902
      %v2904 = vpop.f32.mrb[0].mxu0
      %2905 = vmatprep.mubr.f32.mxu0 0.0
      %2906 = vmatmul.mubr.f32.gmra.mrb[0].mxu0 %v2399
      %v2907 = vpop.f32.mrb[0].mxu0
      %v2908 = vadd.f32 %v2387, %v2907
      %v2909 = vpop.f32.mrb[0].mxu0
      %2910 = vdwg.mxu0
      %2911 = vmatprep.subr.mxu0 0.0
      %2912 = vmatpush1.msra.mxu0 %v2341
      %2913 = vmatprep.subr.mxu0 0.0
      %2914 = vmatpush1.msra.mxu0 %v2342
      %2915 = vmatprep.subr.mxu0 0.0
      %2916 = vmatpush1.msra.mxu0 0.0
      %2917 = vmatprep.subr.mxu0 0.0
      %2918 = vmatpush1.msra.mxu0 0.0
      %2919 = vmatprep.subr.mxu0 0.0
      %2920 = vmatpush1.msra.mxu0 0.0
      %2921 = vmatprep.subr.mxu0 0.0
      %2922 = vmatpush1.msra.mxu0 0.0
      %2923 = vmatprep.subr.mxu0 0.0
      %2924 = vmatpush1.msra.mxu0 0.0
      %2925 = vmatprep.subr.mxu0 0.0
      %2926 = vmatpush1.msra.mxu0 0.0
      %2927 = vmatprep.subr.mxu0 0.0
      %2928 = vmatpush1.msra.mxu0 0.0
      %2929 = vmatprep.subr.mxu0 0.0
      %2930 = vmatpush1.msra.mxu0 0.0
      %2931 = vmatprep.subr.mxu0 0.0
      %2932 = vmatpush1.msra.mxu0 0.0
      %2933 = vmatprep.subr.mxu0 0.0
      %2934 = vmatpush1.msra.mxu0 0.0
      %2935 = vmatprep.subr.mxu0 0.0
      %2936 = vmatpush1.msra.mxu0 0.0
      %2937 = vmatprep.subr.mxu0 0.0
      %2938 = vmatpush1.msra.mxu0 0.0
      %2939 = vmatprep.subr.mxu0 0.0
      %2940 = vmatpush1.msra.mxu0 0.0
      %2941 = vmatprep.subr.mxu0 0.0
      %2942 = vmatpush1.msra.mxu0 0.0
      %2943 = vmatprep.subr.mxu0 0.0
      %2944 = vmatpush1.msra.mxu0 0.0
      %2945 = vmatprep.subr.mxu0 0.0
      %2946 = vmatpush1.msra.mxu0 0.0
      %2947 = vmatprep.subr.mxu0 0.0
      %2948 = vmatpush1.msra.mxu0 0.0
      %2949 = vmatprep.subr.mxu0 0.0
      %2950 = vmatpush1.msra.mxu0 0.0
      %2951 = vmatprep.subr.mxu0 0.0
      %2952 = vmatpush1.msra.mxu0 0.0
      %2953 = vmatprep.subr.mxu0 0.0
      %2954 = vmatpush1.msra.mxu0 0.0
      %2955 = vmatprep.subr.mxu0 0.0
      %2956 = vmatpush1.msra.mxu0 0.0
      %2957 = vmatprep.subr.mxu0 0.0
      %2958 = vmatpush1.msra.mxu0 0.0
      %2959 = vmatprep.subr.mxu0 0.0
      %2960 = vmatpush1.msra.mxu0 0.0
      %2961 = vmatprep.subr.mxu0 0.0
      %2962 = vmatpush1.msra.mxu0 0.0
      %2963 = vmatprep.subr.mxu0 0.0
      %2964 = vmatpush1.msra.mxu0 0.0
      %2965 = vmatprep.subr.mxu0 0.0
      %2966 = vmatpush1.msra.mxu0 0.0
      %2967 = vmatprep.subr.mxu0 0.0
      %2968 = vmatpush1.msra.mxu0 0.0
      %2969 = vmatprep.subr.mxu0 0.0
      %2970 = vmatpush1.msra.mxu0 0.0
      %2971 = vmatprep.subr.mxu0 0.0
      %2972 = vmatpush1.msra.mxu0 0.0
      %2973 = vmatprep.subr.mxu0 0.0
      %2974 = vmatpush1.msra.mxu0 0.0
      %2975 = vmatprep.mubr.f32.mxu0 0.0
      %2976 = vmatmul.mubr.f32.gmra.mrb[0].mxu0 %v2390
      %v2977 = vpop.f32.mrb[0].mxu0
      %v2978 = vadd.f32 %v2372, %v2977
      %v2979 = vpop.f32.mrb[0].mxu0
      %2980 = vmatprep.mubr.f32.mxu0 0.0
      %2981 = vmatmul.mubr.f32.gmra.mrb[0].mxu0 %v2393
      %v2982 = vpop.f32.mrb[0].mxu0
      %v2983 = vadd.f32 %v2377, %v2982
      %v2984 = vpop.f32.mrb[0].mxu0
      %2985 = vmatprep.mubr.f32.mxu0 0.0
      %2986 = vmatmul.mubr.f32.gmra.mrb[0].mxu0 %v2396
      %v2987 = vpop.f32.mrb[0].mxu0
      %v2988 = vadd.f32 %v2382, %v2987
      %v2989 = vpop.f32.mrb[0].mxu0
      %2990 = vmatprep.mubr.f32.mxu0 0.0
      %2991 = vmatmul.mubr.f32.gmra.mrb[0].mxu0 %v2399
      %v2992 = vpop.f32.mrb[0].mxu0
      %v2993 = vadd.f32 %v2387, %v2992
      %v2994 = vpop.f32.mrb[0].mxu0
      %2995 = vdwg.mxu0
      %2996 = vmatprep.subr.mxu0 0.0
      %2997 = vmatpush1.msra.mxu0 %v2343
      %2998 = vmatprep.subr.mxu0 0.0
      %2999 = vmatpush1.msra.mxu0 %v2344
      %3000 = vmatprep.subr.mxu0 0.0
      %3001 = vmatpush1.msra.mxu0 0.0
      %3002 = vmatprep.subr.mxu0 0.0
      %3003 = vmatpush1.msra.mxu0 0.0
      %3004 = vmatprep.subr.mxu0 0.0
      %3005 = vmatpush1.msra.mxu0 0.0
      %3006 = vmatprep.subr.mxu0 0.0
      %3007 = vmatpush1.msra.mxu0 0.0
      %3008 = vmatprep.subr.mxu0 0.0
      %3009 = vmatpush1.msra.mxu0 0.0
      %3010 = vmatprep.subr.mxu0 0.0
      %3011 = vmatpush1.msra.mxu0 0.0
      %3012 = vmatprep.subr.mxu0 0.0
      %3013 = vmatpush1.msra.mxu0 0.0
      %3014 = vmatprep.subr.mxu0 0.0
      %3015 = vmatpush1.msra.mxu0 0.0
      %3016 = vmatprep.subr.mxu0 0.0
      %3017 = vmatpush1.msra.mxu0 0.0
      %3018 = vmatprep.subr.mxu0 0.0
      %3019 = vmatpush1.msra.mxu0 0.0
      %3020 = vmatprep.subr.mxu0 0.0
      %3021 = vmatpush1.msra.mxu0 0.0
      %3022 = vmatprep.subr.mxu0 0.0
      %3023 = vmatpush1.msra.mxu0 0.0
      %3024 = vmatprep.subr.mxu0 0.0
      %3025 = vmatpush1.msra.mxu0 0.0
      %3026 = vmatprep.subr.mxu0 0.0
      %3027 = vmatpush1.msra.mxu0 0.0
      %3028 = vmatprep.subr.mxu0 0.0
      %3029 = vmatpush1.msra.mxu0 0.0
      %3030 = vmatprep.subr.mxu0 0.0
      %3031 = vmatpush1.msra.mxu0 0.0
      %3032 = vmatprep.subr.mxu0 0.0
      %3033 = vmatpush1.msra.mxu0 0.0
      %3034 = vmatprep.subr.mxu0 0.0
      %3035 = vmatpush1.msra.mxu0 0.0
      %3036 = vmatprep.subr.mxu0 0.0
      %3037 = vmatpush1.msra.mxu0 0.0
      %3038 = vmatprep.subr.mxu0 0.0
      %3039 = vmatpush1.msra.mxu0 0.0
      %3040 = vmatprep.subr.mxu0 0.0
      %3041 = vmatpush1.msra.mxu0 0.0
      %3042 = vmatprep.subr.mxu0 0.0
      %3043 = vmatpush1.msra.mxu0 0.0
      %3044 = vmatprep.subr.mxu0 0.0
      %3045 = vmatpush1.msra.mxu0 0.0
      %3046 = vmatprep.subr.mxu0 0.0
      %3047 = vmatpush1.msra.mxu0 0.0
      %3048 = vmatprep.subr.mxu0 0.0
      %3049 = vmatpush1.msra.mxu0 0.0
      %3050 = vmatprep.subr.mxu0 0.0
      %3051 = vmatpush1.msra.mxu0 0.0
      %3052 = vmatprep.subr.mxu0 0.0
      %3053 = vmatpush1.msra.mxu0 0.0
      %3054 = vmatprep.subr.mxu0 0.0
      %3055 = vmatpush1.msra.mxu0 0.0
      %3056 = vmatprep.subr.mxu0 0.0
      %3057 = vmatpush1.msra.mxu0 0.0
      %3058 = vmatprep.subr.mxu0 0.0
      %3059 = vmatpush1.msra.mxu0 0.0
      %3060 = vmatprep.mubr.f32.mxu0 0.0
      %3061 = vmatmul.mubr.f32.gmra.mrb[0].mxu0 %v2390
      %v3062 = vpop.f32.mrb[0].mxu0
      %v3063 = vadd.f32 %v2372, %v3062
      %v3064 = vpop.f32.mrb[0].mxu0
      %3065 = vmatprep.mubr.f32.mxu0 0.0
      %3066 = vmatmul.mubr.f32.gmra.mrb[0].mxu0 %v2393
      %v3067 = vpop.f32.mrb[0].mxu0
      %v3068 = vadd.f32 %v2377, %v3067
      %v3069 = vpop.f32.mrb[0].mxu0
      %3070 = vmatprep.mubr.f32.mxu0 0.0
      %3071 = vmatmul.mubr.f32.gmra.mrb[0].mxu0 %v2396
      %v3072 = vpop.f32.mrb[0].mxu0
      %v3073 = vadd.f32 %v2382, %v3072
      %v3074 = vpop.f32.mrb[0].mxu0
      %3075 = vmatprep.mubr.f32.mxu0 0.0
      %3076 = vmatmul.mubr.f32.gmra.mrb[0].mxu0 %v2399
      %v3077 = vpop.f32.mrb[0].mxu0
      %v3078 = vadd.f32 %v2387, %v3077
      %v3079 = vpop.f32.mrb[0].mxu0
      %3080 = vdwg.mxu0
      %3081 = vmatprep.subr.mxu0 0.0
      %3082 = vmatpush1.msra.mxu0 %v2345
      %3083 = vmatprep.subr.mxu0 0.0
      %3084 = vmatpush1.msra.mxu0 %v2346
      %3085 = vmatprep.subr.mxu0 0.0
      %3086 = vmatpush1.msra.mxu0 0.0
      %3087 = vmatprep.subr.mxu0 0.0
      %3088 = vmatpush1.msra.mxu0 0.0
      %3089 = vmatprep.subr.mxu0 0.0
      %3090 = vmatpush1.msra.mxu0 0.0
      %3091 = vmatprep.subr.mxu0 0.0
      %3092 = vmatpush1.msra.mxu0 0.0
      %3093 = vmatprep.subr.mxu0 0.0
      %3094 = vmatpush1.msra.mxu0 0.0
      %3095 = vmatprep.subr.mxu0 0.0
      %3096 = vmatpush1.msra.mxu0 0.0
      %3097 = vmatprep.subr.mxu0 0.0
      %3098 = vmatpush1.msra.mxu0 0.0
      %3099 = vmatprep.subr.mxu0 0.0
      %3100 = vmatpush1.msra.mxu0 0.0
      %3101 = vmatprep.subr.mxu0 0.0
      %3102 = vmatpush1.msra.mxu0 0.0
      %3103 = vmatprep.subr.mxu0 0.0
      %3104 = vmatpush1.msra.mxu0 0.0
      %3105 = vmatprep.subr.mxu0 0.0
      %3106 = vmatpush1.msra.mxu0 0.0
      %3107 = vmatprep.subr.mxu0 0.0
      %3108 = vmatpush1.msra.mxu0 0.0
      %3109 = vmatprep.subr.mxu0 0.0
      %3110 = vmatpush1.msra.mxu0 0.0
      %3111 = vmatprep.subr.mxu0 0.0
      %3112 = vmatpush1.msra.mxu0 0.0
      %3113 = vmatprep.subr.mxu0 0.0
      %3114 = vmatpush1.msra.mxu0 0.0
      %3115 = vmatprep.subr.mxu0 0.0
      %3116 = vmatpush1.msra.mxu0 0.0
      %3117 = vmatprep.subr.mxu0 0.0
      %3118 = vmatpush1.msra.mxu0 0.0
      %3119 = vmatprep.subr.mxu0 0.0
      %3120 = vmatpush1.msra.mxu0 0.0
      %3121 = vmatprep.subr.mxu0 0.0
      %3122 = vmatpush1.msra.mxu0 0.0
      %3123 = vmatprep.subr.mxu0 0.0
      %3124 = vmatpush1.msra.mxu0 0.0
      %3125 = vmatprep.subr.mxu0 0.0
      %3126 = vmatpush1.msra.mxu0 0.0
      %3127 = vmatprep.subr.mxu0 0.0
      %3128 = vmatpush1.msra.mxu0 0.0
      %3129 = vmatprep.subr.mxu0 0.0
      %3130 = vmatpush1.msra.mxu0 0.0
      %3131 = vmatprep.subr.mxu0 0.0
      %3132 = vmatpush1.msra.mxu0 0.0
      %3133 = vmatprep.subr.mxu0 0.0
      %3134 = vmatpush1.msra.mxu0 0.0
      %3135 = vmatprep.subr.mxu0 0.0
      %3136 = vmatpush1.msra.mxu0 0.0
      %3137 = vmatprep.subr.mxu0 0.0
      %3138 = vmatpush1.msra.mxu0 0.0
      %3139 = vmatprep.subr.mxu0 0.0
      %3140 = vmatpush1.msra.mxu0 0.0
      %3141 = vmatprep.subr.mxu0 0.0
      %3142 = vmatpush1.msra.mxu0 0.0
      %3143 = vmatprep.subr.mxu0 0.0
      %3144 = vmatpush1.msra.mxu0 0.0
      %3145 = vmatprep.mubr.f32.mxu0 0.0
      %3146 = vmatmul.mubr.f32.gmra.mrb[0].mxu0 %v2390
      %v3147 = vpop.f32.mrb[0].mxu0
      %v3148 = vadd.f32 %v2372, %v3147
      %v3149 = vpop.f32.mrb[0].mxu0
      %3150 = vmatprep.mubr.f32.mxu0 0.0
      %3151 = vmatmul.mubr.f32.gmra.mrb[0].mxu0 %v2393
      %v3152 = vpop.f32.mrb[0].mxu0
      %v3153 = vadd.f32 %v2377, %v3152
      %v3154 = vpop.f32.mrb[0].mxu0
      %3155 = vmatprep.mubr.f32.mxu0 0.0
      %3156 = vmatmul.mubr.f32.gmra.mrb[0].mxu0 %v2396
      %v3157 = vpop.f32.mrb[0].mxu0
      %v3158 = vadd.f32 %v2382, %v3157
      %v3159 = vpop.f32.mrb[0].mxu0
      %3160 = vmatprep.mubr.f32.mxu0 0.0
      %3161 = vmatmul.mubr.f32.gmra.mrb[0].mxu0 %v2399
      %v3162 = vpop.f32.mrb[0].mxu0
      %v3163 = vadd.f32 %v2387, %v3162
      %v3164 = vpop.f32.mrb[0].mxu0
      %3165 = vdwg.mxu0
      %3166 = vmatprep.subr.mxu0 0.0
      %3167 = vmatpush1.msra.mxu0 %v2347
      %3168 = vmatprep.subr.mxu0 0.0
      %3169 = vmatpush1.msra.mxu0 %v2348
      %3170 = vmatprep.subr.mxu0 0.0
      %3171 = vmatpush1.msra.mxu0 0.0
      %3172 = vmatprep.subr.mxu0 0.0
      %3173 = vmatpush1.msra.mxu0 0.0
      %3174 = vmatprep.subr.mxu0 0.0
      %3175 = vmatpush1.msra.mxu0 0.0
      %3176 = vmatprep.subr.mxu0 0.0
      %3177 = vmatpush1.msra.mxu0 0.0
      %3178 = vmatprep.subr.mxu0 0.0
      %3179 = vmatpush1.msra.mxu0 0.0
      %3180 = vmatprep.subr.mxu0 0.0
      %3181 = vmatpush1.msra.mxu0 0.0
      %3182 = vmatprep.subr.mxu0 0.0
      %3183 = vmatpush1.msra.mxu0 0.0
      %3184 = vmatprep.subr.mxu0 0.0
      %3185 = vmatpush1.msra.mxu0 0.0
      %3186 = vmatprep.subr.mxu0 0.0
      %3187 = vmatpush1.msra.mxu0 0.0
      %3188 = vmatprep.subr.mxu0 0.0
      %3189 = vmatpush1.msra.mxu0 0.0
      %3190 = vmatprep.subr.mxu0 0.0
      %3191 = vmatpush1.msra.mxu0 0.0
      %3192 = vmatprep.subr.mxu0 0.0
      %3193 = vmatpush1.msra.mxu0 0.0
      %3194 = vmatprep.subr.mxu0 0.0
      %3195 = vmatpush1.msra.mxu0 0.0
      %3196 = vmatprep.subr.mxu0 0.0
      %3197 = vmatpush1.msra.mxu0 0.0
      %3198 = vmatprep.subr.mxu0 0.0
      %3199 = vmatpush1.msra.mxu0 0.0
      %3200 = vmatprep.subr.mxu0 0.0
      %3201 = vmatpush1.msra.mxu0 0.0
      %3202 = vmatprep.subr.mxu0 0.0
      %3203 = vmatpush1.msra.mxu0 0.0
      %3204 = vmatprep.subr.mxu0 0.0
      %3205 = vmatpush1.msra.mxu0 0.0
      %3206 = vmatprep.subr.mxu0 0.0
      %3207 = vmatpush1.msra.mxu0 0.0
      %3208 = vmatprep.subr.mxu0 0.0
      %3209 = vmatpush1.msra.mxu0 0.0
      %3210 = vmatprep.subr.mxu0 0.0
      %3211 = vmatpush1.msra.mxu0 0.0
      %3212 = vmatprep.subr.mxu0 0.0
      %3213 = vmatpush1.msra.mxu0 0.0
      %3214 = vmatprep.subr.mxu0 0.0
      %3215 = vmatpush1.msra.mxu0 0.0
      %3216 = vmatprep.subr.mxu0 0.0
      %3217 = vmatpush1.msra.mxu0 0.0
      %3218 = vmatprep.subr.mxu0 0.0
      %3219 = vmatpush1.msra.mxu0 0.0
      %3220 = vmatprep.subr.mxu0 0.0
      %3221 = vmatpush1.msra.mxu0 0.0
      %3222 = vmatprep.subr.mxu0 0.0
      %3223 = vmatpush1.msra.mxu0 0.0
      %3224 = vmatprep.subr.mxu0 0.0
      %3225 = vmatpush1.msra.mxu0 0.0
      %3226 = vmatprep.subr.mxu0 0.0
      %3227 = vmatpush1.msra.mxu0 0.0
      %3228 = vmatprep.subr.mxu0 0.0
      %3229 = vmatpush1.msra.mxu0 0.0
      %3230 = vmatprep.mubr.f32.mxu0 0.0
      %3231 = vmatmul.mubr.f32.gmra.mrb[0].mxu0 %v2390
      %v3232 = vpop.f32.mrb[0].mxu0
      %v3233 = vadd.f32 %v2372, %v3232
      %v3234 = vpop.f32.mrb[0].mxu0
      %3235 = vmatprep.mubr.f32.mxu0 0.0
      %3236 = vmatmul.mubr.f32.gmra.mrb[0].mxu0 %v2393
      %v3237 = vpop.f32.mrb[0].mxu0
      %v3238 = vadd.f32 %v2377, %v3237
      %v3239 = vpop.f32.mrb[0].mxu0
      %3240 = vmatprep.mubr.f32.mxu0 0.0
      %3241 = vmatmul.mubr.f32.gmra.mrb[0].mxu0 %v2396
      %v3242 = vpop.f32.mrb[0].mxu0
      %v3243 = vadd.f32 %v2382, %v3242
      %v3244 = vpop.f32.mrb[0].mxu0
      %3245 = vmatprep.mubr.f32.mxu0 0.0
      %3246 = vmatmul.mubr.f32.gmra.mrb[0].mxu0 %v2399
      %v3247 = vpop.f32.mrb[0].mxu0
      %v3248 = vadd.f32 %v2387, %v3247
      %v3249 = vpop.f32.mrb[0].mxu0
      %3250 = vdwg.mxu0
      %3251 = vmatprep.subr.mxu0 0.0
      %3252 = vmatpush1.msra.mxu0 %v2349
      %3253 = vmatprep.subr.mxu0 0.0
      %3254 = vmatpush1.msra.mxu0 %v2350
      %3255 = vmatprep.subr.mxu0 0.0
      %3256 = vmatpush1.msra.mxu0 0.0
      %3257 = vmatprep.subr.mxu0 0.0
      %3258 = vmatpush1.msra.mxu0 0.0
      %3259 = vmatprep.subr.mxu0 0.0
      %3260 = vmatpush1.msra.mxu0 0.0
      %3261 = vmatprep.subr.mxu0 0.0
      %3262 = vmatpush1.msra.mxu0 0.0
      %3263 = vmatprep.subr.mxu0 0.0
      %3264 = vmatpush1.msra.mxu0 0.0
      %3265 = vmatprep.subr.mxu0 0.0
      %3266 = vmatpush1.msra.mxu0 0.0
      %3267 = vmatprep.subr.mxu0 0.0
      %3268 = vmatpush1.msra.mxu0 0.0
      %3269 = vmatprep.subr.mxu0 0.0
      %3270 = vmatpush1.msra.mxu0 0.0
      %3271 = vmatprep.subr.mxu0 0.0
      %3272 = vmatpush1.msra.mxu0 0.0
      %3273 = vmatprep.subr.mxu0 0.0
      %3274 = vmatpush1.msra.mxu0 0.0
      %3275 = vmatprep.subr.mxu0 0.0
      %3276 = vmatpush1.msra.mxu0 0.0
      %3277 = vmatprep.subr.mxu0 0.0
      %3278 = vmatpush1.msra.mxu0 0.0
      %3279 = vmatprep.subr.mxu0 0.0
      %3280 = vmatpush1.msra.mxu0 0.0
      %3281 = vmatprep.subr.mxu0 0.0
      %3282 = vmatpush1.msra.mxu0 0.0
      %3283 = vmatprep.subr.mxu0 0.0
      %3284 = vmatpush1.msra.mxu0 0.0
      %3285 = vmatprep.subr.mxu0 0.0
      %3286 = vmatpush1.msra.mxu0 0.0
      %3287 = vmatprep.subr.mxu0 0.0
      %3288 = vmatpush1.msra.mxu0 0.0
      %3289 = vmatprep.subr.mxu0 0.0
      %3290 = vmatpush1.msra.mxu0 0.0
      %3291 = vmatprep.subr.mxu0 0.0
      %3292 = vmatpush1.msra.mxu0 0.0
      %3293 = vmatprep.subr.mxu0 0.0
      %3294 = vmatpush1.msra.mxu0 0.0
      %3295 = vmatprep.subr.mxu0 0.0
      %3296 = vmatpush1.msra.mxu0 0.0
      %3297 = vmatprep.subr.mxu0 0.0
      %3298 = vmatpush1.msra.mxu0 0.0
      %3299 = vmatprep.subr.mxu0 0.0
      %3300 = vmatpush1.msra.mxu0 0.0
      %3301 = vmatprep.subr.mxu0 0.0
      %3302 = vmatpush1.msra.mxu0 0.0
      %3303 = vmatprep.subr.mxu0 0.0
      %3304 = vmatpush1.msra.mxu0 0.0
      %3305 = vmatprep.subr.mxu0 0.0
      %3306 = vmatpush1.msra.mxu0 0.0
      %3307 = vmatprep.subr.mxu0 0.0
      %3308 = vmatpush1.msra.mxu0 0.0
      %3309 = vmatprep.subr.mxu0 0.0
      %3310 = vmatpush1.msra.mxu0 0.0
      %3311 = vmatprep.subr.mxu0 0.0
      %3312 = vmatpush1.msra.mxu0 0.0
      %3313 = vmatprep.subr.mxu0 0.0
      %3314 = vmatpush1.msra.mxu0 0.0
      %3315 = vmatprep.mubr.f32.mxu0 0.0
      %3316 = vmatmul.mubr.f32.gmra.mrb[0].mxu0 %v2390
      %v3317 = vpop.f32.mrb[0].mxu0
      %v3318 = vadd.f32 %v2372, %v3317
      %v3319 = vpop.f32.mrb[0].mxu0
      %3320 = vmatprep.mubr.f32.mxu0 0.0
      %3321 = vmatmul.mubr.f32.gmra.mrb[0].mxu0 %v2393
      %v3322 = vpop.f32.mrb[0].mxu0
      %v3323 = vadd.f32 %v2377, %v3322
      %v3324 = vpop.f32.mrb[0].mxu0
      %3325 = vmatprep.mubr.f32.mxu0 0.0
      %3326 = vmatmul.mubr.f32.gmra.mrb[0].mxu0 %v2396
      %v3327 = vpop.f32.mrb[0].mxu0
      %v3328 = vadd.f32 %v2382, %v3327
      %v3329 = vpop.f32.mrb[0].mxu0
      %3330 = vmatprep.mubr.f32.mxu0 0.0
      %3331 = vmatmul.mubr.f32.gmra.mrb[0].mxu0 %v2399
      %v3332 = vpop.f32.mrb[0].mxu0
      %v3333 = vadd.f32 %v2387, %v3332
      %v3334 = vpop.f32.mrb[0].mxu0
      %3335 = vdwg.mxu0
      %3336 = vmatprep.subr.mxu0 0.0
      %3337 = vmatpush1.msra.mxu0 %v2351
      %3338 = vmatprep.subr.mxu0 0.0
      %3339 = vmatpush1.msra.mxu0 %v2352
      %3340 = vmatprep.subr.mxu0 0.0
      %3341 = vmatpush1.msra.mxu0 0.0
      %3342 = vmatprep.subr.mxu0 0.0
      %3343 = vmatpush1.msra.mxu0 0.0
      %3344 = vmatprep.subr.mxu0 0.0
      %3345 = vmatpush1.msra.mxu0 0.0
      %3346 = vmatprep.subr.mxu0 0.0
      %3347 = vmatpush1.msra.mxu0 0.0
      %3348 = vmatprep.subr.mxu0 0.0
      %3349 = vmatpush1.msra.mxu0 0.0
      %3350 = vmatprep.subr.mxu0 0.0
      %3351 = vmatpush1.msra.mxu0 0.0
      %3352 = vmatprep.subr.mxu0 0.0
      %3353 = vmatpush1.msra.mxu0 0.0
      %3354 = vmatprep.subr.mxu0 0.0
      %3355 = vmatpush1.msra.mxu0 0.0
      %3356 = vmatprep.subr.mxu0 0.0
      %3357 = vmatpush1.msra.mxu0 0.0
      %3358 = vmatprep.subr.mxu0 0.0
      %3359 = vmatpush1.msra.mxu0 0.0
      %3360 = vmatprep.subr.mxu0 0.0
      %3361 = vmatpush1.msra.mxu0 0.0
      %3362 = vmatprep.subr.mxu0 0.0
      %3363 = vmatpush1.msra.mxu0 0.0
      %3364 = vmatprep.subr.mxu0 0.0
      %3365 = vmatpush1.msra.mxu0 0.0
      %3366 = vmatprep.subr.mxu0 0.0
      %3367 = vmatpush1.msra.mxu0 0.0
      %3368 = vmatprep.subr.mxu0 0.0
      %3369 = vmatpush1.msra.mxu0 0.0
      %3370 = vmatprep.subr.mxu0 0.0
      %3371 = vmatpush1.msra.mxu0 0.0
      %3372 = vmatprep.subr.mxu0 0.0
      %3373 = vmatpush1.msra.mxu0 0.0
      %3374 = vmatprep.subr.mxu0 0.0
      %3375 = vmatpush1.msra.mxu0 0.0
      %3376 = vmatprep.subr.mxu0 0.0
      %3377 = vmatpush1.msra.mxu0 0.0
      %3378 = vmatprep.subr.mxu0 0.0
      %3379 = vmatpush1.msra.mxu0 0.0
      %3380 = vmatprep.subr.mxu0 0.0
      %3381 = vmatpush1.msra.mxu0 0.0
      %3382 = vmatprep.subr.mxu0 0.0
      %3383 = vmatpush1.msra.mxu0 0.0
      %3384 = vmatprep.subr.mxu0 0.0
      %3385 = vmatpush1.msra.mxu0 0.0
      %3386 = vmatprep.subr.mxu0 0.0
      %3387 = vmatpush1.msra.mxu0 0.0
      %3388 = vmatprep.subr.mxu0 0.0
      %3389 = vmatpush1.msra.mxu0 0.0
      %3390 = vmatprep.subr.mxu0 0.0
      %3391 = vmatpush1.msra.mxu0 0.0
      %3392 = vmatprep.subr.mxu0 0.0
      %3393 = vmatpush1.msra.mxu0 0.0
      %3394 = vmatprep.subr.mxu0 0.0
      %3395 = vmatpush1.msra.mxu0 0.0
      %3396 = vmatprep.subr.mxu0 0.0
      %3397 = vmatpush1.msra.mxu0 0.0
      %3398 = vmatprep.subr.mxu0 0.0
      %3399 = vmatpush1.msra.mxu0 0.0
      %3400 = vmatprep.mubr.f32.mxu0 0.0
      %3401 = vmatmul.mubr.f32.gmra.mrb[0].mxu0 %v2390
      %v3402 = vpop.f32.mrb[0].mxu0
      %v3403 = vadd.f32 %v2372, %v3402
      %v3404 = vpop.f32.mrb[0].mxu0
      %3405 = vmatprep.mubr.f32.mxu0 0.0
      %3406 = vmatmul.mubr.f32.gmra.mrb[0].mxu0 %v2393
      %v3407 = vpop.f32.mrb[0].mxu0
      %v3408 = vadd.f32 %v2377, %v3407
      %v3409 = vpop.f32.mrb[0].mxu0
      %3410 = vmatprep.mubr.f32.mxu0 0.0
      %3411 = vmatmul.mubr.f32.gmra.mrb[0].mxu0 %v2396
      %v3412 = vpop.f32.mrb[0].mxu0
      %v3413 = vadd.f32 %v2382, %v3412
      %v3414 = vpop.f32.mrb[0].mxu0
      %3415 = vmatprep.mubr.f32.mxu0 0.0
      %3416 = vmatmul.mubr.f32.gmra.mrb[0].mxu0 %v2399
      %v3417 = vpop.f32.mrb[0].mxu0
      %v3418 = vadd.f32 %v2387, %v3417
      %v3419 = vpop.f32.mrb[0].mxu0
      %3420 = vdwg.mxu0
      %3421 = vmatprep.subr.mxu0 0.0
      %3422 = vmatpush1.msra.mxu0 %v2353
      %3423 = vmatprep.subr.mxu0 0.0
      %3424 = vmatpush1.msra.mxu0 %v2354
      %3425 = vmatprep.subr.mxu0 0.0
      %3426 = vmatpush1.msra.mxu0 0.0
      %3427 = vmatprep.subr.mxu0 0.0
      %3428 = vmatpush1.msra.mxu0 0.0
      %3429 = vmatprep.subr.mxu0 0.0
      %3430 = vmatpush1.msra.mxu0 0.0
      %3431 = vmatprep.subr.mxu0 0.0
      %3432 = vmatpush1.msra.mxu0 0.0
      %3433 = vmatprep.subr.mxu0 0.0
      %3434 = vmatpush1.msra.mxu0 0.0
      %3435 = vmatprep.subr.mxu0 0.0
      %3436 = vmatpush1.msra.mxu0 0.0
      %3437 = vmatprep.subr.mxu0 0.0
      %3438 = vmatpush1.msra.mxu0 0.0
      %3439 = vmatprep.subr.mxu0 0.0
      %3440 = vmatpush1.msra.mxu0 0.0
      %3441 = vmatprep.subr.mxu0 0.0
      %3442 = vmatpush1.msra.mxu0 0.0
      %3443 = vmatprep.subr.mxu0 0.0
      %3444 = vmatpush1.msra.mxu0 0.0
      %3445 = vmatprep.subr.mxu0 0.0
      %3446 = vmatpush1.msra.mxu0 0.0
      %3447 = vmatprep.subr.mxu0 0.0
      %3448 = vmatpush1.msra.mxu0 0.0
      %3449 = vmatprep.subr.mxu0 0.0
      %3450 = vmatpush1.msra.mxu0 0.0
      %3451 = vmatprep.subr.mxu0 0.0
      %3452 = vmatpush1.msra.mxu0 0.0
      %3453 = vmatprep.subr.mxu0 0.0
      %3454 = vmatpush1.msra.mxu0 0.0
      %3455 = vmatprep.subr.mxu0 0.0
      %3456 = vmatpush1.msra.mxu0 0.0
      %3457 = vmatprep.subr.mxu0 0.0
      %3458 = vmatpush1.msra.mxu0 0.0
      %3459 = vmatprep.subr.mxu0 0.0
      %3460 = vmatpush1.msra.mxu0 0.0
      %3461 = vmatprep.subr.mxu0 0.0
      %3462 = vmatpush1.msra.mxu0 0.0
      %3463 = vmatprep.subr.mxu0 0.0
      %3464 = vmatpush1.msra.mxu0 0.0
      %3465 = vmatprep.subr.mxu0 0.0
      %3466 = vmatpush1.msra.mxu0 0.0
      %3467 = vmatprep.subr.mxu0 0.0
      %3468 = vmatpush1.msra.mxu0 0.0
      %3469 = vmatprep.subr.mxu0 0.0
      %3470 = vmatpush1.msra.mxu0 0.0
      %3471 = vmatprep.subr.mxu0 0.0
      %3472 = vmatpush1.msra.mxu0 0.0
      %3473 = vmatprep.subr.mxu0 0.0
      %3474 = vmatpush1.msra.mxu0 0.0
      %3475 = vmatprep.subr.mxu0 0.0
      %3476 = vmatpush1.msra.mxu0 0.0
      %3477 = vmatprep.subr.mxu0 0.0
      %3478 = vmatpush1.msra.mxu0 0.0
      %3479 = vmatprep.subr.mxu0 0.0
      %3480 = vmatpush1.msra.mxu0 0.0
      %3481 = vmatprep.subr.mxu0 0.0
      %3482 = vmatpush1.msra.mxu0 0.0
      %3483 = vmatprep.subr.mxu0 0.0
      %3484 = vmatpush1.msra.mxu0 0.0
      %3485 = vmatprep.mubr.f32.mxu0 0.0
      %3486 = vmatmul.mubr.f32.gmra.mrb[0].mxu0 %v2390
      %v3487 = vpop.f32.mrb[0].mxu0
      %v3488 = vadd.f32 %v2372, %v3487
      %v3489 = vpop.f32.mrb[0].mxu0
      %3490 = vmatprep.mubr.f32.mxu0 0.0
      %3491 = vmatmul.mubr.f32.gmra.mrb[0].mxu0 %v2393
      %v3492 = vpop.f32.mrb[0].mxu0
      %v3493 = vadd.f32 %v2377, %v3492
      %v3494 = vpop.f32.mrb[0].mxu0
      %3495 = vmatprep.mubr.f32.mxu0 0.0
      %3496 = vmatmul.mubr.f32.gmra.mrb[0].mxu0 %v2396
      %v3497 = vpop.f32.mrb[0].mxu0
      %v3498 = vadd.f32 %v2382, %v3497
      %v3499 = vpop.f32.mrb[0].mxu0
      %3500 = vmatprep.mubr.f32.mxu0 0.0
      %3501 = vmatmul.mubr.f32.gmra.mrb[0].mxu0 %v2399
      %v3502 = vpop.f32.mrb[0].mxu0
      %v3503 = vadd.f32 %v2387, %v3502
      %v3504 = vpop.f32.mrb[0].mxu0
      %3505 = vdwg.mxu0
      %3506 = vmatprep.subr.mxu0 0.0
      %3507 = vmatpush1.msra.mxu0 %v2355
      %3508 = vmatprep.subr.mxu0 0.0
      %3509 = vmatpush1.msra.mxu0 %v2356
      %3510 = vmatprep.subr.mxu0 0.0
      %3511 = vmatpush1.msra.mxu0 0.0
      %3512 = vmatprep.subr.mxu0 0.0
      %3513 = vmatpush1.msra.mxu0 0.0
      %3514 = vmatprep.subr.mxu0 0.0
      %3515 = vmatpush1.msra.mxu0 0.0
      %3516 = vmatprep.subr.mxu0 0.0
      %3517 = vmatpush1.msra.mxu0 0.0
      %3518 = vmatprep.subr.mxu0 0.0
      %3519 = vmatpush1.msra.mxu0 0.0
      %3520 = vmatprep.subr.mxu0 0.0
      %3521 = vmatpush1.msra.mxu0 0.0
      %3522 = vmatprep.subr.mxu0 0.0
      %3523 = vmatpush1.msra.mxu0 0.0
      %3524 = vmatprep.subr.mxu0 0.0
      %3525 = vmatpush1.msra.mxu0 0.0
      %3526 = vmatprep.subr.mxu0 0.0
      %3527 = vmatpush1.msra.mxu0 0.0
      %3528 = vmatprep.subr.mxu0 0.0
      %3529 = vmatpush1.msra.mxu0 0.0
      %3530 = vmatprep.subr.mxu0 0.0
      %3531 = vmatpush1.msra.mxu0 0.0
      %3532 = vmatprep.subr.mxu0 0.0
      %3533 = vmatpush1.msra.mxu0 0.0
      %3534 = vmatprep.subr.mxu0 0.0
      %3535 = vmatpush1.msra.mxu0 0.0
      %3536 = vmatprep.subr.mxu0 0.0
      %3537 = vmatpush1.msra.mxu0 0.0
      %3538 = vmatprep.subr.mxu0 0.0
      %3539 = vmatpush1.msra.mxu0 0.0
      %3540 = vmatprep.subr.mxu0 0.0
      %3541 = vmatpush1.msra.mxu0 0.0
      %3542 = vmatprep.subr.mxu0 0.0
      %3543 = vmatpush1.msra.mxu0 0.0
      %3544 = vmatprep.subr.mxu0 0.0
      %3545 = vmatpush1.msra.mxu0 0.0
      %3546 = vmatprep.subr.mxu0 0.0
      %3547 = vmatpush1.msra.mxu0 0.0
      %3548 = vmatprep.subr.mxu0 0.0
      %3549 = vmatpush1.msra.mxu0 0.0
      %3550 = vmatprep.subr.mxu0 0.0
      %3551 = vmatpush1.msra.mxu0 0.0
      %3552 = vmatprep.subr.mxu0 0.0
      %3553 = vmatpush1.msra.mxu0 0.0
      %3554 = vmatprep.subr.mxu0 0.0
      %3555 = vmatpush1.msra.mxu0 0.0
      %3556 = vmatprep.subr.mxu0 0.0
      %3557 = vmatpush1.msra.mxu0 0.0
      %3558 = vmatprep.subr.mxu0 0.0
      %3559 = vmatpush1.msra.mxu0 0.0
      %3560 = vmatprep.subr.mxu0 0.0
      %3561 = vmatpush1.msra.mxu0 0.0
      %3562 = vmatprep.subr.mxu0 0.0
      %3563 = vmatpush1.msra.mxu0 0.0
      %3564 = vmatprep.subr.mxu0 0.0
      %3565 = vmatpush1.msra.mxu0 0.0
      %3566 = vmatprep.subr.mxu0 0.0
      %3567 = vmatpush1.msra.mxu0 0.0
      %3568 = vmatprep.subr.mxu0 0.0
      %3569 = vmatpush1.msra.mxu0 0.0
      %3570 = vmatprep.mubr.f32.mxu0 0.0
      %3571 = vmatmul.mubr.f32.gmra.mrb[0].mxu0 %v2390
      %v3572 = vpop.f32.mrb[0].mxu0
      %v3573 = vadd.f32 %v2372, %v3572
      %v3574 = vpop.f32.mrb[0].mxu0
      %3575 = vmatprep.mubr.f32.mxu0 0.0
      %3576 = vmatmul.mubr.f32.gmra.mrb[0].mxu0 %v2393
      %v3577 = vpop.f32.mrb[0].mxu0
      %v3578 = vadd.f32 %v2377, %v3577
      %v3579 = vpop.f32.mrb[0].mxu0
      %3580 = vmatprep.mubr.f32.mxu0 0.0
      %3581 = vmatmul.mubr.f32.gmra.mrb[0].mxu0 %v2396
      %v3582 = vpop.f32.mrb[0].mxu0
      %v3583 = vadd.f32 %v2382, %v3582
      %v3584 = vpop.f32.mrb[0].mxu0
      %3585 = vmatprep.mubr.f32.mxu0 0.0
      %3586 = vmatmul.mubr.f32.gmra.mrb[0].mxu0 %v2399
      %v3587 = vpop.f32.mrb[0].mxu0
      %v3588 = vadd.f32 %v2387, %v3587
      %v3589 = vpop.f32.mrb[0].mxu0
      %3590 = vdwg.mxu0
      %3591 = vmatprep.subr.mxu0 0.0
      %3592 = vmatpush1.msra.mxu0 %v2357
      %3593 = vmatprep.subr.mxu0 0.0
      %3594 = vmatpush1.msra.mxu0 %v2358
      %3595 = vmatprep.subr.mxu0 0.0
      %3596 = vmatpush1.msra.mxu0 0.0
      %3597 = vmatprep.subr.mxu0 0.0
      %3598 = vmatpush1.msra.mxu0 0.0
      %3599 = vmatprep.subr.mxu0 0.0
      %3600 = vmatpush1.msra.mxu0 0.0
      %3601 = vmatprep.subr.mxu0 0.0
      %3602 = vmatpush1.msra.mxu0 0.0
      %3603 = vmatprep.subr.mxu0 0.0
      %3604 = vmatpush1.msra.mxu0 0.0
      %3605 = vmatprep.subr.mxu0 0.0
      %3606 = vmatpush1.msra.mxu0 0.0
      %3607 = vmatprep.subr.mxu0 0.0
      %3608 = vmatpush1.msra.mxu0 0.0
      %3609 = vmatprep.subr.mxu0 0.0
      %3610 = vmatpush1.msra.mxu0 0.0
      %3611 = vmatprep.subr.mxu0 0.0
      %3612 = vmatpush1.msra.mxu0 0.0
      %3613 = vmatprep.subr.mxu0 0.0
      %3614 = vmatpush1.msra.mxu0 0.0
      %3615 = vmatprep.subr.mxu0 0.0
      %3616 = vmatpush1.msra.mxu0 0.0
      %3617 = vmatprep.subr.mxu0 0.0
      %3618 = vmatpush1.msra.mxu0 0.0
      %3619 = vmatprep.subr.mxu0 0.0
      %3620 = vmatpush1.msra.mxu0 0.0
      %3621 = vmatprep.subr.mxu0 0.0
      %3622 = vmatpush1.msra.mxu0 0.0
      %3623 = vmatprep.subr.mxu0 0.0
      %3624 = vmatpush1.msra.mxu0 0.0
      %3625 = vmatprep.subr.mxu0 0.0
      %3626 = vmatpush1.msra.mxu0 0.0
      %3627 = vmatprep.subr.mxu0 0.0
      %3628 = vmatpush1.msra.mxu0 0.0
      %3629 = vmatprep.subr.mxu0 0.0
      %3630 = vmatpush1.msra.mxu0 0.0
      %3631 = vmatprep.subr.mxu0 0.0
      %3632 = vmatpush1.msra.mxu0 0.0
      %3633 = vmatprep.subr.mxu0 0.0
      %3634 = vmatpush1.msra.mxu0 0.0
      %3635 = vmatprep.subr.mxu0 0.0
      %3636 = vmatpush1.msra.mxu0 0.0
      %3637 = vmatprep.subr.mxu0 0.0
      %3638 = vmatpush1.msra.mxu0 0.0
      %3639 = vmatprep.subr.mxu0 0.0
      %3640 = vmatpush1.msra.mxu0 0.0
      %3641 = vmatprep.subr.mxu0 0.0
      %3642 = vmatpush1.msra.mxu0 0.0
      %3643 = vmatprep.subr.mxu0 0.0
      %3644 = vmatpush1.msra.mxu0 0.0
      %3645 = vmatprep.subr.mxu0 0.0
      %3646 = vmatpush1.msra.mxu0 0.0
      %3647 = vmatprep.subr.mxu0 0.0
      %3648 = vmatpush1.msra.mxu0 0.0
      %3649 = vmatprep.subr.mxu0 0.0
      %3650 = vmatpush1.msra.mxu0 0.0
      %3651 = vmatprep.subr.mxu0 0.0
      %3652 = vmatpush1.msra.mxu0 0.0
      %3653 = vmatprep.subr.mxu0 0.0
      %3654 = vmatpush1.msra.mxu0 0.0
      %3655 = vmatprep.mubr.f32.mxu0 0.0
      %3656 = vmatmul.mubr.f32.gmra.mrb[0].mxu0 %v2390
      %v3657 = vpop.f32.mrb[0].mxu0
      %v3658 = vadd.f32 %v2372, %v3657
      %v3659 = vpop.f32.mrb[0].mxu0
      %3660 = vmatprep.mubr.f32.mxu0 0.0
      %3661 = vmatmul.mubr.f32.gmra.mrb[0].mxu0 %v2393
      %v3662 = vpop.f32.mrb[0].mxu0
      %v3663 = vadd.f32 %v2377, %v3662
      %v3664 = vpop.f32.mrb[0].mxu0
      %3665 = vmatprep.mubr.f32.mxu0 0.0
      %3666 = vmatmul.mubr.f32.gmra.mrb[0].mxu0 %v2396
      %v3667 = vpop.f32.mrb[0].mxu0
      %v3668 = vadd.f32 %v2382, %v3667
      %v3669 = vpop.f32.mrb[0].mxu0
      %3670 = vmatprep.mubr.f32.mxu0 0.0
      %3671 = vmatmul.mubr.f32.gmra.mrb[0].mxu0 %v2399
      %v3672 = vpop.f32.mrb[0].mxu0
      %v3673 = vadd.f32 %v2387, %v3672
      %v3674 = vpop.f32.mrb[0].mxu0
      %3675 = vdwg.mxu0
      %3676 = vmatprep.subr.mxu0 0.0
      %3677 = vmatpush1.msra.mxu0 %v2359
      %3678 = vmatprep.subr.mxu0 0.0
      %3679 = vmatpush1.msra.mxu0 %v2360
      %3680 = vmatprep.subr.mxu0 0.0
      %3681 = vmatpush1.msra.mxu0 0.0
      %3682 = vmatprep.subr.mxu0 0.0
      %3683 = vmatpush1.msra.mxu0 0.0
      %3684 = vmatprep.subr.mxu0 0.0
      %3685 = vmatpush1.msra.mxu0 0.0
      %3686 = vmatprep.subr.mxu0 0.0
      %3687 = vmatpush1.msra.mxu0 0.0
      %3688 = vmatprep.subr.mxu0 0.0
      %3689 = vmatpush1.msra.mxu0 0.0
      %3690 = vmatprep.subr.mxu0 0.0
      %3691 = vmatpush1.msra.mxu0 0.0
      %3692 = vmatprep.subr.mxu0 0.0
      %3693 = vmatpush1.msra.mxu0 0.0
      %3694 = vmatprep.subr.mxu0 0.0
      %3695 = vmatpush1.msra.mxu0 0.0
      %3696 = vmatprep.subr.mxu0 0.0
      %3697 = vmatpush1.msra.mxu0 0.0
      %3698 = vmatprep.subr.mxu0 0.0
      %3699 = vmatpush1.msra.mxu0 0.0
      %3700 = vmatprep.subr.mxu0 0.0
      %3701 = vmatpush1.msra.mxu0 0.0
      %3702 = vmatprep.subr.mxu0 0.0
      %3703 = vmatpush1.msra.mxu0 0.0
      %3704 = vmatprep.subr.mxu0 0.0
      %3705 = vmatpush1.msra.mxu0 0.0
      %3706 = vmatprep.subr.mxu0 0.0
      %3707 = vmatpush1.msra.mxu0 0.0
      %3708 = vmatprep.subr.mxu0 0.0
      %3709 = vmatpush1.msra.mxu0 0.0
      %3710 = vmatprep.subr.mxu0 0.0
      %3711 = vmatpush1.msra.mxu0 0.0
      %3712 = vmatprep.subr.mxu0 0.0
      %3713 = vmatpush1.msra.mxu0 0.0
      %3714 = vmatprep.subr.mxu0 0.0
      %3715 = vmatpush1.msra.mxu0 0.0
      %3716 = vmatprep.subr.mxu0 0.0
      %3717 = vmatpush1.msra.mxu0 0.0
      %3718 = vmatprep.subr.mxu0 0.0
      %3719 = vmatpush1.msra.mxu0 0.0
      %3720 = vmatprep.subr.mxu0 0.0
      %3721 = vmatpush1.msra.mxu0 0.0
      %3722 = vmatprep.subr.mxu0 0.0
      %3723 = vmatpush1.msra.mxu0 0.0
      %3724 = vmatprep.subr.mxu0 0.0
      %3725 = vmatpush1.msra.mxu0 0.0
      %3726 = vmatprep.subr.mxu0 0.0
      %3727 = vmatpush1.msra.mxu0 0.0
      %3728 = vmatprep.subr.mxu0 0.0
      %3729 = vmatpush1.msra.mxu0 0.0
      %3730 = vmatprep.subr.mxu0 0.0
      %3731 = vmatpush1.msra.mxu0 0.0
      %3732 = vmatprep.subr.mxu0 0.0
      %3733 = vmatpush1.msra.mxu0 0.0
      %3734 = vmatprep.subr.mxu0 0.0
      %3735 = vmatpush1.msra.mxu0 0.0
      %3736 = vmatprep.subr.mxu0 0.0
      %3737 = vmatpush1.msra.mxu0 0.0
      %3738 = vmatprep.subr.mxu0 0.0
      %3739 = vmatpush1.msra.mxu0 0.0
      %3740 = vmatprep.mubr.f32.mxu0 0.0
      %3741 = vmatmul.mubr.f32.gmra.mrb[0].mxu0 %v2390
      %v3742 = vpop.f32.mrb[0].mxu0
      %v3743 = vadd.f32 %v2372, %v3742
      %v3744 = vpop.f32.mrb[0].mxu0
      %3745 = vmatprep.mubr.f32.mxu0 0.0
      %3746 = vmatmul.mubr.f32.gmra.mrb[0].mxu0 %v2393
      %v3747 = vpop.f32.mrb[0].mxu0
      %v3748 = vadd.f32 %v2377, %v3747
      %v3749 = vpop.f32.mrb[0].mxu0
      %3750 = vmatprep.mubr.f32.mxu0 0.0
      %3751 = vmatmul.mubr.f32.gmra.mrb[0].mxu0 %v2396
      %v3752 = vpop.f32.mrb[0].mxu0
      %v3753 = vadd.f32 %v2382, %v3752
      %v3754 = vpop.f32.mrb[0].mxu0
      %3755 = vmatprep.mubr.f32.mxu0 0.0
      %3756 = vmatmul.mubr.f32.gmra.mrb[0].mxu0 %v2399
      %v3757 = vpop.f32.mrb[0].mxu0
      %v3758 = vadd.f32 %v2387, %v3757
      %v3759 = vpop.f32.mrb[0].mxu0
      %3760 = vdwg.mxu0
      %v3761 = vld [vmem:[%s2] sm:$0xff]
      %v3762 = vld [vmem:[%s2 + $0x8] sm:$0xff]
      %s3763 = scalar_lea.vmem %s2, 16
      %v3764 = vld [vmem:[%s3763] sm:$0xff]
      %v3765 = vld [vmem:[%s3763 + $0x8] sm:$0xff]
      %v3767 = vsel %vm220, %v2473, 0
      %3769 = vmatprep.subr.mxu0 0.0
      %3770 = vmatpush1.msra.mxu0 %v3764
      %3771 = vmatprep.subr.mxu0 0.0
      %3772 = vmatpush1.msra.mxu0 %v3765
      %3773 = vmatprep.subr.mxu0 0.0
      %3774 = vmatpush1.msra.mxu0 0.0
      %3775 = vmatprep.subr.mxu0 0.0
      %3776 = vmatpush1.msra.mxu0 0.0
      %3777 = vmatprep.subr.mxu0 0.0
      %3778 = vmatpush1.msra.mxu0 0.0
      %3779 = vmatprep.subr.mxu0 0.0
      %3780 = vmatpush1.msra.mxu0 0.0
      %3781 = vmatprep.subr.mxu0 0.0
      %3782 = vmatpush1.msra.mxu0 0.0
      %3783 = vmatprep.subr.mxu0 0.0
      %3784 = vmatpush1.msra.mxu0 0.0
      %3785 = vmatprep.subr.mxu0 0.0
      %3786 = vmatpush1.msra.mxu0 0.0
      %3787 = vmatprep.subr.mxu0 0.0
      %3788 = vmatpush1.msra.mxu0 0.0
      %3789 = vmatprep.subr.mxu0 0.0
      %3790 = vmatpush1.msra.mxu0 0.0
      %3791 = vmatprep.subr.mxu0 0.0
      %3792 = vmatpush1.msra.mxu0 0.0
      %3793 = vmatprep.subr.mxu0 0.0
      %3794 = vmatpush1.msra.mxu0 0.0
      %3795 = vmatprep.subr.mxu0 0.0
      %3796 = vmatpush1.msra.mxu0 0.0
      %3797 = vmatprep.subr.mxu0 0.0
      %3798 = vmatpush1.msra.mxu0 0.0
      %3799 = vmatprep.subr.mxu0 0.0
      %3800 = vmatpush1.msra.mxu0 0.0
      %3801 = vmatprep.subr.mxu0 0.0
      %3802 = vmatpush1.msra.mxu0 0.0
      %3803 = vmatprep.subr.mxu0 0.0
      %3804 = vmatpush1.msra.mxu0 0.0
      %3805 = vmatprep.subr.mxu0 0.0
      %3806 = vmatpush1.msra.mxu0 0.0
      %3807 = vmatprep.subr.mxu0 0.0
      %3808 = vmatpush1.msra.mxu0 0.0
      %3809 = vmatprep.subr.mxu0 0.0
      %3810 = vmatpush1.msra.mxu0 0.0
      %3811 = vmatprep.subr.mxu0 0.0
      %3812 = vmatpush1.msra.mxu0 0.0
      %3813 = vmatprep.subr.mxu0 0.0
      %3814 = vmatpush1.msra.mxu0 0.0
      %3815 = vmatprep.subr.mxu0 0.0
      %3816 = vmatpush1.msra.mxu0 0.0
      %3817 = vmatprep.subr.mxu0 0.0
      %3818 = vmatpush1.msra.mxu0 0.0
      %3819 = vmatprep.subr.mxu0 0.0
      %3820 = vmatpush1.msra.mxu0 0.0
      %3821 = vmatprep.subr.mxu0 0.0
      %3822 = vmatpush1.msra.mxu0 0.0
      %3823 = vmatprep.subr.mxu0 0.0
      %3824 = vmatpush1.msra.mxu0 0.0
      %3825 = vmatprep.subr.mxu0 0.0
      %3826 = vmatpush1.msra.mxu0 0.0
      %3827 = vmatprep.subr.mxu0 0.0
      %3828 = vmatpush1.msra.mxu0 0.0
      %3829 = vmatprep.subr.mxu0 0.0
      %3830 = vmatpush1.msra.mxu0 0.0
      %3831 = vmatprep.subr.mxu0 0.0
      %3832 = vmatpush1.msra.mxu0 0.0
      %3833 = vmatprep.mubr.f32.mxu0 0.0
      %3834 = vmatmul.mubr.f32.gmra.mrb[0].mxu0 %v3767
      %v3835 = vpop.f32.mrb[0].mxu0
      %v3836 = vadd.f32 0.0, %v3835
      %v3837 = vpop.f32.mrb[0].mxu0
      %3838 = vdwg.mxu0
      %v3840 = vsel %vm220, %v2558, 0
      %3842 = vmatprep.subr.mxu0 0.0
      %3843 = vmatpush1.msra.mxu0 %v3764
      %3844 = vmatprep.subr.mxu0 0.0
      %3845 = vmatpush1.msra.mxu0 %v3765
      %3846 = vmatprep.subr.mxu0 0.0
      %3847 = vmatpush1.msra.mxu0 0.0
      %3848 = vmatprep.subr.mxu0 0.0
      %3849 = vmatpush1.msra.mxu0 0.0
      %3850 = vmatprep.subr.mxu0 0.0
      %3851 = vmatpush1.msra.mxu0 0.0
      %3852 = vmatprep.subr.mxu0 0.0
      %3853 = vmatpush1.msra.mxu0 0.0
      %3854 = vmatprep.subr.mxu0 0.0
      %3855 = vmatpush1.msra.mxu0 0.0
      %3856 = vmatprep.subr.mxu0 0.0
      %3857 = vmatpush1.msra.mxu0 0.0
      %3858 = vmatprep.subr.mxu0 0.0
      %3859 = vmatpush1.msra.mxu0 0.0
      %3860 = vmatprep.subr.mxu0 0.0
      %3861 = vmatpush1.msra.mxu0 0.0
      %3862 = vmatprep.subr.mxu0 0.0
      %3863 = vmatpush1.msra.mxu0 0.0
      %3864 = vmatprep.subr.mxu0 0.0
      %3865 = vmatpush1.msra.mxu0 0.0
      %3866 = vmatprep.subr.mxu0 0.0
      %3867 = vmatpush1.msra.mxu0 0.0
      %3868 = vmatprep.subr.mxu0 0.0
      %3869 = vmatpush1.msra.mxu0 0.0
      %3870 = vmatprep.subr.mxu0 0.0
      %3871 = vmatpush1.msra.mxu0 0.0
      %3872 = vmatprep.subr.mxu0 0.0
      %3873 = vmatpush1.msra.mxu0 0.0
      %3874 = vmatprep.subr.mxu0 0.0
      %3875 = vmatpush1.msra.mxu0 0.0
      %3876 = vmatprep.subr.mxu0 0.0
      %3877 = vmatpush1.msra.mxu0 0.0
      %3878 = vmatprep.subr.mxu0 0.0
      %3879 = vmatpush1.msra.mxu0 0.0
      %3880 = vmatprep.subr.mxu0 0.0
      %3881 = vmatpush1.msra.mxu0 0.0
      %3882 = vmatprep.subr.mxu0 0.0
      %3883 = vmatpush1.msra.mxu0 0.0
      %3884 = vmatprep.subr.mxu0 0.0
      %3885 = vmatpush1.msra.mxu0 0.0
      %3886 = vmatprep.subr.mxu0 0.0
      %3887 = vmatpush1.msra.mxu0 0.0
      %3888 = vmatprep.subr.mxu0 0.0
      %3889 = vmatpush1.msra.mxu0 0.0
      %3890 = vmatprep.subr.mxu0 0.0
      %3891 = vmatpush1.msra.mxu0 0.0
      %3892 = vmatprep.subr.mxu0 0.0
      %3893 = vmatpush1.msra.mxu0 0.0
      %3894 = vmatprep.subr.mxu0 0.0
      %3895 = vmatpush1.msra.mxu0 0.0
      %3896 = vmatprep.subr.mxu0 0.0
      %3897 = vmatpush1.msra.mxu0 0.0
      %3898 = vmatprep.subr.mxu0 0.0
      %3899 = vmatpush1.msra.mxu0 0.0
      %3900 = vmatprep.subr.mxu0 0.0
      %3901 = vmatpush1.msra.mxu0 0.0
      %3902 = vmatprep.subr.mxu0 0.0
      %3903 = vmatpush1.msra.mxu0 0.0
      %3904 = vmatprep.subr.mxu0 0.0
      %3905 = vmatpush1.msra.mxu0 0.0
      %3906 = vmatprep.mubr.f32.mxu0 0.0
      %3907 = vmatmul.mubr.f32.gmra.mrb[0].mxu0 %v3840
      %v3908 = vpop.f32.mrb[0].mxu0
      %v3909 = vadd.f32 0.0, %v3908
      %v3910 = vpop.f32.mrb[0].mxu0
      %3911 = vdwg.mxu0
      %v3913 = vsel %vm220, %v2643, 0
      %3915 = vmatprep.subr.mxu0 0.0
      %3916 = vmatpush1.msra.mxu0 %v3764
      %3917 = vmatprep.subr.mxu0 0.0
      %3918 = vmatpush1.msra.mxu0 %v3765
      %3919 = vmatprep.subr.mxu0 0.0
      %3920 = vmatpush1.msra.mxu0 0.0
      %3921 = vmatprep.subr.mxu0 0.0
      %3922 = vmatpush1.msra.mxu0 0.0
      %3923 = vmatprep.subr.mxu0 0.0
      %3924 = vmatpush1.msra.mxu0 0.0
      %3925 = vmatprep.subr.mxu0 0.0
      %3926 = vmatpush1.msra.mxu0 0.0
      %3927 = vmatprep.subr.mxu0 0.0
      %3928 = vmatpush1.msra.mxu0 0.0
      %3929 = vmatprep.subr.mxu0 0.0
      %3930 = vmatpush1.msra.mxu0 0.0
      %3931 = vmatprep.subr.mxu0 0.0
      %3932 = vmatpush1.msra.mxu0 0.0
      %3933 = vmatprep.subr.mxu0 0.0
      %3934 = vmatpush1.msra.mxu0 0.0
      %3935 = vmatprep.subr.mxu0 0.0
      %3936 = vmatpush1.msra.mxu0 0.0
      %3937 = vmatprep.subr.mxu0 0.0
      %3938 = vmatpush1.msra.mxu0 0.0
      %3939 = vmatprep.subr.mxu0 0.0
      %3940 = vmatpush1.msra.mxu0 0.0
      %3941 = vmatprep.subr.mxu0 0.0
      %3942 = vmatpush1.msra.mxu0 0.0
      %3943 = vmatprep.subr.mxu0 0.0
      %3944 = vmatpush1.msra.mxu0 0.0
      %3945 = vmatprep.subr.mxu0 0.0
      %3946 = vmatpush1.msra.mxu0 0.0
      %3947 = vmatprep.subr.mxu0 0.0
      %3948 = vmatpush1.msra.mxu0 0.0
      %3949 = vmatprep.subr.mxu0 0.0
      %3950 = vmatpush1.msra.mxu0 0.0
      %3951 = vmatprep.subr.mxu0 0.0
      %3952 = vmatpush1.msra.mxu0 0.0
      %3953 = vmatprep.subr.mxu0 0.0
      %3954 = vmatpush1.msra.mxu0 0.0
      %3955 = vmatprep.subr.mxu0 0.0
      %3956 = vmatpush1.msra.mxu0 0.0
      %3957 = vmatprep.subr.mxu0 0.0
      %3958 = vmatpush1.msra.mxu0 0.0
      %3959 = vmatprep.subr.mxu0 0.0
      %3960 = vmatpush1.msra.mxu0 0.0
      %3961 = vmatprep.subr.mxu0 0.0
      %3962 = vmatpush1.msra.mxu0 0.0
      %3963 = vmatprep.subr.mxu0 0.0
      %3964 = vmatpush1.msra.mxu0 0.0
      %3965 = vmatprep.subr.mxu0 0.0
      %3966 = vmatpush1.msra.mxu0 0.0
      %3967 = vmatprep.subr.mxu0 0.0
      %3968 = vmatpush1.msra.mxu0 0.0
      %3969 = vmatprep.subr.mxu0 0.0
      %3970 = vmatpush1.msra.mxu0 0.0
      %3971 = vmatprep.subr.mxu0 0.0
      %3972 = vmatpush1.msra.mxu0 0.0
      %3973 = vmatprep.subr.mxu0 0.0
      %3974 = vmatpush1.msra.mxu0 0.0
      %3975 = vmatprep.subr.mxu0 0.0
      %3976 = vmatpush1.msra.mxu0 0.0
      %3977 = vmatprep.subr.mxu0 0.0
      %3978 = vmatpush1.msra.mxu0 0.0
      %3979 = vmatprep.mubr.f32.mxu0 0.0
      %3980 = vmatmul.mubr.f32.gmra.mrb[0].mxu0 %v3913
      %v3981 = vpop.f32.mrb[0].mxu0
      %v3982 = vadd.f32 0.0, %v3981
      %v3983 = vpop.f32.mrb[0].mxu0
      %3984 = vdwg.mxu0
      %v3986 = vsel %vm220, %v2728, 0
      %3988 = vmatprep.subr.mxu0 0.0
      %3989 = vmatpush1.msra.mxu0 %v3764
      %3990 = vmatprep.subr.mxu0 0.0
      %3991 = vmatpush1.msra.mxu0 %v3765
      %3992 = vmatprep.subr.mxu0 0.0
      %3993 = vmatpush1.msra.mxu0 0.0
      %3994 = vmatprep.subr.mxu0 0.0
      %3995 = vmatpush1.msra.mxu0 0.0
      %3996 = vmatprep.subr.mxu0 0.0
      %3997 = vmatpush1.msra.mxu0 0.0
      %3998 = vmatprep.subr.mxu0 0.0
      %3999 = vmatpush1.msra.mxu0 0.0
      %4000 = vmatprep.subr.mxu0 0.0
      %4001 = vmatpush1.msra.mxu0 0.0
      %4002 = vmatprep.subr.mxu0 0.0
      %4003 = vmatpush1.msra.mxu0 0.0
      %4004 = vmatprep.subr.mxu0 0.0
      %4005 = vmatpush1.msra.mxu0 0.0
      %4006 = vmatprep.subr.mxu0 0.0
      %4007 = vmatpush1.msra.mxu0 0.0
      %4008 = vmatprep.subr.mxu0 0.0
      %4009 = vmatpush1.msra.mxu0 0.0
      %4010 = vmatprep.subr.mxu0 0.0
      %4011 = vmatpush1.msra.mxu0 0.0
      %4012 = vmatprep.subr.mxu0 0.0
      %4013 = vmatpush1.msra.mxu0 0.0
      %4014 = vmatprep.subr.mxu0 0.0
      %4015 = vmatpush1.msra.mxu0 0.0
      %4016 = vmatprep.subr.mxu0 0.0
      %4017 = vmatpush1.msra.mxu0 0.0
      %4018 = vmatprep.subr.mxu0 0.0
      %4019 = vmatpush1.msra.mxu0 0.0
      %4020 = vmatprep.subr.mxu0 0.0
      %4021 = vmatpush1.msra.mxu0 0.0
      %4022 = vmatprep.subr.mxu0 0.0
      %4023 = vmatpush1.msra.mxu0 0.0
      %4024 = vmatprep.subr.mxu0 0.0
      %4025 = vmatpush1.msra.mxu0 0.0
      %4026 = vmatprep.subr.mxu0 0.0
      %4027 = vmatpush1.msra.mxu0 0.0
      %4028 = vmatprep.subr.mxu0 0.0
      %4029 = vmatpush1.msra.mxu0 0.0
      %4030 = vmatprep.subr.mxu0 0.0
      %4031 = vmatpush1.msra.mxu0 0.0
      %4032 = vmatprep.subr.mxu0 0.0
      %4033 = vmatpush1.msra.mxu0 0.0
      %4034 = vmatprep.subr.mxu0 0.0
      %4035 = vmatpush1.msra.mxu0 0.0
      %4036 = vmatprep.subr.mxu0 0.0
      %4037 = vmatpush1.msra.mxu0 0.0
      %4038 = vmatprep.subr.mxu0 0.0
      %4039 = vmatpush1.msra.mxu0 0.0
      %4040 = vmatprep.subr.mxu0 0.0
      %4041 = vmatpush1.msra.mxu0 0.0
      %4042 = vmatprep.subr.mxu0 0.0
      %4043 = vmatpush1.msra.mxu0 0.0
      %4044 = vmatprep.subr.mxu0 0.0
      %4045 = vmatpush1.msra.mxu0 0.0
      %4046 = vmatprep.subr.mxu0 0.0
      %4047 = vmatpush1.msra.mxu0 0.0
      %4048 = vmatprep.subr.mxu0 0.0
      %4049 = vmatpush1.msra.mxu0 0.0
      %4050 = vmatprep.subr.mxu0 0.0
      %4051 = vmatpush1.msra.mxu0 0.0
      %4052 = vmatprep.mubr.f32.mxu0 0.0
      %4053 = vmatmul.mubr.f32.gmra.mrb[0].mxu0 %v3986
      %v4054 = vpop.f32.mrb[0].mxu0
      %v4055 = vadd.f32 0.0, %v4054
      %v4056 = vpop.f32.mrb[0].mxu0
      %4057 = vdwg.mxu0
      %v4059 = vsel %vm220, %v2813, 0
      %4061 = vmatprep.subr.mxu0 0.0
      %4062 = vmatpush1.msra.mxu0 %v3764
      %4063 = vmatprep.subr.mxu0 0.0
      %4064 = vmatpush1.msra.mxu0 %v3765
      %4065 = vmatprep.subr.mxu0 0.0
      %4066 = vmatpush1.msra.mxu0 0.0
      %4067 = vmatprep.subr.mxu0 0.0
      %4068 = vmatpush1.msra.mxu0 0.0
      %4069 = vmatprep.subr.mxu0 0.0
      %4070 = vmatpush1.msra.mxu0 0.0
      %4071 = vmatprep.subr.mxu0 0.0
      %4072 = vmatpush1.msra.mxu0 0.0
      %4073 = vmatprep.subr.mxu0 0.0
      %4074 = vmatpush1.msra.mxu0 0.0
      %4075 = vmatprep.subr.mxu0 0.0
      %4076 = vmatpush1.msra.mxu0 0.0
      %4077 = vmatprep.subr.mxu0 0.0
      %4078 = vmatpush1.msra.mxu0 0.0
      %4079 = vmatprep.subr.mxu0 0.0
      %4080 = vmatpush1.msra.mxu0 0.0
      %4081 = vmatprep.subr.mxu0 0.0
      %4082 = vmatpush1.msra.mxu0 0.0
      %4083 = vmatprep.subr.mxu0 0.0
      %4084 = vmatpush1.msra.mxu0 0.0
      %4085 = vmatprep.subr.mxu0 0.0
      %4086 = vmatpush1.msra.mxu0 0.0
      %4087 = vmatprep.subr.mxu0 0.0
      %4088 = vmatpush1.msra.mxu0 0.0
      %4089 = vmatprep.subr.mxu0 0.0
      %4090 = vmatpush1.msra.mxu0 0.0
      %4091 = vmatprep.subr.mxu0 0.0
      %4092 = vmatpush1.msra.mxu0 0.0
      %4093 = vmatprep.subr.mxu0 0.0
      %4094 = vmatpush1.msra.mxu0 0.0
      %4095 = vmatprep.subr.mxu0 0.0
      %4096 = vmatpush1.msra.mxu0 0.0
      %4097 = vmatprep.subr.mxu0 0.0
      %4098 = vmatpush1.msra.mxu0 0.0
      %4099 = vmatprep.subr.mxu0 0.0
      %4100 = vmatpush1.msra.mxu0 0.0
      %4101 = vmatprep.subr.mxu0 0.0
      %4102 = vmatpush1.msra.mxu0 0.0
      %4103 = vmatprep.subr.mxu0 0.0
      %4104 = vmatpush1.msra.mxu0 0.0
      %4105 = vmatprep.subr.mxu0 0.0
      %4106 = vmatpush1.msra.mxu0 0.0
      %4107 = vmatprep.subr.mxu0 0.0
      %4108 = vmatpush1.msra.mxu0 0.0
      %4109 = vmatprep.subr.mxu0 0.0
      %4110 = vmatpush1.msra.mxu0 0.0
      %4111 = vmatprep.subr.mxu0 0.0
      %4112 = vmatpush1.msra.mxu0 0.0
      %4113 = vmatprep.subr.mxu0 0.0
      %4114 = vmatpush1.msra.mxu0 0.0
      %4115 = vmatprep.subr.mxu0 0.0
      %4116 = vmatpush1.msra.mxu0 0.0
      %4117 = vmatprep.subr.mxu0 0.0
      %4118 = vmatpush1.msra.mxu0 0.0
      %4119 = vmatprep.subr.mxu0 0.0
      %4120 = vmatpush1.msra.mxu0 0.0
      %4121 = vmatprep.subr.mxu0 0.0
      %4122 = vmatpush1.msra.mxu0 0.0
      %4123 = vmatprep.subr.mxu0 0.0
      %4124 = vmatpush1.msra.mxu0 0.0
      %4125 = vmatprep.mubr.f32.mxu0 0.0
      %4126 = vmatmul.mubr.f32.gmra.mrb[0].mxu0 %v4059
      %v4127 = vpop.f32.mrb[0].mxu0
      %v4128 = vadd.f32 0.0, %v4127
      %v4129 = vpop.f32.mrb[0].mxu0
      %4130 = vdwg.mxu0
      %v4132 = vsel %vm220, %v2898, 0
      %4134 = vmatprep.subr.mxu0 0.0
      %4135 = vmatpush1.msra.mxu0 %v3764
      %4136 = vmatprep.subr.mxu0 0.0
      %4137 = vmatpush1.msra.mxu0 %v3765
      %4138 = vmatprep.subr.mxu0 0.0
      %4139 = vmatpush1.msra.mxu0 0.0
      %4140 = vmatprep.subr.mxu0 0.0
      %4141 = vmatpush1.msra.mxu0 0.0
      %4142 = vmatprep.subr.mxu0 0.0
      %4143 = vmatpush1.msra.mxu0 0.0
      %4144 = vmatprep.subr.mxu0 0.0
      %4145 = vmatpush1.msra.mxu0 0.0
      %4146 = vmatprep.subr.mxu0 0.0
      %4147 = vmatpush1.msra.mxu0 0.0
      %4148 = vmatprep.subr.mxu0 0.0
      %4149 = vmatpush1.msra.mxu0 0.0
      %4150 = vmatprep.subr.mxu0 0.0
      %4151 = vmatpush1.msra.mxu0 0.0
      %4152 = vmatprep.subr.mxu0 0.0
      %4153 = vmatpush1.msra.mxu0 0.0
      %4154 = vmatprep.subr.mxu0 0.0
      %4155 = vmatpush1.msra.mxu0 0.0
      %4156 = vmatprep.subr.mxu0 0.0
      %4157 = vmatpush1.msra.mxu0 0.0
      %4158 = vmatprep.subr.mxu0 0.0
      %4159 = vmatpush1.msra.mxu0 0.0
      %4160 = vmatprep.subr.mxu0 0.0
      %4161 = vmatpush1.msra.mxu0 0.0
      %4162 = vmatprep.subr.mxu0 0.0
      %4163 = vmatpush1.msra.mxu0 0.0
      %4164 = vmatprep.subr.mxu0 0.0
      %4165 = vmatpush1.msra.mxu0 0.0
      %4166 = vmatprep.subr.mxu0 0.0
      %4167 = vmatpush1.msra.mxu0 0.0
      %4168 = vmatprep.subr.mxu0 0.0
      %4169 = vmatpush1.msra.mxu0 0.0
      %4170 = vmatprep.subr.mxu0 0.0
      %4171 = vmatpush1.msra.mxu0 0.0
      %4172 = vmatprep.subr.mxu0 0.0
      %4173 = vmatpush1.msra.mxu0 0.0
      %4174 = vmatprep.subr.mxu0 0.0
      %4175 = vmatpush1.msra.mxu0 0.0
      %4176 = vmatprep.subr.mxu0 0.0
      %4177 = vmatpush1.msra.mxu0 0.0
      %4178 = vmatprep.subr.mxu0 0.0
      %4179 = vmatpush1.msra.mxu0 0.0
      %4180 = vmatprep.subr.mxu0 0.0
      %4181 = vmatpush1.msra.mxu0 0.0
      %4182 = vmatprep.subr.mxu0 0.0
      %4183 = vmatpush1.msra.mxu0 0.0
      %4184 = vmatprep.subr.mxu0 0.0
      %4185 = vmatpush1.msra.mxu0 0.0
      %4186 = vmatprep.subr.mxu0 0.0
      %4187 = vmatpush1.msra.mxu0 0.0
      %4188 = vmatprep.subr.mxu0 0.0
      %4189 = vmatpush1.msra.mxu0 0.0
      %4190 = vmatprep.subr.mxu0 0.0
      %4191 = vmatpush1.msra.mxu0 0.0
      %4192 = vmatprep.subr.mxu0 0.0
      %4193 = vmatpush1.msra.mxu0 0.0
      %4194 = vmatprep.subr.mxu0 0.0
      %4195 = vmatpush1.msra.mxu0 0.0
      %4196 = vmatprep.subr.mxu0 0.0
      %4197 = vmatpush1.msra.mxu0 0.0
      %4198 = vmatprep.mubr.f32.mxu0 0.0
      %4199 = vmatmul.mubr.f32.gmra.mrb[0].mxu0 %v4132
      %v4200 = vpop.f32.mrb[0].mxu0
      %v4201 = vadd.f32 0.0, %v4200
      %v4202 = vpop.f32.mrb[0].mxu0
      %4203 = vdwg.mxu0
      %v4205 = vsel %vm220, %v2983, 0
      %4207 = vmatprep.subr.mxu0 0.0
      %4208 = vmatpush1.msra.mxu0 %v3764
      %4209 = vmatprep.subr.mxu0 0.0
      %4210 = vmatpush1.msra.mxu0 %v3765
      %4211 = vmatprep.subr.mxu0 0.0
      %4212 = vmatpush1.msra.mxu0 0.0
      %4213 = vmatprep.subr.mxu0 0.0
      %4214 = vmatpush1.msra.mxu0 0.0
      %4215 = vmatprep.subr.mxu0 0.0
      %4216 = vmatpush1.msra.mxu0 0.0
      %4217 = vmatprep.subr.mxu0 0.0
      %4218 = vmatpush1.msra.mxu0 0.0
      %4219 = vmatprep.subr.mxu0 0.0
      %4220 = vmatpush1.msra.mxu0 0.0
      %4221 = vmatprep.subr.mxu0 0.0
      %4222 = vmatpush1.msra.mxu0 0.0
      %4223 = vmatprep.subr.mxu0 0.0
      %4224 = vmatpush1.msra.mxu0 0.0
      %4225 = vmatprep.subr.mxu0 0.0
      %4226 = vmatpush1.msra.mxu0 0.0
      %4227 = vmatprep.subr.mxu0 0.0
      %4228 = vmatpush1.msra.mxu0 0.0
      %4229 = vmatprep.subr.mxu0 0.0
      %4230 = vmatpush1.msra.mxu0 0.0
      %4231 = vmatprep.subr.mxu0 0.0
      %4232 = vmatpush1.msra.mxu0 0.0
      %4233 = vmatprep.subr.mxu0 0.0
      %4234 = vmatpush1.msra.mxu0 0.0
      %4235 = vmatprep.subr.mxu0 0.0
      %4236 = vmatpush1.msra.mxu0 0.0
      %4237 = vmatprep.subr.mxu0 0.0
      %4238 = vmatpush1.msra.mxu0 0.0
      %4239 = vmatprep.subr.mxu0 0.0
      %4240 = vmatpush1.msra.mxu0 0.0
      %4241 = vmatprep.subr.mxu0 0.0
      %4242 = vmatpush1.msra.mxu0 0.0
      %4243 = vmatprep.subr.mxu0 0.0
      %4244 = vmatpush1.msra.mxu0 0.0
      %4245 = vmatprep.subr.mxu0 0.0
      %4246 = vmatpush1.msra.mxu0 0.0
      %4247 = vmatprep.subr.mxu0 0.0
      %4248 = vmatpush1.msra.mxu0 0.0
      %4249 = vmatprep.subr.mxu0 0.0
      %4250 = vmatpush1.msra.mxu0 0.0
      %4251 = vmatprep.subr.mxu0 0.0
      %4252 = vmatpush1.msra.mxu0 0.0
      %4253 = vmatprep.subr.mxu0 0.0
      %4254 = vmatpush1.msra.mxu0 0.0
      %4255 = vmatprep.subr.mxu0 0.0
      %4256 = vmatpush1.msra.mxu0 0.0
      %4257 = vmatprep.subr.mxu0 0.0
      %4258 = vmatpush1.msra.mxu0 0.0
      %4259 = vmatprep.subr.mxu0 0.0
      %4260 = vmatpush1.msra.mxu0 0.0
      %4261 = vmatprep.subr.mxu0 0.0
      %4262 = vmatpush1.msra.mxu0 0.0
      %4263 = vmatprep.subr.mxu0 0.0
      %4264 = vmatpush1.msra.mxu0 0.0
      %4265 = vmatprep.subr.mxu0 0.0
      %4266 = vmatpush1.msra.mxu0 0.0
      %4267 = vmatprep.subr.mxu0 0.0
      %4268 = vmatpush1.msra.mxu0 0.0
      %4269 = vmatprep.subr.mxu0 0.0
      %4270 = vmatpush1.msra.mxu0 0.0
      %4271 = vmatprep.mubr.f32.mxu0 0.0
      %4272 = vmatmul.mubr.f32.gmra.mrb[0].mxu0 %v4205
      %v4273 = vpop.f32.mrb[0].mxu0
      %v4274 = vadd.f32 0.0, %v4273
      %v4275 = vpop.f32.mrb[0].mxu0
      %4276 = vdwg.mxu0
      %v4278 = vsel %vm220, %v3068, 0
      %4280 = vmatprep.subr.mxu0 0.0
      %4281 = vmatpush1.msra.mxu0 %v3764
      %4282 = vmatprep.subr.mxu0 0.0
      %4283 = vmatpush1.msra.mxu0 %v3765
      %4284 = vmatprep.subr.mxu0 0.0
      %4285 = vmatpush1.msra.mxu0 0.0
      %4286 = vmatprep.subr.mxu0 0.0
      %4287 = vmatpush1.msra.mxu0 0.0
      %4288 = vmatprep.subr.mxu0 0.0
      %4289 = vmatpush1.msra.mxu0 0.0
      %4290 = vmatprep.subr.mxu0 0.0
      %4291 = vmatpush1.msra.mxu0 0.0
      %4292 = vmatprep.subr.mxu0 0.0
      %4293 = vmatpush1.msra.mxu0 0.0
      %4294 = vmatprep.subr.mxu0 0.0
      %4295 = vmatpush1.msra.mxu0 0.0
      %4296 = vmatprep.subr.mxu0 0.0
      %4297 = vmatpush1.msra.mxu0 0.0
      %4298 = vmatprep.subr.mxu0 0.0
      %4299 = vmatpush1.msra.mxu0 0.0
      %4300 = vmatprep.subr.mxu0 0.0
      %4301 = vmatpush1.msra.mxu0 0.0
      %4302 = vmatprep.subr.mxu0 0.0
      %4303 = vmatpush1.msra.mxu0 0.0
      %4304 = vmatprep.subr.mxu0 0.0
      %4305 = vmatpush1.msra.mxu0 0.0
      %4306 = vmatprep.subr.mxu0 0.0
      %4307 = vmatpush1.msra.mxu0 0.0
      %4308 = vmatprep.subr.mxu0 0.0
      %4309 = vmatpush1.msra.mxu0 0.0
      %4310 = vmatprep.subr.mxu0 0.0
      %4311 = vmatpush1.msra.mxu0 0.0
      %4312 = vmatprep.subr.mxu0 0.0
      %4313 = vmatpush1.msra.mxu0 0.0
      %4314 = vmatprep.subr.mxu0 0.0
      %4315 = vmatpush1.msra.mxu0 0.0
      %4316 = vmatprep.subr.mxu0 0.0
      %4317 = vmatpush1.msra.mxu0 0.0
      %4318 = vmatprep.subr.mxu0 0.0
      %4319 = vmatpush1.msra.mxu0 0.0
      %4320 = vmatprep.subr.mxu0 0.0
      %4321 = vmatpush1.msra.mxu0 0.0
      %4322 = vmatprep.subr.mxu0 0.0
      %4323 = vmatpush1.msra.mxu0 0.0
      %4324 = vmatprep.subr.mxu0 0.0
      %4325 = vmatpush1.msra.mxu0 0.0
      %4326 = vmatprep.subr.mxu0 0.0
      %4327 = vmatpush1.msra.mxu0 0.0
      %4328 = vmatprep.subr.mxu0 0.0
      %4329 = vmatpush1.msra.mxu0 0.0
      %4330 = vmatprep.subr.mxu0 0.0
      %4331 = vmatpush1.msra.mxu0 0.0
      %4332 = vmatprep.subr.mxu0 0.0
      %4333 = vmatpush1.msra.mxu0 0.0
      %4334 = vmatprep.subr.mxu0 0.0
      %4335 = vmatpush1.msra.mxu0 0.0
      %4336 = vmatprep.subr.mxu0 0.0
      %4337 = vmatpush1.msra.mxu0 0.0
      %4338 = vmatprep.subr.mxu0 0.0
      %4339 = vmatpush1.msra.mxu0 0.0
      %4340 = vmatprep.subr.mxu0 0.0
      %4341 = vmatpush1.msra.mxu0 0.0
      %4342 = vmatprep.subr.mxu0 0.0
      %4343 = vmatpush1.msra.mxu0 0.0
      %4344 = vmatprep.mubr.f32.mxu0 0.0
      %4345 = vmatmul.mubr.f32.gmra.mrb[0].mxu0 %v4278
      %v4346 = vpop.f32.mrb[0].mxu0
      %v4347 = vadd.f32 0.0, %v4346
      %v4348 = vpop.f32.mrb[0].mxu0
      %4349 = vdwg.mxu0
      %v4351 = vsel %vm220, %v3153, 0
      %4353 = vmatprep.subr.mxu0 0.0
      %4354 = vmatpush1.msra.mxu0 %v3764
      %4355 = vmatprep.subr.mxu0 0.0
      %4356 = vmatpush1.msra.mxu0 %v3765
      %4357 = vmatprep.subr.mxu0 0.0
      %4358 = vmatpush1.msra.mxu0 0.0
      %4359 = vmatprep.subr.mxu0 0.0
      %4360 = vmatpush1.msra.mxu0 0.0
      %4361 = vmatprep.subr.mxu0 0.0
      %4362 = vmatpush1.msra.mxu0 0.0
      %4363 = vmatprep.subr.mxu0 0.0
      %4364 = vmatpush1.msra.mxu0 0.0
      %4365 = vmatprep.subr.mxu0 0.0
      %4366 = vmatpush1.msra.mxu0 0.0
      %4367 = vmatprep.subr.mxu0 0.0
      %4368 = vmatpush1.msra.mxu0 0.0
      %4369 = vmatprep.subr.mxu0 0.0
      %4370 = vmatpush1.msra.mxu0 0.0
      %4371 = vmatprep.subr.mxu0 0.0
      %4372 = vmatpush1.msra.mxu0 0.0
      %4373 = vmatprep.subr.mxu0 0.0
      %4374 = vmatpush1.msra.mxu0 0.0
      %4375 = vmatprep.subr.mxu0 0.0
      %4376 = vmatpush1.msra.mxu0 0.0
      %4377 = vmatprep.subr.mxu0 0.0
      %4378 = vmatpush1.msra.mxu0 0.0
      %4379 = vmatprep.subr.mxu0 0.0
      %4380 = vmatpush1.msra.mxu0 0.0
      %4381 = vmatprep.subr.mxu0 0.0
      %4382 = vmatpush1.msra.mxu0 0.0
      %4383 = vmatprep.subr.mxu0 0.0
      %4384 = vmatpush1.msra.mxu0 0.0
      %4385 = vmatprep.subr.mxu0 0.0
      %4386 = vmatpush1.msra.mxu0 0.0
      %4387 = vmatprep.subr.mxu0 0.0
      %4388 = vmatpush1.msra.mxu0 0.0
      %4389 = vmatprep.subr.mxu0 0.0
      %4390 = vmatpush1.msra.mxu0 0.0
      %4391 = vmatprep.subr.mxu0 0.0
      %4392 = vmatpush1.msra.mxu0 0.0
      %4393 = vmatprep.subr.mxu0 0.0
      %4394 = vmatpush1.msra.mxu0 0.0
      %4395 = vmatprep.subr.mxu0 0.0
      %4396 = vmatpush1.msra.mxu0 0.0
      %4397 = vmatprep.subr.mxu0 0.0
      %4398 = vmatpush1.msra.mxu0 0.0
      %4399 = vmatprep.subr.mxu0 0.0
      %4400 = vmatpush1.msra.mxu0 0.0
      %4401 = vmatprep.subr.mxu0 0.0
      %4402 = vmatpush1.msra.mxu0 0.0
      %4403 = vmatprep.subr.mxu0 0.0
      %4404 = vmatpush1.msra.mxu0 0.0
      %4405 = vmatprep.subr.mxu0 0.0
      %4406 = vmatpush1.msra.mxu0 0.0
      %4407 = vmatprep.subr.mxu0 0.0
      %4408 = vmatpush1.msra.mxu0 0.0
      %4409 = vmatprep.subr.mxu0 0.0
      %4410 = vmatpush1.msra.mxu0 0.0
      %4411 = vmatprep.subr.mxu0 0.0
      %4412 = vmatpush1.msra.mxu0 0.0
      %4413 = vmatprep.subr.mxu0 0.0
      %4414 = vmatpush1.msra.mxu0 0.0
      %4415 = vmatprep.subr.mxu0 0.0
      %4416 = vmatpush1.msra.mxu0 0.0
      %4417 = vmatprep.mubr.f32.mxu0 0.0
      %4418 = vmatmul.mubr.f32.gmra.mrb[0].mxu0 %v4351
      %v4419 = vpop.f32.mrb[0].mxu0
      %v4420 = vadd.f32 0.0, %v4419
      %v4421 = vpop.f32.mrb[0].mxu0
      %4422 = vdwg.mxu0
      %v4424 = vsel %vm220, %v3238, 0
      %4426 = vmatprep.subr.mxu0 0.0
      %4427 = vmatpush1.msra.mxu0 %v3764
      %4428 = vmatprep.subr.mxu0 0.0
      %4429 = vmatpush1.msra.mxu0 %v3765
      %4430 = vmatprep.subr.mxu0 0.0
      %4431 = vmatpush1.msra.mxu0 0.0
      %4432 = vmatprep.subr.mxu0 0.0
      %4433 = vmatpush1.msra.mxu0 0.0
      %4434 = vmatprep.subr.mxu0 0.0
      %4435 = vmatpush1.msra.mxu0 0.0
      %4436 = vmatprep.subr.mxu0 0.0
      %4437 = vmatpush1.msra.mxu0 0.0
      %4438 = vmatprep.subr.mxu0 0.0
      %4439 = vmatpush1.msra.mxu0 0.0
      %4440 = vmatprep.subr.mxu0 0.0
      %4441 = vmatpush1.msra.mxu0 0.0
      %4442 = vmatprep.subr.mxu0 0.0
      %4443 = vmatpush1.msra.mxu0 0.0
      %4444 = vmatprep.subr.mxu0 0.0
      %4445 = vmatpush1.msra.mxu0 0.0
      %4446 = vmatprep.subr.mxu0 0.0
      %4447 = vmatpush1.msra.mxu0 0.0
      %4448 = vmatprep.subr.mxu0 0.0
      %4449 = vmatpush1.msra.mxu0 0.0
      %4450 = vmatprep.subr.mxu0 0.0
      %4451 = vmatpush1.msra.mxu0 0.0
      %4452 = vmatprep.subr.mxu0 0.0
      %4453 = vmatpush1.msra.mxu0 0.0
      %4454 = vmatprep.subr.mxu0 0.0
      %4455 = vmatpush1.msra.mxu0 0.0
      %4456 = vmatprep.subr.mxu0 0.0
      %4457 = vmatpush1.msra.mxu0 0.0
      %4458 = vmatprep.subr.mxu0 0.0
      %4459 = vmatpush1.msra.mxu0 0.0
      %4460 = vmatprep.subr.mxu0 0.0
      %4461 = vmatpush1.msra.mxu0 0.0
      %4462 = vmatprep.subr.mxu0 0.0
      %4463 = vmatpush1.msra.mxu0 0.0
      %4464 = vmatprep.subr.mxu0 0.0
      %4465 = vmatpush1.msra.mxu0 0.0
      %4466 = vmatprep.subr.mxu0 0.0
      %4467 = vmatpush1.msra.mxu0 0.0
      %4468 = vmatprep.subr.mxu0 0.0
      %4469 = vmatpush1.msra.mxu0 0.0
      %4470 = vmatprep.subr.mxu0 0.0
      %4471 = vmatpush1.msra.mxu0 0.0
      %4472 = vmatprep.subr.mxu0 0.0
      %4473 = vmatpush1.msra.mxu0 0.0
      %4474 = vmatprep.subr.mxu0 0.0
      %4475 = vmatpush1.msra.mxu0 0.0
      %4476 = vmatprep.subr.mxu0 0.0
      %4477 = vmatpush1.msra.mxu0 0.0
      %4478 = vmatprep.subr.mxu0 0.0
      %4479 = vmatpush1.msra.mxu0 0.0
      %4480 = vmatprep.subr.mxu0 0.0
      %4481 = vmatpush1.msra.mxu0 0.0
      %4482 = vmatprep.subr.mxu0 0.0
      %4483 = vmatpush1.msra.mxu0 0.0
      %4484 = vmatprep.subr.mxu0 0.0
      %4485 = vmatpush1.msra.mxu0 0.0
      %4486 = vmatprep.subr.mxu0 0.0
      %4487 = vmatpush1.msra.mxu0 0.0
      %4488 = vmatprep.subr.mxu0 0.0
      %4489 = vmatpush1.msra.mxu0 0.0
      %4490 = vmatprep.mubr.f32.mxu0 0.0
      %4491 = vmatmul.mubr.f32.gmra.mrb[0].mxu0 %v4424
      %v4492 = vpop.f32.mrb[0].mxu0
      %v4493 = vadd.f32 0.0, %v4492
      %v4494 = vpop.f32.mrb[0].mxu0
      %4495 = vdwg.mxu0
      %v4497 = vsel %vm220, %v3323, 0
      %4499 = vmatprep.subr.mxu0 0.0
      %4500 = vmatpush1.msra.mxu0 %v3764
      %4501 = vmatprep.subr.mxu0 0.0
      %4502 = vmatpush1.msra.mxu0 %v3765
      %4503 = vmatprep.subr.mxu0 0.0
      %4504 = vmatpush1.msra.mxu0 0.0
      %4505 = vmatprep.subr.mxu0 0.0
      %4506 = vmatpush1.msra.mxu0 0.0
      %4507 = vmatprep.subr.mxu0 0.0
      %4508 = vmatpush1.msra.mxu0 0.0
      %4509 = vmatprep.subr.mxu0 0.0
      %4510 = vmatpush1.msra.mxu0 0.0
      %4511 = vmatprep.subr.mxu0 0.0
      %4512 = vmatpush1.msra.mxu0 0.0
      %4513 = vmatprep.subr.mxu0 0.0
      %4514 = vmatpush1.msra.mxu0 0.0
      %4515 = vmatprep.subr.mxu0 0.0
      %4516 = vmatpush1.msra.mxu0 0.0
      %4517 = vmatprep.subr.mxu0 0.0
      %4518 = vmatpush1.msra.mxu0 0.0
      %4519 = vmatprep.subr.mxu0 0.0
      %4520 = vmatpush1.msra.mxu0 0.0
      %4521 = vmatprep.subr.mxu0 0.0
      %4522 = vmatpush1.msra.mxu0 0.0
      %4523 = vmatprep.subr.mxu0 0.0
      %4524 = vmatpush1.msra.mxu0 0.0
      %4525 = vmatprep.subr.mxu0 0.0
      %4526 = vmatpush1.msra.mxu0 0.0
      %4527 = vmatprep.subr.mxu0 0.0
      %4528 = vmatpush1.msra.mxu0 0.0
      %4529 = vmatprep.subr.mxu0 0.0
      %4530 = vmatpush1.msra.mxu0 0.0
      %4531 = vmatprep.subr.mxu0 0.0
      %4532 = vmatpush1.msra.mxu0 0.0
      %4533 = vmatprep.subr.mxu0 0.0
      %4534 = vmatpush1.msra.mxu0 0.0
      %4535 = vmatprep.subr.mxu0 0.0
      %4536 = vmatpush1.msra.mxu0 0.0
      %4537 = vmatprep.subr.mxu0 0.0
      %4538 = vmatpush1.msra.mxu0 0.0
      %4539 = vmatprep.subr.mxu0 0.0
      %4540 = vmatpush1.msra.mxu0 0.0
      %4541 = vmatprep.subr.mxu0 0.0
      %4542 = vmatpush1.msra.mxu0 0.0
      %4543 = vmatprep.subr.mxu0 0.0
      %4544 = vmatpush1.msra.mxu0 0.0
      %4545 = vmatprep.subr.mxu0 0.0
      %4546 = vmatpush1.msra.mxu0 0.0
      %4547 = vmatprep.subr.mxu0 0.0
      %4548 = vmatpush1.msra.mxu0 0.0
      %4549 = vmatprep.subr.mxu0 0.0
      %4550 = vmatpush1.msra.mxu0 0.0
      %4551 = vmatprep.subr.mxu0 0.0
      %4552 = vmatpush1.msra.mxu0 0.0
      %4553 = vmatprep.subr.mxu0 0.0
      %4554 = vmatpush1.msra.mxu0 0.0
      %4555 = vmatprep.subr.mxu0 0.0
      %4556 = vmatpush1.msra.mxu0 0.0
      %4557 = vmatprep.subr.mxu0 0.0
      %4558 = vmatpush1.msra.mxu0 0.0
      %4559 = vmatprep.subr.mxu0 0.0
      %4560 = vmatpush1.msra.mxu0 0.0
      %4561 = vmatprep.subr.mxu0 0.0
      %4562 = vmatpush1.msra.mxu0 0.0
      %4563 = vmatprep.mubr.f32.mxu0 0.0
      %4564 = vmatmul.mubr.f32.gmra.mrb[0].mxu0 %v4497
      %v4565 = vpop.f32.mrb[0].mxu0
      %v4566 = vadd.f32 0.0, %v4565
      %v4567 = vpop.f32.mrb[0].mxu0
      %4568 = vdwg.mxu0
      %v4570 = vsel %vm220, %v3408, 0
      %4572 = vmatprep.subr.mxu0 0.0
      %4573 = vmatpush1.msra.mxu0 %v3764
      %4574 = vmatprep.subr.mxu0 0.0
      %4575 = vmatpush1.msra.mxu0 %v3765
      %4576 = vmatprep.subr.mxu0 0.0
      %4577 = vmatpush1.msra.mxu0 0.0
      %4578 = vmatprep.subr.mxu0 0.0
      %4579 = vmatpush1.msra.mxu0 0.0
      %4580 = vmatprep.subr.mxu0 0.0
      %4581 = vmatpush1.msra.mxu0 0.0
      %4582 = vmatprep.subr.mxu0 0.0
      %4583 = vmatpush1.msra.mxu0 0.0
      %4584 = vmatprep.subr.mxu0 0.0
      %4585 = vmatpush1.msra.mxu0 0.0
      %4586 = vmatprep.subr.mxu0 0.0
      %4587 = vmatpush1.msra.mxu0 0.0
      %4588 = vmatprep.subr.mxu0 0.0
      %4589 = vmatpush1.msra.mxu0 0.0
      %4590 = vmatprep.subr.mxu0 0.0
      %4591 = vmatpush1.msra.mxu0 0.0
      %4592 = vmatprep.subr.mxu0 0.0
      %4593 = vmatpush1.msra.mxu0 0.0
      %4594 = vmatprep.subr.mxu0 0.0
      %4595 = vmatpush1.msra.mxu0 0.0
      %4596 = vmatprep.subr.mxu0 0.0
      %4597 = vmatpush1.msra.mxu0 0.0
      %4598 = vmatprep.subr.mxu0 0.0
      %4599 = vmatpush1.msra.mxu0 0.0
      %4600 = vmatprep.subr.mxu0 0.0
      %4601 = vmatpush1.msra.mxu0 0.0
      %4602 = vmatprep.subr.mxu0 0.0
      %4603 = vmatpush1.msra.mxu0 0.0
      %4604 = vmatprep.subr.mxu0 0.0
      %4605 = vmatpush1.msra.mxu0 0.0
      %4606 = vmatprep.subr.mxu0 0.0
      %4607 = vmatpush1.msra.mxu0 0.0
      %4608 = vmatprep.subr.mxu0 0.0
      %4609 = vmatpush1.msra.mxu0 0.0
      %4610 = vmatprep.subr.mxu0 0.0
      %4611 = vmatpush1.msra.mxu0 0.0
      %4612 = vmatprep.subr.mxu0 0.0
      %4613 = vmatpush1.msra.mxu0 0.0
      %4614 = vmatprep.subr.mxu0 0.0
      %4615 = vmatpush1.msra.mxu0 0.0
      %4616 = vmatprep.subr.mxu0 0.0
      %4617 = vmatpush1.msra.mxu0 0.0
      %4618 = vmatprep.subr.mxu0 0.0
      %4619 = vmatpush1.msra.mxu0 0.0
      %4620 = vmatprep.subr.mxu0 0.0
      %4621 = vmatpush1.msra.mxu0 0.0
      %4622 = vmatprep.subr.mxu0 0.0
      %4623 = vmatpush1.msra.mxu0 0.0
      %4624 = vmatprep.subr.mxu0 0.0
      %4625 = vmatpush1.msra.mxu0 0.0
      %4626 = vmatprep.subr.mxu0 0.0
      %4627 = vmatpush1.msra.mxu0 0.0
      %4628 = vmatprep.subr.mxu0 0.0
      %4629 = vmatpush1.msra.mxu0 0.0
      %4630 = vmatprep.subr.mxu0 0.0
      %4631 = vmatpush1.msra.mxu0 0.0
      %4632 = vmatprep.subr.mxu0 0.0
      %4633 = vmatpush1.msra.mxu0 0.0
      %4634 = vmatprep.subr.mxu0 0.0
      %4635 = vmatpush1.msra.mxu0 0.0
      %4636 = vmatprep.mubr.f32.mxu0 0.0
      %4637 = vmatmul.mubr.f32.gmra.mrb[0].mxu0 %v4570
      %v4638 = vpop.f32.mrb[0].mxu0
      %v4639 = vadd.f32 0.0, %v4638
      %v4640 = vpop.f32.mrb[0].mxu0
      %4641 = vdwg.mxu0
      %v4643 = vsel %vm220, %v3493, 0
      %4645 = vmatprep.subr.mxu0 0.0
      %4646 = vmatpush1.msra.mxu0 %v3764
      %4647 = vmatprep.subr.mxu0 0.0
      %4648 = vmatpush1.msra.mxu0 %v3765
      %4649 = vmatprep.subr.mxu0 0.0
      %4650 = vmatpush1.msra.mxu0 0.0
      %4651 = vmatprep.subr.mxu0 0.0
      %4652 = vmatpush1.msra.mxu0 0.0
      %4653 = vmatprep.subr.mxu0 0.0
      %4654 = vmatpush1.msra.mxu0 0.0
      %4655 = vmatprep.subr.mxu0 0.0
      %4656 = vmatpush1.msra.mxu0 0.0
      %4657 = vmatprep.subr.mxu0 0.0
      %4658 = vmatpush1.msra.mxu0 0.0
      %4659 = vmatprep.subr.mxu0 0.0
      %4660 = vmatpush1.msra.mxu0 0.0
      %4661 = vmatprep.subr.mxu0 0.0
      %4662 = vmatpush1.msra.mxu0 0.0
      %4663 = vmatprep.subr.mxu0 0.0
      %4664 = vmatpush1.msra.mxu0 0.0
      %4665 = vmatprep.subr.mxu0 0.0
      %4666 = vmatpush1.msra.mxu0 0.0
      %4667 = vmatprep.subr.mxu0 0.0
      %4668 = vmatpush1.msra.mxu0 0.0
      %4669 = vmatprep.subr.mxu0 0.0
      %4670 = vmatpush1.msra.mxu0 0.0
      %4671 = vmatprep.subr.mxu0 0.0
      %4672 = vmatpush1.msra.mxu0 0.0
      %4673 = vmatprep.subr.mxu0 0.0
      %4674 = vmatpush1.msra.mxu0 0.0
      %4675 = vmatprep.subr.mxu0 0.0
      %4676 = vmatpush1.msra.mxu0 0.0
      %4677 = vmatprep.subr.mxu0 0.0
      %4678 = vmatpush1.msra.mxu0 0.0
      %4679 = vmatprep.subr.mxu0 0.0
      %4680 = vmatpush1.msra.mxu0 0.0
      %4681 = vmatprep.subr.mxu0 0.0
      %4682 = vmatpush1.msra.mxu0 0.0
      %4683 = vmatprep.subr.mxu0 0.0
      %4684 = vmatpush1.msra.mxu0 0.0
      %4685 = vmatprep.subr.mxu0 0.0
      %4686 = vmatpush1.msra.mxu0 0.0
      %4687 = vmatprep.subr.mxu0 0.0
      %4688 = vmatpush1.msra.mxu0 0.0
      %4689 = vmatprep.subr.mxu0 0.0
      %4690 = vmatpush1.msra.mxu0 0.0
      %4691 = vmatprep.subr.mxu0 0.0
      %4692 = vmatpush1.msra.mxu0 0.0
      %4693 = vmatprep.subr.mxu0 0.0
      %4694 = vmatpush1.msra.mxu0 0.0
      %4695 = vmatprep.subr.mxu0 0.0
      %4696 = vmatpush1.msra.mxu0 0.0
      %4697 = vmatprep.subr.mxu0 0.0
      %4698 = vmatpush1.msra.mxu0 0.0
      %4699 = vmatprep.subr.mxu0 0.0
      %4700 = vmatpush1.msra.mxu0 0.0
      %4701 = vmatprep.subr.mxu0 0.0
      %4702 = vmatpush1.msra.mxu0 0.0
      %4703 = vmatprep.subr.mxu0 0.0
      %4704 = vmatpush1.msra.mxu0 0.0
      %4705 = vmatprep.subr.mxu0 0.0
      %4706 = vmatpush1.msra.mxu0 0.0
      %4707 = vmatprep.subr.mxu0 0.0
      %4708 = vmatpush1.msra.mxu0 0.0
      %4709 = vmatprep.mubr.f32.mxu0 0.0
      %4710 = vmatmul.mubr.f32.gmra.mrb[0].mxu0 %v4643
      %v4711 = vpop.f32.mrb[0].mxu0
      %v4712 = vadd.f32 0.0, %v4711
      %v4713 = vpop.f32.mrb[0].mxu0
      %4714 = vdwg.mxu0
      %v4716 = vsel %vm220, %v3578, 0
      %4718 = vmatprep.subr.mxu0 0.0
      %4719 = vmatpush1.msra.mxu0 %v3764
      %4720 = vmatprep.subr.mxu0 0.0
      %4721 = vmatpush1.msra.mxu0 %v3765
      %4722 = vmatprep.subr.mxu0 0.0
      %4723 = vmatpush1.msra.mxu0 0.0
      %4724 = vmatprep.subr.mxu0 0.0
      %4725 = vmatpush1.msra.mxu0 0.0
      %4726 = vmatprep.subr.mxu0 0.0
      %4727 = vmatpush1.msra.mxu0 0.0
      %4728 = vmatprep.subr.mxu0 0.0
      %4729 = vmatpush1.msra.mxu0 0.0
      %4730 = vmatprep.subr.mxu0 0.0
      %4731 = vmatpush1.msra.mxu0 0.0
      %4732 = vmatprep.subr.mxu0 0.0
      %4733 = vmatpush1.msra.mxu0 0.0
      %4734 = vmatprep.subr.mxu0 0.0
      %4735 = vmatpush1.msra.mxu0 0.0
      %4736 = vmatprep.subr.mxu0 0.0
      %4737 = vmatpush1.msra.mxu0 0.0
      %4738 = vmatprep.subr.mxu0 0.0
      %4739 = vmatpush1.msra.mxu0 0.0
      %4740 = vmatprep.subr.mxu0 0.0
      %4741 = vmatpush1.msra.mxu0 0.0
      %4742 = vmatprep.subr.mxu0 0.0
      %4743 = vmatpush1.msra.mxu0 0.0
      %4744 = vmatprep.subr.mxu0 0.0
      %4745 = vmatpush1.msra.mxu0 0.0
      %4746 = vmatprep.subr.mxu0 0.0
      %4747 = vmatpush1.msra.mxu0 0.0
      %4748 = vmatprep.subr.mxu0 0.0
      %4749 = vmatpush1.msra.mxu0 0.0
      %4750 = vmatprep.subr.mxu0 0.0
      %4751 = vmatpush1.msra.mxu0 0.0
      %4752 = vmatprep.subr.mxu0 0.0
      %4753 = vmatpush1.msra.mxu0 0.0
      %4754 = vmatprep.subr.mxu0 0.0
      %4755 = vmatpush1.msra.mxu0 0.0
      %4756 = vmatprep.subr.mxu0 0.0
      %4757 = vmatpush1.msra.mxu0 0.0
      %4758 = vmatprep.subr.mxu0 0.0
      %4759 = vmatpush1.msra.mxu0 0.0
      %4760 = vmatprep.subr.mxu0 0.0
      %4761 = vmatpush1.msra.mxu0 0.0
      %4762 = vmatprep.subr.mxu0 0.0
      %4763 = vmatpush1.msra.mxu0 0.0
      %4764 = vmatprep.subr.mxu0 0.0
      %4765 = vmatpush1.msra.mxu0 0.0
      %4766 = vmatprep.subr.mxu0 0.0
      %4767 = vmatpush1.msra.mxu0 0.0
      %4768 = vmatprep.subr.mxu0 0.0
      %4769 = vmatpush1.msra.mxu0 0.0
      %4770 = vmatprep.subr.mxu0 0.0
      %4771 = vmatpush1.msra.mxu0 0.0
      %4772 = vmatprep.subr.mxu0 0.0
      %4773 = vmatpush1.msra.mxu0 0.0
      %4774 = vmatprep.subr.mxu0 0.0
      %4775 = vmatpush1.msra.mxu0 0.0
      %4776 = vmatprep.subr.mxu0 0.0
      %4777 = vmatpush1.msra.mxu0 0.0
      %4778 = vmatprep.subr.mxu0 0.0
      %4779 = vmatpush1.msra.mxu0 0.0
      %4780 = vmatprep.subr.mxu0 0.0
      %4781 = vmatpush1.msra.mxu0 0.0
      %4782 = vmatprep.mubr.f32.mxu0 0.0
      %4783 = vmatmul.mubr.f32.gmra.mrb[0].mxu0 %v4716
      %v4784 = vpop.f32.mrb[0].mxu0
      %v4785 = vadd.f32 0.0, %v4784
      %v4786 = vpop.f32.mrb[0].mxu0
      %4787 = vdwg.mxu0
      %v4789 = vsel %vm220, %v3663, 0
      %4791 = vmatprep.subr.mxu0 0.0
      %4792 = vmatpush1.msra.mxu0 %v3764
      %4793 = vmatprep.subr.mxu0 0.0
      %4794 = vmatpush1.msra.mxu0 %v3765
      %4795 = vmatprep.subr.mxu0 0.0
      %4796 = vmatpush1.msra.mxu0 0.0
      %4797 = vmatprep.subr.mxu0 0.0
      %4798 = vmatpush1.msra.mxu0 0.0
      %4799 = vmatprep.subr.mxu0 0.0
      %4800 = vmatpush1.msra.mxu0 0.0
      %4801 = vmatprep.subr.mxu0 0.0
      %4802 = vmatpush1.msra.mxu0 0.0
      %4803 = vmatprep.subr.mxu0 0.0
      %4804 = vmatpush1.msra.mxu0 0.0
      %4805 = vmatprep.subr.mxu0 0.0
      %4806 = vmatpush1.msra.mxu0 0.0
      %4807 = vmatprep.subr.mxu0 0.0
      %4808 = vmatpush1.msra.mxu0 0.0
      %4809 = vmatprep.subr.mxu0 0.0
      %4810 = vmatpush1.msra.mxu0 0.0
      %4811 = vmatprep.subr.mxu0 0.0
      %4812 = vmatpush1.msra.mxu0 0.0
      %4813 = vmatprep.subr.mxu0 0.0
      %4814 = vmatpush1.msra.mxu0 0.0
      %4815 = vmatprep.subr.mxu0 0.0
      %4816 = vmatpush1.msra.mxu0 0.0
      %4817 = vmatprep.subr.mxu0 0.0
      %4818 = vmatpush1.msra.mxu0 0.0
      %4819 = vmatprep.subr.mxu0 0.0
      %4820 = vmatpush1.msra.mxu0 0.0
      %4821 = vmatprep.subr.mxu0 0.0
      %4822 = vmatpush1.msra.mxu0 0.0
      %4823 = vmatprep.subr.mxu0 0.0
      %4824 = vmatpush1.msra.mxu0 0.0
      %4825 = vmatprep.subr.mxu0 0.0
      %4826 = vmatpush1.msra.mxu0 0.0
      %4827 = vmatprep.subr.mxu0 0.0
      %4828 = vmatpush1.msra.mxu0 0.0
      %4829 = vmatprep.subr.mxu0 0.0
      %4830 = vmatpush1.msra.mxu0 0.0
      %4831 = vmatprep.subr.mxu0 0.0
      %4832 = vmatpush1.msra.mxu0 0.0
      %4833 = vmatprep.subr.mxu0 0.0
      %4834 = vmatpush1.msra.mxu0 0.0
      %4835 = vmatprep.subr.mxu0 0.0
      %4836 = vmatpush1.msra.mxu0 0.0
      %4837 = vmatprep.subr.mxu0 0.0
      %4838 = vmatpush1.msra.mxu0 0.0
      %4839 = vmatprep.subr.mxu0 0.0
      %4840 = vmatpush1.msra.mxu0 0.0
      %4841 = vmatprep.subr.mxu0 0.0
      %4842 = vmatpush1.msra.mxu0 0.0
      %4843 = vmatprep.subr.mxu0 0.0
      %4844 = vmatpush1.msra.mxu0 0.0
      %4845 = vmatprep.subr.mxu0 0.0
      %4846 = vmatpush1.msra.mxu0 0.0
      %4847 = vmatprep.subr.mxu0 0.0
      %4848 = vmatpush1.msra.mxu0 0.0
      %4849 = vmatprep.subr.mxu0 0.0
      %4850 = vmatpush1.msra.mxu0 0.0
      %4851 = vmatprep.subr.mxu0 0.0
      %4852 = vmatpush1.msra.mxu0 0.0
      %4853 = vmatprep.subr.mxu0 0.0
      %4854 = vmatpush1.msra.mxu0 0.0
      %4855 = vmatprep.mubr.f32.mxu0 0.0
      %4856 = vmatmul.mubr.f32.gmra.mrb[0].mxu0 %v4789
      %v4857 = vpop.f32.mrb[0].mxu0
      %v4858 = vadd.f32 0.0, %v4857
      %v4859 = vpop.f32.mrb[0].mxu0
      %4860 = vdwg.mxu0
      %v4862 = vsel %vm220, %v3748, 0
      %4864 = vmatprep.subr.mxu0 0.0
      %4865 = vmatpush1.msra.mxu0 %v3764
      %4866 = vmatprep.subr.mxu0 0.0
      %4867 = vmatpush1.msra.mxu0 %v3765
      %4868 = vmatprep.subr.mxu0 0.0
      %4869 = vmatpush1.msra.mxu0 0.0
      %4870 = vmatprep.subr.mxu0 0.0
      %4871 = vmatpush1.msra.mxu0 0.0
      %4872 = vmatprep.subr.mxu0 0.0
      %4873 = vmatpush1.msra.mxu0 0.0
      %4874 = vmatprep.subr.mxu0 0.0
      %4875 = vmatpush1.msra.mxu0 0.0
      %4876 = vmatprep.subr.mxu0 0.0
      %4877 = vmatpush1.msra.mxu0 0.0
      %4878 = vmatprep.subr.mxu0 0.0
      %4879 = vmatpush1.msra.mxu0 0.0
      %4880 = vmatprep.subr.mxu0 0.0
      %4881 = vmatpush1.msra.mxu0 0.0
      %4882 = vmatprep.subr.mxu0 0.0
      %4883 = vmatpush1.msra.mxu0 0.0
      %4884 = vmatprep.subr.mxu0 0.0
      %4885 = vmatpush1.msra.mxu0 0.0
      %4886 = vmatprep.subr.mxu0 0.0
      %4887 = vmatpush1.msra.mxu0 0.0
      %4888 = vmatprep.subr.mxu0 0.0
      %4889 = vmatpush1.msra.mxu0 0.0
      %4890 = vmatprep.subr.mxu0 0.0
      %4891 = vmatpush1.msra.mxu0 0.0
      %4892 = vmatprep.subr.mxu0 0.0
      %4893 = vmatpush1.msra.mxu0 0.0
      %4894 = vmatprep.subr.mxu0 0.0
      %4895 = vmatpush1.msra.mxu0 0.0
      %4896 = vmatprep.subr.mxu0 0.0
      %4897 = vmatpush1.msra.mxu0 0.0
      %4898 = vmatprep.subr.mxu0 0.0
      %4899 = vmatpush1.msra.mxu0 0.0
      %4900 = vmatprep.subr.mxu0 0.0
      %4901 = vmatpush1.msra.mxu0 0.0
      %4902 = vmatprep.subr.mxu0 0.0
      %4903 = vmatpush1.msra.mxu0 0.0
      %4904 = vmatprep.subr.mxu0 0.0
      %4905 = vmatpush1.msra.mxu0 0.0
      %4906 = vmatprep.subr.mxu0 0.0
      %4907 = vmatpush1.msra.mxu0 0.0
      %4908 = vmatprep.subr.mxu0 0.0
      %4909 = vmatpush1.msra.mxu0 0.0
      %4910 = vmatprep.subr.mxu0 0.0
      %4911 = vmatpush1.msra.mxu0 0.0
      %4912 = vmatprep.subr.mxu0 0.0
      %4913 = vmatpush1.msra.mxu0 0.0
      %4914 = vmatprep.subr.mxu0 0.0
      %4915 = vmatpush1.msra.mxu0 0.0
      %4916 = vmatprep.subr.mxu0 0.0
      %4917 = vmatpush1.msra.mxu0 0.0
      %4918 = vmatprep.subr.mxu0 0.0
      %4919 = vmatpush1.msra.mxu0 0.0
      %4920 = vmatprep.subr.mxu0 0.0
      %4921 = vmatpush1.msra.mxu0 0.0
      %4922 = vmatprep.subr.mxu0 0.0
      %4923 = vmatpush1.msra.mxu0 0.0
      %4924 = vmatprep.subr.mxu0 0.0
      %4925 = vmatpush1.msra.mxu0 0.0
      %4926 = vmatprep.subr.mxu0 0.0
      %4927 = vmatpush1.msra.mxu0 0.0
      %4928 = vmatprep.mubr.f32.mxu0 0.0
      %4929 = vmatmul.mubr.f32.gmra.mrb[0].mxu0 %v4862
      %v4930 = vpop.f32.mrb[0].mxu0
      %v4931 = vadd.f32 0.0, %v4930
      %v4932 = vpop.f32.mrb[0].mxu0
      %4933 = vdwg.mxu0
      %v4935 = vsel %vm220, %v2468, 0
      %4937 = vmatprep.subr.mxu0 0.0
      %4938 = vmatpush1.msra.mxu0 %v3761
      %4939 = vmatprep.subr.mxu0 0.0
      %4940 = vmatpush1.msra.mxu0 %v3762
      %4941 = vmatprep.subr.mxu0 0.0
      %4942 = vmatpush1.msra.mxu0 0.0
      %4943 = vmatprep.subr.mxu0 0.0
      %4944 = vmatpush1.msra.mxu0 0.0
      %4945 = vmatprep.subr.mxu0 0.0
      %4946 = vmatpush1.msra.mxu0 0.0
      %4947 = vmatprep.subr.mxu0 0.0
      %4948 = vmatpush1.msra.mxu0 0.0
      %4949 = vmatprep.subr.mxu0 0.0
      %4950 = vmatpush1.msra.mxu0 0.0
      %4951 = vmatprep.subr.mxu0 0.0
      %4952 = vmatpush1.msra.mxu0 0.0
      %4953 = vmatprep.subr.mxu0 0.0
      %4954 = vmatpush1.msra.mxu0 0.0
      %4955 = vmatprep.subr.mxu0 0.0
      %4956 = vmatpush1.msra.mxu0 0.0
      %4957 = vmatprep.subr.mxu0 0.0
      %4958 = vmatpush1.msra.mxu0 0.0
      %4959 = vmatprep.subr.mxu0 0.0
      %4960 = vmatpush1.msra.mxu0 0.0
      %4961 = vmatprep.subr.mxu0 0.0
      %4962 = vmatpush1.msra.mxu0 0.0
      %4963 = vmatprep.subr.mxu0 0.0
      %4964 = vmatpush1.msra.mxu0 0.0
      %4965 = vmatprep.subr.mxu0 0.0
      %4966 = vmatpush1.msra.mxu0 0.0
      %4967 = vmatprep.subr.mxu0 0.0
      %4968 = vmatpush1.msra.mxu0 0.0
      %4969 = vmatprep.subr.mxu0 0.0
      %4970 = vmatpush1.msra.mxu0 0.0
      %4971 = vmatprep.subr.mxu0 0.0
      %4972 = vmatpush1.msra.mxu0 0.0
      %4973 = vmatprep.subr.mxu0 0.0
      %4974 = vmatpush1.msra.mxu0 0.0
      %4975 = vmatprep.subr.mxu0 0.0
      %4976 = vmatpush1.msra.mxu0 0.0
      %4977 = vmatprep.subr.mxu0 0.0
      %4978 = vmatpush1.msra.mxu0 0.0
      %4979 = vmatprep.subr.mxu0 0.0
      %4980 = vmatpush1.msra.mxu0 0.0
      %4981 = vmatprep.subr.mxu0 0.0
      %4982 = vmatpush1.msra.mxu0 0.0
      %4983 = vmatprep.subr.mxu0 0.0
      %4984 = vmatpush1.msra.mxu0 0.0
      %4985 = vmatprep.subr.mxu0 0.0
      %4986 = vmatpush1.msra.mxu0 0.0
      %4987 = vmatprep.subr.mxu0 0.0
      %4988 = vmatpush1.msra.mxu0 0.0
      %4989 = vmatprep.subr.mxu0 0.0
      %4990 = vmatpush1.msra.mxu0 0.0
      %4991 = vmatprep.subr.mxu0 0.0
      %4992 = vmatpush1.msra.mxu0 0.0
      %4993 = vmatprep.subr.mxu0 0.0
      %4994 = vmatpush1.msra.mxu0 0.0
      %4995 = vmatprep.subr.mxu0 0.0
      %4996 = vmatpush1.msra.mxu0 0.0
      %4997 = vmatprep.subr.mxu0 0.0
      %4998 = vmatpush1.msra.mxu0 0.0
      %4999 = vmatprep.subr.mxu0 0.0
      %5000 = vmatpush1.msra.mxu0 0.0
      %5001 = vmatprep.mubr.f32.mxu0 0.0
      %5002 = vmatmul.mubr.f32.gmra.mrb[0].mxu0 %v4935
      %v5003 = vpop.f32.mrb[0].mxu0
      %v5004 = vadd.f32 %v3836, %v5003
      %v5005 = vpop.f32.mrb[0].mxu0
      %5006 = vdwg.mxu0
      %v5008 = vsel %vm220, %v2553, 0
      %5010 = vmatprep.subr.mxu0 0.0
      %5011 = vmatpush1.msra.mxu0 %v3761
      %5012 = vmatprep.subr.mxu0 0.0
      %5013 = vmatpush1.msra.mxu0 %v3762
      %5014 = vmatprep.subr.mxu0 0.0
      %5015 = vmatpush1.msra.mxu0 0.0
      %5016 = vmatprep.subr.mxu0 0.0
      %5017 = vmatpush1.msra.mxu0 0.0
      %5018 = vmatprep.subr.mxu0 0.0
      %5019 = vmatpush1.msra.mxu0 0.0
      %5020 = vmatprep.subr.mxu0 0.0
      %5021 = vmatpush1.msra.mxu0 0.0
      %5022 = vmatprep.subr.mxu0 0.0
      %5023 = vmatpush1.msra.mxu0 0.0
      %5024 = vmatprep.subr.mxu0 0.0
      %5025 = vmatpush1.msra.mxu0 0.0
      %5026 = vmatprep.subr.mxu0 0.0
      %5027 = vmatpush1.msra.mxu0 0.0
      %5028 = vmatprep.subr.mxu0 0.0
      %5029 = vmatpush1.msra.mxu0 0.0
      %5030 = vmatprep.subr.mxu0 0.0
      %5031 = vmatpush1.msra.mxu0 0.0
      %5032 = vmatprep.subr.mxu0 0.0
      %5033 = vmatpush1.msra.mxu0 0.0
      %5034 = vmatprep.subr.mxu0 0.0
      %5035 = vmatpush1.msra.mxu0 0.0
      %5036 = vmatprep.subr.mxu0 0.0
      %5037 = vmatpush1.msra.mxu0 0.0
      %5038 = vmatprep.subr.mxu0 0.0
      %5039 = vmatpush1.msra.mxu0 0.0
      %5040 = vmatprep.subr.mxu0 0.0
      %5041 = vmatpush1.msra.mxu0 0.0
      %5042 = vmatprep.subr.mxu0 0.0
      %5043 = vmatpush1.msra.mxu0 0.0
      %5044 = vmatprep.subr.mxu0 0.0
      %5045 = vmatpush1.msra.mxu0 0.0
      %5046 = vmatprep.subr.mxu0 0.0
      %5047 = vmatpush1.msra.mxu0 0.0
      %5048 = vmatprep.subr.mxu0 0.0
      %5049 = vmatpush1.msra.mxu0 0.0
      %5050 = vmatprep.subr.mxu0 0.0
      %5051 = vmatpush1.msra.mxu0 0.0
      %5052 = vmatprep.subr.mxu0 0.0
      %5053 = vmatpush1.msra.mxu0 0.0
      %5054 = vmatprep.subr.mxu0 0.0
      %5055 = vmatpush1.msra.mxu0 0.0
      %5056 = vmatprep.subr.mxu0 0.0
      %5057 = vmatpush1.msra.mxu0 0.0
      %5058 = vmatprep.subr.mxu0 0.0
      %5059 = vmatpush1.msra.mxu0 0.0
      %5060 = vmatprep.subr.mxu0 0.0
      %5061 = vmatpush1.msra.mxu0 0.0
      %5062 = vmatprep.subr.mxu0 0.0
      %5063 = vmatpush1.msra.mxu0 0.0
      %5064 = vmatprep.subr.mxu0 0.0
      %5065 = vmatpush1.msra.mxu0 0.0
      %5066 = vmatprep.subr.mxu0 0.0
      %5067 = vmatpush1.msra.mxu0 0.0
      %5068 = vmatprep.subr.mxu0 0.0
      %5069 = vmatpush1.msra.mxu0 0.0
      %5070 = vmatprep.subr.mxu0 0.0
      %5071 = vmatpush1.msra.mxu0 0.0
      %5072 = vmatprep.subr.mxu0 0.0
      %5073 = vmatpush1.msra.mxu0 0.0
      %5074 = vmatprep.mubr.f32.mxu0 0.0
      %5075 = vmatmul.mubr.f32.gmra.mrb[0].mxu0 %v5008
      %v5076 = vpop.f32.mrb[0].mxu0
      %v5077 = vadd.f32 %v3909, %v5076
      %v5078 = vpop.f32.mrb[0].mxu0
      %5079 = vdwg.mxu0
      %v5081 = vsel %vm220, %v2638, 0
      %5083 = vmatprep.subr.mxu0 0.0
      %5084 = vmatpush1.msra.mxu0 %v3761
      %5085 = vmatprep.subr.mxu0 0.0
      %5086 = vmatpush1.msra.mxu0 %v3762
      %5087 = vmatprep.subr.mxu0 0.0
      %5088 = vmatpush1.msra.mxu0 0.0
      %5089 = vmatprep.subr.mxu0 0.0
      %5090 = vmatpush1.msra.mxu0 0.0
      %5091 = vmatprep.subr.mxu0 0.0
      %5092 = vmatpush1.msra.mxu0 0.0
      %5093 = vmatprep.subr.mxu0 0.0
      %5094 = vmatpush1.msra.mxu0 0.0
      %5095 = vmatprep.subr.mxu0 0.0
      %5096 = vmatpush1.msra.mxu0 0.0
      %5097 = vmatprep.subr.mxu0 0.0
      %5098 = vmatpush1.msra.mxu0 0.0
      %5099 = vmatprep.subr.mxu0 0.0
      %5100 = vmatpush1.msra.mxu0 0.0
      %5101 = vmatprep.subr.mxu0 0.0
      %5102 = vmatpush1.msra.mxu0 0.0
      %5103 = vmatprep.subr.mxu0 0.0
      %5104 = vmatpush1.msra.mxu0 0.0
      %5105 = vmatprep.subr.mxu0 0.0
      %5106 = vmatpush1.msra.mxu0 0.0
      %5107 = vmatprep.subr.mxu0 0.0
      %5108 = vmatpush1.msra.mxu0 0.0
      %5109 = vmatprep.subr.mxu0 0.0
      %5110 = vmatpush1.msra.mxu0 0.0
      %5111 = vmatprep.subr.mxu0 0.0
      %5112 = vmatpush1.msra.mxu0 0.0
      %5113 = vmatprep.subr.mxu0 0.0
      %5114 = vmatpush1.msra.mxu0 0.0
      %5115 = vmatprep.subr.mxu0 0.0
      %5116 = vmatpush1.msra.mxu0 0.0
      %5117 = vmatprep.subr.mxu0 0.0
      %5118 = vmatpush1.msra.mxu0 0.0
      %5119 = vmatprep.subr.mxu0 0.0
      %5120 = vmatpush1.msra.mxu0 0.0
      %5121 = vmatprep.subr.mxu0 0.0
      %5122 = vmatpush1.msra.mxu0 0.0
      %5123 = vmatprep.subr.mxu0 0.0
      %5124 = vmatpush1.msra.mxu0 0.0
      %5125 = vmatprep.subr.mxu0 0.0
      %5126 = vmatpush1.msra.mxu0 0.0
      %5127 = vmatprep.subr.mxu0 0.0
      %5128 = vmatpush1.msra.mxu0 0.0
      %5129 = vmatprep.subr.mxu0 0.0
      %5130 = vmatpush1.msra.mxu0 0.0
      %5131 = vmatprep.subr.mxu0 0.0
      %5132 = vmatpush1.msra.mxu0 0.0
      %5133 = vmatprep.subr.mxu0 0.0
      %5134 = vmatpush1.msra.mxu0 0.0
      %5135 = vmatprep.subr.mxu0 0.0
      %5136 = vmatpush1.msra.mxu0 0.0
      %5137 = vmatprep.subr.mxu0 0.0
      %5138 = vmatpush1.msra.mxu0 0.0
      %5139 = vmatprep.subr.mxu0 0.0
      %5140 = vmatpush1.msra.mxu0 0.0
      %5141 = vmatprep.subr.mxu0 0.0
      %5142 = vmatpush1.msra.mxu0 0.0
      %5143 = vmatprep.subr.mxu0 0.0
      %5144 = vmatpush1.msra.mxu0 0.0
      %5145 = vmatprep.subr.mxu0 0.0
      %5146 = vmatpush1.msra.mxu0 0.0
      %5147 = vmatprep.mubr.f32.mxu0 0.0
      %5148 = vmatmul.mubr.f32.gmra.mrb[0].mxu0 %v5081
      %v5149 = vpop.f32.mrb[0].mxu0
      %v5150 = vadd.f32 %v3982, %v5149
      %v5151 = vpop.f32.mrb[0].mxu0
      %5152 = vdwg.mxu0
      %v5154 = vsel %vm220, %v2723, 0
      %5156 = vmatprep.subr.mxu0 0.0
      %5157 = vmatpush1.msra.mxu0 %v3761
      %5158 = vmatprep.subr.mxu0 0.0
      %5159 = vmatpush1.msra.mxu0 %v3762
      %5160 = vmatprep.subr.mxu0 0.0
      %5161 = vmatpush1.msra.mxu0 0.0
      %5162 = vmatprep.subr.mxu0 0.0
      %5163 = vmatpush1.msra.mxu0 0.0
      %5164 = vmatprep.subr.mxu0 0.0
      %5165 = vmatpush1.msra.mxu0 0.0
      %5166 = vmatprep.subr.mxu0 0.0
      %5167 = vmatpush1.msra.mxu0 0.0
      %5168 = vmatprep.subr.mxu0 0.0
      %5169 = vmatpush1.msra.mxu0 0.0
      %5170 = vmatprep.subr.mxu0 0.0
      %5171 = vmatpush1.msra.mxu0 0.0
      %5172 = vmatprep.subr.mxu0 0.0
      %5173 = vmatpush1.msra.mxu0 0.0
      %5174 = vmatprep.subr.mxu0 0.0
      %5175 = vmatpush1.msra.mxu0 0.0
      %5176 = vmatprep.subr.mxu0 0.0
      %5177 = vmatpush1.msra.mxu0 0.0
      %5178 = vmatprep.subr.mxu0 0.0
      %5179 = vmatpush1.msra.mxu0 0.0
      %5180 = vmatprep.subr.mxu0 0.0
      %5181 = vmatpush1.msra.mxu0 0.0
      %5182 = vmatprep.subr.mxu0 0.0
      %5183 = vmatpush1.msra.mxu0 0.0
      %5184 = vmatprep.subr.mxu0 0.0
      %5185 = vmatpush1.msra.mxu0 0.0
      %5186 = vmatprep.subr.mxu0 0.0
      %5187 = vmatpush1.msra.mxu0 0.0
      %5188 = vmatprep.subr.mxu0 0.0
      %5189 = vmatpush1.msra.mxu0 0.0
      %5190 = vmatprep.subr.mxu0 0.0
      %5191 = vmatpush1.msra.mxu0 0.0
      %5192 = vmatprep.subr.mxu0 0.0
      %5193 = vmatpush1.msra.mxu0 0.0
      %5194 = vmatprep.subr.mxu0 0.0
      %5195 = vmatpush1.msra.mxu0 0.0
      %5196 = vmatprep.subr.mxu0 0.0
      %5197 = vmatpush1.msra.mxu0 0.0
      %5198 = vmatprep.subr.mxu0 0.0
      %5199 = vmatpush1.msra.mxu0 0.0
      %5200 = vmatprep.subr.mxu0 0.0
      %5201 = vmatpush1.msra.mxu0 0.0
      %5202 = vmatprep.subr.mxu0 0.0
      %5203 = vmatpush1.msra.mxu0 0.0
      %5204 = vmatprep.subr.mxu0 0.0
      %5205 = vmatpush1.msra.mxu0 0.0
      %5206 = vmatprep.subr.mxu0 0.0
      %5207 = vmatpush1.msra.mxu0 0.0
      %5208 = vmatprep.subr.mxu0 0.0
      %5209 = vmatpush1.msra.mxu0 0.0
      %5210 = vmatprep.subr.mxu0 0.0
      %5211 = vmatpush1.msra.mxu0 0.0
      %5212 = vmatprep.subr.mxu0 0.0
      %5213 = vmatpush1.msra.mxu0 0.0
      %5214 = vmatprep.subr.mxu0 0.0
      %5215 = vmatpush1.msra.mxu0 0.0
      %5216 = vmatprep.subr.mxu0 0.0
      %5217 = vmatpush1.msra.mxu0 0.0
      %5218 = vmatprep.subr.mxu0 0.0
      %5219 = vmatpush1.msra.mxu0 0.0
      %5220 = vmatprep.mubr.f32.mxu0 0.0
      %5221 = vmatmul.mubr.f32.gmra.mrb[0].mxu0 %v5154
      %v5222 = vpop.f32.mrb[0].mxu0
      %v5223 = vadd.f32 %v4055, %v5222
      %v5224 = vpop.f32.mrb[0].mxu0
      %5225 = vdwg.mxu0
      %v5227 = vsel %vm220, %v2808, 0
      %5229 = vmatprep.subr.mxu0 0.0
      %5230 = vmatpush1.msra.mxu0 %v3761
      %5231 = vmatprep.subr.mxu0 0.0
      %5232 = vmatpush1.msra.mxu0 %v3762
      %5233 = vmatprep.subr.mxu0 0.0
      %5234 = vmatpush1.msra.mxu0 0.0
      %5235 = vmatprep.subr.mxu0 0.0
      %5236 = vmatpush1.msra.mxu0 0.0
      %5237 = vmatprep.subr.mxu0 0.0
      %5238 = vmatpush1.msra.mxu0 0.0
      %5239 = vmatprep.subr.mxu0 0.0
      %5240 = vmatpush1.msra.mxu0 0.0
      %5241 = vmatprep.subr.mxu0 0.0
      %5242 = vmatpush1.msra.mxu0 0.0
      %5243 = vmatprep.subr.mxu0 0.0
      %5244 = vmatpush1.msra.mxu0 0.0
      %5245 = vmatprep.subr.mxu0 0.0
      %5246 = vmatpush1.msra.mxu0 0.0
      %5247 = vmatprep.subr.mxu0 0.0
      %5248 = vmatpush1.msra.mxu0 0.0
      %5249 = vmatprep.subr.mxu0 0.0
      %5250 = vmatpush1.msra.mxu0 0.0
      %5251 = vmatprep.subr.mxu0 0.0
      %5252 = vmatpush1.msra.mxu0 0.0
      %5253 = vmatprep.subr.mxu0 0.0
      %5254 = vmatpush1.msra.mxu0 0.0
      %5255 = vmatprep.subr.mxu0 0.0
      %5256 = vmatpush1.msra.mxu0 0.0
      %5257 = vmatprep.subr.mxu0 0.0
      %5258 = vmatpush1.msra.mxu0 0.0
      %5259 = vmatprep.subr.mxu0 0.0
      %5260 = vmatpush1.msra.mxu0 0.0
      %5261 = vmatprep.subr.mxu0 0.0
      %5262 = vmatpush1.msra.mxu0 0.0
      %5263 = vmatprep.subr.mxu0 0.0
      %5264 = vmatpush1.msra.mxu0 0.0
      %5265 = vmatprep.subr.mxu0 0.0
      %5266 = vmatpush1.msra.mxu0 0.0
      %5267 = vmatprep.subr.mxu0 0.0
      %5268 = vmatpush1.msra.mxu0 0.0
      %5269 = vmatprep.subr.mxu0 0.0
      %5270 = vmatpush1.msra.mxu0 0.0
      %5271 = vmatprep.subr.mxu0 0.0
      %5272 = vmatpush1.msra.mxu0 0.0
      %5273 = vmatprep.subr.mxu0 0.0
      %5274 = vmatpush1.msra.mxu0 0.0
      %5275 = vmatprep.subr.mxu0 0.0
      %5276 = vmatpush1.msra.mxu0 0.0
      %5277 = vmatprep.subr.mxu0 0.0
      %5278 = vmatpush1.msra.mxu0 0.0
      %5279 = vmatprep.subr.mxu0 0.0
      %5280 = vmatpush1.msra.mxu0 0.0
      %5281 = vmatprep.subr.mxu0 0.0
      %5282 = vmatpush1.msra.mxu0 0.0
      %5283 = vmatprep.subr.mxu0 0.0
      %5284 = vmatpush1.msra.mxu0 0.0
      %5285 = vmatprep.subr.mxu0 0.0
      %5286 = vmatpush1.msra.mxu0 0.0
      %5287 = vmatprep.subr.mxu0 0.0
      %5288 = vmatpush1.msra.mxu0 0.0
      %5289 = vmatprep.subr.mxu0 0.0
      %5290 = vmatpush1.msra.mxu0 0.0
      %5291 = vmatprep.subr.mxu0 0.0
      %5292 = vmatpush1.msra.mxu0 0.0
      %5293 = vmatprep.mubr.f32.mxu0 0.0
      %5294 = vmatmul.mubr.f32.gmra.mrb[0].mxu0 %v5227
      %v5295 = vpop.f32.mrb[0].mxu0
      %v5296 = vadd.f32 %v4128, %v5295
      %v5297 = vpop.f32.mrb[0].mxu0
      %5298 = vdwg.mxu0
      %v5300 = vsel %vm220, %v2893, 0
      %5302 = vmatprep.subr.mxu0 0.0
      %5303 = vmatpush1.msra.mxu0 %v3761
      %5304 = vmatprep.subr.mxu0 0.0
      %5305 = vmatpush1.msra.mxu0 %v3762
      %5306 = vmatprep.subr.mxu0 0.0
      %5307 = vmatpush1.msra.mxu0 0.0
      %5308 = vmatprep.subr.mxu0 0.0
      %5309 = vmatpush1.msra.mxu0 0.0
      %5310 = vmatprep.subr.mxu0 0.0
      %5311 = vmatpush1.msra.mxu0 0.0
      %5312 = vmatprep.subr.mxu0 0.0
      %5313 = vmatpush1.msra.mxu0 0.0
      %5314 = vmatprep.subr.mxu0 0.0
      %5315 = vmatpush1.msra.mxu0 0.0
      %5316 = vmatprep.subr.mxu0 0.0
      %5317 = vmatpush1.msra.mxu0 0.0
      %5318 = vmatprep.subr.mxu0 0.0
      %5319 = vmatpush1.msra.mxu0 0.0
      %5320 = vmatprep.subr.mxu0 0.0
      %5321 = vmatpush1.msra.mxu0 0.0
      %5322 = vmatprep.subr.mxu0 0.0
      %5323 = vmatpush1.msra.mxu0 0.0
      %5324 = vmatprep.subr.mxu0 0.0
      %5325 = vmatpush1.msra.mxu0 0.0
      %5326 = vmatprep.subr.mxu0 0.0
      %5327 = vmatpush1.msra.mxu0 0.0
      %5328 = vmatprep.subr.mxu0 0.0
      %5329 = vmatpush1.msra.mxu0 0.0
      %5330 = vmatprep.subr.mxu0 0.0
      %5331 = vmatpush1.msra.mxu0 0.0
      %5332 = vmatprep.subr.mxu0 0.0
      %5333 = vmatpush1.msra.mxu0 0.0
      %5334 = vmatprep.subr.mxu0 0.0
      %5335 = vmatpush1.msra.mxu0 0.0
      %5336 = vmatprep.subr.mxu0 0.0
      %5337 = vmatpush1.msra.mxu0 0.0
      %5338 = vmatprep.subr.mxu0 0.0
      %5339 = vmatpush1.msra.mxu0 0.0
      %5340 = vmatprep.subr.mxu0 0.0
      %5341 = vmatpush1.msra.mxu0 0.0
      %5342 = vmatprep.subr.mxu0 0.0
      %5343 = vmatpush1.msra.mxu0 0.0
      %5344 = vmatprep.subr.mxu0 0.0
      %5345 = vmatpush1.msra.mxu0 0.0
      %5346 = vmatprep.subr.mxu0 0.0
      %5347 = vmatpush1.msra.mxu0 0.0
      %5348 = vmatprep.subr.mxu0 0.0
      %5349 = vmatpush1.msra.mxu0 0.0
      %5350 = vmatprep.subr.mxu0 0.0
      %5351 = vmatpush1.msra.mxu0 0.0
      %5352 = vmatprep.subr.mxu0 0.0
      %5353 = vmatpush1.msra.mxu0 0.0
      %5354 = vmatprep.subr.mxu0 0.0
      %5355 = vmatpush1.msra.mxu0 0.0
      %5356 = vmatprep.subr.mxu0 0.0
      %5357 = vmatpush1.msra.mxu0 0.0
      %5358 = vmatprep.subr.mxu0 0.0
      %5359 = vmatpush1.msra.mxu0 0.0
      %5360 = vmatprep.subr.mxu0 0.0
      %5361 = vmatpush1.msra.mxu0 0.0
      %5362 = vmatprep.subr.mxu0 0.0
      %5363 = vmatpush1.msra.mxu0 0.0
      %5364 = vmatprep.subr.mxu0 0.0
      %5365 = vmatpush1.msra.mxu0 0.0
      %5366 = vmatprep.mubr.f32.mxu0 0.0
      %5367 = vmatmul.mubr.f32.gmra.mrb[0].mxu0 %v5300
      %v5368 = vpop.f32.mrb[0].mxu0
      %v5369 = vadd.f32 %v4201, %v5368
      %v5370 = vpop.f32.mrb[0].mxu0
      %5371 = vdwg.mxu0
      %v5373 = vsel %vm220, %v2978, 0
      %5375 = vmatprep.subr.mxu0 0.0
      %5376 = vmatpush1.msra.mxu0 %v3761
      %5377 = vmatprep.subr.mxu0 0.0
      %5378 = vmatpush1.msra.mxu0 %v3762
      %5379 = vmatprep.subr.mxu0 0.0
      %5380 = vmatpush1.msra.mxu0 0.0
      %5381 = vmatprep.subr.mxu0 0.0
      %5382 = vmatpush1.msra.mxu0 0.0
      %5383 = vmatprep.subr.mxu0 0.0
      %5384 = vmatpush1.msra.mxu0 0.0
      %5385 = vmatprep.subr.mxu0 0.0
      %5386 = vmatpush1.msra.mxu0 0.0
      %5387 = vmatprep.subr.mxu0 0.0
      %5388 = vmatpush1.msra.mxu0 0.0
      %5389 = vmatprep.subr.mxu0 0.0
      %5390 = vmatpush1.msra.mxu0 0.0
      %5391 = vmatprep.subr.mxu0 0.0
      %5392 = vmatpush1.msra.mxu0 0.0
      %5393 = vmatprep.subr.mxu0 0.0
      %5394 = vmatpush1.msra.mxu0 0.0
      %5395 = vmatprep.subr.mxu0 0.0
      %5396 = vmatpush1.msra.mxu0 0.0
      %5397 = vmatprep.subr.mxu0 0.0
      %5398 = vmatpush1.msra.mxu0 0.0
      %5399 = vmatprep.subr.mxu0 0.0
      %5400 = vmatpush1.msra.mxu0 0.0
      %5401 = vmatprep.subr.mxu0 0.0
      %5402 = vmatpush1.msra.mxu0 0.0
      %5403 = vmatprep.subr.mxu0 0.0
      %5404 = vmatpush1.msra.mxu0 0.0
      %5405 = vmatprep.subr.mxu0 0.0
      %5406 = vmatpush1.msra.mxu0 0.0
      %5407 = vmatprep.subr.mxu0 0.0
      %5408 = vmatpush1.msra.mxu0 0.0
      %5409 = vmatprep.subr.mxu0 0.0
      %5410 = vmatpush1.msra.mxu0 0.0
      %5411 = vmatprep.subr.mxu0 0.0
      %5412 = vmatpush1.msra.mxu0 0.0
      %5413 = vmatprep.subr.mxu0 0.0
      %5414 = vmatpush1.msra.mxu0 0.0
      %5415 = vmatprep.subr.mxu0 0.0
      %5416 = vmatpush1.msra.mxu0 0.0
      %5417 = vmatprep.subr.mxu0 0.0
      %5418 = vmatpush1.msra.mxu0 0.0
      %5419 = vmatprep.subr.mxu0 0.0
      %5420 = vmatpush1.msra.mxu0 0.0
      %5421 = vmatprep.subr.mxu0 0.0
      %5422 = vmatpush1.msra.mxu0 0.0
      %5423 = vmatprep.subr.mxu0 0.0
      %5424 = vmatpush1.msra.mxu0 0.0
      %5425 = vmatprep.subr.mxu0 0.0
      %5426 = vmatpush1.msra.mxu0 0.0
      %5427 = vmatprep.subr.mxu0 0.0
      %5428 = vmatpush1.msra.mxu0 0.0
      %5429 = vmatprep.subr.mxu0 0.0
      %5430 = vmatpush1.msra.mxu0 0.0
      %5431 = vmatprep.subr.mxu0 0.0
      %5432 = vmatpush1.msra.mxu0 0.0
      %5433 = vmatprep.subr.mxu0 0.0
      %5434 = vmatpush1.msra.mxu0 0.0
      %5435 = vmatprep.subr.mxu0 0.0
      %5436 = vmatpush1.msra.mxu0 0.0
      %5437 = vmatprep.subr.mxu0 0.0
      %5438 = vmatpush1.msra.mxu0 0.0
      %5439 = vmatprep.mubr.f32.mxu0 0.0
      %5440 = vmatmul.mubr.f32.gmra.mrb[0].mxu0 %v5373
      %v5441 = vpop.f32.mrb[0].mxu0
      %v5442 = vadd.f32 %v4274, %v5441
      %v5443 = vpop.f32.mrb[0].mxu0
      %5444 = vdwg.mxu0
      %v5446 = vsel %vm220, %v3063, 0
      %5448 = vmatprep.subr.mxu0 0.0
      %5449 = vmatpush1.msra.mxu0 %v3761
      %5450 = vmatprep.subr.mxu0 0.0
      %5451 = vmatpush1.msra.mxu0 %v3762
      %5452 = vmatprep.subr.mxu0 0.0
      %5453 = vmatpush1.msra.mxu0 0.0
      %5454 = vmatprep.subr.mxu0 0.0
      %5455 = vmatpush1.msra.mxu0 0.0
      %5456 = vmatprep.subr.mxu0 0.0
      %5457 = vmatpush1.msra.mxu0 0.0
      %5458 = vmatprep.subr.mxu0 0.0
      %5459 = vmatpush1.msra.mxu0 0.0
      %5460 = vmatprep.subr.mxu0 0.0
      %5461 = vmatpush1.msra.mxu0 0.0
      %5462 = vmatprep.subr.mxu0 0.0
      %5463 = vmatpush1.msra.mxu0 0.0
      %5464 = vmatprep.subr.mxu0 0.0
      %5465 = vmatpush1.msra.mxu0 0.0
      %5466 = vmatprep.subr.mxu0 0.0
      %5467 = vmatpush1.msra.mxu0 0.0
      %5468 = vmatprep.subr.mxu0 0.0
      %5469 = vmatpush1.msra.mxu0 0.0
      %5470 = vmatprep.subr.mxu0 0.0
      %5471 = vmatpush1.msra.mxu0 0.0
      %5472 = vmatprep.subr.mxu0 0.0
      %5473 = vmatpush1.msra.mxu0 0.0
      %5474 = vmatprep.subr.mxu0 0.0
      %5475 = vmatpush1.msra.mxu0 0.0
      %5476 = vmatprep.subr.mxu0 0.0
      %5477 = vmatpush1.msra.mxu0 0.0
      %5478 = vmatprep.subr.mxu0 0.0
      %5479 = vmatpush1.msra.mxu0 0.0
      %5480 = vmatprep.subr.mxu0 0.0
      %5481 = vmatpush1.msra.mxu0 0.0
      %5482 = vmatprep.subr.mxu0 0.0
      %5483 = vmatpush1.msra.mxu0 0.0
      %5484 = vmatprep.subr.mxu0 0.0
      %5485 = vmatpush1.msra.mxu0 0.0
      %5486 = vmatprep.subr.mxu0 0.0
      %5487 = vmatpush1.msra.mxu0 0.0
      %5488 = vmatprep.subr.mxu0 0.0
      %5489 = vmatpush1.msra.mxu0 0.0
      %5490 = vmatprep.subr.mxu0 0.0
      %5491 = vmatpush1.msra.mxu0 0.0
      %5492 = vmatprep.subr.mxu0 0.0
      %5493 = vmatpush1.msra.mxu0 0.0
      %5494 = vmatprep.subr.mxu0 0.0
      %5495 = vmatpush1.msra.mxu0 0.0
      %5496 = vmatprep.subr.mxu0 0.0
      %5497 = vmatpush1.msra.mxu0 0.0
      %5498 = vmatprep.subr.mxu0 0.0
      %5499 = vmatpush1.msra.mxu0 0.0
      %5500 = vmatprep.subr.mxu0 0.0
      %5501 = vmatpush1.msra.mxu0 0.0
      %5502 = vmatprep.subr.mxu0 0.0
      %5503 = vmatpush1.msra.mxu0 0.0
      %5504 = vmatprep.subr.mxu0 0.0
      %5505 = vmatpush1.msra.mxu0 0.0
      %5506 = vmatprep.subr.mxu0 0.0
      %5507 = vmatpush1.msra.mxu0 0.0
      %5508 = vmatprep.subr.mxu0 0.0
      %5509 = vmatpush1.msra.mxu0 0.0
      %5510 = vmatprep.subr.mxu0 0.0
      %5511 = vmatpush1.msra.mxu0 0.0
      %5512 = vmatprep.mubr.f32.mxu0 0.0
      %5513 = vmatmul.mubr.f32.gmra.mrb[0].mxu0 %v5446
      %v5514 = vpop.f32.mrb[0].mxu0
      %v5515 = vadd.f32 %v4347, %v5514
      %v5516 = vpop.f32.mrb[0].mxu0
      %5517 = vdwg.mxu0
      %v5519 = vsel %vm220, %v3148, 0
      %5521 = vmatprep.subr.mxu0 0.0
      %5522 = vmatpush1.msra.mxu0 %v3761
      %5523 = vmatprep.subr.mxu0 0.0
      %5524 = vmatpush1.msra.mxu0 %v3762
      %5525 = vmatprep.subr.mxu0 0.0
      %5526 = vmatpush1.msra.mxu0 0.0
      %5527 = vmatprep.subr.mxu0 0.0
      %5528 = vmatpush1.msra.mxu0 0.0
      %5529 = vmatprep.subr.mxu0 0.0
      %5530 = vmatpush1.msra.mxu0 0.0
      %5531 = vmatprep.subr.mxu0 0.0
      %5532 = vmatpush1.msra.mxu0 0.0
      %5533 = vmatprep.subr.mxu0 0.0
      %5534 = vmatpush1.msra.mxu0 0.0
      %5535 = vmatprep.subr.mxu0 0.0
      %5536 = vmatpush1.msra.mxu0 0.0
      %5537 = vmatprep.subr.mxu0 0.0
      %5538 = vmatpush1.msra.mxu0 0.0
      %5539 = vmatprep.subr.mxu0 0.0
      %5540 = vmatpush1.msra.mxu0 0.0
      %5541 = vmatprep.subr.mxu0 0.0
      %5542 = vmatpush1.msra.mxu0 0.0
      %5543 = vmatprep.subr.mxu0 0.0
      %5544 = vmatpush1.msra.mxu0 0.0
      %5545 = vmatprep.subr.mxu0 0.0
      %5546 = vmatpush1.msra.mxu0 0.0
      %5547 = vmatprep.subr.mxu0 0.0
      %5548 = vmatpush1.msra.mxu0 0.0
      %5549 = vmatprep.subr.mxu0 0.0
      %5550 = vmatpush1.msra.mxu0 0.0
      %5551 = vmatprep.subr.mxu0 0.0
      %5552 = vmatpush1.msra.mxu0 0.0
      %5553 = vmatprep.subr.mxu0 0.0
      %5554 = vmatpush1.msra.mxu0 0.0
      %5555 = vmatprep.subr.mxu0 0.0
      %5556 = vmatpush1.msra.mxu0 0.0
      %5557 = vmatprep.subr.mxu0 0.0
      %5558 = vmatpush1.msra.mxu0 0.0
      %5559 = vmatprep.subr.mxu0 0.0
      %5560 = vmatpush1.msra.mxu0 0.0
      %5561 = vmatprep.subr.mxu0 0.0
      %5562 = vmatpush1.msra.mxu0 0.0
      %5563 = vmatprep.subr.mxu0 0.0
      %5564 = vmatpush1.msra.mxu0 0.0
      %5565 = vmatprep.subr.mxu0 0.0
      %5566 = vmatpush1.msra.mxu0 0.0
      %5567 = vmatprep.subr.mxu0 0.0
      %5568 = vmatpush1.msra.mxu0 0.0
      %5569 = vmatprep.subr.mxu0 0.0
      %5570 = vmatpush1.msra.mxu0 0.0
      %5571 = vmatprep.subr.mxu0 0.0
      %5572 = vmatpush1.msra.mxu0 0.0
      %5573 = vmatprep.subr.mxu0 0.0
      %5574 = vmatpush1.msra.mxu0 0.0
      %5575 = vmatprep.subr.mxu0 0.0
      %5576 = vmatpush1.msra.mxu0 0.0
      %5577 = vmatprep.subr.mxu0 0.0
      %5578 = vmatpush1.msra.mxu0 0.0
      %5579 = vmatprep.subr.mxu0 0.0
      %5580 = vmatpush1.msra.mxu0 0.0
      %5581 = vmatprep.subr.mxu0 0.0
      %5582 = vmatpush1.msra.mxu0 0.0
      %5583 = vmatprep.subr.mxu0 0.0
      %5584 = vmatpush1.msra.mxu0 0.0
      %5585 = vmatprep.mubr.f32.mxu0 0.0
      %5586 = vmatmul.mubr.f32.gmra.mrb[0].mxu0 %v5519
      %v5587 = vpop.f32.mrb[0].mxu0
      %v5588 = vadd.f32 %v4420, %v5587
      %v5589 = vpop.f32.mrb[0].mxu0
      %5590 = vdwg.mxu0
      %v5592 = vsel %vm220, %v3233, 0
      %5594 = vmatprep.subr.mxu0 0.0
      %5595 = vmatpush1.msra.mxu0 %v3761
      %5596 = vmatprep.subr.mxu0 0.0
      %5597 = vmatpush1.msra.mxu0 %v3762
      %5598 = vmatprep.subr.mxu0 0.0
      %5599 = vmatpush1.msra.mxu0 0.0
      %5600 = vmatprep.subr.mxu0 0.0
      %5601 = vmatpush1.msra.mxu0 0.0
      %5602 = vmatprep.subr.mxu0 0.0
      %5603 = vmatpush1.msra.mxu0 0.0
      %5604 = vmatprep.subr.mxu0 0.0
      %5605 = vmatpush1.msra.mxu0 0.0
      %5606 = vmatprep.subr.mxu0 0.0
      %5607 = vmatpush1.msra.mxu0 0.0
      %5608 = vmatprep.subr.mxu0 0.0
      %5609 = vmatpush1.msra.mxu0 0.0
      %5610 = vmatprep.subr.mxu0 0.0
      %5611 = vmatpush1.msra.mxu0 0.0
      %5612 = vmatprep.subr.mxu0 0.0
      %5613 = vmatpush1.msra.mxu0 0.0
      %5614 = vmatprep.subr.mxu0 0.0
      %5615 = vmatpush1.msra.mxu0 0.0
      %5616 = vmatprep.subr.mxu0 0.0
      %5617 = vmatpush1.msra.mxu0 0.0
      %5618 = vmatprep.subr.mxu0 0.0
      %5619 = vmatpush1.msra.mxu0 0.0
      %5620 = vmatprep.subr.mxu0 0.0
      %5621 = vmatpush1.msra.mxu0 0.0
      %5622 = vmatprep.subr.mxu0 0.0
      %5623 = vmatpush1.msra.mxu0 0.0
      %5624 = vmatprep.subr.mxu0 0.0
      %5625 = vmatpush1.msra.mxu0 0.0
      %5626 = vmatprep.subr.mxu0 0.0
      %5627 = vmatpush1.msra.mxu0 0.0
      %5628 = vmatprep.subr.mxu0 0.0
      %5629 = vmatpush1.msra.mxu0 0.0
      %5630 = vmatprep.subr.mxu0 0.0
      %5631 = vmatpush1.msra.mxu0 0.0
      %5632 = vmatprep.subr.mxu0 0.0
      %5633 = vmatpush1.msra.mxu0 0.0
      %5634 = vmatprep.subr.mxu0 0.0
      %5635 = vmatpush1.msra.mxu0 0.0
      %5636 = vmatprep.subr.mxu0 0.0
      %5637 = vmatpush1.msra.mxu0 0.0
      %5638 = vmatprep.subr.mxu0 0.0
      %5639 = vmatpush1.msra.mxu0 0.0
      %5640 = vmatprep.subr.mxu0 0.0
      %5641 = vmatpush1.msra.mxu0 0.0
      %5642 = vmatprep.subr.mxu0 0.0
      %5643 = vmatpush1.msra.mxu0 0.0
      %5644 = vmatprep.subr.mxu0 0.0
      %5645 = vmatpush1.msra.mxu0 0.0
      %5646 = vmatprep.subr.mxu0 0.0
      %5647 = vmatpush1.msra.mxu0 0.0
      %5648 = vmatprep.subr.mxu0 0.0
      %5649 = vmatpush1.msra.mxu0 0.0
      %5650 = vmatprep.subr.mxu0 0.0
      %5651 = vmatpush1.msra.mxu0 0.0
      %5652 = vmatprep.subr.mxu0 0.0
      %5653 = vmatpush1.msra.mxu0 0.0
      %5654 = vmatprep.subr.mxu0 0.0
      %5655 = vmatpush1.msra.mxu0 0.0
      %5656 = vmatprep.subr.mxu0 0.0
      %5657 = vmatpush1.msra.mxu0 0.0
      %5658 = vmatprep.mubr.f32.mxu0 0.0
      %5659 = vmatmul.mubr.f32.gmra.mrb[0].mxu0 %v5592
      %v5660 = vpop.f32.mrb[0].mxu0
      %v5661 = vadd.f32 %v4493, %v5660
      %v5662 = vpop.f32.mrb[0].mxu0
      %5663 = vdwg.mxu0
      %v5665 = vsel %vm220, %v3318, 0
      %5667 = vmatprep.subr.mxu0 0.0
      %5668 = vmatpush1.msra.mxu0 %v3761
      %5669 = vmatprep.subr.mxu0 0.0
      %5670 = vmatpush1.msra.mxu0 %v3762
      %5671 = vmatprep.subr.mxu0 0.0
      %5672 = vmatpush1.msra.mxu0 0.0
      %5673 = vmatprep.subr.mxu0 0.0
      %5674 = vmatpush1.msra.mxu0 0.0
      %5675 = vmatprep.subr.mxu0 0.0
      %5676 = vmatpush1.msra.mxu0 0.0
      %5677 = vmatprep.subr.mxu0 0.0
      %5678 = vmatpush1.msra.mxu0 0.0
      %5679 = vmatprep.subr.mxu0 0.0
      %5680 = vmatpush1.msra.mxu0 0.0
      %5681 = vmatprep.subr.mxu0 0.0
      %5682 = vmatpush1.msra.mxu0 0.0
      %5683 = vmatprep.subr.mxu0 0.0
      %5684 = vmatpush1.msra.mxu0 0.0
      %5685 = vmatprep.subr.mxu0 0.0
      %5686 = vmatpush1.msra.mxu0 0.0
      %5687 = vmatprep.subr.mxu0 0.0
      %5688 = vmatpush1.msra.mxu0 0.0
      %5689 = vmatprep.subr.mxu0 0.0
      %5690 = vmatpush1.msra.mxu0 0.0
      %5691 = vmatprep.subr.mxu0 0.0
      %5692 = vmatpush1.msra.mxu0 0.0
      %5693 = vmatprep.subr.mxu0 0.0
      %5694 = vmatpush1.msra.mxu0 0.0
      %5695 = vmatprep.subr.mxu0 0.0
      %5696 = vmatpush1.msra.mxu0 0.0
      %5697 = vmatprep.subr.mxu0 0.0
      %5698 = vmatpush1.msra.mxu0 0.0
      %5699 = vmatprep.subr.mxu0 0.0
      %5700 = vmatpush1.msra.mxu0 0.0
      %5701 = vmatprep.subr.mxu0 0.0
      %5702 = vmatpush1.msra.mxu0 0.0
      %5703 = vmatprep.subr.mxu0 0.0
      %5704 = vmatpush1.msra.mxu0 0.0
      %5705 = vmatprep.subr.mxu0 0.0
      %5706 = vmatpush1.msra.mxu0 0.0
      %5707 = vmatprep.subr.mxu0 0.0
      %5708 = vmatpush1.msra.mxu0 0.0
      %5709 = vmatprep.subr.mxu0 0.0
      %5710 = vmatpush1.msra.mxu0 0.0
      %5711 = vmatprep.subr.mxu0 0.0
      %5712 = vmatpush1.msra.mxu0 0.0
      %5713 = vmatprep.subr.mxu0 0.0
      %5714 = vmatpush1.msra.mxu0 0.0
      %5715 = vmatprep.subr.mxu0 0.0
      %5716 = vmatpush1.msra.mxu0 0.0
      %5717 = vmatprep.subr.mxu0 0.0
      %5718 = vmatpush1.msra.mxu0 0.0
      %5719 = vmatprep.subr.mxu0 0.0
      %5720 = vmatpush1.msra.mxu0 0.0
      %5721 = vmatprep.subr.mxu0 0.0
      %5722 = vmatpush1.msra.mxu0 0.0
      %5723 = vmatprep.subr.mxu0 0.0
      %5724 = vmatpush1.msra.mxu0 0.0
      %5725 = vmatprep.subr.mxu0 0.0
      %5726 = vmatpush1.msra.mxu0 0.0
      %5727 = vmatprep.subr.mxu0 0.0
      %5728 = vmatpush1.msra.mxu0 0.0
      %5729 = vmatprep.subr.mxu0 0.0
      %5730 = vmatpush1.msra.mxu0 0.0
      %5731 = vmatprep.mubr.f32.mxu0 0.0
      %5732 = vmatmul.mubr.f32.gmra.mrb[0].mxu0 %v5665
      %v5733 = vpop.f32.mrb[0].mxu0
      %v5734 = vadd.f32 %v4566, %v5733
      %v5735 = vpop.f32.mrb[0].mxu0
      %5736 = vdwg.mxu0
      %v5738 = vsel %vm220, %v3403, 0
      %5740 = vmatprep.subr.mxu0 0.0
      %5741 = vmatpush1.msra.mxu0 %v3761
      %5742 = vmatprep.subr.mxu0 0.0
      %5743 = vmatpush1.msra.mxu0 %v3762
      %5744 = vmatprep.subr.mxu0 0.0
      %5745 = vmatpush1.msra.mxu0 0.0
      %5746 = vmatprep.subr.mxu0 0.0
      %5747 = vmatpush1.msra.mxu0 0.0
      %5748 = vmatprep.subr.mxu0 0.0
      %5749 = vmatpush1.msra.mxu0 0.0
      %5750 = vmatprep.subr.mxu0 0.0
      %5751 = vmatpush1.msra.mxu0 0.0
      %5752 = vmatprep.subr.mxu0 0.0
      %5753 = vmatpush1.msra.mxu0 0.0
      %5754 = vmatprep.subr.mxu0 0.0
      %5755 = vmatpush1.msra.mxu0 0.0
      %5756 = vmatprep.subr.mxu0 0.0
      %5757 = vmatpush1.msra.mxu0 0.0
      %5758 = vmatprep.subr.mxu0 0.0
      %5759 = vmatpush1.msra.mxu0 0.0
      %5760 = vmatprep.subr.mxu0 0.0
      %5761 = vmatpush1.msra.mxu0 0.0
      %5762 = vmatprep.subr.mxu0 0.0
      %5763 = vmatpush1.msra.mxu0 0.0
      %5764 = vmatprep.subr.mxu0 0.0
      %5765 = vmatpush1.msra.mxu0 0.0
      %5766 = vmatprep.subr.mxu0 0.0
      %5767 = vmatpush1.msra.mxu0 0.0
      %5768 = vmatprep.subr.mxu0 0.0
      %5769 = vmatpush1.msra.mxu0 0.0
      %5770 = vmatprep.subr.mxu0 0.0
      %5771 = vmatpush1.msra.mxu0 0.0
      %5772 = vmatprep.subr.mxu0 0.0
      %5773 = vmatpush1.msra.mxu0 0.0
      %5774 = vmatprep.subr.mxu0 0.0
      %5775 = vmatpush1.msra.mxu0 0.0
      %5776 = vmatprep.subr.mxu0 0.0
      %5777 = vmatpush1.msra.mxu0 0.0
      %5778 = vmatprep.subr.mxu0 0.0
      %5779 = vmatpush1.msra.mxu0 0.0
      %5780 = vmatprep.subr.mxu0 0.0
      %5781 = vmatpush1.msra.mxu0 0.0
      %5782 = vmatprep.subr.mxu0 0.0
      %5783 = vmatpush1.msra.mxu0 0.0
      %5784 = vmatprep.subr.mxu0 0.0
      %5785 = vmatpush1.msra.mxu0 0.0
      %5786 = vmatprep.subr.mxu0 0.0
      %5787 = vmatpush1.msra.mxu0 0.0
      %5788 = vmatprep.subr.mxu0 0.0
      %5789 = vmatpush1.msra.mxu0 0.0
      %5790 = vmatprep.subr.mxu0 0.0
      %5791 = vmatpush1.msra.mxu0 0.0
      %5792 = vmatprep.subr.mxu0 0.0
      %5793 = vmatpush1.msra.mxu0 0.0
      %5794 = vmatprep.subr.mxu0 0.0
      %5795 = vmatpush1.msra.mxu0 0.0
      %5796 = vmatprep.subr.mxu0 0.0
      %5797 = vmatpush1.msra.mxu0 0.0
      %5798 = vmatprep.subr.mxu0 0.0
      %5799 = vmatpush1.msra.mxu0 0.0
      %5800 = vmatprep.subr.mxu0 0.0
      %5801 = vmatpush1.msra.mxu0 0.0
      %5802 = vmatprep.subr.mxu0 0.0
      %5803 = vmatpush1.msra.mxu0 0.0
      %5804 = vmatprep.mubr.f32.mxu0 0.0
      %5805 = vmatmul.mubr.f32.gmra.mrb[0].mxu0 %v5738
      %v5806 = vpop.f32.mrb[0].mxu0
      %v5807 = vadd.f32 %v4639, %v5806
      %v5808 = vpop.f32.mrb[0].mxu0
      %5809 = vdwg.mxu0
      %v5811 = vsel %vm220, %v3488, 0
      %5813 = vmatprep.subr.mxu0 0.0
      %5814 = vmatpush1.msra.mxu0 %v3761
      %5815 = vmatprep.subr.mxu0 0.0
      %5816 = vmatpush1.msra.mxu0 %v3762
      %5817 = vmatprep.subr.mxu0 0.0
      %5818 = vmatpush1.msra.mxu0 0.0
      %5819 = vmatprep.subr.mxu0 0.0
      %5820 = vmatpush1.msra.mxu0 0.0
      %5821 = vmatprep.subr.mxu0 0.0
      %5822 = vmatpush1.msra.mxu0 0.0
      %5823 = vmatprep.subr.mxu0 0.0
      %5824 = vmatpush1.msra.mxu0 0.0
      %5825 = vmatprep.subr.mxu0 0.0
      %5826 = vmatpush1.msra.mxu0 0.0
      %5827 = vmatprep.subr.mxu0 0.0
      %5828 = vmatpush1.msra.mxu0 0.0
      %5829 = vmatprep.subr.mxu0 0.0
      %5830 = vmatpush1.msra.mxu0 0.0
      %5831 = vmatprep.subr.mxu0 0.0
      %5832 = vmatpush1.msra.mxu0 0.0
      %5833 = vmatprep.subr.mxu0 0.0
      %5834 = vmatpush1.msra.mxu0 0.0
      %5835 = vmatprep.subr.mxu0 0.0
      %5836 = vmatpush1.msra.mxu0 0.0
      %5837 = vmatprep.subr.mxu0 0.0
      %5838 = vmatpush1.msra.mxu0 0.0
      %5839 = vmatprep.subr.mxu0 0.0
      %5840 = vmatpush1.msra.mxu0 0.0
      %5841 = vmatprep.subr.mxu0 0.0
      %5842 = vmatpush1.msra.mxu0 0.0
      %5843 = vmatprep.subr.mxu0 0.0
      %5844 = vmatpush1.msra.mxu0 0.0
      %5845 = vmatprep.subr.mxu0 0.0
      %5846 = vmatpush1.msra.mxu0 0.0
      %5847 = vmatprep.subr.mxu0 0.0
      %5848 = vmatpush1.msra.mxu0 0.0
      %5849 = vmatprep.subr.mxu0 0.0
      %5850 = vmatpush1.msra.mxu0 0.0
      %5851 = vmatprep.subr.mxu0 0.0
      %5852 = vmatpush1.msra.mxu0 0.0
      %5853 = vmatprep.subr.mxu0 0.0
      %5854 = vmatpush1.msra.mxu0 0.0
      %5855 = vmatprep.subr.mxu0 0.0
      %5856 = vmatpush1.msra.mxu0 0.0
      %5857 = vmatprep.subr.mxu0 0.0
      %5858 = vmatpush1.msra.mxu0 0.0
      %5859 = vmatprep.subr.mxu0 0.0
      %5860 = vmatpush1.msra.mxu0 0.0
      %5861 = vmatprep.subr.mxu0 0.0
      %5862 = vmatpush1.msra.mxu0 0.0
      %5863 = vmatprep.subr.mxu0 0.0
      %5864 = vmatpush1.msra.mxu0 0.0
      %5865 = vmatprep.subr.mxu0 0.0
      %5866 = vmatpush1.msra.mxu0 0.0
      %5867 = vmatprep.subr.mxu0 0.0
      %5868 = vmatpush1.msra.mxu0 0.0
      %5869 = vmatprep.subr.mxu0 0.0
      %5870 = vmatpush1.msra.mxu0 0.0
      %5871 = vmatprep.subr.mxu0 0.0
      %5872 = vmatpush1.msra.mxu0 0.0
      %5873 = vmatprep.subr.mxu0 0.0
      %5874 = vmatpush1.msra.mxu0 0.0
      %5875 = vmatprep.subr.mxu0 0.0
      %5876 = vmatpush1.msra.mxu0 0.0
      %5877 = vmatprep.mubr.f32.mxu0 0.0
      %5878 = vmatmul.mubr.f32.gmra.mrb[0].mxu0 %v5811
      %v5879 = vpop.f32.mrb[0].mxu0
      %v5880 = vadd.f32 %v4712, %v5879
      %v5881 = vpop.f32.mrb[0].mxu0
      %5882 = vdwg.mxu0
      %v5884 = vsel %vm220, %v3573, 0
      %5886 = vmatprep.subr.mxu0 0.0
      %5887 = vmatpush1.msra.mxu0 %v3761
      %5888 = vmatprep.subr.mxu0 0.0
      %5889 = vmatpush1.msra.mxu0 %v3762
      %5890 = vmatprep.subr.mxu0 0.0
      %5891 = vmatpush1.msra.mxu0 0.0
      %5892 = vmatprep.subr.mxu0 0.0
      %5893 = vmatpush1.msra.mxu0 0.0
      %5894 = vmatprep.subr.mxu0 0.0
      %5895 = vmatpush1.msra.mxu0 0.0
      %5896 = vmatprep.subr.mxu0 0.0
      %5897 = vmatpush1.msra.mxu0 0.0
      %5898 = vmatprep.subr.mxu0 0.0
      %5899 = vmatpush1.msra.mxu0 0.0
      %5900 = vmatprep.subr.mxu0 0.0
      %5901 = vmatpush1.msra.mxu0 0.0
      %5902 = vmatprep.subr.mxu0 0.0
      %5903 = vmatpush1.msra.mxu0 0.0
      %5904 = vmatprep.subr.mxu0 0.0
      %5905 = vmatpush1.msra.mxu0 0.0
      %5906 = vmatprep.subr.mxu0 0.0
      %5907 = vmatpush1.msra.mxu0 0.0
      %5908 = vmatprep.subr.mxu0 0.0
      %5909 = vmatpush1.msra.mxu0 0.0
      %5910 = vmatprep.subr.mxu0 0.0
      %5911 = vmatpush1.msra.mxu0 0.0
      %5912 = vmatprep.subr.mxu0 0.0
      %5913 = vmatpush1.msra.mxu0 0.0
      %5914 = vmatprep.subr.mxu0 0.0
      %5915 = vmatpush1.msra.mxu0 0.0
      %5916 = vmatprep.subr.mxu0 0.0
      %5917 = vmatpush1.msra.mxu0 0.0
      %5918 = vmatprep.subr.mxu0 0.0
      %5919 = vmatpush1.msra.mxu0 0.0
      %5920 = vmatprep.subr.mxu0 0.0
      %5921 = vmatpush1.msra.mxu0 0.0
      %5922 = vmatprep.subr.mxu0 0.0
      %5923 = vmatpush1.msra.mxu0 0.0
      %5924 = vmatprep.subr.mxu0 0.0
      %5925 = vmatpush1.msra.mxu0 0.0
      %5926 = vmatprep.subr.mxu0 0.0
      %5927 = vmatpush1.msra.mxu0 0.0
      %5928 = vmatprep.subr.mxu0 0.0
      %5929 = vmatpush1.msra.mxu0 0.0
      %5930 = vmatprep.subr.mxu0 0.0
      %5931 = vmatpush1.msra.mxu0 0.0
      %5932 = vmatprep.subr.mxu0 0.0
      %5933 = vmatpush1.msra.mxu0 0.0
      %5934 = vmatprep.subr.mxu0 0.0
      %5935 = vmatpush1.msra.mxu0 0.0
      %5936 = vmatprep.subr.mxu0 0.0
      %5937 = vmatpush1.msra.mxu0 0.0
      %5938 = vmatprep.subr.mxu0 0.0
      %5939 = vmatpush1.msra.mxu0 0.0
      %5940 = vmatprep.subr.mxu0 0.0
      %5941 = vmatpush1.msra.mxu0 0.0
      %5942 = vmatprep.subr.mxu0 0.0
      %5943 = vmatpush1.msra.mxu0 0.0
      %5944 = vmatprep.subr.mxu0 0.0
      %5945 = vmatpush1.msra.mxu0 0.0
      %5946 = vmatprep.subr.mxu0 0.0
      %5947 = vmatpush1.msra.mxu0 0.0
      %5948 = vmatprep.subr.mxu0 0.0
      %5949 = vmatpush1.msra.mxu0 0.0
      %5950 = vmatprep.mubr.f32.mxu0 0.0
      %5951 = vmatmul.mubr.f32.gmra.mrb[0].mxu0 %v5884
      %v5952 = vpop.f32.mrb[0].mxu0
      %v5953 = vadd.f32 %v4785, %v5952
      %v5954 = vpop.f32.mrb[0].mxu0
      %5955 = vdwg.mxu0
      %v5957 = vsel %vm220, %v3658, 0
      %5959 = vmatprep.subr.mxu0 0.0
      %5960 = vmatpush1.msra.mxu0 %v3761
      %5961 = vmatprep.subr.mxu0 0.0
      %5962 = vmatpush1.msra.mxu0 %v3762
      %5963 = vmatprep.subr.mxu0 0.0
      %5964 = vmatpush1.msra.mxu0 0.0
      %5965 = vmatprep.subr.mxu0 0.0
      %5966 = vmatpush1.msra.mxu0 0.0
      %5967 = vmatprep.subr.mxu0 0.0
      %5968 = vmatpush1.msra.mxu0 0.0
      %5969 = vmatprep.subr.mxu0 0.0
      %5970 = vmatpush1.msra.mxu0 0.0
      %5971 = vmatprep.subr.mxu0 0.0
      %5972 = vmatpush1.msra.mxu0 0.0
      %5973 = vmatprep.subr.mxu0 0.0
      %5974 = vmatpush1.msra.mxu0 0.0
      %5975 = vmatprep.subr.mxu0 0.0
      %5976 = vmatpush1.msra.mxu0 0.0
      %5977 = vmatprep.subr.mxu0 0.0
      %5978 = vmatpush1.msra.mxu0 0.0
      %5979 = vmatprep.subr.mxu0 0.0
      %5980 = vmatpush1.msra.mxu0 0.0
      %5981 = vmatprep.subr.mxu0 0.0
      %5982 = vmatpush1.msra.mxu0 0.0
      %5983 = vmatprep.subr.mxu0 0.0
      %5984 = vmatpush1.msra.mxu0 0.0
      %5985 = vmatprep.subr.mxu0 0.0
      %5986 = vmatpush1.msra.mxu0 0.0
      %5987 = vmatprep.subr.mxu0 0.0
      %5988 = vmatpush1.msra.mxu0 0.0
      %5989 = vmatprep.subr.mxu0 0.0
      %5990 = vmatpush1.msra.mxu0 0.0
      %5991 = vmatprep.subr.mxu0 0.0
      %5992 = vmatpush1.msra.mxu0 0.0
      %5993 = vmatprep.subr.mxu0 0.0
      %5994 = vmatpush1.msra.mxu0 0.0
      %5995 = vmatprep.subr.mxu0 0.0
      %5996 = vmatpush1.msra.mxu0 0.0
      %5997 = vmatprep.subr.mxu0 0.0
      %5998 = vmatpush1.msra.mxu0 0.0
      %5999 = vmatprep.subr.mxu0 0.0
      %6000 = vmatpush1.msra.mxu0 0.0
      %6001 = vmatprep.subr.mxu0 0.0
      %6002 = vmatpush1.msra.mxu0 0.0
      %6003 = vmatprep.subr.mxu0 0.0
      %6004 = vmatpush1.msra.mxu0 0.0
      %6005 = vmatprep.subr.mxu0 0.0
      %6006 = vmatpush1.msra.mxu0 0.0
      %6007 = vmatprep.subr.mxu0 0.0
      %6008 = vmatpush1.msra.mxu0 0.0
      %6009 = vmatprep.subr.mxu0 0.0
      %6010 = vmatpush1.msra.mxu0 0.0
      %6011 = vmatprep.subr.mxu0 0.0
      %6012 = vmatpush1.msra.mxu0 0.0
      %6013 = vmatprep.subr.mxu0 0.0
      %6014 = vmatpush1.msra.mxu0 0.0
      %6015 = vmatprep.subr.mxu0 0.0
      %6016 = vmatpush1.msra.mxu0 0.0
      %6017 = vmatprep.subr.mxu0 0.0
      %6018 = vmatpush1.msra.mxu0 0.0
      %6019 = vmatprep.subr.mxu0 0.0
      %6020 = vmatpush1.msra.mxu0 0.0
      %6021 = vmatprep.subr.mxu0 0.0
      %6022 = vmatpush1.msra.mxu0 0.0
      %6023 = vmatprep.mubr.f32.mxu0 0.0
      %6024 = vmatmul.mubr.f32.gmra.mrb[0].mxu0 %v5957
      %v6025 = vpop.f32.mrb[0].mxu0
      %v6026 = vadd.f32 %v4858, %v6025
      %v6027 = vpop.f32.mrb[0].mxu0
      %6028 = vdwg.mxu0
      %v6030 = vsel %vm220, %v3743, 0
      %6032 = vmatprep.subr.mxu0 0.0
      %6033 = vmatpush1.msra.mxu0 %v3761
      %6034 = vmatprep.subr.mxu0 0.0
      %6035 = vmatpush1.msra.mxu0 %v3762
      %6036 = vmatprep.subr.mxu0 0.0
      %6037 = vmatpush1.msra.mxu0 0.0
      %6038 = vmatprep.subr.mxu0 0.0
      %6039 = vmatpush1.msra.mxu0 0.0
      %6040 = vmatprep.subr.mxu0 0.0
      %6041 = vmatpush1.msra.mxu0 0.0
      %6042 = vmatprep.subr.mxu0 0.0
      %6043 = vmatpush1.msra.mxu0 0.0
      %6044 = vmatprep.subr.mxu0 0.0
      %6045 = vmatpush1.msra.mxu0 0.0
      %6046 = vmatprep.subr.mxu0 0.0
      %6047 = vmatpush1.msra.mxu0 0.0
      %6048 = vmatprep.subr.mxu0 0.0
      %6049 = vmatpush1.msra.mxu0 0.0
      %6050 = vmatprep.subr.mxu0 0.0
      %6051 = vmatpush1.msra.mxu0 0.0
      %6052 = vmatprep.subr.mxu0 0.0
      %6053 = vmatpush1.msra.mxu0 0.0
      %6054 = vmatprep.subr.mxu0 0.0
      %6055 = vmatpush1.msra.mxu0 0.0
      %6056 = vmatprep.subr.mxu0 0.0
      %6057 = vmatpush1.msra.mxu0 0.0
      %6058 = vmatprep.subr.mxu0 0.0
      %6059 = vmatpush1.msra.mxu0 0.0
      %6060 = vmatprep.subr.mxu0 0.0
      %6061 = vmatpush1.msra.mxu0 0.0
      %6062 = vmatprep.subr.mxu0 0.0
      %6063 = vmatpush1.msra.mxu0 0.0
      %6064 = vmatprep.subr.mxu0 0.0
      %6065 = vmatpush1.msra.mxu0 0.0
      %6066 = vmatprep.subr.mxu0 0.0
      %6067 = vmatpush1.msra.mxu0 0.0
      %6068 = vmatprep.subr.mxu0 0.0
      %6069 = vmatpush1.msra.mxu0 0.0
      %6070 = vmatprep.subr.mxu0 0.0
      %6071 = vmatpush1.msra.mxu0 0.0
      %6072 = vmatprep.subr.mxu0 0.0
      %6073 = vmatpush1.msra.mxu0 0.0
      %6074 = vmatprep.subr.mxu0 0.0
      %6075 = vmatpush1.msra.mxu0 0.0
      %6076 = vmatprep.subr.mxu0 0.0
      %6077 = vmatpush1.msra.mxu0 0.0
      %6078 = vmatprep.subr.mxu0 0.0
      %6079 = vmatpush1.msra.mxu0 0.0
      %6080 = vmatprep.subr.mxu0 0.0
      %6081 = vmatpush1.msra.mxu0 0.0
      %6082 = vmatprep.subr.mxu0 0.0
      %6083 = vmatpush1.msra.mxu0 0.0
      %6084 = vmatprep.subr.mxu0 0.0
      %6085 = vmatpush1.msra.mxu0 0.0
      %6086 = vmatprep.subr.mxu0 0.0
      %6087 = vmatpush1.msra.mxu0 0.0
      %6088 = vmatprep.subr.mxu0 0.0
      %6089 = vmatpush1.msra.mxu0 0.0
      %6090 = vmatprep.subr.mxu0 0.0
      %6091 = vmatpush1.msra.mxu0 0.0
      %6092 = vmatprep.subr.mxu0 0.0
      %6093 = vmatpush1.msra.mxu0 0.0
      %6094 = vmatprep.subr.mxu0 0.0
      %6095 = vmatpush1.msra.mxu0 0.0
      %6096 = vmatprep.mubr.f32.mxu0 0.0
      %6097 = vmatmul.mubr.f32.gmra.mrb[0].mxu0 %v6030
      %v6098 = vpop.f32.mrb[0].mxu0
      %v6099 = vadd.f32 %v4931, %v6098
      %v6100 = vpop.f32.mrb[0].mxu0
      %6101 = vdwg.mxu0
      %v6103 = vsel %vm220, %v2483, 0
      %6105 = vmatprep.subr.mxu0 0.0
      %6106 = vmatpush1.msra.mxu0 %v3764
      %6107 = vmatprep.subr.mxu0 0.0
      %6108 = vmatpush1.msra.mxu0 %v3765
      %6109 = vmatprep.subr.mxu0 0.0
      %6110 = vmatpush1.msra.mxu0 0.0
      %6111 = vmatprep.subr.mxu0 0.0
      %6112 = vmatpush1.msra.mxu0 0.0
      %6113 = vmatprep.subr.mxu0 0.0
      %6114 = vmatpush1.msra.mxu0 0.0
      %6115 = vmatprep.subr.mxu0 0.0
      %6116 = vmatpush1.msra.mxu0 0.0
      %6117 = vmatprep.subr.mxu0 0.0
      %6118 = vmatpush1.msra.mxu0 0.0
      %6119 = vmatprep.subr.mxu0 0.0
      %6120 = vmatpush1.msra.mxu0 0.0
      %6121 = vmatprep.subr.mxu0 0.0
      %6122 = vmatpush1.msra.mxu0 0.0
      %6123 = vmatprep.subr.mxu0 0.0
      %6124 = vmatpush1.msra.mxu0 0.0
      %6125 = vmatprep.subr.mxu0 0.0
      %6126 = vmatpush1.msra.mxu0 0.0
      %6127 = vmatprep.subr.mxu0 0.0
      %6128 = vmatpush1.msra.mxu0 0.0
      %6129 = vmatprep.subr.mxu0 0.0
      %6130 = vmatpush1.msra.mxu0 0.0
      %6131 = vmatprep.subr.mxu0 0.0
      %6132 = vmatpush1.msra.mxu0 0.0
      %6133 = vmatprep.subr.mxu0 0.0
      %6134 = vmatpush1.msra.mxu0 0.0
      %6135 = vmatprep.subr.mxu0 0.0
      %6136 = vmatpush1.msra.mxu0 0.0
      %6137 = vmatprep.subr.mxu0 0.0
      %6138 = vmatpush1.msra.mxu0 0.0
      %6139 = vmatprep.subr.mxu0 0.0
      %6140 = vmatpush1.msra.mxu0 0.0
      %6141 = vmatprep.subr.mxu0 0.0
      %6142 = vmatpush1.msra.mxu0 0.0
      %6143 = vmatprep.subr.mxu0 0.0
      %6144 = vmatpush1.msra.mxu0 0.0
      %6145 = vmatprep.subr.mxu0 0.0
      %6146 = vmatpush1.msra.mxu0 0.0
      %6147 = vmatprep.subr.mxu0 0.0
      %6148 = vmatpush1.msra.mxu0 0.0
      %6149 = vmatprep.subr.mxu0 0.0
      %6150 = vmatpush1.msra.mxu0 0.0
      %6151 = vmatprep.subr.mxu0 0.0
      %6152 = vmatpush1.msra.mxu0 0.0
      %6153 = vmatprep.subr.mxu0 0.0
      %6154 = vmatpush1.msra.mxu0 0.0
      %6155 = vmatprep.subr.mxu0 0.0
      %6156 = vmatpush1.msra.mxu0 0.0
      %6157 = vmatprep.subr.mxu0 0.0
      %6158 = vmatpush1.msra.mxu0 0.0
      %6159 = vmatprep.subr.mxu0 0.0
      %6160 = vmatpush1.msra.mxu0 0.0
      %6161 = vmatprep.subr.mxu0 0.0
      %6162 = vmatpush1.msra.mxu0 0.0
      %6163 = vmatprep.subr.mxu0 0.0
      %6164 = vmatpush1.msra.mxu0 0.0
      %6165 = vmatprep.subr.mxu0 0.0
      %6166 = vmatpush1.msra.mxu0 0.0
      %6167 = vmatprep.subr.mxu0 0.0
      %6168 = vmatpush1.msra.mxu0 0.0
      %6169 = vmatprep.mubr.f32.mxu0 0.0
      %6170 = vmatmul.mubr.f32.gmra.mrb[0].mxu0 %v6103
      %v6171 = vpop.f32.mrb[0].mxu0
      %v6172 = vadd.f32 0.0, %v6171
      %v6173 = vpop.f32.mrb[0].mxu0
      %6174 = vdwg.mxu0
      %v6176 = vsel %vm220, %v2568, 0
      %6178 = vmatprep.subr.mxu0 0.0
      %6179 = vmatpush1.msra.mxu0 %v3764
      %6180 = vmatprep.subr.mxu0 0.0
      %6181 = vmatpush1.msra.mxu0 %v3765
      %6182 = vmatprep.subr.mxu0 0.0
      %6183 = vmatpush1.msra.mxu0 0.0
      %6184 = vmatprep.subr.mxu0 0.0
      %6185 = vmatpush1.msra.mxu0 0.0
      %6186 = vmatprep.subr.mxu0 0.0
      %6187 = vmatpush1.msra.mxu0 0.0
      %6188 = vmatprep.subr.mxu0 0.0
      %6189 = vmatpush1.msra.mxu0 0.0
      %6190 = vmatprep.subr.mxu0 0.0
      %6191 = vmatpush1.msra.mxu0 0.0
      %6192 = vmatprep.subr.mxu0 0.0
      %6193 = vmatpush1.msra.mxu0 0.0
      %6194 = vmatprep.subr.mxu0 0.0
      %6195 = vmatpush1.msra.mxu0 0.0
      %6196 = vmatprep.subr.mxu0 0.0
      %6197 = vmatpush1.msra.mxu0 0.0
      %6198 = vmatprep.subr.mxu0 0.0
      %6199 = vmatpush1.msra.mxu0 0.0
      %6200 = vmatprep.subr.mxu0 0.0
      %6201 = vmatpush1.msra.mxu0 0.0
      %6202 = vmatprep.subr.mxu0 0.0
      %6203 = vmatpush1.msra.mxu0 0.0
      %6204 = vmatprep.subr.mxu0 0.0
      %6205 = vmatpush1.msra.mxu0 0.0
      %6206 = vmatprep.subr.mxu0 0.0
      %6207 = vmatpush1.msra.mxu0 0.0
      %6208 = vmatprep.subr.mxu0 0.0
      %6209 = vmatpush1.msra.mxu0 0.0
      %6210 = vmatprep.subr.mxu0 0.0
      %6211 = vmatpush1.msra.mxu0 0.0
      %6212 = vmatprep.subr.mxu0 0.0
      %6213 = vmatpush1.msra.mxu0 0.0
      %6214 = vmatprep.subr.mxu0 0.0
      %6215 = vmatpush1.msra.mxu0 0.0
      %6216 = vmatprep.subr.mxu0 0.0
      %6217 = vmatpush1.msra.mxu0 0.0
      %6218 = vmatprep.subr.mxu0 0.0
      %6219 = vmatpush1.msra.mxu0 0.0
      %6220 = vmatprep.subr.mxu0 0.0
      %6221 = vmatpush1.msra.mxu0 0.0
      %6222 = vmatprep.subr.mxu0 0.0
      %6223 = vmatpush1.msra.mxu0 0.0
      %6224 = vmatprep.subr.mxu0 0.0
      %6225 = vmatpush1.msra.mxu0 0.0
      %6226 = vmatprep.subr.mxu0 0.0
      %6227 = vmatpush1.msra.mxu0 0.0
      %6228 = vmatprep.subr.mxu0 0.0
      %6229 = vmatpush1.msra.mxu0 0.0
      %6230 = vmatprep.subr.mxu0 0.0
      %6231 = vmatpush1.msra.mxu0 0.0
      %6232 = vmatprep.subr.mxu0 0.0
      %6233 = vmatpush1.msra.mxu0 0.0
      %6234 = vmatprep.subr.mxu0 0.0
      %6235 = vmatpush1.msra.mxu0 0.0
      %6236 = vmatprep.subr.mxu0 0.0
      %6237 = vmatpush1.msra.mxu0 0.0
      %6238 = vmatprep.subr.mxu0 0.0
      %6239 = vmatpush1.msra.mxu0 0.0
      %6240 = vmatprep.subr.mxu0 0.0
      %6241 = vmatpush1.msra.mxu0 0.0
      %6242 = vmatprep.mubr.f32.mxu0 0.0
      %6243 = vmatmul.mubr.f32.gmra.mrb[0].mxu0 %v6176
      %v6244 = vpop.f32.mrb[0].mxu0
      %v6245 = vadd.f32 0.0, %v6244
      %v6246 = vpop.f32.mrb[0].mxu0
      %6247 = vdwg.mxu0
      %v6249 = vsel %vm220, %v2653, 0
      %6251 = vmatprep.subr.mxu0 0.0
      %6252 = vmatpush1.msra.mxu0 %v3764
      %6253 = vmatprep.subr.mxu0 0.0
      %6254 = vmatpush1.msra.mxu0 %v3765
      %6255 = vmatprep.subr.mxu0 0.0
      %6256 = vmatpush1.msra.mxu0 0.0
      %6257 = vmatprep.subr.mxu0 0.0
      %6258 = vmatpush1.msra.mxu0 0.0
      %6259 = vmatprep.subr.mxu0 0.0
      %6260 = vmatpush1.msra.mxu0 0.0
      %6261 = vmatprep.subr.mxu0 0.0
      %6262 = vmatpush1.msra.mxu0 0.0
      %6263 = vmatprep.subr.mxu0 0.0
      %6264 = vmatpush1.msra.mxu0 0.0
      %6265 = vmatprep.subr.mxu0 0.0
      %6266 = vmatpush1.msra.mxu0 0.0
      %6267 = vmatprep.subr.mxu0 0.0
      %6268 = vmatpush1.msra.mxu0 0.0
      %6269 = vmatprep.subr.mxu0 0.0
      %6270 = vmatpush1.msra.mxu0 0.0
      %6271 = vmatprep.subr.mxu0 0.0
      %6272 = vmatpush1.msra.mxu0 0.0
      %6273 = vmatprep.subr.mxu0 0.0
      %6274 = vmatpush1.msra.mxu0 0.0
      %6275 = vmatprep.subr.mxu0 0.0
      %6276 = vmatpush1.msra.mxu0 0.0
      %6277 = vmatprep.subr.mxu0 0.0
      %6278 = vmatpush1.msra.mxu0 0.0
      %6279 = vmatprep.subr.mxu0 0.0
      %6280 = vmatpush1.msra.mxu0 0.0
      %6281 = vmatprep.subr.mxu0 0.0
      %6282 = vmatpush1.msra.mxu0 0.0
      %6283 = vmatprep.subr.mxu0 0.0
      %6284 = vmatpush1.msra.mxu0 0.0
      %6285 = vmatprep.subr.mxu0 0.0
      %6286 = vmatpush1.msra.mxu0 0.0
      %6287 = vmatprep.subr.mxu0 0.0
      %6288 = vmatpush1.msra.mxu0 0.0
      %6289 = vmatprep.subr.mxu0 0.0
      %6290 = vmatpush1.msra.mxu0 0.0
      %6291 = vmatprep.subr.mxu0 0.0
      %6292 = vmatpush1.msra.mxu0 0.0
      %6293 = vmatprep.subr.mxu0 0.0
      %6294 = vmatpush1.msra.mxu0 0.0
      %6295 = vmatprep.subr.mxu0 0.0
      %6296 = vmatpush1.msra.mxu0 0.0
      %6297 = vmatprep.subr.mxu0 0.0
      %6298 = vmatpush1.msra.mxu0 0.0
      %6299 = vmatprep.subr.mxu0 0.0
      %6300 = vmatpush1.msra.mxu0 0.0
      %6301 = vmatprep.subr.mxu0 0.0
      %6302 = vmatpush1.msra.mxu0 0.0
      %6303 = vmatprep.subr.mxu0 0.0
      %6304 = vmatpush1.msra.mxu0 0.0
      %6305 = vmatprep.subr.mxu0 0.0
      %6306 = vmatpush1.msra.mxu0 0.0
      %6307 = vmatprep.subr.mxu0 0.0
      %6308 = vmatpush1.msra.mxu0 0.0
      %6309 = vmatprep.subr.mxu0 0.0
      %6310 = vmatpush1.msra.mxu0 0.0
      %6311 = vmatprep.subr.mxu0 0.0
      %6312 = vmatpush1.msra.mxu0 0.0
      %6313 = vmatprep.subr.mxu0 0.0
      %6314 = vmatpush1.msra.mxu0 0.0
      %6315 = vmatprep.mubr.f32.mxu0 0.0
      %6316 = vmatmul.mubr.f32.gmra.mrb[0].mxu0 %v6249
      %v6317 = vpop.f32.mrb[0].mxu0
      %v6318 = vadd.f32 0.0, %v6317
      %v6319 = vpop.f32.mrb[0].mxu0
      %6320 = vdwg.mxu0
      %v6322 = vsel %vm220, %v2738, 0
      %6324 = vmatprep.subr.mxu0 0.0
      %6325 = vmatpush1.msra.mxu0 %v3764
      %6326 = vmatprep.subr.mxu0 0.0
      %6327 = vmatpush1.msra.mxu0 %v3765
      %6328 = vmatprep.subr.mxu0 0.0
      %6329 = vmatpush1.msra.mxu0 0.0
      %6330 = vmatprep.subr.mxu0 0.0
      %6331 = vmatpush1.msra.mxu0 0.0
      %6332 = vmatprep.subr.mxu0 0.0
      %6333 = vmatpush1.msra.mxu0 0.0
      %6334 = vmatprep.subr.mxu0 0.0
      %6335 = vmatpush1.msra.mxu0 0.0
      %6336 = vmatprep.subr.mxu0 0.0
      %6337 = vmatpush1.msra.mxu0 0.0
      %6338 = vmatprep.subr.mxu0 0.0
      %6339 = vmatpush1.msra.mxu0 0.0
      %6340 = vmatprep.subr.mxu0 0.0
      %6341 = vmatpush1.msra.mxu0 0.0
      %6342 = vmatprep.subr.mxu0 0.0
      %6343 = vmatpush1.msra.mxu0 0.0
      %6344 = vmatprep.subr.mxu0 0.0
      %6345 = vmatpush1.msra.mxu0 0.0
      %6346 = vmatprep.subr.mxu0 0.0
      %6347 = vmatpush1.msra.mxu0 0.0
      %6348 = vmatprep.subr.mxu0 0.0
      %6349 = vmatpush1.msra.mxu0 0.0
      %6350 = vmatprep.subr.mxu0 0.0
      %6351 = vmatpush1.msra.mxu0 0.0
      %6352 = vmatprep.subr.mxu0 0.0
      %6353 = vmatpush1.msra.mxu0 0.0
      %6354 = vmatprep.subr.mxu0 0.0
      %6355 = vmatpush1.msra.mxu0 0.0
      %6356 = vmatprep.subr.mxu0 0.0
      %6357 = vmatpush1.msra.mxu0 0.0
      %6358 = vmatprep.subr.mxu0 0.0
      %6359 = vmatpush1.msra.mxu0 0.0
      %6360 = vmatprep.subr.mxu0 0.0
      %6361 = vmatpush1.msra.mxu0 0.0
      %6362 = vmatprep.subr.mxu0 0.0
      %6363 = vmatpush1.msra.mxu0 0.0
      %6364 = vmatprep.subr.mxu0 0.0
      %6365 = vmatpush1.msra.mxu0 0.0
      %6366 = vmatprep.subr.mxu0 0.0
      %6367 = vmatpush1.msra.mxu0 0.0
      %6368 = vmatprep.subr.mxu0 0.0
      %6369 = vmatpush1.msra.mxu0 0.0
      %6370 = vmatprep.subr.mxu0 0.0
      %6371 = vmatpush1.msra.mxu0 0.0
      %6372 = vmatprep.subr.mxu0 0.0
      %6373 = vmatpush1.msra.mxu0 0.0
      %6374 = vmatprep.subr.mxu0 0.0
      %6375 = vmatpush1.msra.mxu0 0.0
      %6376 = vmatprep.subr.mxu0 0.0
      %6377 = vmatpush1.msra.mxu0 0.0
      %6378 = vmatprep.subr.mxu0 0.0
      %6379 = vmatpush1.msra.mxu0 0.0
      %6380 = vmatprep.subr.mxu0 0.0
      %6381 = vmatpush1.msra.mxu0 0.0
      %6382 = vmatprep.subr.mxu0 0.0
      %6383 = vmatpush1.msra.mxu0 0.0
      %6384 = vmatprep.subr.mxu0 0.0
      %6385 = vmatpush1.msra.mxu0 0.0
      %6386 = vmatprep.subr.mxu0 0.0
      %6387 = vmatpush1.msra.mxu0 0.0
      %6388 = vmatprep.mubr.f32.mxu0 0.0
      %6389 = vmatmul.mubr.f32.gmra.mrb[0].mxu0 %v6322
      %v6390 = vpop.f32.mrb[0].mxu0
      %v6391 = vadd.f32 0.0, %v6390
      %v6392 = vpop.f32.mrb[0].mxu0
      %6393 = vdwg.mxu0
      %v6395 = vsel %vm220, %v2823, 0
      %6397 = vmatprep.subr.mxu0 0.0
      %6398 = vmatpush1.msra.mxu0 %v3764
      %6399 = vmatprep.subr.mxu0 0.0
      %6400 = vmatpush1.msra.mxu0 %v3765
      %6401 = vmatprep.subr.mxu0 0.0
      %6402 = vmatpush1.msra.mxu0 0.0
      %6403 = vmatprep.subr.mxu0 0.0
      %6404 = vmatpush1.msra.mxu0 0.0
      %6405 = vmatprep.subr.mxu0 0.0
      %6406 = vmatpush1.msra.mxu0 0.0
      %6407 = vmatprep.subr.mxu0 0.0
      %6408 = vmatpush1.msra.mxu0 0.0
      %6409 = vmatprep.subr.mxu0 0.0
      %6410 = vmatpush1.msra.mxu0 0.0
      %6411 = vmatprep.subr.mxu0 0.0
      %6412 = vmatpush1.msra.mxu0 0.0
      %6413 = vmatprep.subr.mxu0 0.0
      %6414 = vmatpush1.msra.mxu0 0.0
      %6415 = vmatprep.subr.mxu0 0.0
      %6416 = vmatpush1.msra.mxu0 0.0
      %6417 = vmatprep.subr.mxu0 0.0
      %6418 = vmatpush1.msra.mxu0 0.0
      %6419 = vmatprep.subr.mxu0 0.0
      %6420 = vmatpush1.msra.mxu0 0.0
      %6421 = vmatprep.subr.mxu0 0.0
      %6422 = vmatpush1.msra.mxu0 0.0
      %6423 = vmatprep.subr.mxu0 0.0
      %6424 = vmatpush1.msra.mxu0 0.0
      %6425 = vmatprep.subr.mxu0 0.0
      %6426 = vmatpush1.msra.mxu0 0.0
      %6427 = vmatprep.subr.mxu0 0.0
      %6428 = vmatpush1.msra.mxu0 0.0
      %6429 = vmatprep.subr.mxu0 0.0
      %6430 = vmatpush1.msra.mxu0 0.0
      %6431 = vmatprep.subr.mxu0 0.0
      %6432 = vmatpush1.msra.mxu0 0.0
      %6433 = vmatprep.subr.mxu0 0.0
      %6434 = vmatpush1.msra.mxu0 0.0
      %6435 = vmatprep.subr.mxu0 0.0
      %6436 = vmatpush1.msra.mxu0 0.0
      %6437 = vmatprep.subr.mxu0 0.0
      %6438 = vmatpush1.msra.mxu0 0.0
      %6439 = vmatprep.subr.mxu0 0.0
      %6440 = vmatpush1.msra.mxu0 0.0
      %6441 = vmatprep.subr.mxu0 0.0
      %6442 = vmatpush1.msra.mxu0 0.0
      %6443 = vmatprep.subr.mxu0 0.0
      %6444 = vmatpush1.msra.mxu0 0.0
      %6445 = vmatprep.subr.mxu0 0.0
      %6446 = vmatpush1.msra.mxu0 0.0
      %6447 = vmatprep.subr.mxu0 0.0
      %6448 = vmatpush1.msra.mxu0 0.0
      %6449 = vmatprep.subr.mxu0 0.0
      %6450 = vmatpush1.msra.mxu0 0.0
      %6451 = vmatprep.subr.mxu0 0.0
      %6452 = vmatpush1.msra.mxu0 0.0
      %6453 = vmatprep.subr.mxu0 0.0
      %6454 = vmatpush1.msra.mxu0 0.0
      %6455 = vmatprep.subr.mxu0 0.0
      %6456 = vmatpush1.msra.mxu0 0.0
      %6457 = vmatprep.subr.mxu0 0.0
      %6458 = vmatpush1.msra.mxu0 0.0
      %6459 = vmatprep.subr.mxu0 0.0
      %6460 = vmatpush1.msra.mxu0 0.0
      %6461 = vmatprep.mubr.f32.mxu0 0.0
      %6462 = vmatmul.mubr.f32.gmra.mrb[0].mxu0 %v6395
      %v6463 = vpop.f32.mrb[0].mxu0
      %v6464 = vadd.f32 0.0, %v6463
      %v6465 = vpop.f32.mrb[0].mxu0
      %6466 = vdwg.mxu0
      %v6468 = vsel %vm220, %v2908, 0
      %6470 = vmatprep.subr.mxu0 0.0
      %6471 = vmatpush1.msra.mxu0 %v3764
      %6472 = vmatprep.subr.mxu0 0.0
      %6473 = vmatpush1.msra.mxu0 %v3765
      %6474 = vmatprep.subr.mxu0 0.0
      %6475 = vmatpush1.msra.mxu0 0.0
      %6476 = vmatprep.subr.mxu0 0.0
      %6477 = vmatpush1.msra.mxu0 0.0
      %6478 = vmatprep.subr.mxu0 0.0
      %6479 = vmatpush1.msra.mxu0 0.0
      %6480 = vmatprep.subr.mxu0 0.0
      %6481 = vmatpush1.msra.mxu0 0.0
      %6482 = vmatprep.subr.mxu0 0.0
      %6483 = vmatpush1.msra.mxu0 0.0
      %6484 = vmatprep.subr.mxu0 0.0
      %6485 = vmatpush1.msra.mxu0 0.0
      %6486 = vmatprep.subr.mxu0 0.0
      %6487 = vmatpush1.msra.mxu0 0.0
      %6488 = vmatprep.subr.mxu0 0.0
      %6489 = vmatpush1.msra.mxu0 0.0
      %6490 = vmatprep.subr.mxu0 0.0
      %6491 = vmatpush1.msra.mxu0 0.0
      %6492 = vmatprep.subr.mxu0 0.0
      %6493 = vmatpush1.msra.mxu0 0.0
      %6494 = vmatprep.subr.mxu0 0.0
      %6495 = vmatpush1.msra.mxu0 0.0
      %6496 = vmatprep.subr.mxu0 0.0
      %6497 = vmatpush1.msra.mxu0 0.0
      %6498 = vmatprep.subr.mxu0 0.0
      %6499 = vmatpush1.msra.mxu0 0.0
      %6500 = vmatprep.subr.mxu0 0.0
      %6501 = vmatpush1.msra.mxu0 0.0
      %6502 = vmatprep.subr.mxu0 0.0
      %6503 = vmatpush1.msra.mxu0 0.0
      %6504 = vmatprep.subr.mxu0 0.0
      %6505 = vmatpush1.msra.mxu0 0.0
      %6506 = vmatprep.subr.mxu0 0.0
      %6507 = vmatpush1.msra.mxu0 0.0
      %6508 = vmatprep.subr.mxu0 0.0
      %6509 = vmatpush1.msra.mxu0 0.0
      %6510 = vmatprep.subr.mxu0 0.0
      %6511 = vmatpush1.msra.mxu0 0.0
      %6512 = vmatprep.subr.mxu0 0.0
      %6513 = vmatpush1.msra.mxu0 0.0
      %6514 = vmatprep.subr.mxu0 0.0
      %6515 = vmatpush1.msra.mxu0 0.0
      %6516 = vmatprep.subr.mxu0 0.0
      %6517 = vmatpush1.msra.mxu0 0.0
      %6518 = vmatprep.subr.mxu0 0.0
      %6519 = vmatpush1.msra.mxu0 0.0
      %6520 = vmatprep.subr.mxu0 0.0
      %6521 = vmatpush1.msra.mxu0 0.0
      %6522 = vmatprep.subr.mxu0 0.0
      %6523 = vmatpush1.msra.mxu0 0.0
      %6524 = vmatprep.subr.mxu0 0.0
      %6525 = vmatpush1.msra.mxu0 0.0
      %6526 = vmatprep.subr.mxu0 0.0
      %6527 = vmatpush1.msra.mxu0 0.0
      %6528 = vmatprep.subr.mxu0 0.0
      %6529 = vmatpush1.msra.mxu0 0.0
      %6530 = vmatprep.subr.mxu0 0.0
      %6531 = vmatpush1.msra.mxu0 0.0
      %6532 = vmatprep.subr.mxu0 0.0
      %6533 = vmatpush1.msra.mxu0 0.0
      %6534 = vmatprep.mubr.f32.mxu0 0.0
      %6535 = vmatmul.mubr.f32.gmra.mrb[0].mxu0 %v6468
      %v6536 = vpop.f32.mrb[0].mxu0
      %v6537 = vadd.f32 0.0, %v6536
      %v6538 = vpop.f32.mrb[0].mxu0
      %6539 = vdwg.mxu0
      %v6541 = vsel %vm220, %v2993, 0
      %6543 = vmatprep.subr.mxu0 0.0
      %6544 = vmatpush1.msra.mxu0 %v3764
      %6545 = vmatprep.subr.mxu0 0.0
      %6546 = vmatpush1.msra.mxu0 %v3765
      %6547 = vmatprep.subr.mxu0 0.0
      %6548 = vmatpush1.msra.mxu0 0.0
      %6549 = vmatprep.subr.mxu0 0.0
      %6550 = vmatpush1.msra.mxu0 0.0
      %6551 = vmatprep.subr.mxu0 0.0
      %6552 = vmatpush1.msra.mxu0 0.0
      %6553 = vmatprep.subr.mxu0 0.0
      %6554 = vmatpush1.msra.mxu0 0.0
      %6555 = vmatprep.subr.mxu0 0.0
      %6556 = vmatpush1.msra.mxu0 0.0
      %6557 = vmatprep.subr.mxu0 0.0
      %6558 = vmatpush1.msra.mxu0 0.0
      %6559 = vmatprep.subr.mxu0 0.0
      %6560 = vmatpush1.msra.mxu0 0.0
      %6561 = vmatprep.subr.mxu0 0.0
      %6562 = vmatpush1.msra.mxu0 0.0
      %6563 = vmatprep.subr.mxu0 0.0
      %6564 = vmatpush1.msra.mxu0 0.0
      %6565 = vmatprep.subr.mxu0 0.0
      %6566 = vmatpush1.msra.mxu0 0.0
      %6567 = vmatprep.subr.mxu0 0.0
      %6568 = vmatpush1.msra.mxu0 0.0
      %6569 = vmatprep.subr.mxu0 0.0
      %6570 = vmatpush1.msra.mxu0 0.0
      %6571 = vmatprep.subr.mxu0 0.0
      %6572 = vmatpush1.msra.mxu0 0.0
      %6573 = vmatprep.subr.mxu0 0.0
      %6574 = vmatpush1.msra.mxu0 0.0
      %6575 = vmatprep.subr.mxu0 0.0
      %6576 = vmatpush1.msra.mxu0 0.0
      %6577 = vmatprep.subr.mxu0 0.0
      %6578 = vmatpush1.msra.mxu0 0.0
      %6579 = vmatprep.subr.mxu0 0.0
      %6580 = vmatpush1.msra.mxu0 0.0
      %6581 = vmatprep.subr.mxu0 0.0
      %6582 = vmatpush1.msra.mxu0 0.0
      %6583 = vmatprep.subr.mxu0 0.0
      %6584 = vmatpush1.msra.mxu0 0.0
      %6585 = vmatprep.subr.mxu0 0.0
      %6586 = vmatpush1.msra.mxu0 0.0
      %6587 = vmatprep.subr.mxu0 0.0
      %6588 = vmatpush1.msra.mxu0 0.0
      %6589 = vmatprep.subr.mxu0 0.0
      %6590 = vmatpush1.msra.mxu0 0.0
      %6591 = vmatprep.subr.mxu0 0.0
      %6592 = vmatpush1.msra.mxu0 0.0
      %6593 = vmatprep.subr.mxu0 0.0
      %6594 = vmatpush1.msra.mxu0 0.0
      %6595 = vmatprep.subr.mxu0 0.0
      %6596 = vmatpush1.msra.mxu0 0.0
      %6597 = vmatprep.subr.mxu0 0.0
      %6598 = vmatpush1.msra.mxu0 0.0
      %6599 = vmatprep.subr.mxu0 0.0
      %6600 = vmatpush1.msra.mxu0 0.0
      %6601 = vmatprep.subr.mxu0 0.0
      %6602 = vmatpush1.msra.mxu0 0.0
      %6603 = vmatprep.subr.mxu0 0.0
      %6604 = vmatpush1.msra.mxu0 0.0
      %6605 = vmatprep.subr.mxu0 0.0
      %6606 = vmatpush1.msra.mxu0 0.0
      %6607 = vmatprep.mubr.f32.mxu0 0.0
      %6608 = vmatmul.mubr.f32.gmra.mrb[0].mxu0 %v6541
      %v6609 = vpop.f32.mrb[0].mxu0
      %v6610 = vadd.f32 0.0, %v6609
      %v6611 = vpop.f32.mrb[0].mxu0
      %6612 = vdwg.mxu0
      %v6614 = vsel %vm220, %v3078, 0
      %6616 = vmatprep.subr.mxu0 0.0
      %6617 = vmatpush1.msra.mxu0 %v3764
      %6618 = vmatprep.subr.mxu0 0.0
      %6619 = vmatpush1.msra.mxu0 %v3765
      %6620 = vmatprep.subr.mxu0 0.0
      %6621 = vmatpush1.msra.mxu0 0.0
      %6622 = vmatprep.subr.mxu0 0.0
      %6623 = vmatpush1.msra.mxu0 0.0
      %6624 = vmatprep.subr.mxu0 0.0
      %6625 = vmatpush1.msra.mxu0 0.0
      %6626 = vmatprep.subr.mxu0 0.0
      %6627 = vmatpush1.msra.mxu0 0.0
      %6628 = vmatprep.subr.mxu0 0.0
      %6629 = vmatpush1.msra.mxu0 0.0
      %6630 = vmatprep.subr.mxu0 0.0
      %6631 = vmatpush1.msra.mxu0 0.0
      %6632 = vmatprep.subr.mxu0 0.0
      %6633 = vmatpush1.msra.mxu0 0.0
      %6634 = vmatprep.subr.mxu0 0.0
      %6635 = vmatpush1.msra.mxu0 0.0
      %6636 = vmatprep.subr.mxu0 0.0
      %6637 = vmatpush1.msra.mxu0 0.0
      %6638 = vmatprep.subr.mxu0 0.0
      %6639 = vmatpush1.msra.mxu0 0.0
      %6640 = vmatprep.subr.mxu0 0.0
      %6641 = vmatpush1.msra.mxu0 0.0
      %6642 = vmatprep.subr.mxu0 0.0
      %6643 = vmatpush1.msra.mxu0 0.0
      %6644 = vmatprep.subr.mxu0 0.0
      %6645 = vmatpush1.msra.mxu0 0.0
      %6646 = vmatprep.subr.mxu0 0.0
      %6647 = vmatpush1.msra.mxu0 0.0
      %6648 = vmatprep.subr.mxu0 0.0
      %6649 = vmatpush1.msra.mxu0 0.0
      %6650 = vmatprep.subr.mxu0 0.0
      %6651 = vmatpush1.msra.mxu0 0.0
      %6652 = vmatprep.subr.mxu0 0.0
      %6653 = vmatpush1.msra.mxu0 0.0
      %6654 = vmatprep.subr.mxu0 0.0
      %6655 = vmatpush1.msra.mxu0 0.0
      %6656 = vmatprep.subr.mxu0 0.0
      %6657 = vmatpush1.msra.mxu0 0.0
      %6658 = vmatprep.subr.mxu0 0.0
      %6659 = vmatpush1.msra.mxu0 0.0
      %6660 = vmatprep.subr.mxu0 0.0
      %6661 = vmatpush1.msra.mxu0 0.0
      %6662 = vmatprep.subr.mxu0 0.0
      %6663 = vmatpush1.msra.mxu0 0.0
      %6664 = vmatprep.subr.mxu0 0.0
      %6665 = vmatpush1.msra.mxu0 0.0
      %6666 = vmatprep.subr.mxu0 0.0
      %6667 = vmatpush1.msra.mxu0 0.0
      %6668 = vmatprep.subr.mxu0 0.0
      %6669 = vmatpush1.msra.mxu0 0.0
      %6670 = vmatprep.subr.mxu0 0.0
      %6671 = vmatpush1.msra.mxu0 0.0
      %6672 = vmatprep.subr.mxu0 0.0
      %6673 = vmatpush1.msra.mxu0 0.0
      %6674 = vmatprep.subr.mxu0 0.0
      %6675 = vmatpush1.msra.mxu0 0.0
      %6676 = vmatprep.subr.mxu0 0.0
      %6677 = vmatpush1.msra.mxu0 0.0
      %6678 = vmatprep.subr.mxu0 0.0
      %6679 = vmatpush1.msra.mxu0 0.0
      %6680 = vmatprep.mubr.f32.mxu0 0.0
      %6681 = vmatmul.mubr.f32.gmra.mrb[0].mxu0 %v6614
      %v6682 = vpop.f32.mrb[0].mxu0
      %v6683 = vadd.f32 0.0, %v6682
      %v6684 = vpop.f32.mrb[0].mxu0
      %6685 = vdwg.mxu0
      %v6687 = vsel %vm220, %v3163, 0
      %6689 = vmatprep.subr.mxu0 0.0
      %6690 = vmatpush1.msra.mxu0 %v3764
      %6691 = vmatprep.subr.mxu0 0.0
      %6692 = vmatpush1.msra.mxu0 %v3765
      %6693 = vmatprep.subr.mxu0 0.0
      %6694 = vmatpush1.msra.mxu0 0.0
      %6695 = vmatprep.subr.mxu0 0.0
      %6696 = vmatpush1.msra.mxu0 0.0
      %6697 = vmatprep.subr.mxu0 0.0
      %6698 = vmatpush1.msra.mxu0 0.0
      %6699 = vmatprep.subr.mxu0 0.0
      %6700 = vmatpush1.msra.mxu0 0.0
      %6701 = vmatprep.subr.mxu0 0.0
      %6702 = vmatpush1.msra.mxu0 0.0
      %6703 = vmatprep.subr.mxu0 0.0
      %6704 = vmatpush1.msra.mxu0 0.0
      %6705 = vmatprep.subr.mxu0 0.0
      %6706 = vmatpush1.msra.mxu0 0.0
      %6707 = vmatprep.subr.mxu0 0.0
      %6708 = vmatpush1.msra.mxu0 0.0
      %6709 = vmatprep.subr.mxu0 0.0
      %6710 = vmatpush1.msra.mxu0 0.0
      %6711 = vmatprep.subr.mxu0 0.0
      %6712 = vmatpush1.msra.mxu0 0.0
      %6713 = vmatprep.subr.mxu0 0.0
      %6714 = vmatpush1.msra.mxu0 0.0
      %6715 = vmatprep.subr.mxu0 0.0
      %6716 = vmatpush1.msra.mxu0 0.0
      %6717 = vmatprep.subr.mxu0 0.0
      %6718 = vmatpush1.msra.mxu0 0.0
      %6719 = vmatprep.subr.mxu0 0.0
      %6720 = vmatpush1.msra.mxu0 0.0
      %6721 = vmatprep.subr.mxu0 0.0
      %6722 = vmatpush1.msra.mxu0 0.0
      %6723 = vmatprep.subr.mxu0 0.0
      %6724 = vmatpush1.msra.mxu0 0.0
      %6725 = vmatprep.subr.mxu0 0.0
      %6726 = vmatpush1.msra.mxu0 0.0
      %6727 = vmatprep.subr.mxu0 0.0
      %6728 = vmatpush1.msra.mxu0 0.0
      %6729 = vmatprep.subr.mxu0 0.0
      %6730 = vmatpush1.msra.mxu0 0.0
      %6731 = vmatprep.subr.mxu0 0.0
      %6732 = vmatpush1.msra.mxu0 0.0
      %6733 = vmatprep.subr.mxu0 0.0
      %6734 = vmatpush1.msra.mxu0 0.0
      %6735 = vmatprep.subr.mxu0 0.0
      %6736 = vmatpush1.msra.mxu0 0.0
      %6737 = vmatprep.subr.mxu0 0.0
      %6738 = vmatpush1.msra.mxu0 0.0
      %6739 = vmatprep.subr.mxu0 0.0
      %6740 = vmatpush1.msra.mxu0 0.0
      %6741 = vmatprep.subr.mxu0 0.0
      %6742 = vmatpush1.msra.mxu0 0.0
      %6743 = vmatprep.subr.mxu0 0.0
      %6744 = vmatpush1.msra.mxu0 0.0
      %6745 = vmatprep.subr.mxu0 0.0
      %6746 = vmatpush1.msra.mxu0 0.0
      %6747 = vmatprep.subr.mxu0 0.0
      %6748 = vmatpush1.msra.mxu0 0.0
      %6749 = vmatprep.subr.mxu0 0.0
      %6750 = vmatpush1.msra.mxu0 0.0
      %6751 = vmatprep.subr.mxu0 0.0
      %6752 = vmatpush1.msra.mxu0 0.0
      %6753 = vmatprep.mubr.f32.mxu0 0.0
      %6754 = vmatmul.mubr.f32.gmra.mrb[0].mxu0 %v6687
      %v6755 = vpop.f32.mrb[0].mxu0
      %v6756 = vadd.f32 0.0, %v6755
      %v6757 = vpop.f32.mrb[0].mxu0
      %6758 = vdwg.mxu0
      %v6760 = vsel %vm220, %v3248, 0
      %6762 = vmatprep.subr.mxu0 0.0
      %6763 = vmatpush1.msra.mxu0 %v3764
      %6764 = vmatprep.subr.mxu0 0.0
      %6765 = vmatpush1.msra.mxu0 %v3765
      %6766 = vmatprep.subr.mxu0 0.0
      %6767 = vmatpush1.msra.mxu0 0.0
      %6768 = vmatprep.subr.mxu0 0.0
      %6769 = vmatpush1.msra.mxu0 0.0
      %6770 = vmatprep.subr.mxu0 0.0
      %6771 = vmatpush1.msra.mxu0 0.0
      %6772 = vmatprep.subr.mxu0 0.0
      %6773 = vmatpush1.msra.mxu0 0.0
      %6774 = vmatprep.subr.mxu0 0.0
      %6775 = vmatpush1.msra.mxu0 0.0
      %6776 = vmatprep.subr.mxu0 0.0
      %6777 = vmatpush1.msra.mxu0 0.0
      %6778 = vmatprep.subr.mxu0 0.0
      %6779 = vmatpush1.msra.mxu0 0.0
      %6780 = vmatprep.subr.mxu0 0.0
      %6781 = vmatpush1.msra.mxu0 0.0
      %6782 = vmatprep.subr.mxu0 0.0
      %6783 = vmatpush1.msra.mxu0 0.0
      %6784 = vmatprep.subr.mxu0 0.0
      %6785 = vmatpush1.msra.mxu0 0.0
      %6786 = vmatprep.subr.mxu0 0.0
      %6787 = vmatpush1.msra.mxu0 0.0
      %6788 = vmatprep.subr.mxu0 0.0
      %6789 = vmatpush1.msra.mxu0 0.0
      %6790 = vmatprep.subr.mxu0 0.0
      %6791 = vmatpush1.msra.mxu0 0.0
      %6792 = vmatprep.subr.mxu0 0.0
      %6793 = vmatpush1.msra.mxu0 0.0
      %6794 = vmatprep.subr.mxu0 0.0
      %6795 = vmatpush1.msra.mxu0 0.0
      %6796 = vmatprep.subr.mxu0 0.0
      %6797 = vmatpush1.msra.mxu0 0.0
      %6798 = vmatprep.subr.mxu0 0.0
      %6799 = vmatpush1.msra.mxu0 0.0
      %6800 = vmatprep.subr.mxu0 0.0
      %6801 = vmatpush1.msra.mxu0 0.0
      %6802 = vmatprep.subr.mxu0 0.0
      %6803 = vmatpush1.msra.mxu0 0.0
      %6804 = vmatprep.subr.mxu0 0.0
      %6805 = vmatpush1.msra.mxu0 0.0
      %6806 = vmatprep.subr.mxu0 0.0
      %6807 = vmatpush1.msra.mxu0 0.0
      %6808 = vmatprep.subr.mxu0 0.0
      %6809 = vmatpush1.msra.mxu0 0.0
      %6810 = vmatprep.subr.mxu0 0.0
      %6811 = vmatpush1.msra.mxu0 0.0
      %6812 = vmatprep.subr.mxu0 0.0
      %6813 = vmatpush1.msra.mxu0 0.0
      %6814 = vmatprep.subr.mxu0 0.0
      %6815 = vmatpush1.msra.mxu0 0.0
      %6816 = vmatprep.subr.mxu0 0.0
      %6817 = vmatpush1.msra.mxu0 0.0
      %6818 = vmatprep.subr.mxu0 0.0
      %6819 = vmatpush1.msra.mxu0 0.0
      %6820 = vmatprep.subr.mxu0 0.0
      %6821 = vmatpush1.msra.mxu0 0.0
      %6822 = vmatprep.subr.mxu0 0.0
      %6823 = vmatpush1.msra.mxu0 0.0
      %6824 = vmatprep.subr.mxu0 0.0
      %6825 = vmatpush1.msra.mxu0 0.0
      %6826 = vmatprep.mubr.f32.mxu0 0.0
      %6827 = vmatmul.mubr.f32.gmra.mrb[0].mxu0 %v6760
      %v6828 = vpop.f32.mrb[0].mxu0
      %v6829 = vadd.f32 0.0, %v6828
      %v6830 = vpop.f32.mrb[0].mxu0
      %6831 = vdwg.mxu0
      %v6833 = vsel %vm220, %v3333, 0
      %6835 = vmatprep.subr.mxu0 0.0
      %6836 = vmatpush1.msra.mxu0 %v3764
      %6837 = vmatprep.subr.mxu0 0.0
      %6838 = vmatpush1.msra.mxu0 %v3765
      %6839 = vmatprep.subr.mxu0 0.0
      %6840 = vmatpush1.msra.mxu0 0.0
      %6841 = vmatprep.subr.mxu0 0.0
      %6842 = vmatpush1.msra.mxu0 0.0
      %6843 = vmatprep.subr.mxu0 0.0
      %6844 = vmatpush1.msra.mxu0 0.0
      %6845 = vmatprep.subr.mxu0 0.0
      %6846 = vmatpush1.msra.mxu0 0.0
      %6847 = vmatprep.subr.mxu0 0.0
      %6848 = vmatpush1.msra.mxu0 0.0
      %6849 = vmatprep.subr.mxu0 0.0
      %6850 = vmatpush1.msra.mxu0 0.0
      %6851 = vmatprep.subr.mxu0 0.0
      %6852 = vmatpush1.msra.mxu0 0.0
      %6853 = vmatprep.subr.mxu0 0.0
      %6854 = vmatpush1.msra.mxu0 0.0
      %6855 = vmatprep.subr.mxu0 0.0
      %6856 = vmatpush1.msra.mxu0 0.0
      %6857 = vmatprep.subr.mxu0 0.0
      %6858 = vmatpush1.msra.mxu0 0.0
      %6859 = vmatprep.subr.mxu0 0.0
      %6860 = vmatpush1.msra.mxu0 0.0
      %6861 = vmatprep.subr.mxu0 0.0
      %6862 = vmatpush1.msra.mxu0 0.0
      %6863 = vmatprep.subr.mxu0 0.0
      %6864 = vmatpush1.msra.mxu0 0.0
      %6865 = vmatprep.subr.mxu0 0.0
      %6866 = vmatpush1.msra.mxu0 0.0
      %6867 = vmatprep.subr.mxu0 0.0
      %6868 = vmatpush1.msra.mxu0 0.0
      %6869 = vmatprep.subr.mxu0 0.0
      %6870 = vmatpush1.msra.mxu0 0.0
      %6871 = vmatprep.subr.mxu0 0.0
      %6872 = vmatpush1.msra.mxu0 0.0
      %6873 = vmatprep.subr.mxu0 0.0
      %6874 = vmatpush1.msra.mxu0 0.0
      %6875 = vmatprep.subr.mxu0 0.0
      %6876 = vmatpush1.msra.mxu0 0.0
      %6877 = vmatprep.subr.mxu0 0.0
      %6878 = vmatpush1.msra.mxu0 0.0
      %6879 = vmatprep.subr.mxu0 0.0
      %6880 = vmatpush1.msra.mxu0 0.0
      %6881 = vmatprep.subr.mxu0 0.0
      %6882 = vmatpush1.msra.mxu0 0.0
      %6883 = vmatprep.subr.mxu0 0.0
      %6884 = vmatpush1.msra.mxu0 0.0
      %6885 = vmatprep.subr.mxu0 0.0
      %6886 = vmatpush1.msra.mxu0 0.0
      %6887 = vmatprep.subr.mxu0 0.0
      %6888 = vmatpush1.msra.mxu0 0.0
      %6889 = vmatprep.subr.mxu0 0.0
      %6890 = vmatpush1.msra.mxu0 0.0
      %6891 = vmatprep.subr.mxu0 0.0
      %6892 = vmatpush1.msra.mxu0 0.0
      %6893 = vmatprep.subr.mxu0 0.0
      %6894 = vmatpush1.msra.mxu0 0.0
      %6895 = vmatprep.subr.mxu0 0.0
      %6896 = vmatpush1.msra.mxu0 0.0
      %6897 = vmatprep.subr.mxu0 0.0
      %6898 = vmatpush1.msra.mxu0 0.0
      %6899 = vmatprep.mubr.f32.mxu0 0.0
      %6900 = vmatmul.mubr.f32.gmra.mrb[0].mxu0 %v6833
      %v6901 = vpop.f32.mrb[0].mxu0
      %v6902 = vadd.f32 0.0, %v6901
      %v6903 = vpop.f32.mrb[0].mxu0
      %6904 = vdwg.mxu0
      %v6906 = vsel %vm220, %v3418, 0
      %6908 = vmatprep.subr.mxu0 0.0
      %6909 = vmatpush1.msra.mxu0 %v3764
      %6910 = vmatprep.subr.mxu0 0.0
      %6911 = vmatpush1.msra.mxu0 %v3765
      %6912 = vmatprep.subr.mxu0 0.0
      %6913 = vmatpush1.msra.mxu0 0.0
      %6914 = vmatprep.subr.mxu0 0.0
      %6915 = vmatpush1.msra.mxu0 0.0
      %6916 = vmatprep.subr.mxu0 0.0
      %6917 = vmatpush1.msra.mxu0 0.0
      %6918 = vmatprep.subr.mxu0 0.0
      %6919 = vmatpush1.msra.mxu0 0.0
      %6920 = vmatprep.subr.mxu0 0.0
      %6921 = vmatpush1.msra.mxu0 0.0
      %6922 = vmatprep.subr.mxu0 0.0
      %6923 = vmatpush1.msra.mxu0 0.0
      %6924 = vmatprep.subr.mxu0 0.0
      %6925 = vmatpush1.msra.mxu0 0.0
      %6926 = vmatprep.subr.mxu0 0.0
      %6927 = vmatpush1.msra.mxu0 0.0
      %6928 = vmatprep.subr.mxu0 0.0
      %6929 = vmatpush1.msra.mxu0 0.0
      %6930 = vmatprep.subr.mxu0 0.0
      %6931 = vmatpush1.msra.mxu0 0.0
      %6932 = vmatprep.subr.mxu0 0.0
      %6933 = vmatpush1.msra.mxu0 0.0
      %6934 = vmatprep.subr.mxu0 0.0
      %6935 = vmatpush1.msra.mxu0 0.0
      %6936 = vmatprep.subr.mxu0 0.0
      %6937 = vmatpush1.msra.mxu0 0.0
      %6938 = vmatprep.subr.mxu0 0.0
      %6939 = vmatpush1.msra.mxu0 0.0
      %6940 = vmatprep.subr.mxu0 0.0
      %6941 = vmatpush1.msra.mxu0 0.0
      %6942 = vmatprep.subr.mxu0 0.0
      %6943 = vmatpush1.msra.mxu0 0.0
      %6944 = vmatprep.subr.mxu0 0.0
      %6945 = vmatpush1.msra.mxu0 0.0
      %6946 = vmatprep.subr.mxu0 0.0
      %6947 = vmatpush1.msra.mxu0 0.0
      %6948 = vmatprep.subr.mxu0 0.0
      %6949 = vmatpush1.msra.mxu0 0.0
      %6950 = vmatprep.subr.mxu0 0.0
      %6951 = vmatpush1.msra.mxu0 0.0
      %6952 = vmatprep.subr.mxu0 0.0
      %6953 = vmatpush1.msra.mxu0 0.0
      %6954 = vmatprep.subr.mxu0 0.0
      %6955 = vmatpush1.msra.mxu0 0.0
      %6956 = vmatprep.subr.mxu0 0.0
      %6957 = vmatpush1.msra.mxu0 0.0
      %6958 = vmatprep.subr.mxu0 0.0
      %6959 = vmatpush1.msra.mxu0 0.0
      %6960 = vmatprep.subr.mxu0 0.0
      %6961 = vmatpush1.msra.mxu0 0.0
      %6962 = vmatprep.subr.mxu0 0.0
      %6963 = vmatpush1.msra.mxu0 0.0
      %6964 = vmatprep.subr.mxu0 0.0
      %6965 = vmatpush1.msra.mxu0 0.0
      %6966 = vmatprep.subr.mxu0 0.0
      %6967 = vmatpush1.msra.mxu0 0.0
      %6968 = vmatprep.subr.mxu0 0.0
      %6969 = vmatpush1.msra.mxu0 0.0
      %6970 = vmatprep.subr.mxu0 0.0
      %6971 = vmatpush1.msra.mxu0 0.0
      %6972 = vmatprep.mubr.f32.mxu0 0.0
      %6973 = vmatmul.mubr.f32.gmra.mrb[0].mxu0 %v6906
      %v6974 = vpop.f32.mrb[0].mxu0
      %v6975 = vadd.f32 0.0, %v6974
      %v6976 = vpop.f32.mrb[0].mxu0
      %6977 = vdwg.mxu0
      %v6979 = vsel %vm220, %v3503, 0
      %6981 = vmatprep.subr.mxu0 0.0
      %6982 = vmatpush1.msra.mxu0 %v3764
      %6983 = vmatprep.subr.mxu0 0.0
      %6984 = vmatpush1.msra.mxu0 %v3765
      %6985 = vmatprep.subr.mxu0 0.0
      %6986 = vmatpush1.msra.mxu0 0.0
      %6987 = vmatprep.subr.mxu0 0.0
      %6988 = vmatpush1.msra.mxu0 0.0
      %6989 = vmatprep.subr.mxu0 0.0
      %6990 = vmatpush1.msra.mxu0 0.0
      %6991 = vmatprep.subr.mxu0 0.0
      %6992 = vmatpush1.msra.mxu0 0.0
      %6993 = vmatprep.subr.mxu0 0.0
      %6994 = vmatpush1.msra.mxu0 0.0
      %6995 = vmatprep.subr.mxu0 0.0
      %6996 = vmatpush1.msra.mxu0 0.0
      %6997 = vmatprep.subr.mxu0 0.0
      %6998 = vmatpush1.msra.mxu0 0.0
      %6999 = vmatprep.subr.mxu0 0.0
      %7000 = vmatpush1.msra.mxu0 0.0
      %7001 = vmatprep.subr.mxu0 0.0
      %7002 = vmatpush1.msra.mxu0 0.0
      %7003 = vmatprep.subr.mxu0 0.0
      %7004 = vmatpush1.msra.mxu0 0.0
      %7005 = vmatprep.subr.mxu0 0.0
      %7006 = vmatpush1.msra.mxu0 0.0
      %7007 = vmatprep.subr.mxu0 0.0
      %7008 = vmatpush1.msra.mxu0 0.0
      %7009 = vmatprep.subr.mxu0 0.0
      %7010 = vmatpush1.msra.mxu0 0.0
      %7011 = vmatprep.subr.mxu0 0.0
      %7012 = vmatpush1.msra.mxu0 0.0
      %7013 = vmatprep.subr.mxu0 0.0
      %7014 = vmatpush1.msra.mxu0 0.0
      %7015 = vmatprep.subr.mxu0 0.0
      %7016 = vmatpush1.msra.mxu0 0.0
      %7017 = vmatprep.subr.mxu0 0.0
      %7018 = vmatpush1.msra.mxu0 0.0
      %7019 = vmatprep.subr.mxu0 0.0
      %7020 = vmatpush1.msra.mxu0 0.0
      %7021 = vmatprep.subr.mxu0 0.0
      %7022 = vmatpush1.msra.mxu0 0.0
      %7023 = vmatprep.subr.mxu0 0.0
      %7024 = vmatpush1.msra.mxu0 0.0
      %7025 = vmatprep.subr.mxu0 0.0
      %7026 = vmatpush1.msra.mxu0 0.0
      %7027 = vmatprep.subr.mxu0 0.0
      %7028 = vmatpush1.msra.mxu0 0.0
      %7029 = vmatprep.subr.mxu0 0.0
      %7030 = vmatpush1.msra.mxu0 0.0
      %7031 = vmatprep.subr.mxu0 0.0
      %7032 = vmatpush1.msra.mxu0 0.0
      %7033 = vmatprep.subr.mxu0 0.0
      %7034 = vmatpush1.msra.mxu0 0.0
      %7035 = vmatprep.subr.mxu0 0.0
      %7036 = vmatpush1.msra.mxu0 0.0
      %7037 = vmatprep.subr.mxu0 0.0
      %7038 = vmatpush1.msra.mxu0 0.0
      %7039 = vmatprep.subr.mxu0 0.0
      %7040 = vmatpush1.msra.mxu0 0.0
      %7041 = vmatprep.subr.mxu0 0.0
      %7042 = vmatpush1.msra.mxu0 0.0
      %7043 = vmatprep.subr.mxu0 0.0
      %7044 = vmatpush1.msra.mxu0 0.0
      %7045 = vmatprep.mubr.f32.mxu0 0.0
      %7046 = vmatmul.mubr.f32.gmra.mrb[0].mxu0 %v6979
      %v7047 = vpop.f32.mrb[0].mxu0
      %v7048 = vadd.f32 0.0, %v7047
      %v7049 = vpop.f32.mrb[0].mxu0
      %7050 = vdwg.mxu0
      %v7052 = vsel %vm220, %v3588, 0
      %7054 = vmatprep.subr.mxu0 0.0
      %7055 = vmatpush1.msra.mxu0 %v3764
      %7056 = vmatprep.subr.mxu0 0.0
      %7057 = vmatpush1.msra.mxu0 %v3765
      %7058 = vmatprep.subr.mxu0 0.0
      %7059 = vmatpush1.msra.mxu0 0.0
      %7060 = vmatprep.subr.mxu0 0.0
      %7061 = vmatpush1.msra.mxu0 0.0
      %7062 = vmatprep.subr.mxu0 0.0
      %7063 = vmatpush1.msra.mxu0 0.0
      %7064 = vmatprep.subr.mxu0 0.0
      %7065 = vmatpush1.msra.mxu0 0.0
      %7066 = vmatprep.subr.mxu0 0.0
      %7067 = vmatpush1.msra.mxu0 0.0
      %7068 = vmatprep.subr.mxu0 0.0
      %7069 = vmatpush1.msra.mxu0 0.0
      %7070 = vmatprep.subr.mxu0 0.0
      %7071 = vmatpush1.msra.mxu0 0.0
      %7072 = vmatprep.subr.mxu0 0.0
      %7073 = vmatpush1.msra.mxu0 0.0
      %7074 = vmatprep.subr.mxu0 0.0
      %7075 = vmatpush1.msra.mxu0 0.0
      %7076 = vmatprep.subr.mxu0 0.0
      %7077 = vmatpush1.msra.mxu0 0.0
      %7078 = vmatprep.subr.mxu0 0.0
      %7079 = vmatpush1.msra.mxu0 0.0
      %7080 = vmatprep.subr.mxu0 0.0
      %7081 = vmatpush1.msra.mxu0 0.0
      %7082 = vmatprep.subr.mxu0 0.0
      %7083 = vmatpush1.msra.mxu0 0.0
      %7084 = vmatprep.subr.mxu0 0.0
      %7085 = vmatpush1.msra.mxu0 0.0
      %7086 = vmatprep.subr.mxu0 0.0
      %7087 = vmatpush1.msra.mxu0 0.0
      %7088 = vmatprep.subr.mxu0 0.0
      %7089 = vmatpush1.msra.mxu0 0.0
      %7090 = vmatprep.subr.mxu0 0.0
      %7091 = vmatpush1.msra.mxu0 0.0
      %7092 = vmatprep.subr.mxu0 0.0
      %7093 = vmatpush1.msra.mxu0 0.0
      %7094 = vmatprep.subr.mxu0 0.0
      %7095 = vmatpush1.msra.mxu0 0.0
      %7096 = vmatprep.subr.mxu0 0.0
      %7097 = vmatpush1.msra.mxu0 0.0
      %7098 = vmatprep.subr.mxu0 0.0
      %7099 = vmatpush1.msra.mxu0 0.0
      %7100 = vmatprep.subr.mxu0 0.0
      %7101 = vmatpush1.msra.mxu0 0.0
      %7102 = vmatprep.subr.mxu0 0.0
      %7103 = vmatpush1.msra.mxu0 0.0
      %7104 = vmatprep.subr.mxu0 0.0
      %7105 = vmatpush1.msra.mxu0 0.0
      %7106 = vmatprep.subr.mxu0 0.0
      %7107 = vmatpush1.msra.mxu0 0.0
      %7108 = vmatprep.subr.mxu0 0.0
      %7109 = vmatpush1.msra.mxu0 0.0
      %7110 = vmatprep.subr.mxu0 0.0
      %7111 = vmatpush1.msra.mxu0 0.0
      %7112 = vmatprep.subr.mxu0 0.0
      %7113 = vmatpush1.msra.mxu0 0.0
      %7114 = vmatprep.subr.mxu0 0.0
      %7115 = vmatpush1.msra.mxu0 0.0
      %7116 = vmatprep.subr.mxu0 0.0
      %7117 = vmatpush1.msra.mxu0 0.0
      %7118 = vmatprep.mubr.f32.mxu0 0.0
      %7119 = vmatmul.mubr.f32.gmra.mrb[0].mxu0 %v7052
      %v7120 = vpop.f32.mrb[0].mxu0
      %v7121 = vadd.f32 0.0, %v7120
      %v7122 = vpop.f32.mrb[0].mxu0
      %7123 = vdwg.mxu0
      %v7125 = vsel %vm220, %v3673, 0
      %7127 = vmatprep.subr.mxu0 0.0
      %7128 = vmatpush1.msra.mxu0 %v3764
      %7129 = vmatprep.subr.mxu0 0.0
      %7130 = vmatpush1.msra.mxu0 %v3765
      %7131 = vmatprep.subr.mxu0 0.0
      %7132 = vmatpush1.msra.mxu0 0.0
      %7133 = vmatprep.subr.mxu0 0.0
      %7134 = vmatpush1.msra.mxu0 0.0
      %7135 = vmatprep.subr.mxu0 0.0
      %7136 = vmatpush1.msra.mxu0 0.0
      %7137 = vmatprep.subr.mxu0 0.0
      %7138 = vmatpush1.msra.mxu0 0.0
      %7139 = vmatprep.subr.mxu0 0.0
      %7140 = vmatpush1.msra.mxu0 0.0
      %7141 = vmatprep.subr.mxu0 0.0
      %7142 = vmatpush1.msra.mxu0 0.0
      %7143 = vmatprep.subr.mxu0 0.0
      %7144 = vmatpush1.msra.mxu0 0.0
      %7145 = vmatprep.subr.mxu0 0.0
      %7146 = vmatpush1.msra.mxu0 0.0
      %7147 = vmatprep.subr.mxu0 0.0
      %7148 = vmatpush1.msra.mxu0 0.0
      %7149 = vmatprep.subr.mxu0 0.0
      %7150 = vmatpush1.msra.mxu0 0.0
      %7151 = vmatprep.subr.mxu0 0.0
      %7152 = vmatpush1.msra.mxu0 0.0
      %7153 = vmatprep.subr.mxu0 0.0
      %7154 = vmatpush1.msra.mxu0 0.0
      %7155 = vmatprep.subr.mxu0 0.0
      %7156 = vmatpush1.msra.mxu0 0.0
      %7157 = vmatprep.subr.mxu0 0.0
      %7158 = vmatpush1.msra.mxu0 0.0
      %7159 = vmatprep.subr.mxu0 0.0
      %7160 = vmatpush1.msra.mxu0 0.0
      %7161 = vmatprep.subr.mxu0 0.0
      %7162 = vmatpush1.msra.mxu0 0.0
      %7163 = vmatprep.subr.mxu0 0.0
      %7164 = vmatpush1.msra.mxu0 0.0
      %7165 = vmatprep.subr.mxu0 0.0
      %7166 = vmatpush1.msra.mxu0 0.0
      %7167 = vmatprep.subr.mxu0 0.0
      %7168 = vmatpush1.msra.mxu0 0.0
      %7169 = vmatprep.subr.mxu0 0.0
      %7170 = vmatpush1.msra.mxu0 0.0
      %7171 = vmatprep.subr.mxu0 0.0
      %7172 = vmatpush1.msra.mxu0 0.0
      %7173 = vmatprep.subr.mxu0 0.0
      %7174 = vmatpush1.msra.mxu0 0.0
      %7175 = vmatprep.subr.mxu0 0.0
      %7176 = vmatpush1.msra.mxu0 0.0
      %7177 = vmatprep.subr.mxu0 0.0
      %7178 = vmatpush1.msra.mxu0 0.0
      %7179 = vmatprep.subr.mxu0 0.0
      %7180 = vmatpush1.msra.mxu0 0.0
      %7181 = vmatprep.subr.mxu0 0.0
      %7182 = vmatpush1.msra.mxu0 0.0
      %7183 = vmatprep.subr.mxu0 0.0
      %7184 = vmatpush1.msra.mxu0 0.0
      %7185 = vmatprep.subr.mxu0 0.0
      %7186 = vmatpush1.msra.mxu0 0.0
      %7187 = vmatprep.subr.mxu0 0.0
      %7188 = vmatpush1.msra.mxu0 0.0
      %7189 = vmatprep.subr.mxu0 0.0
      %7190 = vmatpush1.msra.mxu0 0.0
      %7191 = vmatprep.mubr.f32.mxu0 0.0
      %7192 = vmatmul.mubr.f32.gmra.mrb[0].mxu0 %v7125
      %v7193 = vpop.f32.mrb[0].mxu0
      %v7194 = vadd.f32 0.0, %v7193
      %v7195 = vpop.f32.mrb[0].mxu0
      %7196 = vdwg.mxu0
      %v7198 = vsel %vm220, %v3758, 0
      %7200 = vmatprep.subr.mxu0 0.0
      %7201 = vmatpush1.msra.mxu0 %v3764
      %7202 = vmatprep.subr.mxu0 0.0
      %7203 = vmatpush1.msra.mxu0 %v3765
      %7204 = vmatprep.subr.mxu0 0.0
      %7205 = vmatpush1.msra.mxu0 0.0
      %7206 = vmatprep.subr.mxu0 0.0
      %7207 = vmatpush1.msra.mxu0 0.0
      %7208 = vmatprep.subr.mxu0 0.0
      %7209 = vmatpush1.msra.mxu0 0.0
      %7210 = vmatprep.subr.mxu0 0.0
      %7211 = vmatpush1.msra.mxu0 0.0
      %7212 = vmatprep.subr.mxu0 0.0
      %7213 = vmatpush1.msra.mxu0 0.0
      %7214 = vmatprep.subr.mxu0 0.0
      %7215 = vmatpush1.msra.mxu0 0.0
      %7216 = vmatprep.subr.mxu0 0.0
      %7217 = vmatpush1.msra.mxu0 0.0
      %7218 = vmatprep.subr.mxu0 0.0
      %7219 = vmatpush1.msra.mxu0 0.0
      %7220 = vmatprep.subr.mxu0 0.0
      %7221 = vmatpush1.msra.mxu0 0.0
      %7222 = vmatprep.subr.mxu0 0.0
      %7223 = vmatpush1.msra.mxu0 0.0
      %7224 = vmatprep.subr.mxu0 0.0
      %7225 = vmatpush1.msra.mxu0 0.0
      %7226 = vmatprep.subr.mxu0 0.0
      %7227 = vmatpush1.msra.mxu0 0.0
      %7228 = vmatprep.subr.mxu0 0.0
      %7229 = vmatpush1.msra.mxu0 0.0
      %7230 = vmatprep.subr.mxu0 0.0
      %7231 = vmatpush1.msra.mxu0 0.0
      %7232 = vmatprep.subr.mxu0 0.0
      %7233 = vmatpush1.msra.mxu0 0.0
      %7234 = vmatprep.subr.mxu0 0.0
      %7235 = vmatpush1.msra.mxu0 0.0
      %7236 = vmatprep.subr.mxu0 0.0
      %7237 = vmatpush1.msra.mxu0 0.0
      %7238 = vmatprep.subr.mxu0 0.0
      %7239 = vmatpush1.msra.mxu0 0.0
      %7240 = vmatprep.subr.mxu0 0.0
      %7241 = vmatpush1.msra.mxu0 0.0
      %7242 = vmatprep.subr.mxu0 0.0
      %7243 = vmatpush1.msra.mxu0 0.0
      %7244 = vmatprep.subr.mxu0 0.0
      %7245 = vmatpush1.msra.mxu0 0.0
      %7246 = vmatprep.subr.mxu0 0.0
      %7247 = vmatpush1.msra.mxu0 0.0
      %7248 = vmatprep.subr.mxu0 0.0
      %7249 = vmatpush1.msra.mxu0 0.0
      %7250 = vmatprep.subr.mxu0 0.0
      %7251 = vmatpush1.msra.mxu0 0.0
      %7252 = vmatprep.subr.mxu0 0.0
      %7253 = vmatpush1.msra.mxu0 0.0
      %7254 = vmatprep.subr.mxu0 0.0
      %7255 = vmatpush1.msra.mxu0 0.0
      %7256 = vmatprep.subr.mxu0 0.0
      %7257 = vmatpush1.msra.mxu0 0.0
      %7258 = vmatprep.subr.mxu0 0.0
      %7259 = vmatpush1.msra.mxu0 0.0
      %7260 = vmatprep.subr.mxu0 0.0
      %7261 = vmatpush1.msra.mxu0 0.0
      %7262 = vmatprep.subr.mxu0 0.0
      %7263 = vmatpush1.msra.mxu0 0.0
      %7264 = vmatprep.mubr.f32.mxu0 0.0
      %7265 = vmatmul.mubr.f32.gmra.mrb[0].mxu0 %v7198
      %v7266 = vpop.f32.mrb[0].mxu0
      %v7267 = vadd.f32 0.0, %v7266
      %v7268 = vpop.f32.mrb[0].mxu0
      %7269 = vdwg.mxu0
      %v7271 = vsel %vm220, %v2478, 0
      %7273 = vmatprep.subr.mxu0 0.0
      %7274 = vmatpush1.msra.mxu0 %v3761
      %7275 = vmatprep.subr.mxu0 0.0
      %7276 = vmatpush1.msra.mxu0 %v3762
      %7277 = vmatprep.subr.mxu0 0.0
      %7278 = vmatpush1.msra.mxu0 0.0
      %7279 = vmatprep.subr.mxu0 0.0
      %7280 = vmatpush1.msra.mxu0 0.0
      %7281 = vmatprep.subr.mxu0 0.0
      %7282 = vmatpush1.msra.mxu0 0.0
      %7283 = vmatprep.subr.mxu0 0.0
      %7284 = vmatpush1.msra.mxu0 0.0
      %7285 = vmatprep.subr.mxu0 0.0
      %7286 = vmatpush1.msra.mxu0 0.0
      %7287 = vmatprep.subr.mxu0 0.0
      %7288 = vmatpush1.msra.mxu0 0.0
      %7289 = vmatprep.subr.mxu0 0.0
      %7290 = vmatpush1.msra.mxu0 0.0
      %7291 = vmatprep.subr.mxu0 0.0
      %7292 = vmatpush1.msra.mxu0 0.0
      %7293 = vmatprep.subr.mxu0 0.0
      %7294 = vmatpush1.msra.mxu0 0.0
      %7295 = vmatprep.subr.mxu0 0.0
      %7296 = vmatpush1.msra.mxu0 0.0
      %7297 = vmatprep.subr.mxu0 0.0
      %7298 = vmatpush1.msra.mxu0 0.0
      %7299 = vmatprep.subr.mxu0 0.0
      %7300 = vmatpush1.msra.mxu0 0.0
      %7301 = vmatprep.subr.mxu0 0.0
      %7302 = vmatpush1.msra.mxu0 0.0
      %7303 = vmatprep.subr.mxu0 0.0
      %7304 = vmatpush1.msra.mxu0 0.0
      %7305 = vmatprep.subr.mxu0 0.0
      %7306 = vmatpush1.msra.mxu0 0.0
      %7307 = vmatprep.subr.mxu0 0.0
      %7308 = vmatpush1.msra.mxu0 0.0
      %7309 = vmatprep.subr.mxu0 0.0
      %7310 = vmatpush1.msra.mxu0 0.0
      %7311 = vmatprep.subr.mxu0 0.0
      %7312 = vmatpush1.msra.mxu0 0.0
      %7313 = vmatprep.subr.mxu0 0.0
      %7314 = vmatpush1.msra.mxu0 0.0
      %7315 = vmatprep.subr.mxu0 0.0
      %7316 = vmatpush1.msra.mxu0 0.0
      %7317 = vmatprep.subr.mxu0 0.0
      %7318 = vmatpush1.msra.mxu0 0.0
      %7319 = vmatprep.subr.mxu0 0.0
      %7320 = vmatpush1.msra.mxu0 0.0
      %7321 = vmatprep.subr.mxu0 0.0
      %7322 = vmatpush1.msra.mxu0 0.0
      %7323 = vmatprep.subr.mxu0 0.0
      %7324 = vmatpush1.msra.mxu0 0.0
      %7325 = vmatprep.subr.mxu0 0.0
      %7326 = vmatpush1.msra.mxu0 0.0
      %7327 = vmatprep.subr.mxu0 0.0
      %7328 = vmatpush1.msra.mxu0 0.0
      %7329 = vmatprep.subr.mxu0 0.0
      %7330 = vmatpush1.msra.mxu0 0.0
      %7331 = vmatprep.subr.mxu0 0.0
      %7332 = vmatpush1.msra.mxu0 0.0
      %7333 = vmatprep.subr.mxu0 0.0
      %7334 = vmatpush1.msra.mxu0 0.0
      %7335 = vmatprep.subr.mxu0 0.0
      %7336 = vmatpush1.msra.mxu0 0.0
      %7337 = vmatprep.mubr.f32.mxu0 0.0
      %7338 = vmatmul.mubr.f32.gmra.mrb[0].mxu0 %v7271
      %v7339 = vpop.f32.mrb[0].mxu0
      %v7340 = vadd.f32 %v6172, %v7339
      %v7341 = vpop.f32.mrb[0].mxu0
      %7342 = vdwg.mxu0
      %v7344 = vsel %vm220, %v2563, 0
      %7346 = vmatprep.subr.mxu0 0.0
      %7347 = vmatpush1.msra.mxu0 %v3761
      %7348 = vmatprep.subr.mxu0 0.0
      %7349 = vmatpush1.msra.mxu0 %v3762
      %7350 = vmatprep.subr.mxu0 0.0
      %7351 = vmatpush1.msra.mxu0 0.0
      %7352 = vmatprep.subr.mxu0 0.0
      %7353 = vmatpush1.msra.mxu0 0.0
      %7354 = vmatprep.subr.mxu0 0.0
      %7355 = vmatpush1.msra.mxu0 0.0
      %7356 = vmatprep.subr.mxu0 0.0
      %7357 = vmatpush1.msra.mxu0 0.0
      %7358 = vmatprep.subr.mxu0 0.0
      %7359 = vmatpush1.msra.mxu0 0.0
      %7360 = vmatprep.subr.mxu0 0.0
      %7361 = vmatpush1.msra.mxu0 0.0
      %7362 = vmatprep.subr.mxu0 0.0
      %7363 = vmatpush1.msra.mxu0 0.0
      %7364 = vmatprep.subr.mxu0 0.0
      %7365 = vmatpush1.msra.mxu0 0.0
      %7366 = vmatprep.subr.mxu0 0.0
      %7367 = vmatpush1.msra.mxu0 0.0
      %7368 = vmatprep.subr.mxu0 0.0
      %7369 = vmatpush1.msra.mxu0 0.0
      %7370 = vmatprep.subr.mxu0 0.0
      %7371 = vmatpush1.msra.mxu0 0.0
      %7372 = vmatprep.subr.mxu0 0.0
      %7373 = vmatpush1.msra.mxu0 0.0
      %7374 = vmatprep.subr.mxu0 0.0
      %7375 = vmatpush1.msra.mxu0 0.0
      %7376 = vmatprep.subr.mxu0 0.0
      %7377 = vmatpush1.msra.mxu0 0.0
      %7378 = vmatprep.subr.mxu0 0.0
      %7379 = vmatpush1.msra.mxu0 0.0
      %7380 = vmatprep.subr.mxu0 0.0
      %7381 = vmatpush1.msra.mxu0 0.0
      %7382 = vmatprep.subr.mxu0 0.0
      %7383 = vmatpush1.msra.mxu0 0.0
      %7384 = vmatprep.subr.mxu0 0.0
      %7385 = vmatpush1.msra.mxu0 0.0
      %7386 = vmatprep.subr.mxu0 0.0
      %7387 = vmatpush1.msra.mxu0 0.0
      %7388 = vmatprep.subr.mxu0 0.0
      %7389 = vmatpush1.msra.mxu0 0.0
      %7390 = vmatprep.subr.mxu0 0.0
      %7391 = vmatpush1.msra.mxu0 0.0
      %7392 = vmatprep.subr.mxu0 0.0
      %7393 = vmatpush1.msra.mxu0 0.0
      %7394 = vmatprep.subr.mxu0 0.0
      %7395 = vmatpush1.msra.mxu0 0.0
      %7396 = vmatprep.subr.mxu0 0.0
      %7397 = vmatpush1.msra.mxu0 0.0
      %7398 = vmatprep.subr.mxu0 0.0
      %7399 = vmatpush1.msra.mxu0 0.0
      %7400 = vmatprep.subr.mxu0 0.0
      %7401 = vmatpush1.msra.mxu0 0.0
      %7402 = vmatprep.subr.mxu0 0.0
      %7403 = vmatpush1.msra.mxu0 0.0
      %7404 = vmatprep.subr.mxu0 0.0
      %7405 = vmatpush1.msra.mxu0 0.0
      %7406 = vmatprep.subr.mxu0 0.0
      %7407 = vmatpush1.msra.mxu0 0.0
      %7408 = vmatprep.subr.mxu0 0.0
      %7409 = vmatpush1.msra.mxu0 0.0
      %7410 = vmatprep.mubr.f32.mxu0 0.0
      %7411 = vmatmul.mubr.f32.gmra.mrb[0].mxu0 %v7344
      %v7412 = vpop.f32.mrb[0].mxu0
      %v7413 = vadd.f32 %v6245, %v7412
      %v7414 = vpop.f32.mrb[0].mxu0
      %7415 = vdwg.mxu0
      %v7417 = vsel %vm220, %v2648, 0
      %7419 = vmatprep.subr.mxu0 0.0
      %7420 = vmatpush1.msra.mxu0 %v3761
      %7421 = vmatprep.subr.mxu0 0.0
      %7422 = vmatpush1.msra.mxu0 %v3762
      %7423 = vmatprep.subr.mxu0 0.0
      %7424 = vmatpush1.msra.mxu0 0.0
      %7425 = vmatprep.subr.mxu0 0.0
      %7426 = vmatpush1.msra.mxu0 0.0
      %7427 = vmatprep.subr.mxu0 0.0
      %7428 = vmatpush1.msra.mxu0 0.0
      %7429 = vmatprep.subr.mxu0 0.0
      %7430 = vmatpush1.msra.mxu0 0.0
      %7431 = vmatprep.subr.mxu0 0.0
      %7432 = vmatpush1.msra.mxu0 0.0
      %7433 = vmatprep.subr.mxu0 0.0
      %7434 = vmatpush1.msra.mxu0 0.0
      %7435 = vmatprep.subr.mxu0 0.0
      %7436 = vmatpush1.msra.mxu0 0.0
      %7437 = vmatprep.subr.mxu0 0.0
      %7438 = vmatpush1.msra.mxu0 0.0
      %7439 = vmatprep.subr.mxu0 0.0
      %7440 = vmatpush1.msra.mxu0 0.0
      %7441 = vmatprep.subr.mxu0 0.0
      %7442 = vmatpush1.msra.mxu0 0.0
      %7443 = vmatprep.subr.mxu0 0.0
      %7444 = vmatpush1.msra.mxu0 0.0
      %7445 = vmatprep.subr.mxu0 0.0
      %7446 = vmatpush1.msra.mxu0 0.0
      %7447 = vmatprep.subr.mxu0 0.0
      %7448 = vmatpush1.msra.mxu0 0.0
      %7449 = vmatprep.subr.mxu0 0.0
      %7450 = vmatpush1.msra.mxu0 0.0
      %7451 = vmatprep.subr.mxu0 0.0
      %7452 = vmatpush1.msra.mxu0 0.0
      %7453 = vmatprep.subr.mxu0 0.0
      %7454 = vmatpush1.msra.mxu0 0.0
      %7455 = vmatprep.subr.mxu0 0.0
      %7456 = vmatpush1.msra.mxu0 0.0
      %7457 = vmatprep.subr.mxu0 0.0
      %7458 = vmatpush1.msra.mxu0 0.0
      %7459 = vmatprep.subr.mxu0 0.0
      %7460 = vmatpush1.msra.mxu0 0.0
      %7461 = vmatprep.subr.mxu0 0.0
      %7462 = vmatpush1.msra.mxu0 0.0
      %7463 = vmatprep.subr.mxu0 0.0
      %7464 = vmatpush1.msra.mxu0 0.0
      %7465 = vmatprep.subr.mxu0 0.0
      %7466 = vmatpush1.msra.mxu0 0.0
      %7467 = vmatprep.subr.mxu0 0.0
      %7468 = vmatpush1.msra.mxu0 0.0
      %7469 = vmatprep.subr.mxu0 0.0
      %7470 = vmatpush1.msra.mxu0 0.0
      %7471 = vmatprep.subr.mxu0 0.0
      %7472 = vmatpush1.msra.mxu0 0.0
      %7473 = vmatprep.subr.mxu0 0.0
      %7474 = vmatpush1.msra.mxu0 0.0
      %7475 = vmatprep.subr.mxu0 0.0
      %7476 = vmatpush1.msra.mxu0 0.0
      %7477 = vmatprep.subr.mxu0 0.0
      %7478 = vmatpush1.msra.mxu0 0.0
      %7479 = vmatprep.subr.mxu0 0.0
      %7480 = vmatpush1.msra.mxu0 0.0
      %7481 = vmatprep.subr.mxu0 0.0
      %7482 = vmatpush1.msra.mxu0 0.0
      %7483 = vmatprep.mubr.f32.mxu0 0.0
      %7484 = vmatmul.mubr.f32.gmra.mrb[0].mxu0 %v7417
      %v7485 = vpop.f32.mrb[0].mxu0
      %v7486 = vadd.f32 %v6318, %v7485
      %v7487 = vpop.f32.mrb[0].mxu0
      %7488 = vdwg.mxu0
      %v7490 = vsel %vm220, %v2733, 0
      %7492 = vmatprep.subr.mxu0 0.0
      %7493 = vmatpush1.msra.mxu0 %v3761
      %7494 = vmatprep.subr.mxu0 0.0
      %7495 = vmatpush1.msra.mxu0 %v3762
      %7496 = vmatprep.subr.mxu0 0.0
      %7497 = vmatpush1.msra.mxu0 0.0
      %7498 = vmatprep.subr.mxu0 0.0
      %7499 = vmatpush1.msra.mxu0 0.0
      %7500 = vmatprep.subr.mxu0 0.0
      %7501 = vmatpush1.msra.mxu0 0.0
      %7502 = vmatprep.subr.mxu0 0.0
      %7503 = vmatpush1.msra.mxu0 0.0
      %7504 = vmatprep.subr.mxu0 0.0
      %7505 = vmatpush1.msra.mxu0 0.0
      %7506 = vmatprep.subr.mxu0 0.0
      %7507 = vmatpush1.msra.mxu0 0.0
      %7508 = vmatprep.subr.mxu0 0.0
      %7509 = vmatpush1.msra.mxu0 0.0
      %7510 = vmatprep.subr.mxu0 0.0
      %7511 = vmatpush1.msra.mxu0 0.0
      %7512 = vmatprep.subr.mxu0 0.0
      %7513 = vmatpush1.msra.mxu0 0.0
      %7514 = vmatprep.subr.mxu0 0.0
      %7515 = vmatpush1.msra.mxu0 0.0
      %7516 = vmatprep.subr.mxu0 0.0
      %7517 = vmatpush1.msra.mxu0 0.0
      %7518 = vmatprep.subr.mxu0 0.0
      %7519 = vmatpush1.msra.mxu0 0.0
      %7520 = vmatprep.subr.mxu0 0.0
      %7521 = vmatpush1.msra.mxu0 0.0
      %7522 = vmatprep.subr.mxu0 0.0
      %7523 = vmatpush1.msra.mxu0 0.0
      %7524 = vmatprep.subr.mxu0 0.0
      %7525 = vmatpush1.msra.mxu0 0.0
      %7526 = vmatprep.subr.mxu0 0.0
      %7527 = vmatpush1.msra.mxu0 0.0
      %7528 = vmatprep.subr.mxu0 0.0
      %7529 = vmatpush1.msra.mxu0 0.0
      %7530 = vmatprep.subr.mxu0 0.0
      %7531 = vmatpush1.msra.mxu0 0.0
      %7532 = vmatprep.subr.mxu0 0.0
      %7533 = vmatpush1.msra.mxu0 0.0
      %7534 = vmatprep.subr.mxu0 0.0
      %7535 = vmatpush1.msra.mxu0 0.0
      %7536 = vmatprep.subr.mxu0 0.0
      %7537 = vmatpush1.msra.mxu0 0.0
      %7538 = vmatprep.subr.mxu0 0.0
      %7539 = vmatpush1.msra.mxu0 0.0
      %7540 = vmatprep.subr.mxu0 0.0
      %7541 = vmatpush1.msra.mxu0 0.0
      %7542 = vmatprep.subr.mxu0 0.0
      %7543 = vmatpush1.msra.mxu0 0.0
      %7544 = vmatprep.subr.mxu0 0.0
      %7545 = vmatpush1.msra.mxu0 0.0
      %7546 = vmatprep.subr.mxu0 0.0
      %7547 = vmatpush1.msra.mxu0 0.0
      %7548 = vmatprep.subr.mxu0 0.0
      %7549 = vmatpush1.msra.mxu0 0.0
      %7550 = vmatprep.subr.mxu0 0.0
      %7551 = vmatpush1.msra.mxu0 0.0
      %7552 = vmatprep.subr.mxu0 0.0
      %7553 = vmatpush1.msra.mxu0 0.0
      %7554 = vmatprep.subr.mxu0 0.0
      %7555 = vmatpush1.msra.mxu0 0.0
      %7556 = vmatprep.mubr.f32.mxu0 0.0
      %7557 = vmatmul.mubr.f32.gmra.mrb[0].mxu0 %v7490
      %v7558 = vpop.f32.mrb[0].mxu0
      %v7559 = vadd.f32 %v6391, %v7558
      %v7560 = vpop.f32.mrb[0].mxu0
      %7561 = vdwg.mxu0
      %v7563 = vsel %vm220, %v2818, 0
      %7565 = vmatprep.subr.mxu0 0.0
      %7566 = vmatpush1.msra.mxu0 %v3761
      %7567 = vmatprep.subr.mxu0 0.0
      %7568 = vmatpush1.msra.mxu0 %v3762
      %7569 = vmatprep.subr.mxu0 0.0
      %7570 = vmatpush1.msra.mxu0 0.0
      %7571 = vmatprep.subr.mxu0 0.0
      %7572 = vmatpush1.msra.mxu0 0.0
      %7573 = vmatprep.subr.mxu0 0.0
      %7574 = vmatpush1.msra.mxu0 0.0
      %7575 = vmatprep.subr.mxu0 0.0
      %7576 = vmatpush1.msra.mxu0 0.0
      %7577 = vmatprep.subr.mxu0 0.0
      %7578 = vmatpush1.msra.mxu0 0.0
      %7579 = vmatprep.subr.mxu0 0.0
      %7580 = vmatpush1.msra.mxu0 0.0
      %7581 = vmatprep.subr.mxu0 0.0
      %7582 = vmatpush1.msra.mxu0 0.0
      %7583 = vmatprep.subr.mxu0 0.0
      %7584 = vmatpush1.msra.mxu0 0.0
      %7585 = vmatprep.subr.mxu0 0.0
      %7586 = vmatpush1.msra.mxu0 0.0
      %7587 = vmatprep.subr.mxu0 0.0
      %7588 = vmatpush1.msra.mxu0 0.0
      %7589 = vmatprep.subr.mxu0 0.0
      %7590 = vmatpush1.msra.mxu0 0.0
      %7591 = vmatprep.subr.mxu0 0.0
      %7592 = vmatpush1.msra.mxu0 0.0
      %7593 = vmatprep.subr.mxu0 0.0
      %7594 = vmatpush1.msra.mxu0 0.0
      %7595 = vmatprep.subr.mxu0 0.0
      %7596 = vmatpush1.msra.mxu0 0.0
      %7597 = vmatprep.subr.mxu0 0.0
      %7598 = vmatpush1.msra.mxu0 0.0
      %7599 = vmatprep.subr.mxu0 0.0
      %7600 = vmatpush1.msra.mxu0 0.0
      %7601 = vmatprep.subr.mxu0 0.0
      %7602 = vmatpush1.msra.mxu0 0.0
      %7603 = vmatprep.subr.mxu0 0.0
      %7604 = vmatpush1.msra.mxu0 0.0
      %7605 = vmatprep.subr.mxu0 0.0
      %7606 = vmatpush1.msra.mxu0 0.0
      %7607 = vmatprep.subr.mxu0 0.0
      %7608 = vmatpush1.msra.mxu0 0.0
      %7609 = vmatprep.subr.mxu0 0.0
      %7610 = vmatpush1.msra.mxu0 0.0
      %7611 = vmatprep.subr.mxu0 0.0
      %7612 = vmatpush1.msra.mxu0 0.0
      %7613 = vmatprep.subr.mxu0 0.0
      %7614 = vmatpush1.msra.mxu0 0.0
      %7615 = vmatprep.subr.mxu0 0.0
      %7616 = vmatpush1.msra.mxu0 0.0
      %7617 = vmatprep.subr.mxu0 0.0
      %7618 = vmatpush1.msra.mxu0 0.0
      %7619 = vmatprep.subr.mxu0 0.0
      %7620 = vmatpush1.msra.mxu0 0.0
      %7621 = vmatprep.subr.mxu0 0.0
      %7622 = vmatpush1.msra.mxu0 0.0
      %7623 = vmatprep.subr.mxu0 0.0
      %7624 = vmatpush1.msra.mxu0 0.0
      %7625 = vmatprep.subr.mxu0 0.0
      %7626 = vmatpush1.msra.mxu0 0.0
      %7627 = vmatprep.subr.mxu0 0.0
      %7628 = vmatpush1.msra.mxu0 0.0
      %7629 = vmatprep.mubr.f32.mxu0 0.0
      %7630 = vmatmul.mubr.f32.gmra.mrb[0].mxu0 %v7563
      %v7631 = vpop.f32.mrb[0].mxu0
      %v7632 = vadd.f32 %v6464, %v7631
      %v7633 = vpop.f32.mrb[0].mxu0
      %7634 = vdwg.mxu0
      %v7636 = vsel %vm220, %v2903, 0
      %7638 = vmatprep.subr.mxu0 0.0
      %7639 = vmatpush1.msra.mxu0 %v3761
      %7640 = vmatprep.subr.mxu0 0.0
      %7641 = vmatpush1.msra.mxu0 %v3762
      %7642 = vmatprep.subr.mxu0 0.0
      %7643 = vmatpush1.msra.mxu0 0.0
      %7644 = vmatprep.subr.mxu0 0.0
      %7645 = vmatpush1.msra.mxu0 0.0
      %7646 = vmatprep.subr.mxu0 0.0
      %7647 = vmatpush1.msra.mxu0 0.0
      %7648 = vmatprep.subr.mxu0 0.0
      %7649 = vmatpush1.msra.mxu0 0.0
      %7650 = vmatprep.subr.mxu0 0.0
      %7651 = vmatpush1.msra.mxu0 0.0
      %7652 = vmatprep.subr.mxu0 0.0
      %7653 = vmatpush1.msra.mxu0 0.0
      %7654 = vmatprep.subr.mxu0 0.0
      %7655 = vmatpush1.msra.mxu0 0.0
      %7656 = vmatprep.subr.mxu0 0.0
      %7657 = vmatpush1.msra.mxu0 0.0
      %7658 = vmatprep.subr.mxu0 0.0
      %7659 = vmatpush1.msra.mxu0 0.0
      %7660 = vmatprep.subr.mxu0 0.0
      %7661 = vmatpush1.msra.mxu0 0.0
      %7662 = vmatprep.subr.mxu0 0.0
      %7663 = vmatpush1.msra.mxu0 0.0
      %7664 = vmatprep.subr.mxu0 0.0
      %7665 = vmatpush1.msra.mxu0 0.0
      %7666 = vmatprep.subr.mxu0 0.0
      %7667 = vmatpush1.msra.mxu0 0.0
      %7668 = vmatprep.subr.mxu0 0.0
      %7669 = vmatpush1.msra.mxu0 0.0
      %7670 = vmatprep.subr.mxu0 0.0
      %7671 = vmatpush1.msra.mxu0 0.0
      %7672 = vmatprep.subr.mxu0 0.0
      %7673 = vmatpush1.msra.mxu0 0.0
      %7674 = vmatprep.subr.mxu0 0.0
      %7675 = vmatpush1.msra.mxu0 0.0
      %7676 = vmatprep.subr.mxu0 0.0
      %7677 = vmatpush1.msra.mxu0 0.0
      %7678 = vmatprep.subr.mxu0 0.0
      %7679 = vmatpush1.msra.mxu0 0.0
      %7680 = vmatprep.subr.mxu0 0.0
      %7681 = vmatpush1.msra.mxu0 0.0
      %7682 = vmatprep.subr.mxu0 0.0
      %7683 = vmatpush1.msra.mxu0 0.0
      %7684 = vmatprep.subr.mxu0 0.0
      %7685 = vmatpush1.msra.mxu0 0.0
      %7686 = vmatprep.subr.mxu0 0.0
      %7687 = vmatpush1.msra.mxu0 0.0
      %7688 = vmatprep.subr.mxu0 0.0
      %7689 = vmatpush1.msra.mxu0 0.0
      %7690 = vmatprep.subr.mxu0 0.0
      %7691 = vmatpush1.msra.mxu0 0.0
      %7692 = vmatprep.subr.mxu0 0.0
      %7693 = vmatpush1.msra.mxu0 0.0
      %7694 = vmatprep.subr.mxu0 0.0
      %7695 = vmatpush1.msra.mxu0 0.0
      %7696 = vmatprep.subr.mxu0 0.0
      %7697 = vmatpush1.msra.mxu0 0.0
      %7698 = vmatprep.subr.mxu0 0.0
      %7699 = vmatpush1.msra.mxu0 0.0
      %7700 = vmatprep.subr.mxu0 0.0
      %7701 = vmatpush1.msra.mxu0 0.0
      %7702 = vmatprep.mubr.f32.mxu0 0.0
      %7703 = vmatmul.mubr.f32.gmra.mrb[0].mxu0 %v7636
      %v7704 = vpop.f32.mrb[0].mxu0
      %v7705 = vadd.f32 %v6537, %v7704
      %v7706 = vpop.f32.mrb[0].mxu0
      %7707 = vdwg.mxu0
      %v7709 = vsel %vm220, %v2988, 0
      %7711 = vmatprep.subr.mxu0 0.0
      %7712 = vmatpush1.msra.mxu0 %v3761
      %7713 = vmatprep.subr.mxu0 0.0
      %7714 = vmatpush1.msra.mxu0 %v3762
      %7715 = vmatprep.subr.mxu0 0.0
      %7716 = vmatpush1.msra.mxu0 0.0
      %7717 = vmatprep.subr.mxu0 0.0
      %7718 = vmatpush1.msra.mxu0 0.0
      %7719 = vmatprep.subr.mxu0 0.0
      %7720 = vmatpush1.msra.mxu0 0.0
      %7721 = vmatprep.subr.mxu0 0.0
      %7722 = vmatpush1.msra.mxu0 0.0
      %7723 = vmatprep.subr.mxu0 0.0
      %7724 = vmatpush1.msra.mxu0 0.0
      %7725 = vmatprep.subr.mxu0 0.0
      %7726 = vmatpush1.msra.mxu0 0.0
      %7727 = vmatprep.subr.mxu0 0.0
      %7728 = vmatpush1.msra.mxu0 0.0
      %7729 = vmatprep.subr.mxu0 0.0
      %7730 = vmatpush1.msra.mxu0 0.0
      %7731 = vmatprep.subr.mxu0 0.0
      %7732 = vmatpush1.msra.mxu0 0.0
      %7733 = vmatprep.subr.mxu0 0.0
      %7734 = vmatpush1.msra.mxu0 0.0
      %7735 = vmatprep.subr.mxu0 0.0
      %7736 = vmatpush1.msra.mxu0 0.0
      %7737 = vmatprep.subr.mxu0 0.0
      %7738 = vmatpush1.msra.mxu0 0.0
      %7739 = vmatprep.subr.mxu0 0.0
      %7740 = vmatpush1.msra.mxu0 0.0
      %7741 = vmatprep.subr.mxu0 0.0
      %7742 = vmatpush1.msra.mxu0 0.0
      %7743 = vmatprep.subr.mxu0 0.0
      %7744 = vmatpush1.msra.mxu0 0.0
      %7745 = vmatprep.subr.mxu0 0.0
      %7746 = vmatpush1.msra.mxu0 0.0
      %7747 = vmatprep.subr.mxu0 0.0
      %7748 = vmatpush1.msra.mxu0 0.0
      %7749 = vmatprep.subr.mxu0 0.0
      %7750 = vmatpush1.msra.mxu0 0.0
      %7751 = vmatprep.subr.mxu0 0.0
      %7752 = vmatpush1.msra.mxu0 0.0
      %7753 = vmatprep.subr.mxu0 0.0
      %7754 = vmatpush1.msra.mxu0 0.0
      %7755 = vmatprep.subr.mxu0 0.0
      %7756 = vmatpush1.msra.mxu0 0.0
      %7757 = vmatprep.subr.mxu0 0.0
      %7758 = vmatpush1.msra.mxu0 0.0
      %7759 = vmatprep.subr.mxu0 0.0
      %7760 = vmatpush1.msra.mxu0 0.0
      %7761 = vmatprep.subr.mxu0 0.0
      %7762 = vmatpush1.msra.mxu0 0.0
      %7763 = vmatprep.subr.mxu0 0.0
      %7764 = vmatpush1.msra.mxu0 0.0
      %7765 = vmatprep.subr.mxu0 0.0
      %7766 = vmatpush1.msra.mxu0 0.0
      %7767 = vmatprep.subr.mxu0 0.0
      %7768 = vmatpush1.msra.mxu0 0.0
      %7769 = vmatprep.subr.mxu0 0.0
      %7770 = vmatpush1.msra.mxu0 0.0
      %7771 = vmatprep.subr.mxu0 0.0
      %7772 = vmatpush1.msra.mxu0 0.0
      %7773 = vmatprep.subr.mxu0 0.0
      %7774 = vmatpush1.msra.mxu0 0.0
      %7775 = vmatprep.mubr.f32.mxu0 0.0
      %7776 = vmatmul.mubr.f32.gmra.mrb[0].mxu0 %v7709
      %v7777 = vpop.f32.mrb[0].mxu0
      %v7778 = vadd.f32 %v6610, %v7777
      %v7779 = vpop.f32.mrb[0].mxu0
      %7780 = vdwg.mxu0
      %v7782 = vsel %vm220, %v3073, 0
      %7784 = vmatprep.subr.mxu0 0.0
      %7785 = vmatpush1.msra.mxu0 %v3761
      %7786 = vmatprep.subr.mxu0 0.0
      %7787 = vmatpush1.msra.mxu0 %v3762
      %7788 = vmatprep.subr.mxu0 0.0
      %7789 = vmatpush1.msra.mxu0 0.0
      %7790 = vmatprep.subr.mxu0 0.0
      %7791 = vmatpush1.msra.mxu0 0.0
      %7792 = vmatprep.subr.mxu0 0.0
      %7793 = vmatpush1.msra.mxu0 0.0
      %7794 = vmatprep.subr.mxu0 0.0
      %7795 = vmatpush1.msra.mxu0 0.0
      %7796 = vmatprep.subr.mxu0 0.0
      %7797 = vmatpush1.msra.mxu0 0.0
      %7798 = vmatprep.subr.mxu0 0.0
      %7799 = vmatpush1.msra.mxu0 0.0
      %7800 = vmatprep.subr.mxu0 0.0
      %7801 = vmatpush1.msra.mxu0 0.0
      %7802 = vmatprep.subr.mxu0 0.0
      %7803 = vmatpush1.msra.mxu0 0.0
      %7804 = vmatprep.subr.mxu0 0.0
      %7805 = vmatpush1.msra.mxu0 0.0
      %7806 = vmatprep.subr.mxu0 0.0
      %7807 = vmatpush1.msra.mxu0 0.0
      %7808 = vmatprep.subr.mxu0 0.0
      %7809 = vmatpush1.msra.mxu0 0.0
      %7810 = vmatprep.subr.mxu0 0.0
      %7811 = vmatpush1.msra.mxu0 0.0
      %7812 = vmatprep.subr.mxu0 0.0
      %7813 = vmatpush1.msra.mxu0 0.0
      %7814 = vmatprep.subr.mxu0 0.0
      %7815 = vmatpush1.msra.mxu0 0.0
      %7816 = vmatprep.subr.mxu0 0.0
      %7817 = vmatpush1.msra.mxu0 0.0
      %7818 = vmatprep.subr.mxu0 0.0
      %7819 = vmatpush1.msra.mxu0 0.0
      %7820 = vmatprep.subr.mxu0 0.0
      %7821 = vmatpush1.msra.mxu0 0.0
      %7822 = vmatprep.subr.mxu0 0.0
      %7823 = vmatpush1.msra.mxu0 0.0
      %7824 = vmatprep.subr.mxu0 0.0
      %7825 = vmatpush1.msra.mxu0 0.0
      %7826 = vmatprep.subr.mxu0 0.0
      %7827 = vmatpush1.msra.mxu0 0.0
      %7828 = vmatprep.subr.mxu0 0.0
      %7829 = vmatpush1.msra.mxu0 0.0
      %7830 = vmatprep.subr.mxu0 0.0
      %7831 = vmatpush1.msra.mxu0 0.0
      %7832 = vmatprep.subr.mxu0 0.0
      %7833 = vmatpush1.msra.mxu0 0.0
      %7834 = vmatprep.subr.mxu0 0.0
      %7835 = vmatpush1.msra.mxu0 0.0
      %7836 = vmatprep.subr.mxu0 0.0
      %7837 = vmatpush1.msra.mxu0 0.0
      %7838 = vmatprep.subr.mxu0 0.0
      %7839 = vmatpush1.msra.mxu0 0.0
      %7840 = vmatprep.subr.mxu0 0.0
      %7841 = vmatpush1.msra.mxu0 0.0
      %7842 = vmatprep.subr.mxu0 0.0
      %7843 = vmatpush1.msra.mxu0 0.0
      %7844 = vmatprep.subr.mxu0 0.0
      %7845 = vmatpush1.msra.mxu0 0.0
      %7846 = vmatprep.subr.mxu0 0.0
      %7847 = vmatpush1.msra.mxu0 0.0
      %7848 = vmatprep.mubr.f32.mxu0 0.0
      %7849 = vmatmul.mubr.f32.gmra.mrb[0].mxu0 %v7782
      %v7850 = vpop.f32.mrb[0].mxu0
      %v7851 = vadd.f32 %v6683, %v7850
      %v7852 = vpop.f32.mrb[0].mxu0
      %7853 = vdwg.mxu0
      %v7855 = vsel %vm220, %v3158, 0
      %7857 = vmatprep.subr.mxu0 0.0
      %7858 = vmatpush1.msra.mxu0 %v3761
      %7859 = vmatprep.subr.mxu0 0.0
      %7860 = vmatpush1.msra.mxu0 %v3762
      %7861 = vmatprep.subr.mxu0 0.0
      %7862 = vmatpush1.msra.mxu0 0.0
      %7863 = vmatprep.subr.mxu0 0.0
      %7864 = vmatpush1.msra.mxu0 0.0
      %7865 = vmatprep.subr.mxu0 0.0
      %7866 = vmatpush1.msra.mxu0 0.0
      %7867 = vmatprep.subr.mxu0 0.0
      %7868 = vmatpush1.msra.mxu0 0.0
      %7869 = vmatprep.subr.mxu0 0.0
      %7870 = vmatpush1.msra.mxu0 0.0
      %7871 = vmatprep.subr.mxu0 0.0
      %7872 = vmatpush1.msra.mxu0 0.0
      %7873 = vmatprep.subr.mxu0 0.0
      %7874 = vmatpush1.msra.mxu0 0.0
      %7875 = vmatprep.subr.mxu0 0.0
      %7876 = vmatpush1.msra.mxu0 0.0
      %7877 = vmatprep.subr.mxu0 0.0
      %7878 = vmatpush1.msra.mxu0 0.0
      %7879 = vmatprep.subr.mxu0 0.0
      %7880 = vmatpush1.msra.mxu0 0.0
      %7881 = vmatprep.subr.mxu0 0.0
      %7882 = vmatpush1.msra.mxu0 0.0
      %7883 = vmatprep.subr.mxu0 0.0
      %7884 = vmatpush1.msra.mxu0 0.0
      %7885 = vmatprep.subr.mxu0 0.0
      %7886 = vmatpush1.msra.mxu0 0.0
      %7887 = vmatprep.subr.mxu0 0.0
      %7888 = vmatpush1.msra.mxu0 0.0
      %7889 = vmatprep.subr.mxu0 0.0
      %7890 = vmatpush1.msra.mxu0 0.0
      %7891 = vmatprep.subr.mxu0 0.0
      %7892 = vmatpush1.msra.mxu0 0.0
      %7893 = vmatprep.subr.mxu0 0.0
      %7894 = vmatpush1.msra.mxu0 0.0
      %7895 = vmatprep.subr.mxu0 0.0
      %7896 = vmatpush1.msra.mxu0 0.0
      %7897 = vmatprep.subr.mxu0 0.0
      %7898 = vmatpush1.msra.mxu0 0.0
      %7899 = vmatprep.subr.mxu0 0.0
      %7900 = vmatpush1.msra.mxu0 0.0
      %7901 = vmatprep.subr.mxu0 0.0
      %7902 = vmatpush1.msra.mxu0 0.0
      %7903 = vmatprep.subr.mxu0 0.0
      %7904 = vmatpush1.msra.mxu0 0.0
      %7905 = vmatprep.subr.mxu0 0.0
      %7906 = vmatpush1.msra.mxu0 0.0
      %7907 = vmatprep.subr.mxu0 0.0
      %7908 = vmatpush1.msra.mxu0 0.0
      %7909 = vmatprep.subr.mxu0 0.0
      %7910 = vmatpush1.msra.mxu0 0.0
      %7911 = vmatprep.subr.mxu0 0.0
      %7912 = vmatpush1.msra.mxu0 0.0
      %7913 = vmatprep.subr.mxu0 0.0
      %7914 = vmatpush1.msra.mxu0 0.0
      %7915 = vmatprep.subr.mxu0 0.0
      %7916 = vmatpush1.msra.mxu0 0.0
      %7917 = vmatprep.subr.mxu0 0.0
      %7918 = vmatpush1.msra.mxu0 0.0
      %7919 = vmatprep.subr.mxu0 0.0
      %7920 = vmatpush1.msra.mxu0 0.0
      %7921 = vmatprep.mubr.f32.mxu0 0.0
      %7922 = vmatmul.mubr.f32.gmra.mrb[0].mxu0 %v7855
      %v7923 = vpop.f32.mrb[0].mxu0
      %v7924 = vadd.f32 %v6756, %v7923
      %v7925 = vpop.f32.mrb[0].mxu0
      %7926 = vdwg.mxu0
      %v7928 = vsel %vm220, %v3243, 0
      %7930 = vmatprep.subr.mxu0 0.0
      %7931 = vmatpush1.msra.mxu0 %v3761
      %7932 = vmatprep.subr.mxu0 0.0
      %7933 = vmatpush1.msra.mxu0 %v3762
      %7934 = vmatprep.subr.mxu0 0.0
      %7935 = vmatpush1.msra.mxu0 0.0
      %7936 = vmatprep.subr.mxu0 0.0
      %7937 = vmatpush1.msra.mxu0 0.0
      %7938 = vmatprep.subr.mxu0 0.0
      %7939 = vmatpush1.msra.mxu0 0.0
      %7940 = vmatprep.subr.mxu0 0.0
      %7941 = vmatpush1.msra.mxu0 0.0
      %7942 = vmatprep.subr.mxu0 0.0
      %7943 = vmatpush1.msra.mxu0 0.0
      %7944 = vmatprep.subr.mxu0 0.0
      %7945 = vmatpush1.msra.mxu0 0.0
      %7946 = vmatprep.subr.mxu0 0.0
      %7947 = vmatpush1.msra.mxu0 0.0
      %7948 = vmatprep.subr.mxu0 0.0
      %7949 = vmatpush1.msra.mxu0 0.0
      %7950 = vmatprep.subr.mxu0 0.0
      %7951 = vmatpush1.msra.mxu0 0.0
      %7952 = vmatprep.subr.mxu0 0.0
      %7953 = vmatpush1.msra.mxu0 0.0
      %7954 = vmatprep.subr.mxu0 0.0
      %7955 = vmatpush1.msra.mxu0 0.0
      %7956 = vmatprep.subr.mxu0 0.0
      %7957 = vmatpush1.msra.mxu0 0.0
      %7958 = vmatprep.subr.mxu0 0.0
      %7959 = vmatpush1.msra.mxu0 0.0
      %7960 = vmatprep.subr.mxu0 0.0
      %7961 = vmatpush1.msra.mxu0 0.0
      %7962 = vmatprep.subr.mxu0 0.0
      %7963 = vmatpush1.msra.mxu0 0.0
      %7964 = vmatprep.subr.mxu0 0.0
      %7965 = vmatpush1.msra.mxu0 0.0
      %7966 = vmatprep.subr.mxu0 0.0
      %7967 = vmatpush1.msra.mxu0 0.0
      %7968 = vmatprep.subr.mxu0 0.0
      %7969 = vmatpush1.msra.mxu0 0.0
      %7970 = vmatprep.subr.mxu0 0.0
      %7971 = vmatpush1.msra.mxu0 0.0
      %7972 = vmatprep.subr.mxu0 0.0
      %7973 = vmatpush1.msra.mxu0 0.0
      %7974 = vmatprep.subr.mxu0 0.0
      %7975 = vmatpush1.msra.mxu0 0.0
      %7976 = vmatprep.subr.mxu0 0.0
      %7977 = vmatpush1.msra.mxu0 0.0
      %7978 = vmatprep.subr.mxu0 0.0
      %7979 = vmatpush1.msra.mxu0 0.0
      %7980 = vmatprep.subr.mxu0 0.0
      %7981 = vmatpush1.msra.mxu0 0.0
      %7982 = vmatprep.subr.mxu0 0.0
      %7983 = vmatpush1.msra.mxu0 0.0
      %7984 = vmatprep.subr.mxu0 0.0
      %7985 = vmatpush1.msra.mxu0 0.0
      %7986 = vmatprep.subr.mxu0 0.0
      %7987 = vmatpush1.msra.mxu0 0.0
      %7988 = vmatprep.subr.mxu0 0.0
      %7989 = vmatpush1.msra.mxu0 0.0
      %7990 = vmatprep.subr.mxu0 0.0
      %7991 = vmatpush1.msra.mxu0 0.0
      %7992 = vmatprep.subr.mxu0 0.0
      %7993 = vmatpush1.msra.mxu0 0.0
      %7994 = vmatprep.mubr.f32.mxu0 0.0
      %7995 = vmatmul.mubr.f32.gmra.mrb[0].mxu0 %v7928
      %v7996 = vpop.f32.mrb[0].mxu0
      %v7997 = vadd.f32 %v6829, %v7996
      %v7998 = vpop.f32.mrb[0].mxu0
      %7999 = vdwg.mxu0
      %v8001 = vsel %vm220, %v3328, 0
      %8003 = vmatprep.subr.mxu0 0.0
      %8004 = vmatpush1.msra.mxu0 %v3761
      %8005 = vmatprep.subr.mxu0 0.0
      %8006 = vmatpush1.msra.mxu0 %v3762
      %8007 = vmatprep.subr.mxu0 0.0
      %8008 = vmatpush1.msra.mxu0 0.0
      %8009 = vmatprep.subr.mxu0 0.0
      %8010 = vmatpush1.msra.mxu0 0.0
      %8011 = vmatprep.subr.mxu0 0.0
      %8012 = vmatpush1.msra.mxu0 0.0
      %8013 = vmatprep.subr.mxu0 0.0
      %8014 = vmatpush1.msra.mxu0 0.0
      %8015 = vmatprep.subr.mxu0 0.0
      %8016 = vmatpush1.msra.mxu0 0.0
      %8017 = vmatprep.subr.mxu0 0.0
      %8018 = vmatpush1.msra.mxu0 0.0
      %8019 = vmatprep.subr.mxu0 0.0
      %8020 = vmatpush1.msra.mxu0 0.0
      %8021 = vmatprep.subr.mxu0 0.0
      %8022 = vmatpush1.msra.mxu0 0.0
      %8023 = vmatprep.subr.mxu0 0.0
      %8024 = vmatpush1.msra.mxu0 0.0
      %8025 = vmatprep.subr.mxu0 0.0
      %8026 = vmatpush1.msra.mxu0 0.0
      %8027 = vmatprep.subr.mxu0 0.0
      %8028 = vmatpush1.msra.mxu0 0.0
      %8029 = vmatprep.subr.mxu0 0.0
      %8030 = vmatpush1.msra.mxu0 0.0
      %8031 = vmatprep.subr.mxu0 0.0
      %8032 = vmatpush1.msra.mxu0 0.0
      %8033 = vmatprep.subr.mxu0 0.0
      %8034 = vmatpush1.msra.mxu0 0.0
      %8035 = vmatprep.subr.mxu0 0.0
      %8036 = vmatpush1.msra.mxu0 0.0
      %8037 = vmatprep.subr.mxu0 0.0
      %8038 = vmatpush1.msra.mxu0 0.0
      %8039 = vmatprep.subr.mxu0 0.0
      %8040 = vmatpush1.msra.mxu0 0.0
      %8041 = vmatprep.subr.mxu0 0.0
      %8042 = vmatpush1.msra.mxu0 0.0
      %8043 = vmatprep.subr.mxu0 0.0
      %8044 = vmatpush1.msra.mxu0 0.0
      %8045 = vmatprep.subr.mxu0 0.0
      %8046 = vmatpush1.msra.mxu0 0.0
      %8047 = vmatprep.subr.mxu0 0.0
      %8048 = vmatpush1.msra.mxu0 0.0
      %8049 = vmatprep.subr.mxu0 0.0
      %8050 = vmatpush1.msra.mxu0 0.0
      %8051 = vmatprep.subr.mxu0 0.0
      %8052 = vmatpush1.msra.mxu0 0.0
      %8053 = vmatprep.subr.mxu0 0.0
      %8054 = vmatpush1.msra.mxu0 0.0
      %8055 = vmatprep.subr.mxu0 0.0
      %8056 = vmatpush1.msra.mxu0 0.0
      %8057 = vmatprep.subr.mxu0 0.0
      %8058 = vmatpush1.msra.mxu0 0.0
      %8059 = vmatprep.subr.mxu0 0.0
      %8060 = vmatpush1.msra.mxu0 0.0
      %8061 = vmatprep.subr.mxu0 0.0
      %8062 = vmatpush1.msra.mxu0 0.0
      %8063 = vmatprep.subr.mxu0 0.0
      %8064 = vmatpush1.msra.mxu0 0.0
      %8065 = vmatprep.subr.mxu0 0.0
      %8066 = vmatpush1.msra.mxu0 0.0
      %8067 = vmatprep.mubr.f32.mxu0 0.0
      %8068 = vmatmul.mubr.f32.gmra.mrb[0].mxu0 %v8001
      %v8069 = vpop.f32.mrb[0].mxu0
      %v8070 = vadd.f32 %v6902, %v8069
      %v8071 = vpop.f32.mrb[0].mxu0
      %8072 = vdwg.mxu0
      %v8074 = vsel %vm220, %v3413, 0
      %8076 = vmatprep.subr.mxu0 0.0
      %8077 = vmatpush1.msra.mxu0 %v3761
      %8078 = vmatprep.subr.mxu0 0.0
      %8079 = vmatpush1.msra.mxu0 %v3762
      %8080 = vmatprep.subr.mxu0 0.0
      %8081 = vmatpush1.msra.mxu0 0.0
      %8082 = vmatprep.subr.mxu0 0.0
      %8083 = vmatpush1.msra.mxu0 0.0
      %8084 = vmatprep.subr.mxu0 0.0
      %8085 = vmatpush1.msra.mxu0 0.0
      %8086 = vmatprep.subr.mxu0 0.0
      %8087 = vmatpush1.msra.mxu0 0.0
      %8088 = vmatprep.subr.mxu0 0.0
      %8089 = vmatpush1.msra.mxu0 0.0
      %8090 = vmatprep.subr.mxu0 0.0
      %8091 = vmatpush1.msra.mxu0 0.0
      %8092 = vmatprep.subr.mxu0 0.0
      %8093 = vmatpush1.msra.mxu0 0.0
      %8094 = vmatprep.subr.mxu0 0.0
      %8095 = vmatpush1.msra.mxu0 0.0
      %8096 = vmatprep.subr.mxu0 0.0
      %8097 = vmatpush1.msra.mxu0 0.0
      %8098 = vmatprep.subr.mxu0 0.0
      %8099 = vmatpush1.msra.mxu0 0.0
      %8100 = vmatprep.subr.mxu0 0.0
      %8101 = vmatpush1.msra.mxu0 0.0
      %8102 = vmatprep.subr.mxu0 0.0
      %8103 = vmatpush1.msra.mxu0 0.0
      %8104 = vmatprep.subr.mxu0 0.0
      %8105 = vmatpush1.msra.mxu0 0.0
      %8106 = vmatprep.subr.mxu0 0.0
      %8107 = vmatpush1.msra.mxu0 0.0
      %8108 = vmatprep.subr.mxu0 0.0
      %8109 = vmatpush1.msra.mxu0 0.0
      %8110 = vmatprep.subr.mxu0 0.0
      %8111 = vmatpush1.msra.mxu0 0.0
      %8112 = vmatprep.subr.mxu0 0.0
      %8113 = vmatpush1.msra.mxu0 0.0
      %8114 = vmatprep.subr.mxu0 0.0
      %8115 = vmatpush1.msra.mxu0 0.0
      %8116 = vmatprep.subr.mxu0 0.0
      %8117 = vmatpush1.msra.mxu0 0.0
      %8118 = vmatprep.subr.mxu0 0.0
      %8119 = vmatpush1.msra.mxu0 0.0
      %8120 = vmatprep.subr.mxu0 0.0
      %8121 = vmatpush1.msra.mxu0 0.0
      %8122 = vmatprep.subr.mxu0 0.0
      %8123 = vmatpush1.msra.mxu0 0.0
      %8124 = vmatprep.subr.mxu0 0.0
      %8125 = vmatpush1.msra.mxu0 0.0
      %8126 = vmatprep.subr.mxu0 0.0
      %8127 = vmatpush1.msra.mxu0 0.0
      %8128 = vmatprep.subr.mxu0 0.0
      %8129 = vmatpush1.msra.mxu0 0.0
      %8130 = vmatprep.subr.mxu0 0.0
      %8131 = vmatpush1.msra.mxu0 0.0
      %8132 = vmatprep.subr.mxu0 0.0
      %8133 = vmatpush1.msra.mxu0 0.0
      %8134 = vmatprep.subr.mxu0 0.0
      %8135 = vmatpush1.msra.mxu0 0.0
      %8136 = vmatprep.subr.mxu0 0.0
      %8137 = vmatpush1.msra.mxu0 0.0
      %8138 = vmatprep.subr.mxu0 0.0
      %8139 = vmatpush1.msra.mxu0 0.0
      %8140 = vmatprep.mubr.f32.mxu0 0.0
      %8141 = vmatmul.mubr.f32.gmra.mrb[0].mxu0 %v8074
      %v8142 = vpop.f32.mrb[0].mxu0
      %v8143 = vadd.f32 %v6975, %v8142
      %v8144 = vpop.f32.mrb[0].mxu0
      %8145 = vdwg.mxu0
      %v8147 = vsel %vm220, %v3498, 0
      %8149 = vmatprep.subr.mxu0 0.0
      %8150 = vmatpush1.msra.mxu0 %v3761
      %8151 = vmatprep.subr.mxu0 0.0
      %8152 = vmatpush1.msra.mxu0 %v3762
      %8153 = vmatprep.subr.mxu0 0.0
      %8154 = vmatpush1.msra.mxu0 0.0
      %8155 = vmatprep.subr.mxu0 0.0
      %8156 = vmatpush1.msra.mxu0 0.0
      %8157 = vmatprep.subr.mxu0 0.0
      %8158 = vmatpush1.msra.mxu0 0.0
      %8159 = vmatprep.subr.mxu0 0.0
      %8160 = vmatpush1.msra.mxu0 0.0
      %8161 = vmatprep.subr.mxu0 0.0
      %8162 = vmatpush1.msra.mxu0 0.0
      %8163 = vmatprep.subr.mxu0 0.0
      %8164 = vmatpush1.msra.mxu0 0.0
      %8165 = vmatprep.subr.mxu0 0.0
      %8166 = vmatpush1.msra.mxu0 0.0
      %8167 = vmatprep.subr.mxu0 0.0
      %8168 = vmatpush1.msra.mxu0 0.0
      %8169 = vmatprep.subr.mxu0 0.0
      %8170 = vmatpush1.msra.mxu0 0.0
      %8171 = vmatprep.subr.mxu0 0.0
      %8172 = vmatpush1.msra.mxu0 0.0
      %8173 = vmatprep.subr.mxu0 0.0
      %8174 = vmatpush1.msra.mxu0 0.0
      %8175 = vmatprep.subr.mxu0 0.0
      %8176 = vmatpush1.msra.mxu0 0.0
      %8177 = vmatprep.subr.mxu0 0.0
      %8178 = vmatpush1.msra.mxu0 0.0
      %8179 = vmatprep.subr.mxu0 0.0
      %8180 = vmatpush1.msra.mxu0 0.0
      %8181 = vmatprep.subr.mxu0 0.0
      %8182 = vmatpush1.msra.mxu0 0.0
      %8183 = vmatprep.subr.mxu0 0.0
      %8184 = vmatpush1.msra.mxu0 0.0
      %8185 = vmatprep.subr.mxu0 0.0
      %8186 = vmatpush1.msra.mxu0 0.0
      %8187 = vmatprep.subr.mxu0 0.0
      %8188 = vmatpush1.msra.mxu0 0.0
      %8189 = vmatprep.subr.mxu0 0.0
      %8190 = vmatpush1.msra.mxu0 0.0
      %8191 = vmatprep.subr.mxu0 0.0
      %8192 = vmatpush1.msra.mxu0 0.0
      %8193 = vmatprep.subr.mxu0 0.0
      %8194 = vmatpush1.msra.mxu0 0.0
      %8195 = vmatprep.subr.mxu0 0.0
      %8196 = vmatpush1.msra.mxu0 0.0
      %8197 = vmatprep.subr.mxu0 0.0
      %8198 = vmatpush1.msra.mxu0 0.0
      %8199 = vmatprep.subr.mxu0 0.0
      %8200 = vmatpush1.msra.mxu0 0.0
      %8201 = vmatprep.subr.mxu0 0.0
      %8202 = vmatpush1.msra.mxu0 0.0
      %8203 = vmatprep.subr.mxu0 0.0
      %8204 = vmatpush1.msra.mxu0 0.0
      %8205 = vmatprep.subr.mxu0 0.0
      %8206 = vmatpush1.msra.mxu0 0.0
      %8207 = vmatprep.subr.mxu0 0.0
      %8208 = vmatpush1.msra.mxu0 0.0
      %8209 = vmatprep.subr.mxu0 0.0
      %8210 = vmatpush1.msra.mxu0 0.0
      %8211 = vmatprep.subr.mxu0 0.0
      %8212 = vmatpush1.msra.mxu0 0.0
      %8213 = vmatprep.mubr.f32.mxu0 0.0
      %8214 = vmatmul.mubr.f32.gmra.mrb[0].mxu0 %v8147
      %v8215 = vpop.f32.mrb[0].mxu0
      %v8216 = vadd.f32 %v7048, %v8215
      %v8217 = vpop.f32.mrb[0].mxu0
      %8218 = vdwg.mxu0
      %v8220 = vsel %vm220, %v3583, 0
      %8222 = vmatprep.subr.mxu0 0.0
      %8223 = vmatpush1.msra.mxu0 %v3761
      %8224 = vmatprep.subr.mxu0 0.0
      %8225 = vmatpush1.msra.mxu0 %v3762
      %8226 = vmatprep.subr.mxu0 0.0
      %8227 = vmatpush1.msra.mxu0 0.0
      %8228 = vmatprep.subr.mxu0 0.0
      %8229 = vmatpush1.msra.mxu0 0.0
      %8230 = vmatprep.subr.mxu0 0.0
      %8231 = vmatpush1.msra.mxu0 0.0
      %8232 = vmatprep.subr.mxu0 0.0
      %8233 = vmatpush1.msra.mxu0 0.0
      %8234 = vmatprep.subr.mxu0 0.0
      %8235 = vmatpush1.msra.mxu0 0.0
      %8236 = vmatprep.subr.mxu0 0.0
      %8237 = vmatpush1.msra.mxu0 0.0
      %8238 = vmatprep.subr.mxu0 0.0
      %8239 = vmatpush1.msra.mxu0 0.0
      %8240 = vmatprep.subr.mxu0 0.0
      %8241 = vmatpush1.msra.mxu0 0.0
      %8242 = vmatprep.subr.mxu0 0.0
      %8243 = vmatpush1.msra.mxu0 0.0
      %8244 = vmatprep.subr.mxu0 0.0
      %8245 = vmatpush1.msra.mxu0 0.0
      %8246 = vmatprep.subr.mxu0 0.0
      %8247 = vmatpush1.msra.mxu0 0.0
      %8248 = vmatprep.subr.mxu0 0.0
      %8249 = vmatpush1.msra.mxu0 0.0
      %8250 = vmatprep.subr.mxu0 0.0
      %8251 = vmatpush1.msra.mxu0 0.0
      %8252 = vmatprep.subr.mxu0 0.0
      %8253 = vmatpush1.msra.mxu0 0.0
      %8254 = vmatprep.subr.mxu0 0.0
      %8255 = vmatpush1.msra.mxu0 0.0
      %8256 = vmatprep.subr.mxu0 0.0
      %8257 = vmatpush1.msra.mxu0 0.0
      %8258 = vmatprep.subr.mxu0 0.0
      %8259 = vmatpush1.msra.mxu0 0.0
      %8260 = vmatprep.subr.mxu0 0.0
      %8261 = vmatpush1.msra.mxu0 0.0
      %8262 = vmatprep.subr.mxu0 0.0
      %8263 = vmatpush1.msra.mxu0 0.0
      %8264 = vmatprep.subr.mxu0 0.0
      %8265 = vmatpush1.msra.mxu0 0.0
      %8266 = vmatprep.subr.mxu0 0.0
      %8267 = vmatpush1.msra.mxu0 0.0
      %8268 = vmatprep.subr.mxu0 0.0
      %8269 = vmatpush1.msra.mxu0 0.0
      %8270 = vmatprep.subr.mxu0 0.0
      %8271 = vmatpush1.msra.mxu0 0.0
      %8272 = vmatprep.subr.mxu0 0.0
      %8273 = vmatpush1.msra.mxu0 0.0
      %8274 = vmatprep.subr.mxu0 0.0
      %8275 = vmatpush1.msra.mxu0 0.0
      %8276 = vmatprep.subr.mxu0 0.0
      %8277 = vmatpush1.msra.mxu0 0.0
      %8278 = vmatprep.subr.mxu0 0.0
      %8279 = vmatpush1.msra.mxu0 0.0
      %8280 = vmatprep.subr.mxu0 0.0
      %8281 = vmatpush1.msra.mxu0 0.0
      %8282 = vmatprep.subr.mxu0 0.0
      %8283 = vmatpush1.msra.mxu0 0.0
      %8284 = vmatprep.subr.mxu0 0.0
      %8285 = vmatpush1.msra.mxu0 0.0
      %8286 = vmatprep.mubr.f32.mxu0 0.0
      %8287 = vmatmul.mubr.f32.gmra.mrb[0].mxu0 %v8220
      %v8288 = vpop.f32.mrb[0].mxu0
      %v8289 = vadd.f32 %v7121, %v8288
      %v8290 = vpop.f32.mrb[0].mxu0
      %8291 = vdwg.mxu0
      %v8293 = vsel %vm220, %v3668, 0
      %8295 = vmatprep.subr.mxu0 0.0
      %8296 = vmatpush1.msra.mxu0 %v3761
      %8297 = vmatprep.subr.mxu0 0.0
      %8298 = vmatpush1.msra.mxu0 %v3762
      %8299 = vmatprep.subr.mxu0 0.0
      %8300 = vmatpush1.msra.mxu0 0.0
      %8301 = vmatprep.subr.mxu0 0.0
      %8302 = vmatpush1.msra.mxu0 0.0
      %8303 = vmatprep.subr.mxu0 0.0
      %8304 = vmatpush1.msra.mxu0 0.0
      %8305 = vmatprep.subr.mxu0 0.0
      %8306 = vmatpush1.msra.mxu0 0.0
      %8307 = vmatprep.subr.mxu0 0.0
      %8308 = vmatpush1.msra.mxu0 0.0
      %8309 = vmatprep.subr.mxu0 0.0
      %8310 = vmatpush1.msra.mxu0 0.0
      %8311 = vmatprep.subr.mxu0 0.0
      %8312 = vmatpush1.msra.mxu0 0.0
      %8313 = vmatprep.subr.mxu0 0.0
      %8314 = vmatpush1.msra.mxu0 0.0
      %8315 = vmatprep.subr.mxu0 0.0
      %8316 = vmatpush1.msra.mxu0 0.0
      %8317 = vmatprep.subr.mxu0 0.0
      %8318 = vmatpush1.msra.mxu0 0.0
      %8319 = vmatprep.subr.mxu0 0.0
      %8320 = vmatpush1.msra.mxu0 0.0
      %8321 = vmatprep.subr.mxu0 0.0
      %8322 = vmatpush1.msra.mxu0 0.0
      %8323 = vmatprep.subr.mxu0 0.0
      %8324 = vmatpush1.msra.mxu0 0.0
      %8325 = vmatprep.subr.mxu0 0.0
      %8326 = vmatpush1.msra.mxu0 0.0
      %8327 = vmatprep.subr.mxu0 0.0
      %8328 = vmatpush1.msra.mxu0 0.0
      %8329 = vmatprep.subr.mxu0 0.0
      %8330 = vmatpush1.msra.mxu0 0.0
      %8331 = vmatprep.subr.mxu0 0.0
      %8332 = vmatpush1.msra.mxu0 0.0
      %8333 = vmatprep.subr.mxu0 0.0
      %8334 = vmatpush1.msra.mxu0 0.0
      %8335 = vmatprep.subr.mxu0 0.0
      %8336 = vmatpush1.msra.mxu0 0.0
      %8337 = vmatprep.subr.mxu0 0.0
      %8338 = vmatpush1.msra.mxu0 0.0
      %8339 = vmatprep.subr.mxu0 0.0
      %8340 = vmatpush1.msra.mxu0 0.0
      %8341 = vmatprep.subr.mxu0 0.0
      %8342 = vmatpush1.msra.mxu0 0.0
      %8343 = vmatprep.subr.mxu0 0.0
      %8344 = vmatpush1.msra.mxu0 0.0
      %8345 = vmatprep.subr.mxu0 0.0
      %8346 = vmatpush1.msra.mxu0 0.0
      %8347 = vmatprep.subr.mxu0 0.0
      %8348 = vmatpush1.msra.mxu0 0.0
      %8349 = vmatprep.subr.mxu0 0.0
      %8350 = vmatpush1.msra.mxu0 0.0
      %8351 = vmatprep.subr.mxu0 0.0
      %8352 = vmatpush1.msra.mxu0 0.0
      %8353 = vmatprep.subr.mxu0 0.0
      %8354 = vmatpush1.msra.mxu0 0.0
      %8355 = vmatprep.subr.mxu0 0.0
      %8356 = vmatpush1.msra.mxu0 0.0
      %8357 = vmatprep.subr.mxu0 0.0
      %8358 = vmatpush1.msra.mxu0 0.0
      %8359 = vmatprep.mubr.f32.mxu0 0.0
      %8360 = vmatmul.mubr.f32.gmra.mrb[0].mxu0 %v8293
      %v8361 = vpop.f32.mrb[0].mxu0
      %v8362 = vadd.f32 %v7194, %v8361
      %v8363 = vpop.f32.mrb[0].mxu0
      %8364 = vdwg.mxu0
      %v8366 = vsel %vm220, %v3753, 0
      %8368 = vmatprep.subr.mxu0 0.0
      %8369 = vmatpush1.msra.mxu0 %v3761
      %8370 = vmatprep.subr.mxu0 0.0
      %8371 = vmatpush1.msra.mxu0 %v3762
      %8372 = vmatprep.subr.mxu0 0.0
      %8373 = vmatpush1.msra.mxu0 0.0
      %8374 = vmatprep.subr.mxu0 0.0
      %8375 = vmatpush1.msra.mxu0 0.0
      %8376 = vmatprep.subr.mxu0 0.0
      %8377 = vmatpush1.msra.mxu0 0.0
      %8378 = vmatprep.subr.mxu0 0.0
      %8379 = vmatpush1.msra.mxu0 0.0
      %8380 = vmatprep.subr.mxu0 0.0
      %8381 = vmatpush1.msra.mxu0 0.0
      %8382 = vmatprep.subr.mxu0 0.0
      %8383 = vmatpush1.msra.mxu0 0.0
      %8384 = vmatprep.subr.mxu0 0.0
      %8385 = vmatpush1.msra.mxu0 0.0
      %8386 = vmatprep.subr.mxu0 0.0
      %8387 = vmatpush1.msra.mxu0 0.0
      %8388 = vmatprep.subr.mxu0 0.0
      %8389 = vmatpush1.msra.mxu0 0.0
      %8390 = vmatprep.subr.mxu0 0.0
      %8391 = vmatpush1.msra.mxu0 0.0
      %8392 = vmatprep.subr.mxu0 0.0
      %8393 = vmatpush1.msra.mxu0 0.0
      %8394 = vmatprep.subr.mxu0 0.0
      %8395 = vmatpush1.msra.mxu0 0.0
      %8396 = vmatprep.subr.mxu0 0.0
      %8397 = vmatpush1.msra.mxu0 0.0
      %8398 = vmatprep.subr.mxu0 0.0
      %8399 = vmatpush1.msra.mxu0 0.0
      %8400 = vmatprep.subr.mxu0 0.0
      %8401 = vmatpush1.msra.mxu0 0.0
      %8402 = vmatprep.subr.mxu0 0.0
      %8403 = vmatpush1.msra.mxu0 0.0
      %8404 = vmatprep.subr.mxu0 0.0
      %8405 = vmatpush1.msra.mxu0 0.0
      %8406 = vmatprep.subr.mxu0 0.0
      %8407 = vmatpush1.msra.mxu0 0.0
      %8408 = vmatprep.subr.mxu0 0.0
      %8409 = vmatpush1.msra.mxu0 0.0
      %8410 = vmatprep.subr.mxu0 0.0
      %8411 = vmatpush1.msra.mxu0 0.0
      %8412 = vmatprep.subr.mxu0 0.0
      %8413 = vmatpush1.msra.mxu0 0.0
      %8414 = vmatprep.subr.mxu0 0.0
      %8415 = vmatpush1.msra.mxu0 0.0
      %8416 = vmatprep.subr.mxu0 0.0
      %8417 = vmatpush1.msra.mxu0 0.0
      %8418 = vmatprep.subr.mxu0 0.0
      %8419 = vmatpush1.msra.mxu0 0.0
      %8420 = vmatprep.subr.mxu0 0.0
      %8421 = vmatpush1.msra.mxu0 0.0
      %8422 = vmatprep.subr.mxu0 0.0
      %8423 = vmatpush1.msra.mxu0 0.0
      %8424 = vmatprep.subr.mxu0 0.0
      %8425 = vmatpush1.msra.mxu0 0.0
      %8426 = vmatprep.subr.mxu0 0.0
      %8427 = vmatpush1.msra.mxu0 0.0
      %8428 = vmatprep.subr.mxu0 0.0
      %8429 = vmatpush1.msra.mxu0 0.0
      %8430 = vmatprep.subr.mxu0 0.0
      %8431 = vmatpush1.msra.mxu0 0.0
      %8432 = vmatprep.mubr.f32.mxu0 0.0
      %8433 = vmatmul.mubr.f32.gmra.mrb[0].mxu0 %v8366
      %v8434 = vpop.f32.mrb[0].mxu0
      %v8435 = vadd.f32 %v7267, %v8434
      %v8436 = vpop.f32.mrb[0].mxu0
      %8437 = vdwg.mxu0
      %8454 = vrot.lane.b32.xlu0 %v7340, 32
      %v8455 = vpop.permute.xlu0 %8454
      %8456 = vrot.lane.b32.xlu0 %v7413, 32
      %v8457 = vpop.permute.xlu0 %8456
      %8458 = vrot.lane.b32.xlu0 %v7486, 32
      %v8459 = vpop.permute.xlu0 %8458
      %8460 = vrot.lane.b32.xlu0 %v7559, 32
      %v8461 = vpop.permute.xlu0 %8460
      %8462 = vrot.lane.b32.xlu0 %v7632, 32
      %v8463 = vpop.permute.xlu0 %8462
      %8464 = vrot.lane.b32.xlu0 %v7705, 32
      %v8465 = vpop.permute.xlu0 %8464
      %8466 = vrot.lane.b32.xlu0 %v7778, 32
      %v8467 = vpop.permute.xlu0 %8466
      %8468 = vrot.lane.b32.xlu0 %v7851, 32
      %v8469 = vpop.permute.xlu0 %8468
      %8470 = vrot.lane.b32.xlu0 %v7924, 32
      %v8471 = vpop.permute.xlu0 %8470
      %8472 = vrot.lane.b32.xlu0 %v7997, 32
      %v8473 = vpop.permute.xlu0 %8472
      %8474 = vrot.lane.b32.xlu0 %v8070, 32
      %v8475 = vpop.permute.xlu0 %8474
      %8476 = vrot.lane.b32.xlu0 %v8143, 32
      %v8477 = vpop.permute.xlu0 %8476
      %8478 = vrot.lane.b32.xlu0 %v8216, 32
      %v8479 = vpop.permute.xlu0 %8478
      %8480 = vrot.lane.b32.xlu0 %v8289, 32
      %v8481 = vpop.permute.xlu0 %8480
      %8482 = vrot.lane.b32.xlu0 %v8362, 32
      %v8483 = vpop.permute.xlu0 %8482
      %8484 = vrot.lane.b32.xlu0 %v8435, 32
      %v8485 = vpop.permute.xlu0 %8484
      %vm8502 = vcmask 261120
      %v8503 = vsel %vm8502, %v5004, %v8455
      %v8504 = vsel %vm8502, %v5077, %v8457
      %v8505 = vsel %vm8502, %v5150, %v8459
      %v8506 = vsel %vm8502, %v5223, %v8461
      %v8507 = vsel %vm8502, %v5296, %v8463
      %v8508 = vsel %vm8502, %v5369, %v8465
      %v8509 = vsel %vm8502, %v5442, %v8467
      %v8510 = vsel %vm8502, %v5515, %v8469
      %v8511 = vsel %vm8502, %v5588, %v8471
      %v8512 = vsel %vm8502, %v5661, %v8473
      %v8513 = vsel %vm8502, %v5734, %v8475
      %v8514 = vsel %vm8502, %v5807, %v8477
      %v8515 = vsel %vm8502, %v5880, %v8479
      %v8516 = vsel %vm8502, %v5953, %v8481
      %v8517 = vsel %vm8502, %v6026, %v8483
      %v8518 = vsel %vm8502, %v6099, %v8485
      %v8535 = vrot.slane %v8504, 7
      %vm8536 = vcmask 1041409
      %v8537 = vsel %vm8536, %v8535, %v8503
      %v8538 = vrot.slane %v8505, 6
      %vm8539 = vcmask 1042434
      %v8540 = vsel %vm8539, %v8538, %v8537
      %v8541 = vrot.slane %v8506, 5
      %vm8542 = vcmask 1043459
      %v8543 = vsel %vm8542, %v8541, %v8540
      %v8544 = vrot.slane %v8507, 4
      %vm8545 = vcmask 1044484
      %v8546 = vsel %vm8545, %v8544, %v8543
      %v8547 = vrot.slane %v8508, 3
      %vm8548 = vcmask 1045509
      %v8549 = vsel %vm8548, %v8547, %v8546
      %v8550 = vrot.slane %v8509, 2
      %vm8551 = vcmask 1046534
      %v8552 = vsel %vm8551, %v8550, %v8549
      %v8553 = vrot.slane %v8510, 1
      %vm8554 = vcmask 1047559
      %v8555 = vsel %vm8554, %v8553, %v8552
      %v8556 = vrot.slane %v8512, 7
      %v8557 = vsel %vm8536, %v8556, %v8511
      %v8558 = vrot.slane %v8513, 6
      %v8559 = vsel %vm8539, %v8558, %v8557
      %v8560 = vrot.slane %v8514, 5
      %v8561 = vsel %vm8542, %v8560, %v8559
      %v8562 = vrot.slane %v8515, 4
      %v8563 = vsel %vm8545, %v8562, %v8561
      %v8564 = vrot.slane %v8516, 3
      %v8565 = vsel %vm8548, %v8564, %v8563
      %v8566 = vrot.slane %v8517, 2
      %v8567 = vsel %vm8551, %v8566, %v8565
      %v8568 = vrot.slane %v8518, 1
      %v8569 = vsel %vm8554, %v8568, %v8567
      %vm8572 = vcmask 523264
      %8573 = vst.msk [vmem:[%s197] sm:$0xff] %vm8572, %v8555
      %8574 = vst.msk [vmem:[%s197 + $0x8] sm:$0xff] %vm8572, %v8569
      %v8575 = vsel %vm8539, %v8535, %v8503
      %v8576 = vsel %vm8542, %v8538, %v8575
      %v8577 = vsel %vm8545, %v8541, %v8576
      %v8578 = vsel %vm8548, %v8544, %v8577
      %v8579 = vsel %vm8551, %v8547, %v8578
      %v8580 = vsel %vm8554, %v8550, %v8579
      %v8581 = vsel %vm8536, %v8511, %v8553
      %v8582 = vsel %vm8539, %v8556, %v8581
      %v8583 = vsel %vm8542, %v8558, %v8582
      %v8584 = vsel %vm8545, %v8560, %v8583
      %v8585 = vsel %vm8548, %v8562, %v8584
      %v8586 = vsel %vm8551, %v8564, %v8585
      %v8587 = vsel %vm8554, %v8566, %v8586
      %s8591 = scalar_lea.vmem %s197, 16
      %vm8592 = vcmask 523265
      %8593 = vst.msk [vmem:[%s8591 - $0x1] sm:$0xfe] %vm8592, %v8580
      %8594 = vst.msk [vmem:[%s8591 + $0x7] sm:$0xff] %vm8572, %v8587
      %vm8595 = vcmask 516096
      %8596 = vst.msk [vmem:[%s8591 + $0xf] sm:$0x1] %vm8595, %v8568
      %v8597 = vsel %vm8542, %v8535, %v8503
      %v8598 = vsel %vm8545, %v8538, %v8597
      %v8599 = vsel %vm8548, %v8541, %v8598
      %v8600 = vsel %vm8551, %v8544, %v8599
      %v8601 = vsel %vm8554, %v8547, %v8600
      %v8602 = vsel %vm8536, %v8553, %v8550
      %v8603 = vsel %vm8539, %v8511, %v8602
      %v8604 = vsel %vm8542, %v8556, %v8603
      %v8605 = vsel %vm8545, %v8558, %v8604
      %v8606 = vsel %vm8548, %v8560, %v8605
      %v8607 = vsel %vm8551, %v8562, %v8606
      %v8608 = vsel %vm8554, %v8564, %v8607
      %v8609 = vsel %vm8536, %v8568, %v8566
      %s8613 = scalar_lea.vmem %s197, 32
      %vm8614 = vcmask 523266
      %8615 = vst.msk [vmem:[%s8613 - $0x2] sm:$0xfc] %vm8614, %v8601
      %8616 = vst.msk [vmem:[%s8613 + $0x6] sm:$0xff] %vm8572, %v8608
      %vm8617 = vcmask 517120
      %8618 = vst.msk [vmem:[%s8613 + $0xe] sm:$0x3] %vm8617, %v8609
      %v8619 = vsel %vm8545, %v8535, %v8503
      %v8620 = vsel %vm8548, %v8538, %v8619
      %v8621 = vsel %vm8551, %v8541, %v8620
      %v8622 = vsel %vm8554, %v8544, %v8621
      %v8623 = vsel %vm8536, %v8550, %v8547
      %v8624 = vsel %vm8539, %v8553, %v8623
      %v8625 = vsel %vm8542, %v8511, %v8624
      %v8626 = vsel %vm8545, %v8556, %v8625
      %v8627 = vsel %vm8548, %v8558, %v8626
      %v8628 = vsel %vm8551, %v8560, %v8627
      %v8629 = vsel %vm8554, %v8562, %v8628
      %v8630 = vsel %vm8536, %v8566, %v8564
      %v8631 = vsel %vm8539, %v8568, %v8630
      %s8635 = scalar_lea.vmem %s197, 48
      %vm8636 = vcmask 523267
      %8637 = vst.msk [vmem:[%s8635 - $0x3] sm:$0xf8] %vm8636, %v8622
      %8638 = vst.msk [vmem:[%s8635 + $0x5] sm:$0xff] %vm8572, %v8629
      %vm8639 = vcmask 518144
      %8640 = vst.msk [vmem:[%s8635 + $0xd] sm:$0x7] %vm8639, %v8631
      %v8641 = vsel %vm8548, %v8535, %v8503
      %v8642 = vsel %vm8551, %v8538, %v8641
      %v8643 = vsel %vm8554, %v8541, %v8642
      %v8644 = vsel %vm8536, %v8547, %v8544
      %v8645 = vsel %vm8539, %v8550, %v8644
      %v8646 = vsel %vm8542, %v8553, %v8645
      %v8647 = vsel %vm8545, %v8511, %v8646
      %v8648 = vsel %vm8548, %v8556, %v8647
      %v8649 = vsel %vm8551, %v8558, %v8648
      %v8650 = vsel %vm8554, %v8560, %v8649
      %v8651 = vsel %vm8536, %v8564, %v8562
      %v8652 = vsel %vm8539, %v8566, %v8651
      %v8653 = vsel %vm8542, %v8568, %v8652
      %s8657 = scalar_lea.vmem %s197, 64
      %vm8658 = vcmask 523268
      %8659 = vst.msk [vmem:[%s8657 - $0x4] sm:$0xf0] %vm8658, %v8643
      %8660 = vst.msk [vmem:[%s8657 + $0x4] sm:$0xff] %vm8572, %v8650
      %vm8661 = vcmask 519168
      %8662 = vst.msk [vmem:[%s8657 + $0xc] sm:$0xf] %vm8661, %v8653
      %v8663 = vsel %vm8551, %v8535, %v8503
      %v8664 = vsel %vm8554, %v8538, %v8663
      %v8665 = vsel %vm8536, %v8544, %v8541
      %v8666 = vsel %vm8539, %v8547, %v8665
      %v8667 = vsel %vm8542, %v8550, %v8666
      %v8668 = vsel %vm8545, %v8553, %v8667
      %v8669 = vsel %vm8548, %v8511, %v8668
      %v8670 = vsel %vm8551, %v8556, %v8669
      %v8671 = vsel %vm8554, %v8558, %v8670
      %v8672 = vsel %vm8536, %v8562, %v8560
      %v8673 = vsel %vm8539, %v8564, %v8672
      %v8674 = vsel %vm8542, %v8566, %v8673
      %v8675 = vsel %vm8545, %v8568, %v8674
      %s8679 = scalar_lea.vmem %s197, 80
      %vm8680 = vcmask 523269
      %8681 = vst.msk [vmem:[%s8679 - $0x5] sm:$0xe0] %vm8680, %v8664
      %8682 = vst.msk [vmem:[%s8679 + $0x3] sm:$0xff] %vm8572, %v8671
      %vm8683 = vcmask 520192
      %8684 = vst.msk [vmem:[%s8679 + $0xb] sm:$0x1f] %vm8683, %v8675
      %v8685 = vsel %vm8554, %v8535, %v8503
      %v8686 = vsel %vm8536, %v8541, %v8538
      %v8687 = vsel %vm8539, %v8544, %v8686
      %v8688 = vsel %vm8542, %v8547, %v8687
      %v8689 = vsel %vm8545, %v8550, %v8688
      %v8690 = vsel %vm8548, %v8553, %v8689
      %v8691 = vsel %vm8551, %v8511, %v8690
      %v8692 = vsel %vm8554, %v8556, %v8691
      %v8693 = vsel %vm8536, %v8560, %v8558
      %v8694 = vsel %vm8539, %v8562, %v8693
      %v8695 = vsel %vm8542, %v8564, %v8694
      %v8696 = vsel %vm8545, %v8566, %v8695
      %v8697 = vsel %vm8548, %v8568, %v8696
      %s8701 = scalar_lea.vmem %s197, 96
      %vm8702 = vcmask 523270
      %8703 = vst.msk [vmem:[%s8701 - $0x6] sm:$0xc0] %vm8702, %v8685
      %8704 = vst.msk [vmem:[%s8701 + $0x2] sm:$0xff] %vm8572, %v8692
      %vm8705 = vcmask 521216
      %8706 = vst.msk [vmem:[%s8701 + $0xa] sm:$0x3f] %vm8705, %v8697
      %v8707 = vsel %vm8536, %v8538, %v8535
      %v8708 = vsel %vm8539, %v8541, %v8707
      %v8709 = vsel %vm8542, %v8544, %v8708
      %v8710 = vsel %vm8545, %v8547, %v8709
      %v8711 = vsel %vm8548, %v8550, %v8710
      %v8712 = vsel %vm8551, %v8553, %v8711
      %v8713 = vsel %vm8554, %v8511, %v8712
      %v8714 = vsel %vm8536, %v8558, %v8556
      %v8715 = vsel %vm8539, %v8560, %v8714
      %v8716 = vsel %vm8542, %v8562, %v8715
      %v8717 = vsel %vm8545, %v8564, %v8716
      %v8718 = vsel %vm8548, %v8566, %v8717
      %v8719 = vsel %vm8551, %v8568, %v8718
      %s8723 = scalar_lea.vmem %s197, 112
      %vm8724 = vcmask 523271
      %8725 = vst.msk [vmem:[%s8723 - $0x7] sm:$0x80] %vm8724, %v8503
      %8726 = vst.msk [vmem:[%s8723 + $0x1] sm:$0xff] %vm8572, %v8713
      %vm8727 = vcmask 522240
      %8728 = vst.msk [vmem:[%s8723 + $0x9] sm:$0x7f] %vm8727, %v8719
      %p8729 = scmp.lt.s32.totalorder %s15, 1
      %s8730 = scalar_select %p8729, %s15, 1
      %s8731 = smul.addr %s8730, 16
      %s8732 = smul.addr %s8731, 8
      %s8733 = scalar_lea.vmem %s4, %s8732
      // Predicated region
      $region37: #{conv_transpose2d_pallas.1} parent=35 // pred_check
        %p8734 = pneg %p122
      $region38: #{conv_transpose2d_pallas.1} parent=35 // pred_check_branch
        %8736 = sbr.rel (%p8734) target = $region40
      $region39: #{conv_transpose2d_pallas.1} parent=35 // pred_region
        _
      $region40: #{conv_transpose2d_pallas.1} parent=35 // pred_fallthru
        _
    $region36: #{conv_transpose2d_pallas.1} parent=5 // pred_fallthru
      _
    %p8737 = scmp.le.s32.totalorder 2, %s10
    // Predicated region
    $region41: #{conv_transpose2d_pallas.1} parent=5 // pred_check
      %p8738 = pneg %p8737
    $region42: #{conv_transpose2d_pallas.1} parent=5 // pred_check_branch
      %8740 = sbr.rel (%p8738) target = $region44
    $region43: #{conv_transpose2d_pallas.1} parent=5 // pred_region
      %s8741 = ssub.s32 %s10, 2
      // Predicated region
      $region45: #{conv_transpose2d_pallas.1} parent=43 // pred_check
        %p8742 = pneg %p128
      $region46: #{conv_transpose2d_pallas.1} parent=43 // pred_check_branch
        %8744 = sbr.rel (%p8742) target = $region48
      $region47: #{conv_transpose2d_pallas.1} parent=43 // pred_region
        %p8745 = scmp.lt.s32.totalorder %s16, 1
        %s8746 = scalar_select %p8745, %s16, 1
        %s8747 = smul.addr %s8746, 16
        %s8748 = smul.addr %s8747, 8
        %s8749 = scalar_lea.vmem %s4, %s8748
      $region48: #{conv_transpose2d_pallas.1} parent=43 // pred_fallthru
        _
    $region44: #{conv_transpose2d_pallas.1} parent=5 // pred_fallthru
      _
  $region6: #{conv_transpose2d_pallas.1} parent=0 // loop_footer
    %s14 = sadd.s32 1, %s10
  $region7: #{conv_transpose2d_pallas.1} parent=0 // loop_footer_branch
    %9 = sbr.rel target = $region3
  $region8: #{conv_transpose2d_pallas.1} parent=0 // loop_exit
    _

</llo_original>
